<compile_context>
chip_gen: v7x
topology: tpu7x:2x2x1
jax: 0.10.0
libtpu: 0.0.40
codegen_flags: <defaults>
</compile_context>

<pallas_src>
import functools

import jax
import jax.numpy as jnp
from jax.experimental import pallas as pl
from jax.experimental.pallas import tpu as pltpu

_BN_EPS = 1e-5


# ----------------------------- in-kernel helpers ------------------------------

def _sel_matrix(l_in, l_out, stride, offset):
    """M[m, l] = 1.0 iff m == l*stride + offset.
    Rows that fall outside [0, l_in) simply do not exist -> implicit zero padding."""
    rows = jax.lax.broadcasted_iota(jnp.int32, (l_in, l_out), 0)
    cols = jax.lax.broadcasted_iota(jnp.int32, (l_in, l_out), 1)
    return jnp.where(rows == cols * stride + offset, 1.0, 0.0).astype(jnp.float32)


def _scatter_matrix(l_in, k_total, k):
    """M[l, j] = 1.0 iff j == l*k_total + k (ConvTranspose1d interleave, K == stride)."""
    rows = jax.lax.broadcasted_iota(jnp.int32, (l_in, l_in * k_total), 0)
    cols = jax.lax.broadcasted_iota(jnp.int32, (l_in, l_in * k_total), 1)
    return jnp.where(cols == rows * k_total + k, 1.0, 0.0).astype(jnp.float32)


def _conv(w_ref, v_ref, x, p):
    """nn.Conv1d with zero padding; each tap is W_k @ (x @ Sel_k) on the MXU."""
    l_in = x.shape[1]
    k, pad, stride = p['k'], p['pad'], p['stride']
    cin, cout = p['cin'], p['cout']
    l_out = (l_in + 2 * pad - k) // stride + 1
    acc = jnp.zeros((cout, l_out), jnp.float32)
    for kk in range(k):
        w_k = w_ref[0:cout, p['off'] + kk * cin: p['off'] + (kk + 1) * cin]
        tap = jnp.dot(x, _sel_matrix(l_in, l_out, stride, kk - pad),
                      preferred_element_type=jnp.float32)
        acc = acc + jnp.dot(w_k, tap, preferred_element_type=jnp.float32)
    return acc + v_ref[0:cout, p['b']:p['b'] + 1]


def _convtranspose(w_ref, v_ref, x, p):
    """nn.ConvTranspose1d, non-overlapping case (kernel_size == stride, output_padding=0):
    out[:, l*K + k] = W_k^T @ x[:, l] + b.  Interleave is a matmul with a scatter matrix."""
    l_in = x.shape[1]
    k, cin, cout = p['k'], p['cin'], p['cout']
    out = jnp.zeros((cout, l_in * k), jnp.float32)
    for kk in range(k):
        w_k = w_ref[0:cout, p['off'] + kk * cin: p['off'] + (kk + 1) * cin]
        t = jnp.dot(w_k, x, preferred_element_type=jnp.float32)          # (Cout, L)
        out = out + jnp.dot(t, _scatter_matrix(l_in, k, kk),
                            preferred_element_type=jnp.float32)          # (Cout, K*L)
    return out + v_ref[0:cout, p['b']:p['b'] + 1]


def _relu_bn(v_ref, x, p):
    """ReLU followed by eval-mode BatchNorm1d, pre-folded to per-channel scale/shift."""
    c = p['c']
    scale = v_ref[0:c, p['scale']:p['scale'] + 1]
    shift = v_ref[0:c, p['shift']:p['shift'] + 1]
    return jnp.maximum(x, 0.0) * scale + shift


def _maxpool(x, pool_k, pool_s):
    """nn.MaxPool1d (no padding): elementwise max over P selected tap streams."""
    l_in = x.shape[1]
    l_out = (l_in - pool_k) // pool_s + 1
    out = jnp.dot(x, _sel_matrix(l_in, l_out, pool_s, 0),
                  preferred_element_type=jnp.float32)
    for p in range(1, pool_k):
        out = jnp.maximum(out, jnp.dot(x, _sel_matrix(l_in, l_out, pool_s, p),
                                       preferred_element_type=jnp.float32))
    return out


def _softplus(x):
    # Numerically stable; matches torch's thresholded softplus to f32 precision.
    return jnp.maximum(x, 0.0) + jnp.log(1.0 + jnp.exp(-jnp.abs(x)))


# ----------------------------- the single fused kernel ------------------------------

def _fused_forward_kernel(x_ref, w_ref, v_ref, *out_refs, plan):
    """One batch element per grid step; all activations stay in registers."""
    enc_refs, rec_ref = out_refs[:-1], out_refs[-1]

    t = x_ref[0]                                     # (C_in, L0)
    skips = []
    for st in plan['enc']:
        t = _conv(w_ref, v_ref, t, st['conv1'])
        t = _relu_bn(v_ref, t, st['bn1'])            # Dropout: identity (eval)
        t = _conv(w_ref, v_ref, t, st['conv2'])
        t = _maxpool(t, st['pool_k'], st['pool_s'])
        t = _relu_bn(v_ref, t, st['bn2'])            # Dropout: identity (eval)
        skips.append(t)
    for ref, val in zip(enc_refs, skips):
        ref[0] = val

    d = skips[-1]                                    # z = out[2]
    for st in plan['dec']:
        d = _relu_bn(v_ref, d, st['bn1'])
        d = _convtranspose(w_ref, v_ref, d, st['convt'])
        d = _relu_bn(v_ref, d, st['bn2'])
        d = _conv(w_ref, v_ref, d, st['conv'])
    rec_ref[0] = _softplus(d)


# ----------------------------- parameter packing (host-side, done once) ------------------------------

def pack_params(enc_params, dec_params, pool_k, pool_s, c_max):
    """Pack every weight/vector into two matrices so the kernel has only 3 inputs.
       wpack (c_max, Nw): each conv/convT tap's (Cout, Cin) block at a static column offset.
       vpack (c_max, Nv): one column per per-channel vector (bias / BN scale / BN shift).
       The returned `plan` holds only static Python ints (offsets / shapes)."""
    w_blocks, v_blocks = [], []
    w_cols = 0

    def add_tap(mat):
        nonlocal w_cols
        w_blocks.append((w_cols, mat))
        w_cols += int(mat.shape[1])

    def add_vec(vec):
        v_blocks.append(vec)
        return len(v_blocks) - 1

    def add_conv(w, b, stride=1):
        cout, cin, k = (int(s) for s in w.shape)
        off = w_cols
        for kk in range(k):
            add_tap(w[:, :, kk])                                  # (Cout, Cin)
        return dict(off=off, cin=cin, cout=cout, k=k, pad=(k - 1) // 2,
                    stride=int(stride), b=add_vec(b))

    def add_convt(w, b, stride):
        cin, cout, k = (int(s) for s in w.shape)
        if k != int(stride):
            # TODO(synk): general overlapping ConvTranspose1d (kernel_size != stride or
            # output_padding != 0) is not needed for this config and is not implemented.
            raise NotImplementedError("ConvTranspose1d requires kernel_size == stride")
        off = w_cols
        for kk in range(k):
            add_tap(jnp.transpose(w[:, :, kk]))                   # -> (Cout, Cin)
        return dict(off=off, cin=cin, cout=cout, k=k, b=add_vec(b))

    def add_bn(bn):
        scale = bn['gamma'] * jax.lax.rsqrt(bn['var'] + _BN_EPS)
        shift = bn['beta'] - bn['mean'] * scale
        return dict(c=int(scale.shape[0]), scale=add_vec(scale), shift=add_vec(shift))

    enc_plan = []
    for i, sp in enumerate(enc_params):
        enc_plan.append(dict(
            conv1=add_conv(sp['conv1_w'], sp['conv1_b']),
            bn1=add_bn(sp['bn1']),
            conv2=add_conv(sp['conv2_w'], sp['conv2_b']),
            pool_k=int(pool_k[i]), pool_s=int(pool_s[i]),
            bn2=add_bn(sp['bn2']),
        ))

    dec_plan = []
    for sp in dec_params:
        dec_plan.append(dict(
            bn1=add_bn(sp['bn1']),
            convt=add_convt(sp['convt_w'], sp['convt_b'], sp['pool_s']),
            bn2=add_bn(sp['bn2']),
            conv=add_conv(sp['conv_w'], sp['conv_b'], stride=sp['conv_s']),
        ))

    wpack = jnp.zeros((c_max, w_cols), jnp.float32)
    for col, mat in w_blocks:
        r, cc = mat.shape
        wpack = wpack.at[:r, col:col + cc].set(mat.astype(jnp.float32))
    vpack = jnp.zeros((c_max, len(v_blocks)), jnp.float32)
    for j, vec in enumerate(v_blocks):
        vpack = vpack.at[:vec.shape[0], j].set(vec.astype(jnp.float32))

    return wpack, vpack, dict(enc=enc_plan, dec=dec_plan)


def _activation_shapes(plan, l0):
    """Static (C, L) shapes of the three encoder outputs and the reconstruction."""
    l = l0
    enc_shapes = []
    for st in plan['enc']:
        for cv in (st['conv1'], st['conv2']):
            l = (l + 2 * cv['pad'] - cv['k']) // cv['stride'] + 1
        l = (l - st['pool_k']) // st['pool_s'] + 1
        enc_shapes.append((st['conv2']['cout'], l))
    out_c = None
    for st in plan['dec']:
        l = l * st['convt']['k']                      # K == stride, output_padding == 0
        cv = st['conv']
        l = (l + 2 * cv['pad'] - cv['k']) // cv['stride'] + 1
        out_c = cv['cout']
    return enc_shapes, (out_c, l)


# ----------------------------- forward wrapper ------------------------------

def make_forward(plan, wpack, vpack, flag=True):
    """Mirrors ConvAutoencoder.forward (eval mode, flag=config['train'])."""
    c_max, n_wcols = wpack.shape
    _, n_vcols = vpack.shape

    @jax.jit
    def forward(x):
        b, c, h, w = x.shape
        l0 = h * w
        xf = x.reshape(b, c, l0)                      # x.view(b, c, -1)
        enc_shapes, rec_shape = _activation_shapes(plan, l0)

        out_shape = tuple(jax.ShapeDtypeStruct((b, cc, ll), jnp.float32)
                          for cc, ll in enc_shapes)
        out_shape += (jax.ShapeDtypeStruct((b,) + rec_shape, jnp.float32),)
        out_specs = tuple(pl.BlockSpec((1, cc, ll), lambda i: (i, 0, 0))
                          for cc, ll in enc_shapes)
        out_specs += (pl.BlockSpec((1,) + rec_shape, lambda i: (i, 0, 0)),)

        results = pl.pallas_call(
            functools.partial(_fused_forward_kernel, plan=plan),
            out_shape=out_shape,
            grid=(b,),
            in_specs=[
                pl.BlockSpec((1, c, l0), lambda i: (i, 0, 0)),
                pl.BlockSpec((c_max, n_wcols), lambda i: (0, 0)),
                pl.BlockSpec((c_max, n_vcols), lambda i: (0, 0)),
            ],
            out_specs=out_specs,
            compiler_params=pltpu.CompilerParams(
                dimension_semantics=("parallel",)),
        )(xf, wpack, vpack)

        out = list(results[:-1])
        if not flag:
            return out                                # (decoder result is just dropped)
        return out, results[-1].reshape(b, c, h, w)

    return forward


# ----------------------------- parameters ------------------------------

def _bn_params(key, c):
    k1, k2, k3, k4 = jax.random.split(key, 4)
    return dict(
        gamma=1.0 + 0.1 * jax.random.normal(k1, (c,), jnp.float32),
        beta=0.1 * jax.random.normal(k2, (c,), jnp.float32),
        mean=0.1 * jax.random.normal(k3, (c,), jnp.float32),
        var=jax.random.uniform(k4, (c,), jnp.float32, minval=0.5, maxval=1.5),
    )


def init_params(key, in_channels, channels, conv_k, pool_k, pool_s, out_channels):
    enc, dec = [], []
    n = len(channels)
    # Encoder stages: Conv -> ReLU -> BN -> Dropout -> Conv -> MaxPool -> ReLU -> BN -> Dropout
    for i in range(n):
        cin = in_channels if i == 0 else channels[i - 1]
        ch = channels[i]
        key, k1, k2, k3, k4, k5, k6 = jax.random.split(key, 7)
        enc.append(dict(
            conv1_w=0.2 * jax.random.normal(k1, (ch, cin, conv_k[i]), jnp.float32),
            conv1_b=0.1 * jax.random.normal(k2, (ch,), jnp.float32),
            bn1=_bn_params(k3, ch),
            conv2_w=0.2 * jax.random.normal(k4, (ch, ch, conv_k[i]), jnp.float32),
            conv2_b=0.1 * jax.random.normal(k5, (ch,), jnp.float32),
            bn2=_bn_params(k6, ch),
        ))
    # Decoder stages: ReLU -> BN -> Dropout -> ConvTranspose -> ReLU -> BN -> Dropout -> Conv
    rch = list(reversed(channels))
    rck = list(reversed(conv_k))
    rpk = list(reversed(pool_k))
    for i in range(n):
        prev_ch = rch[i]
        new_ch = out_channels if i == n - 1 else rch[i + 1]
        key, k1, k2, k3, k4, k5, k6 = jax.random.split(key, 7)
        dec.append(dict(
            bn1=_bn_params(k1, prev_ch),
            convt_w=0.2 * jax.random.normal(k2, (prev_ch, prev_ch, rpk[i]), jnp.float32),
            convt_b=0.1 * jax.random.normal(k3, (prev_ch,), jnp.float32),
            bn2=_bn_params(k4, prev_ch),
            conv_w=0.2 * jax.random.normal(k5, (new_ch, prev_ch, rck[i]), jnp.float32),
            conv_b=0.1 * jax.random.normal(k6, (new_ch,), jnp.float32),
            pool_k=rpk[i],
            pool_s=pool_s[i],
            conv_k=rck[i],
            conv_s=1,
        ))
    return enc, dec


# ----------------------------- pure-JAX reference (correctness check) ------------------------------

def _ref_conv1d(x, w, b, stride, pad):
    B, Ci, L = x.shape
    Co, _, K = w.shape
    xp = jnp.pad(x, ((0, 0), (0, 0), (pad, pad)))
    Lo = (L + 2 * pad - K) // stride + 1
    cols = jnp.stack([xp[:, :, k:k + stride * (Lo - 1) + 1:stride] for k in range(K)], axis=-1)
    return jnp.einsum('bclk,ock->bol', cols, w) + b[None, :, None]


def _ref_convt1d(x, w, b):
    B, Ci, L = x.shape
    _, Co, K = w.shape
    y = jnp.einsum('bcl,cok->bolk', x, w).reshape(B, Co, L * K)
    return y + b[None, :, None]


def _ref_maxpool1d(x, P, s):
    B, C, L = x.shape
    Lo = (L - P) // s + 1
    return jnp.max(jnp.stack(
        [x[:, :, p:p + s * (Lo - 1) + 1:s] for p in range(P)], axis=0), axis=0)


def _ref_relu_bn(x, bn):
    xr = jnp.maximum(x, 0.0)
    scale = (bn['gamma'] / jnp.sqrt(bn['var'] + _BN_EPS))[None, :, None]
    return (xr - bn['mean'][None, :, None]) * scale + bn['beta'][None, :, None]


def _ref_forward(x, enc_params, dec_params, conv_k, pool_k, pool_s):
    b, c, h, w = x.shape
    t = x.reshape(b, c, h * w)
    out = []
    for i, sp in enumerate(enc_params):
        pad = (conv_k[i] - 1) // 2
        t = _ref_conv1d(t, sp['conv1_w'], sp['conv1_b'], 1, pad)
        t = _ref_relu_bn(t, sp['bn1'])
        t = _ref_conv1d(t, sp['conv2_w'], sp['conv2_b'], 1, pad)
        t = _ref_maxpool1d(t, pool_k[i], pool_s[i])
        t = _ref_relu_bn(t, sp['bn2'])
        out.append(t)
    d = out[2]
    for sp in dec_params:
        d = _ref_relu_bn(d, sp['bn1'])
        d = _ref_convt1d(d, sp['convt_w'], sp['convt_b'])
        d = _ref_relu_bn(d, sp['bn2'])
        d = _ref_conv1d(d, sp['conv_w'], sp['conv_b'], 1, (sp['conv_k'] - 1) // 2)
    d = jax.nn.softplus(d)
    return out, d.reshape(b, c, h, w)


# ----------------------------- main ------------------------------

if __name__ == "__main__":
    # Config: LR_size=4 -> input_size=16, spectral_bands=4, train=True,
    # AE: channels=[8,16,32], conv_kernel_sizes=[3,3,3], pool_kernel_sizes=[2,2,2],
    #     conv_strides=[1,1,1], pool_strides=[2,2,2], dropout=0.1 (eval -> identity).
    B, C, H, W = 2, 4, 4, 4
    channels = [8, 16, 32]
    conv_k = [3, 3, 3]
    pool_k = [2, 2, 2]
    pool_s = [2, 2, 2]

    key = jax.random.PRNGKey(0)
    kx, kp = jax.random.split(key)
    x = jax.random.normal(kx, (B, C, H, W), dtype=jnp.float32)
    enc_params, dec_params = init_params(kp, C, channels, conv_k, pool_k, pool_s, C)

    c_max = max([C] + channels)
    wpack, vpack, plan = pack_params(enc_params, dec_params, pool_k, pool_s, c_max)
    forward = make_forward(plan, wpack, vpack, flag=True)

    out, recon = forward(x)
    jax.block_until_ready(out)
    jax.block_until_ready(recon)

    ref_out, ref_recon = _ref_forward(x, enc_params, dec_params, conv_k, pool_k, pool_s)
    assert recon.shape == (B, C, H, W)
    for a, r in zip(out, ref_out):
        assert a.shape == r.shape
        assert jnp.allclose(a, r, atol=1e-3, rtol=1e-3), "encoder output mismatch"
    assert jnp.allclose(recon, ref_recon, atol=1e-3, rtol=1e-3), "decoder output mismatch"

    print("KERNEL_OK")
</pallas_src>

<mosaic_0001>
module attributes {stable_mosaic.version = 11 : i64} {
  func.func @_fused_forward_kernel(%arg0: i32, %arg1: memref<1x4x16xf32, #tpu.memory_space<vmem>>, %arg2: memref<32x532xf32, #tpu.memory_space<vmem>>, %arg3: memref<32x36xf32, #tpu.memory_space<vmem>>, %arg4: memref<1x8x8xf32, #tpu.memory_space<vmem>>, %arg5: memref<1x16x4xf32, #tpu.memory_space<vmem>>, %arg6: memref<1x32x2xf32, #tpu.memory_space<vmem>>, %arg7: memref<1x4x16xf32, #tpu.memory_space<vmem>>) attributes {dimension_semantics = [#tpu.dimension_semantics<parallel>], iteration_bounds = array<i64: 2>, scalar_prefetch = 0 : i64, scratch_operands = 0 : i64, tpu.core_type = #tpu.core_type<tc>, window_params = [{transform_indices = @transform_0, window_bounds = array<i64: 1, 4, 16>}, {pipeline_mode = #tpu.pipeline_mode<synchronous>, transform_indices = @transform_1, window_bounds = array<i64: 32, 532>}, {pipeline_mode = #tpu.pipeline_mode<synchronous>, transform_indices = @transform_2, window_bounds = array<i64: 32, 36>}, {transform_indices = @transform_3, window_bounds = array<i64: 1, 8, 8>}, {transform_indices = @transform_4, window_bounds = array<i64: 1, 16, 4>}, {transform_indices = @transform_5, window_bounds = array<i64: 1, 32, 2>}, {transform_indices = @transform_6, window_bounds = array<i64: 1, 4, 16>}]} {
    %c0 = arith.constant 0 : index
    %c0_0 = arith.constant 0 : index
    %c0_1 = arith.constant 0 : index
    %0 = vector.load %arg1[%c0, %c0_0, %c0_1] : memref<1x4x16xf32, #tpu.memory_space<vmem>>, vector<1x4x16xf32>
    %1 = vector.shape_cast %0 : vector<1x4x16xf32> to vector<4x16xf32>
    %cst = arith.constant 0.000000e+00 : f32
    %2 = vector.broadcast %cst : f32 to vector<8x16xf32>
    %c0_2 = arith.constant 0 : index
    %c0_3 = arith.constant 0 : index
    %3 = vector.load %arg2[%c0_2, %c0_3] : memref<32x532xf32, #tpu.memory_space<vmem>>, vector<8x4xf32>
    %4 = tpu.iota {dimensions = array<i32: 0>} : vector<16x16xi32>
    %5 = tpu.iota {dimensions = array<i32: 1>} : vector<16x16xi32>
    %c1_i32 = arith.constant 1 : i32
    %6 = vector.broadcast %c1_i32 : i32 to vector<16x16xi32>
    %7 = arith.muli %5, %6 : vector<16x16xi32>
    %c-1_i32 = arith.constant -1 : i32
    %8 = vector.broadcast %c-1_i32 : i32 to vector<16x16xi32>
    %9 = arith.addi %7, %8 : vector<16x16xi32>
    %10 = arith.cmpi eq, %4, %9 : vector<16x16xi32>
    %cst_4 = arith.constant 1.000000e+00 : f32
    %cst_5 = arith.constant 0.000000e+00 : f32
    %11 = vector.broadcast %cst_4 : f32 to vector<16x16xf32>
    %12 = vector.broadcast %cst_5 : f32 to vector<16x16xf32>
    %13 = arith.select %10, %11, %12 : vector<16x16xi1>, vector<16x16xf32>
    %cst_6 = arith.constant dense<0.000000e+00> : vector<4x16xf32>
    %14 = tpu.matmul %1, %13, %cst_6 {dimension_numbers = #tpu.dot_dimension_numbers<[1], [0], [0], [1], [0, 0, 1, 1], [], []>} : vector<4x16xf32>, vector<16x16xf32>, vector<4x16xf32> -> vector<4x16xf32>
    %cst_7 = arith.constant dense<0.000000e+00> : vector<8x16xf32>
    %15 = tpu.matmul %3, %14, %cst_7 {dimension_numbers = #tpu.dot_dimension_numbers<[1], [0], [0], [1], [0, 0, 1, 1], [], []>} : vector<8x4xf32>, vector<4x16xf32>, vector<8x16xf32> -> vector<8x16xf32>
    %16 = arith.addf %2, %15 : vector<8x16xf32>
    %c0_8 = arith.constant 0 : index
    %c4 = arith.constant 4 : index
    %17 = vector.load %arg2[%c0_8, %c4] : memref<32x532xf32, #tpu.memory_space<vmem>>, vector<8x4xf32>
    %18 = tpu.iota {dimensions = array<i32: 0>} : vector<16x16xi32>
    %19 = tpu.iota {dimensions = array<i32: 1>} : vector<16x16xi32>
    %c1_i32_9 = arith.constant 1 : i32
    %20 = vector.broadcast %c1_i32_9 : i32 to vector<16x16xi32>
    %21 = arith.muli %19, %20 : vector<16x16xi32>
    %c0_i32 = arith.constant 0 : i32
    %22 = vector.broadcast %c0_i32 : i32 to vector<16x16xi32>
    %23 = arith.addi %21, %22 : vector<16x16xi32>
    %24 = arith.cmpi eq, %18, %23 : vector<16x16xi32>
    %cst_10 = arith.constant 1.000000e+00 : f32
    %cst_11 = arith.constant 0.000000e+00 : f32
    %25 = vector.broadcast %cst_10 : f32 to vector<16x16xf32>
    %26 = vector.broadcast %cst_11 : f32 to vector<16x16xf32>
    %27 = arith.select %24, %25, %26 : vector<16x16xi1>, vector<16x16xf32>
    %cst_12 = arith.constant dense<0.000000e+00> : vector<4x16xf32>
    %28 = tpu.matmul %1, %27, %cst_12 {dimension_numbers = #tpu.dot_dimension_numbers<[1], [0], [0], [1], [0, 0, 1, 1], [], []>} : vector<4x16xf32>, vector<16x16xf32>, vector<4x16xf32> -> vector<4x16xf32>
    %cst_13 = arith.constant dense<0.000000e+00> : vector<8x16xf32>
    %29 = tpu.matmul %17, %28, %cst_13 {dimension_numbers = #tpu.dot_dimension_numbers<[1], [0], [0], [1], [0, 0, 1, 1], [], []>} : vector<8x4xf32>, vector<4x16xf32>, vector<8x16xf32> -> vector<8x16xf32>
    %30 = arith.addf %16, %29 : vector<8x16xf32>
    %c0_14 = arith.constant 0 : index
    %c8 = arith.constant 8 : index
    %31 = vector.load %arg2[%c0_14, %c8] : memref<32x532xf32, #tpu.memory_space<vmem>>, vector<8x4xf32>
    %32 = tpu.iota {dimensions = array<i32: 0>} : vector<16x16xi32>
    %33 = tpu.iota {dimensions = array<i32: 1>} : vector<16x16xi32>
    %c1_i32_15 = arith.constant 1 : i32
    %34 = vector.broadcast %c1_i32_15 : i32 to vector<16x16xi32>
    %35 = arith.muli %33, %34 : vector<16x16xi32>
    %c1_i32_16 = arith.constant 1 : i32
    %36 = vector.broadcast %c1_i32_16 : i32 to vector<16x16xi32>
    %37 = arith.addi %35, %36 : vector<16x16xi32>
    %38 = arith.cmpi eq, %32, %37 : vector<16x16xi32>
    %cst_17 = arith.constant 1.000000e+00 : f32
    %cst_18 = arith.constant 0.000000e+00 : f32
    %39 = vector.broadcast %cst_17 : f32 to vector<16x16xf32>
    %40 = vector.broadcast %cst_18 : f32 to vector<16x16xf32>
    %41 = arith.select %38, %39, %40 : vector<16x16xi1>, vector<16x16xf32>
    %cst_19 = arith.constant dense<0.000000e+00> : vector<4x16xf32>
    %42 = tpu.matmul %1, %41, %cst_19 {dimension_numbers = #tpu.dot_dimension_numbers<[1], [0], [0], [1], [0, 0, 1, 1], [], []>} : vector<4x16xf32>, vector<16x16xf32>, vector<4x16xf32> -> vector<4x16xf32>
    %cst_20 = arith.constant dense<0.000000e+00> : vector<8x16xf32>
    %43 = tpu.matmul %31, %42, %cst_20 {dimension_numbers = #tpu.dot_dimension_numbers<[1], [0], [0], [1], [0, 0, 1, 1], [], []>} : vector<8x4xf32>, vector<4x16xf32>, vector<8x16xf32> -> vector<8x16xf32>
    %44 = arith.addf %30, %43 : vector<8x16xf32>
    %c0_21 = arith.constant 0 : index
    %c0_22 = arith.constant 0 : index
    %45 = vector.load %arg3[%c0_21, %c0_22] : memref<32x36xf32, #tpu.memory_space<vmem>>, vector<8x1xf32>
    %46 = vector.broadcast %45 : vector<8x1xf32> to vector<8x16xf32>
    %47 = arith.addf %44, %46 : vector<8x16xf32>
    %c0_23 = arith.constant 0 : index
    %c1 = arith.constant 1 : index
    %48 = vector.load %arg3[%c0_23, %c1] : memref<32x36xf32, #tpu.memory_space<vmem>>, vector<8x1xf32>
    %c0_24 = arith.constant 0 : index
    %c2 = arith.constant 2 : index
    %49 = vector.load %arg3[%c0_24, %c2] : memref<32x36xf32, #tpu.memory_space<vmem>>, vector<8x1xf32>
    %cst_25 = arith.constant 0.000000e+00 : f32
    %50 = vector.broadcast %cst_25 : f32 to vector<8x16xf32>
    %51 = arith.maximumf %47, %50 : vector<8x16xf32>
    %52 = vector.broadcast %48 : vector<8x1xf32> to vector<8x16xf32>
    %53 = arith.mulf %51, %52 : vector<8x16xf32>
    %54 = vector.broadcast %49 : vector<8x1xf32> to vector<8x16xf32>
    %55 = arith.addf %53, %54 : vector<8x16xf32>
    %cst_26 = arith.constant 0.000000e+00 : f32
    %56 = vector.broadcast %cst_26 : f32 to vector<8x16xf32>
    %c0_27 = arith.constant 0 : index
    %c12 = arith.constant 12 : index
    %57 = vector.load %arg2[%c0_27, %c12] : memref<32x532xf32, #tpu.memory_space<vmem>>, vector<8x8xf32>
    %58 = tpu.iota {dimensions = array<i32: 0>} : vector<16x16xi32>
    %59 = tpu.iota {dimensions = array<i32: 1>} : vector<16x16xi32>
    %c1_i32_28 = arith.constant 1 : i32
    %60 = vector.broadcast %c1_i32_28 : i32 to vector<16x16xi32>
    %61 = arith.muli %59, %60 : vector<16x16xi32>
    %c-1_i32_29 = arith.constant -1 : i32
    %62 = vector.broadcast %c-1_i32_29 : i32 to vector<16x16xi32>
    %63 = arith.addi %61, %62 : vector<16x16xi32>
    %64 = arith.cmpi eq, %58, %63 : vector<16x16xi32>
    %cst_30 = arith.constant 1.000000e+00 : f32
    %cst_31 = arith.constant 0.000000e+00 : f32
    %65 = vector.broadcast %cst_30 : f32 to vector<16x16xf32>
    %66 = vector.broadcast %cst_31 : f32 to vector<16x16xf32>
    %67 = arith.select %64, %65, %66 : vector<16x16xi1>, vector<16x16xf32>
    %cst_32 = arith.constant dense<0.000000e+00> : vector<8x16xf32>
    %68 = tpu.matmul %55, %67, %cst_32 {dimension_numbers = #tpu.dot_dimension_numbers<[1], [0], [0], [1], [0, 0, 1, 1], [], []>} : vector<8x16xf32>, vector<16x16xf32>, vector<8x16xf32> -> vector<8x16xf32>
    %cst_33 = arith.constant dense<0.000000e+00> : vector<8x16xf32>
    %69 = tpu.matmul %57, %68, %cst_33 {dimension_numbers = #tpu.dot_dimension_numbers<[1], [0], [0], [1], [0, 0, 1, 1], [], []>} : vector<8x8xf32>, vector<8x16xf32>, vector<8x16xf32> -> vector<8x16xf32>
    %70 = arith.addf %56, %69 : vector<8x16xf32>
    %c0_34 = arith.constant 0 : index
    %c20 = arith.constant 20 : index
    %71 = vector.load %arg2[%c0_34, %c20] : memref<32x532xf32, #tpu.memory_space<vmem>>, vector<8x8xf32>
    %72 = tpu.iota {dimensions = array<i32: 0>} : vector<16x16xi32>
    %73 = tpu.iota {dimensions = array<i32: 1>} : vector<16x16xi32>
    %c1_i32_35 = arith.constant 1 : i32
    %74 = vector.broadcast %c1_i32_35 : i32 to vector<16x16xi32>
    %75 = arith.muli %73, %74 : vector<16x16xi32>
    %c0_i32_36 = arith.constant 0 : i32
    %76 = vector.broadcast %c0_i32_36 : i32 to vector<16x16xi32>
    %77 = arith.addi %75, %76 : vector<16x16xi32>
    %78 = arith.cmpi eq, %72, %77 : vector<16x16xi32>
    %cst_37 = arith.constant 1.000000e+00 : f32
    %cst_38 = arith.constant 0.000000e+00 : f32
    %79 = vector.broadcast %cst_37 : f32 to vector<16x16xf32>
    %80 = vector.broadcast %cst_38 : f32 to vector<16x16xf32>
    %81 = arith.select %78, %79, %80 : vector<16x16xi1>, vector<16x16xf32>
    %cst_39 = arith.constant dense<0.000000e+00> : vector<8x16xf32>
    %82 = tpu.matmul %55, %81, %cst_39 {dimension_numbers = #tpu.dot_dimension_numbers<[1], [0], [0], [1], [0, 0, 1, 1], [], []>} : vector<8x16xf32>, vector<16x16xf32>, vector<8x16xf32> -> vector<8x16xf32>
    %cst_40 = arith.constant dense<0.000000e+00> : vector<8x16xf32>
    %83 = tpu.matmul %71, %82, %cst_40 {dimension_numbers = #tpu.dot_dimension_numbers<[1], [0], [0], [1], [0, 0, 1, 1], [], []>} : vector<8x8xf32>, vector<8x16xf32>, vector<8x16xf32> -> vector<8x16xf32>
    %84 = arith.addf %70, %83 : vector<8x16xf32>
    %c0_41 = arith.constant 0 : index
    %c28 = arith.constant 28 : index
    %85 = vector.load %arg2[%c0_41, %c28] : memref<32x532xf32, #tpu.memory_space<vmem>>, vector<8x8xf32>
    %86 = tpu.iota {dimensions = array<i32: 0>} : vector<16x16xi32>
    %87 = tpu.iota {dimensions = array<i32: 1>} : vector<16x16xi32>
    %c1_i32_42 = arith.constant 1 : i32
    %88 = vector.broadcast %c1_i32_42 : i32 to vector<16x16xi32>
    %89 = arith.muli %87, %88 : vector<16x16xi32>
    %c1_i32_43 = arith.constant 1 : i32
    %90 = vector.broadcast %c1_i32_43 : i32 to vector<16x16xi32>
    %91 = arith.addi %89, %90 : vector<16x16xi32>
    %92 = arith.cmpi eq, %86, %91 : vector<16x16xi32>
    %cst_44 = arith.constant 1.000000e+00 : f32
    %cst_45 = arith.constant 0.000000e+00 : f32
    %93 = vector.broadcast %cst_44 : f32 to vector<16x16xf32>
    %94 = vector.broadcast %cst_45 : f32 to vector<16x16xf32>
    %95 = arith.select %92, %93, %94 : vector<16x16xi1>, vector<16x16xf32>
    %cst_46 = arith.constant dense<0.000000e+00> : vector<8x16xf32>
    %96 = tpu.matmul %55, %95, %cst_46 {dimension_numbers = #tpu.dot_dimension_numbers<[1], [0], [0], [1], [0, 0, 1, 1], [], []>} : vector<8x16xf32>, vector<16x16xf32>, vector<8x16xf32> -> vector<8x16xf32>
    %cst_47 = arith.constant dense<0.000000e+00> : vector<8x16xf32>
    %97 = tpu.matmul %85, %96, %cst_47 {dimension_numbers = #tpu.dot_dimension_numbers<[1], [0], [0], [1], [0, 0, 1, 1], [], []>} : vector<8x8xf32>, vector<8x16xf32>, vector<8x16xf32> -> vector<8x16xf32>
    %98 = arith.addf %84, %97 : vector<8x16xf32>
    %c0_48 = arith.constant 0 : index
    %c3 = arith.constant 3 : index
    %99 = vector.load %arg3[%c0_48, %c3] : memref<32x36xf32, #tpu.memory_space<vmem>>, vector<8x1xf32>
    %100 = vector.broadcast %99 : vector<8x1xf32> to vector<8x16xf32>
    %101 = arith.addf %98, %100 : vector<8x16xf32>
    %102 = tpu.iota {dimensions = array<i32: 0>} : vector<16x8xi32>
    %103 = tpu.iota {dimensions = array<i32: 1>} : vector<16x8xi32>
    %c2_i32 = arith.constant 2 : i32
    %104 = vector.broadcast %c2_i32 : i32 to vector<16x8xi32>
    %105 = arith.muli %103, %104 : vector<16x8xi32>
    %c0_i32_49 = arith.constant 0 : i32
    %106 = vector.broadcast %c0_i32_49 : i32 to vector<16x8xi32>
    %107 = arith.addi %105, %106 : vector<16x8xi32>
    %108 = arith.cmpi eq, %102, %107 : vector<16x8xi32>
    %cst_50 = arith.constant 1.000000e+00 : f32
    %cst_51 = arith.constant 0.000000e+00 : f32
    %109 = vector.broadcast %cst_50 : f32 to vector<16x8xf32>
    %110 = vector.broadcast %cst_51 : f32 to vector<16x8xf32>
    %111 = arith.select %108, %109, %110 : vector<16x8xi1>, vector<16x8xf32>
    %cst_52 = arith.constant dense<0.000000e+00> : vector<8x8xf32>
    %112 = tpu.matmul %101, %111, %cst_52 {dimension_numbers = #tpu.dot_dimension_numbers<[1], [0], [0], [1], [0, 0, 1, 1], [], []>} : vector<8x16xf32>, vector<16x8xf32>, vector<8x8xf32> -> vector<8x8xf32>
    %113 = tpu.iota {dimensions = array<i32: 0>} : vector<16x8xi32>
    %114 = tpu.iota {dimensions = array<i32: 1>} : vector<16x8xi32>
    %c2_i32_53 = arith.constant 2 : i32
    %115 = vector.broadcast %c2_i32_53 : i32 to vector<16x8xi32>
    %116 = arith.muli %114, %115 : vector<16x8xi32>
    %c1_i32_54 = arith.constant 1 : i32
    %117 = vector.broadcast %c1_i32_54 : i32 to vector<16x8xi32>
    %118 = arith.addi %116, %117 : vector<16x8xi32>
    %119 = arith.cmpi eq, %113, %118 : vector<16x8xi32>
    %cst_55 = arith.constant 1.000000e+00 : f32
    %cst_56 = arith.constant 0.000000e+00 : f32
    %120 = vector.broadcast %cst_55 : f32 to vector<16x8xf32>
    %121 = vector.broadcast %cst_56 : f32 to vector<16x8xf32>
    %122 = arith.select %119, %120, %121 : vector<16x8xi1>, vector<16x8xf32>
    %cst_57 = arith.constant dense<0.000000e+00> : vector<8x8xf32>
    %123 = tpu.matmul %101, %122, %cst_57 {dimension_numbers = #tpu.dot_dimension_numbers<[1], [0], [0], [1], [0, 0, 1, 1], [], []>} : vector<8x16xf32>, vector<16x8xf32>, vector<8x8xf32> -> vector<8x8xf32>
    %124 = arith.maximumf %112, %123 : vector<8x8xf32>
    %c0_58 = arith.constant 0 : index
    %c4_59 = arith.constant 4 : index
    %125 = vector.load %arg3[%c0_58, %c4_59] : memref<32x36xf32, #tpu.memory_space<vmem>>, vector<8x1xf32>
    %c0_60 = arith.constant 0 : index
    %c5 = arith.constant 5 : index
    %126 = vector.load %arg3[%c0_60, %c5] : memref<32x36xf32, #tpu.memory_space<vmem>>, vector<8x1xf32>
    %cst_61 = arith.constant 0.000000e+00 : f32
    %127 = vector.broadcast %cst_61 : f32 to vector<8x8xf32>
    %128 = arith.maximumf %124, %127 : vector<8x8xf32>
    %129 = vector.broadcast %125 : vector<8x1xf32> to vector<8x8xf32>
    %130 = arith.mulf %128, %129 : vector<8x8xf32>
    %131 = vector.broadcast %126 : vector<8x1xf32> to vector<8x8xf32>
    %132 = arith.addf %130, %131 : vector<8x8xf32>
    %cst_62 = arith.constant 0.000000e+00 : f32
    %133 = vector.broadcast %cst_62 : f32 to vector<16x8xf32>
    %c0_63 = arith.constant 0 : index
    %c36 = arith.constant 36 : index
    %134 = vector.load %arg2[%c0_63, %c36] : memref<32x532xf32, #tpu.memory_space<vmem>>, vector<16x8xf32>
    %135 = tpu.iota {dimensions = array<i32: 0>} : vector<8x8xi32>
    %136 = tpu.iota {dimensions = array<i32: 1>} : vector<8x8xi32>
    %c1_i32_64 = arith.constant 1 : i32
    %137 = vector.broadcast %c1_i32_64 : i32 to vector<8x8xi32>
    %138 = arith.muli %136, %137 : vector<8x8xi32>
    %c-1_i32_65 = arith.constant -1 : i32
    %139 = vector.broadcast %c-1_i32_65 : i32 to vector<8x8xi32>
    %140 = arith.addi %138, %139 : vector<8x8xi32>
    %141 = arith.cmpi eq, %135, %140 : vector<8x8xi32>
    %cst_66 = arith.constant 1.000000e+00 : f32
    %cst_67 = arith.constant 0.000000e+00 : f32
    %142 = vector.broadcast %cst_66 : f32 to vector<8x8xf32>
    %143 = vector.broadcast %cst_67 : f32 to vector<8x8xf32>
    %144 = arith.select %141, %142, %143 : vector<8x8xi1>, vector<8x8xf32>
    %cst_68 = arith.constant dense<0.000000e+00> : vector<8x8xf32>
    %145 = tpu.matmul %132, %144, %cst_68 {dimension_numbers = #tpu.dot_dimension_numbers<[1], [0], [0], [1], [0, 0, 1, 1], [], []>} : vector<8x8xf32>, vector<8x8xf32>, vector<8x8xf32> -> vector<8x8xf32>
    %cst_69 = arith.constant dense<0.000000e+00> : vector<16x8xf32>
    %146 = tpu.matmul %134, %145, %cst_69 {dimension_numbers = #tpu.dot_dimension_numbers<[1], [0], [0], [1], [0, 0, 1, 1], [], []>} : vector<16x8xf32>, vector<8x8xf32>, vector<16x8xf32> -> vector<16x8xf32>
    %147 = arith.addf %133, %146 : vector<16x8xf32>
    %c0_70 = arith.constant 0 : index
    %c44 = arith.constant 44 : index
    %148 = vector.load %arg2[%c0_70, %c44] : memref<32x532xf32, #tpu.memory_space<vmem>>, vector<16x8xf32>
    %149 = tpu.iota {dimensions = array<i32: 0>} : vector<8x8xi32>
    %150 = tpu.iota {dimensions = array<i32: 1>} : vector<8x8xi32>
    %c1_i32_71 = arith.constant 1 : i32
    %151 = vector.broadcast %c1_i32_71 : i32 to vector<8x8xi32>
    %152 = arith.muli %150, %151 : vector<8x8xi32>
    %c0_i32_72 = arith.constant 0 : i32
    %153 = vector.broadcast %c0_i32_72 : i32 to vector<8x8xi32>
    %154 = arith.addi %152, %153 : vector<8x8xi32>
    %155 = arith.cmpi eq, %149, %154 : vector<8x8xi32>
    %cst_73 = arith.constant 1.000000e+00 : f32
    %cst_74 = arith.constant 0.000000e+00 : f32
    %156 = vector.broadcast %cst_73 : f32 to vector<8x8xf32>
    %157 = vector.broadcast %cst_74 : f32 to vector<8x8xf32>
    %158 = arith.select %155, %156, %157 : vector<8x8xi1>, vector<8x8xf32>
    %cst_75 = arith.constant dense<0.000000e+00> : vector<8x8xf32>
    %159 = tpu.matmul %132, %158, %cst_75 {dimension_numbers = #tpu.dot_dimension_numbers<[1], [0], [0], [1], [0, 0, 1, 1], [], []>} : vector<8x8xf32>, vector<8x8xf32>, vector<8x8xf32> -> vector<8x8xf32>
    %cst_76 = arith.constant dense<0.000000e+00> : vector<16x8xf32>
    %160 = tpu.matmul %148, %159, %cst_76 {dimension_numbers = #tpu.dot_dimension_numbers<[1], [0], [0], [1], [0, 0, 1, 1], [], []>} : vector<16x8xf32>, vector<8x8xf32>, vector<16x8xf32> -> vector<16x8xf32>
    %161 = arith.addf %147, %160 : vector<16x8xf32>
    %c0_77 = arith.constant 0 : index
    %c52 = arith.constant 52 : index
    %162 = vector.load %arg2[%c0_77, %c52] : memref<32x532xf32, #tpu.memory_space<vmem>>, vector<16x8xf32>
    %163 = tpu.iota {dimensions = array<i32: 0>} : vector<8x8xi32>
    %164 = tpu.iota {dimensions = array<i32: 1>} : vector<8x8xi32>
    %c1_i32_78 = arith.constant 1 : i32
    %165 = vector.broadcast %c1_i32_78 : i32 to vector<8x8xi32>
    %166 = arith.muli %164, %165 : vector<8x8xi32>
    %c1_i32_79 = arith.constant 1 : i32
    %167 = vector.broadcast %c1_i32_79 : i32 to vector<8x8xi32>
    %168 = arith.addi %166, %167 : vector<8x8xi32>
    %169 = arith.cmpi eq, %163, %168 : vector<8x8xi32>
    %cst_80 = arith.constant 1.000000e+00 : f32
    %cst_81 = arith.constant 0.000000e+00 : f32
    %170 = vector.broadcast %cst_80 : f32 to vector<8x8xf32>
    %171 = vector.broadcast %cst_81 : f32 to vector<8x8xf32>
    %172 = arith.select %169, %170, %171 : vector<8x8xi1>, vector<8x8xf32>
    %cst_82 = arith.constant dense<0.000000e+00> : vector<8x8xf32>
    %173 = tpu.matmul %132, %172, %cst_82 {dimension_numbers = #tpu.dot_dimension_numbers<[1], [0], [0], [1], [0, 0, 1, 1], [], []>} : vector<8x8xf32>, vector<8x8xf32>, vector<8x8xf32> -> vector<8x8xf32>
    %cst_83 = arith.constant dense<0.000000e+00> : vector<16x8xf32>
    %174 = tpu.matmul %162, %173, %cst_83 {dimension_numbers = #tpu.dot_dimension_numbers<[1], [0], [0], [1], [0, 0, 1, 1], [], []>} : vector<16x8xf32>, vector<8x8xf32>, vector<16x8xf32> -> vector<16x8xf32>
    %175 = arith.addf %161, %174 : vector<16x8xf32>
    %c0_84 = arith.constant 0 : index
    %c6 = arith.constant 6 : index
    %176 = vector.load %arg3[%c0_84, %c6] : memref<32x36xf32, #tpu.memory_space<vmem>>, vector<16x1xf32>
    %177 = vector.broadcast %176 : vector<16x1xf32> to vector<16x8xf32>
    %178 = arith.addf %175, %177 : vector<16x8xf32>
    %c0_85 = arith.constant 0 : index
    %c7 = arith.constant 7 : index
    %179 = vector.load %arg3[%c0_85, %c7] : memref<32x36xf32, #tpu.memory_space<vmem>>, vector<16x1xf32>
    %c0_86 = arith.constant 0 : index
    %c8_87 = arith.constant 8 : index
    %180 = vector.load %arg3[%c0_86, %c8_87] : memref<32x36xf32, #tpu.memory_space<vmem>>, vector<16x1xf32>
    %cst_88 = arith.constant 0.000000e+00 : f32
    %181 = vector.broadcast %cst_88 : f32 to vector<16x8xf32>
    %182 = arith.maximumf %178, %181 : vector<16x8xf32>
    %183 = vector.broadcast %179 : vector<16x1xf32> to vector<16x8xf32>
    %184 = arith.mulf %182, %183 : vector<16x8xf32>
    %185 = vector.broadcast %180 : vector<16x1xf32> to vector<16x8xf32>
    %186 = arith.addf %184, %185 : vector<16x8xf32>
    %cst_89 = arith.constant 0.000000e+00 : f32
    %187 = vector.broadcast %cst_89 : f32 to vector<16x8xf32>
    %c0_90 = arith.constant 0 : index
    %c60 = arith.constant 60 : index
    %188 = vector.load %arg2[%c0_90, %c60] : memref<32x532xf32, #tpu.memory_space<vmem>>, vector<16x16xf32>
    %189 = tpu.iota {dimensions = array<i32: 0>} : vector<8x8xi32>
    %190 = tpu.iota {dimensions = array<i32: 1>} : vector<8x8xi32>
    %c1_i32_91 = arith.constant 1 : i32
    %191 = vector.broadcast %c1_i32_91 : i32 to vector<8x8xi32>
    %192 = arith.muli %190, %191 : vector<8x8xi32>
    %c-1_i32_92 = arith.constant -1 : i32
    %193 = vector.broadcast %c-1_i32_92 : i32 to vector<8x8xi32>
    %194 = arith.addi %192, %193 : vector<8x8xi32>
    %195 = arith.cmpi eq, %189, %194 : vector<8x8xi32>
    %cst_93 = arith.constant 1.000000e+00 : f32
    %cst_94 = arith.constant 0.000000e+00 : f32
    %196 = vector.broadcast %cst_93 : f32 to vector<8x8xf32>
    %197 = vector.broadcast %cst_94 : f32 to vector<8x8xf32>
    %198 = arith.select %195, %196, %197 : vector<8x8xi1>, vector<8x8xf32>
    %cst_95 = arith.constant dense<0.000000e+00> : vector<16x8xf32>
    %199 = tpu.matmul %186, %198, %cst_95 {dimension_numbers = #tpu.dot_dimension_numbers<[1], [0], [0], [1], [0, 0, 1, 1], [], []>} : vector<16x8xf32>, vector<8x8xf32>, vector<16x8xf32> -> vector<16x8xf32>
    %cst_96 = arith.constant dense<0.000000e+00> : vector<16x8xf32>
    %200 = tpu.matmul %188, %199, %cst_96 {dimension_numbers = #tpu.dot_dimension_numbers<[1], [0], [0], [1], [0, 0, 1, 1], [], []>} : vector<16x16xf32>, vector<16x8xf32>, vector<16x8xf32> -> vector<16x8xf32>
    %201 = arith.addf %187, %200 : vector<16x8xf32>
    %c0_97 = arith.constant 0 : index
    %c76 = arith.constant 76 : index
    %202 = vector.load %arg2[%c0_97, %c76] : memref<32x532xf32, #tpu.memory_space<vmem>>, vector<16x16xf32>
    %203 = tpu.iota {dimensions = array<i32: 0>} : vector<8x8xi32>
    %204 = tpu.iota {dimensions = array<i32: 1>} : vector<8x8xi32>
    %c1_i32_98 = arith.constant 1 : i32
    %205 = vector.broadcast %c1_i32_98 : i32 to vector<8x8xi32>
    %206 = arith.muli %204, %205 : vector<8x8xi32>
    %c0_i32_99 = arith.constant 0 : i32
    %207 = vector.broadcast %c0_i32_99 : i32 to vector<8x8xi32>
    %208 = arith.addi %206, %207 : vector<8x8xi32>
    %209 = arith.cmpi eq, %203, %208 : vector<8x8xi32>
    %cst_100 = arith.constant 1.000000e+00 : f32
    %cst_101 = arith.constant 0.000000e+00 : f32
    %210 = vector.broadcast %cst_100 : f32 to vector<8x8xf32>
    %211 = vector.broadcast %cst_101 : f32 to vector<8x8xf32>
    %212 = arith.select %209, %210, %211 : vector<8x8xi1>, vector<8x8xf32>
    %cst_102 = arith.constant dense<0.000000e+00> : vector<16x8xf32>
    %213 = tpu.matmul %186, %212, %cst_102 {dimension_numbers = #tpu.dot_dimension_numbers<[1], [0], [0], [1], [0, 0, 1, 1], [], []>} : vector<16x8xf32>, vector<8x8xf32>, vector<16x8xf32> -> vector<16x8xf32>
    %cst_103 = arith.constant dense<0.000000e+00> : vector<16x8xf32>
    %214 = tpu.matmul %202, %213, %cst_103 {dimension_numbers = #tpu.dot_dimension_numbers<[1], [0], [0], [1], [0, 0, 1, 1], [], []>} : vector<16x16xf32>, vector<16x8xf32>, vector<16x8xf32> -> vector<16x8xf32>
    %215 = arith.addf %201, %214 : vector<16x8xf32>
    %c0_104 = arith.constant 0 : index
    %c92 = arith.constant 92 : index
    %216 = vector.load %arg2[%c0_104, %c92] : memref<32x532xf32, #tpu.memory_space<vmem>>, vector<16x16xf32>
    %217 = tpu.iota {dimensions = array<i32: 0>} : vector<8x8xi32>
    %218 = tpu.iota {dimensions = array<i32: 1>} : vector<8x8xi32>
    %c1_i32_105 = arith.constant 1 : i32
    %219 = vector.broadcast %c1_i32_105 : i32 to vector<8x8xi32>
    %220 = arith.muli %218, %219 : vector<8x8xi32>
    %c1_i32_106 = arith.constant 1 : i32
    %221 = vector.broadcast %c1_i32_106 : i32 to vector<8x8xi32>
    %222 = arith.addi %220, %221 : vector<8x8xi32>
    %223 = arith.cmpi eq, %217, %222 : vector<8x8xi32>
    %cst_107 = arith.constant 1.000000e+00 : f32
    %cst_108 = arith.constant 0.000000e+00 : f32
    %224 = vector.broadcast %cst_107 : f32 to vector<8x8xf32>
    %225 = vector.broadcast %cst_108 : f32 to vector<8x8xf32>
    %226 = arith.select %223, %224, %225 : vector<8x8xi1>, vector<8x8xf32>
    %cst_109 = arith.constant dense<0.000000e+00> : vector<16x8xf32>
    %227 = tpu.matmul %186, %226, %cst_109 {dimension_numbers = #tpu.dot_dimension_numbers<[1], [0], [0], [1], [0, 0, 1, 1], [], []>} : vector<16x8xf32>, vector<8x8xf32>, vector<16x8xf32> -> vector<16x8xf32>
    %cst_110 = arith.constant dense<0.000000e+00> : vector<16x8xf32>
    %228 = tpu.matmul %216, %227, %cst_110 {dimension_numbers = #tpu.dot_dimension_numbers<[1], [0], [0], [1], [0, 0, 1, 1], [], []>} : vector<16x16xf32>, vector<16x8xf32>, vector<16x8xf32> -> vector<16x8xf32>
    %229 = arith.addf %215, %228 : vector<16x8xf32>
    %c0_111 = arith.constant 0 : index
    %c9 = arith.constant 9 : index
    %230 = vector.load %arg3[%c0_111, %c9] : memref<32x36xf32, #tpu.memory_space<vmem>>, vector<16x1xf32>
    %231 = vector.broadcast %230 : vector<16x1xf32> to vector<16x8xf32>
    %232 = arith.addf %229, %231 : vector<16x8xf32>
    %233 = tpu.iota {dimensions = array<i32: 0>} : vector<8x4xi32>
    %234 = tpu.iota {dimensions = array<i32: 1>} : vector<8x4xi32>
    %c2_i32_112 = arith.constant 2 : i32
    %235 = vector.broadcast %c2_i32_112 : i32 to vector<8x4xi32>
    %236 = arith.muli %234, %235 : vector<8x4xi32>
    %c0_i32_113 = arith.constant 0 : i32
    %237 = vector.broadcast %c0_i32_113 : i32 to vector<8x4xi32>
    %238 = arith.addi %236, %237 : vector<8x4xi32>
    %239 = arith.cmpi eq, %233, %238 : vector<8x4xi32>
    %cst_114 = arith.constant 1.000000e+00 : f32
    %cst_115 = arith.constant 0.000000e+00 : f32
    %240 = vector.broadcast %cst_114 : f32 to vector<8x4xf32>
    %241 = vector.broadcast %cst_115 : f32 to vector<8x4xf32>
    %242 = arith.select %239, %240, %241 : vector<8x4xi1>, vector<8x4xf32>
    %cst_116 = arith.constant dense<0.000000e+00> : vector<16x4xf32>
    %243 = tpu.matmul %232, %242, %cst_116 {dimension_numbers = #tpu.dot_dimension_numbers<[1], [0], [0], [1], [0, 0, 1, 1], [], []>} : vector<16x8xf32>, vector<8x4xf32>, vector<16x4xf32> -> vector<16x4xf32>
    %244 = tpu.iota {dimensions = array<i32: 0>} : vector<8x4xi32>
    %245 = tpu.iota {dimensions = array<i32: 1>} : vector<8x4xi32>
    %c2_i32_117 = arith.constant 2 : i32
    %246 = vector.broadcast %c2_i32_117 : i32 to vector<8x4xi32>
    %247 = arith.muli %245, %246 : vector<8x4xi32>
    %c1_i32_118 = arith.constant 1 : i32
    %248 = vector.broadcast %c1_i32_118 : i32 to vector<8x4xi32>
    %249 = arith.addi %247, %248 : vector<8x4xi32>
    %250 = arith.cmpi eq, %244, %249 : vector<8x4xi32>
    %cst_119 = arith.constant 1.000000e+00 : f32
    %cst_120 = arith.constant 0.000000e+00 : f32
    %251 = vector.broadcast %cst_119 : f32 to vector<8x4xf32>
    %252 = vector.broadcast %cst_120 : f32 to vector<8x4xf32>
    %253 = arith.select %250, %251, %252 : vector<8x4xi1>, vector<8x4xf32>
    %cst_121 = arith.constant dense<0.000000e+00> : vector<16x4xf32>
    %254 = tpu.matmul %232, %253, %cst_121 {dimension_numbers = #tpu.dot_dimension_numbers<[1], [0], [0], [1], [0, 0, 1, 1], [], []>} : vector<16x8xf32>, vector<8x4xf32>, vector<16x4xf32> -> vector<16x4xf32>
    %255 = arith.maximumf %243, %254 : vector<16x4xf32>
    %c0_122 = arith.constant 0 : index
    %c10 = arith.constant 10 : index
    %256 = vector.load %arg3[%c0_122, %c10] : memref<32x36xf32, #tpu.memory_space<vmem>>, vector<16x1xf32>
    %c0_123 = arith.constant 0 : index
    %c11 = arith.constant 11 : index
    %257 = vector.load %arg3[%c0_123, %c11] : memref<32x36xf32, #tpu.memory_space<vmem>>, vector<16x1xf32>
    %cst_124 = arith.constant 0.000000e+00 : f32
    %258 = vector.broadcast %cst_124 : f32 to vector<16x4xf32>
    %259 = arith.maximumf %255, %258 : vector<16x4xf32>
    %260 = vector.broadcast %256 : vector<16x1xf32> to vector<16x4xf32>
    %261 = arith.mulf %259, %260 : vector<16x4xf32>
    %262 = vector.broadcast %257 : vector<16x1xf32> to vector<16x4xf32>
    %263 = arith.addf %261, %262 : vector<16x4xf32>
    %cst_125 = arith.constant 0.000000e+00 : f32
    %264 = vector.broadcast %cst_125 : f32 to vector<32x4xf32>
    %c0_126 = arith.constant 0 : index
    %c108 = arith.constant 108 : index
    %265 = vector.load %arg2[%c0_126, %c108] : memref<32x532xf32, #tpu.memory_space<vmem>>, vector<32x16xf32>
    %266 = tpu.iota {dimensions = array<i32: 0>} : vector<4x4xi32>
    %267 = tpu.iota {dimensions = array<i32: 1>} : vector<4x4xi32>
    %c1_i32_127 = arith.constant 1 : i32
    %268 = vector.broadcast %c1_i32_127 : i32 to vector<4x4xi32>
    %269 = arith.muli %267, %268 : vector<4x4xi32>
    %c-1_i32_128 = arith.constant -1 : i32
    %270 = vector.broadcast %c-1_i32_128 : i32 to vector<4x4xi32>
    %271 = arith.addi %269, %270 : vector<4x4xi32>
    %272 = arith.cmpi eq, %266, %271 : vector<4x4xi32>
    %cst_129 = arith.constant 1.000000e+00 : f32
    %cst_130 = arith.constant 0.000000e+00 : f32
    %273 = vector.broadcast %cst_129 : f32 to vector<4x4xf32>
    %274 = vector.broadcast %cst_130 : f32 to vector<4x4xf32>
    %275 = arith.select %272, %273, %274 : vector<4x4xi1>, vector<4x4xf32>
    %cst_131 = arith.constant dense<0.000000e+00> : vector<16x4xf32>
    %276 = tpu.matmul %263, %275, %cst_131 {dimension_numbers = #tpu.dot_dimension_numbers<[1], [0], [0], [1], [0, 0, 1, 1], [], []>} : vector<16x4xf32>, vector<4x4xf32>, vector<16x4xf32> -> vector<16x4xf32>
    %cst_132 = arith.constant dense<0.000000e+00> : vector<32x4xf32>
    %277 = tpu.matmul %265, %276, %cst_132 {dimension_numbers = #tpu.dot_dimension_numbers<[1], [0], [0], [1], [0, 0, 1, 1], [], []>} : vector<32x16xf32>, vector<16x4xf32>, vector<32x4xf32> -> vector<32x4xf32>
    %278 = arith.addf %264, %277 : vector<32x4xf32>
    %c0_133 = arith.constant 0 : index
    %c124 = arith.constant 124 : index
    %279 = vector.load %arg2[%c0_133, %c124] : memref<32x532xf32, #tpu.memory_space<vmem>>, vector<32x16xf32>
    %280 = tpu.iota {dimensions = array<i32: 0>} : vector<4x4xi32>
    %281 = tpu.iota {dimensions = array<i32: 1>} : vector<4x4xi32>
    %c1_i32_134 = arith.constant 1 : i32
    %282 = vector.broadcast %c1_i32_134 : i32 to vector<4x4xi32>
    %283 = arith.muli %281, %282 : vector<4x4xi32>
    %c0_i32_135 = arith.constant 0 : i32
    %284 = vector.broadcast %c0_i32_135 : i32 to vector<4x4xi32>
    %285 = arith.addi %283, %284 : vector<4x4xi32>
    %286 = arith.cmpi eq, %280, %285 : vector<4x4xi32>
    %cst_136 = arith.constant 1.000000e+00 : f32
    %cst_137 = arith.constant 0.000000e+00 : f32
    %287 = vector.broadcast %cst_136 : f32 to vector<4x4xf32>
    %288 = vector.broadcast %cst_137 : f32 to vector<4x4xf32>
    %289 = arith.select %286, %287, %288 : vector<4x4xi1>, vector<4x4xf32>
    %cst_138 = arith.constant dense<0.000000e+00> : vector<16x4xf32>
    %290 = tpu.matmul %263, %289, %cst_138 {dimension_numbers = #tpu.dot_dimension_numbers<[1], [0], [0], [1], [0, 0, 1, 1], [], []>} : vector<16x4xf32>, vector<4x4xf32>, vector<16x4xf32> -> vector<16x4xf32>
    %cst_139 = arith.constant dense<0.000000e+00> : vector<32x4xf32>
    %291 = tpu.matmul %279, %290, %cst_139 {dimension_numbers = #tpu.dot_dimension_numbers<[1], [0], [0], [1], [0, 0, 1, 1], [], []>} : vector<32x16xf32>, vector<16x4xf32>, vector<32x4xf32> -> vector<32x4xf32>
    %292 = arith.addf %278, %291 : vector<32x4xf32>
    %c0_140 = arith.constant 0 : index
    %c140 = arith.constant 140 : index
    %293 = vector.load %arg2[%c0_140, %c140] : memref<32x532xf32, #tpu.memory_space<vmem>>, vector<32x16xf32>
    %294 = tpu.iota {dimensions = array<i32: 0>} : vector<4x4xi32>
    %295 = tpu.iota {dimensions = array<i32: 1>} : vector<4x4xi32>
    %c1_i32_141 = arith.constant 1 : i32
    %296 = vector.broadcast %c1_i32_141 : i32 to vector<4x4xi32>
    %297 = arith.muli %295, %296 : vector<4x4xi32>
    %c1_i32_142 = arith.constant 1 : i32
    %298 = vector.broadcast %c1_i32_142 : i32 to vector<4x4xi32>
    %299 = arith.addi %297, %298 : vector<4x4xi32>
    %300 = arith.cmpi eq, %294, %299 : vector<4x4xi32>
    %cst_143 = arith.constant 1.000000e+00 : f32
    %cst_144 = arith.constant 0.000000e+00 : f32
    %301 = vector.broadcast %cst_143 : f32 to vector<4x4xf32>
    %302 = vector.broadcast %cst_144 : f32 to vector<4x4xf32>
    %303 = arith.select %300, %301, %302 : vector<4x4xi1>, vector<4x4xf32>
    %cst_145 = arith.constant dense<0.000000e+00> : vector<16x4xf32>
    %304 = tpu.matmul %263, %303, %cst_145 {dimension_numbers = #tpu.dot_dimension_numbers<[1], [0], [0], [1], [0, 0, 1, 1], [], []>} : vector<16x4xf32>, vector<4x4xf32>, vector<16x4xf32> -> vector<16x4xf32>
    %cst_146 = arith.constant dense<0.000000e+00> : vector<32x4xf32>
    %305 = tpu.matmul %293, %304, %cst_146 {dimension_numbers = #tpu.dot_dimension_numbers<[1], [0], [0], [1], [0, 0, 1, 1], [], []>} : vector<32x16xf32>, vector<16x4xf32>, vector<32x4xf32> -> vector<32x4xf32>
    %306 = arith.addf %292, %305 : vector<32x4xf32>
    %c0_147 = arith.constant 0 : index
    %c12_148 = arith.constant 12 : index
    %307 = vector.load %arg3[%c0_147, %c12_148] : memref<32x36xf32, #tpu.memory_space<vmem>>, vector<32x1xf32>
    %308 = vector.broadcast %307 : vector<32x1xf32> to vector<32x4xf32>
    %309 = arith.addf %306, %308 : vector<32x4xf32>
    %c0_149 = arith.constant 0 : index
    %c13 = arith.constant 13 : index
    %310 = vector.load %arg3[%c0_149, %c13] : memref<32x36xf32, #tpu.memory_space<vmem>>, vector<32x1xf32>
    %c0_150 = arith.constant 0 : index
    %c14 = arith.constant 14 : index
    %311 = vector.load %arg3[%c0_150, %c14] : memref<32x36xf32, #tpu.memory_space<vmem>>, vector<32x1xf32>
    %cst_151 = arith.constant 0.000000e+00 : f32
    %312 = vector.broadcast %cst_151 : f32 to vector<32x4xf32>
    %313 = arith.maximumf %309, %312 : vector<32x4xf32>
    %314 = vector.broadcast %310 : vector<32x1xf32> to vector<32x4xf32>
    %315 = arith.mulf %313, %314 : vector<32x4xf32>
    %316 = vector.broadcast %311 : vector<32x1xf32> to vector<32x4xf32>
    %317 = arith.addf %315, %316 : vector<32x4xf32>
    %cst_152 = arith.constant 0.000000e+00 : f32
    %318 = vector.broadcast %cst_152 : f32 to vector<32x4xf32>
    %c0_153 = arith.constant 0 : index
    %c156 = arith.constant 156 : index
    %319 = vector.load %arg2[%c0_153, %c156] : memref<32x532xf32, #tpu.memory_space<vmem>>, vector<32x32xf32>
    %320 = tpu.iota {dimensions = array<i32: 0>} : vector<4x4xi32>
    %321 = tpu.iota {dimensions = array<i32: 1>} : vector<4x4xi32>
    %c1_i32_154 = arith.constant 1 : i32
    %322 = vector.broadcast %c1_i32_154 : i32 to vector<4x4xi32>
    %323 = arith.muli %321, %322 : vector<4x4xi32>
    %c-1_i32_155 = arith.constant -1 : i32
    %324 = vector.broadcast %c-1_i32_155 : i32 to vector<4x4xi32>
    %325 = arith.addi %323, %324 : vector<4x4xi32>
    %326 = arith.cmpi eq, %320, %325 : vector<4x4xi32>
    %cst_156 = arith.constant 1.000000e+00 : f32
    %cst_157 = arith.constant 0.000000e+00 : f32
    %327 = vector.broadcast %cst_156 : f32 to vector<4x4xf32>
    %328 = vector.broadcast %cst_157 : f32 to vector<4x4xf32>
    %329 = arith.select %326, %327, %328 : vector<4x4xi1>, vector<4x4xf32>
    %cst_158 = arith.constant dense<0.000000e+00> : vector<32x4xf32>
    %330 = tpu.matmul %317, %329, %cst_158 {dimension_numbers = #tpu.dot_dimension_numbers<[1], [0], [0], [1], [0, 0, 1, 1], [], []>} : vector<32x4xf32>, vector<4x4xf32>, vector<32x4xf32> -> vector<32x4xf32>
    %cst_159 = arith.constant dense<0.000000e+00> : vector<32x4xf32>
    %331 = tpu.matmul %319, %330, %cst_159 {dimension_numbers = #tpu.dot_dimension_numbers<[1], [0], [0], [1], [0, 0, 1, 1], [], []>} : vector<32x32xf32>, vector<32x4xf32>, vector<32x4xf32> -> vector<32x4xf32>
    %332 = arith.addf %318, %331 : vector<32x4xf32>
    %c0_160 = arith.constant 0 : index
    %c188 = arith.constant 188 : index
    %333 = vector.load %arg2[%c0_160, %c188] : memref<32x532xf32, #tpu.memory_space<vmem>>, vector<32x32xf32>
    %334 = tpu.iota {dimensions = array<i32: 0>} : vector<4x4xi32>
    %335 = tpu.iota {dimensions = array<i32: 1>} : vector<4x4xi32>
    %c1_i32_161 = arith.constant 1 : i32
    %336 = vector.broadcast %c1_i32_161 : i32 to vector<4x4xi32>
    %337 = arith.muli %335, %336 : vector<4x4xi32>
    %c0_i32_162 = arith.constant 0 : i32
    %338 = vector.broadcast %c0_i32_162 : i32 to vector<4x4xi32>
    %339 = arith.addi %337, %338 : vector<4x4xi32>
    %340 = arith.cmpi eq, %334, %339 : vector<4x4xi32>
    %cst_163 = arith.constant 1.000000e+00 : f32
    %cst_164 = arith.constant 0.000000e+00 : f32
    %341 = vector.broadcast %cst_163 : f32 to vector<4x4xf32>
    %342 = vector.broadcast %cst_164 : f32 to vector<4x4xf32>
    %343 = arith.select %340, %341, %342 : vector<4x4xi1>, vector<4x4xf32>
    %cst_165 = arith.constant dense<0.000000e+00> : vector<32x4xf32>
    %344 = tpu.matmul %317, %343, %cst_165 {dimension_numbers = #tpu.dot_dimension_numbers<[1], [0], [0], [1], [0, 0, 1, 1], [], []>} : vector<32x4xf32>, vector<4x4xf32>, vector<32x4xf32> -> vector<32x4xf32>
    %cst_166 = arith.constant dense<0.000000e+00> : vector<32x4xf32>
    %345 = tpu.matmul %333, %344, %cst_166 {dimension_numbers = #tpu.dot_dimension_numbers<[1], [0], [0], [1], [0, 0, 1, 1], [], []>} : vector<32x32xf32>, vector<32x4xf32>, vector<32x4xf32> -> vector<32x4xf32>
    %346 = arith.addf %332, %345 : vector<32x4xf32>
    %c0_167 = arith.constant 0 : index
    %c220 = arith.constant 220 : index
    %347 = vector.load %arg2[%c0_167, %c220] : memref<32x532xf32, #tpu.memory_space<vmem>>, vector<32x32xf32>
    %348 = tpu.iota {dimensions = array<i32: 0>} : vector<4x4xi32>
    %349 = tpu.iota {dimensions = array<i32: 1>} : vector<4x4xi32>
    %c1_i32_168 = arith.constant 1 : i32
    %350 = vector.broadcast %c1_i32_168 : i32 to vector<4x4xi32>
    %351 = arith.muli %349, %350 : vector<4x4xi32>
    %c1_i32_169 = arith.constant 1 : i32
    %352 = vector.broadcast %c1_i32_169 : i32 to vector<4x4xi32>
    %353 = arith.addi %351, %352 : vector<4x4xi32>
    %354 = arith.cmpi eq, %348, %353 : vector<4x4xi32>
    %cst_170 = arith.constant 1.000000e+00 : f32
    %cst_171 = arith.constant 0.000000e+00 : f32
    %355 = vector.broadcast %cst_170 : f32 to vector<4x4xf32>
    %356 = vector.broadcast %cst_171 : f32 to vector<4x4xf32>
    %357 = arith.select %354, %355, %356 : vector<4x4xi1>, vector<4x4xf32>
    %cst_172 = arith.constant dense<0.000000e+00> : vector<32x4xf32>
    %358 = tpu.matmul %317, %357, %cst_172 {dimension_numbers = #tpu.dot_dimension_numbers<[1], [0], [0], [1], [0, 0, 1, 1], [], []>} : vector<32x4xf32>, vector<4x4xf32>, vector<32x4xf32> -> vector<32x4xf32>
    %cst_173 = arith.constant dense<0.000000e+00> : vector<32x4xf32>
    %359 = tpu.matmul %347, %358, %cst_173 {dimension_numbers = #tpu.dot_dimension_numbers<[1], [0], [0], [1], [0, 0, 1, 1], [], []>} : vector<32x32xf32>, vector<32x4xf32>, vector<32x4xf32> -> vector<32x4xf32>
    %360 = arith.addf %346, %359 : vector<32x4xf32>
    %c0_174 = arith.constant 0 : index
    %c15 = arith.constant 15 : index
    %361 = vector.load %arg3[%c0_174, %c15] : memref<32x36xf32, #tpu.memory_space<vmem>>, vector<32x1xf32>
    %362 = vector.broadcast %361 : vector<32x1xf32> to vector<32x4xf32>
    %363 = arith.addf %360, %362 : vector<32x4xf32>
    %364 = tpu.iota {dimensions = array<i32: 0>} : vector<4x2xi32>
    %365 = tpu.iota {dimensions = array<i32: 1>} : vector<4x2xi32>
    %c2_i32_175 = arith.constant 2 : i32
    %366 = vector.broadcast %c2_i32_175 : i32 to vector<4x2xi32>
    %367 = arith.muli %365, %366 : vector<4x2xi32>
    %c0_i32_176 = arith.constant 0 : i32
    %368 = vector.broadcast %c0_i32_176 : i32 to vector<4x2xi32>
    %369 = arith.addi %367, %368 : vector<4x2xi32>
    %370 = arith.cmpi eq, %364, %369 : vector<4x2xi32>
    %cst_177 = arith.constant 1.000000e+00 : f32
    %cst_178 = arith.constant 0.000000e+00 : f32
    %371 = vector.broadcast %cst_177 : f32 to vector<4x2xf32>
    %372 = vector.broadcast %cst_178 : f32 to vector<4x2xf32>
    %373 = arith.select %370, %371, %372 : vector<4x2xi1>, vector<4x2xf32>
    %cst_179 = arith.constant dense<0.000000e+00> : vector<32x2xf32>
    %374 = tpu.matmul %363, %373, %cst_179 {dimension_numbers = #tpu.dot_dimension_numbers<[1], [0], [0], [1], [0, 0, 1, 1], [], []>} : vector<32x4xf32>, vector<4x2xf32>, vector<32x2xf32> -> vector<32x2xf32>
    %375 = tpu.iota {dimensions = array<i32: 0>} : vector<4x2xi32>
    %376 = tpu.iota {dimensions = array<i32: 1>} : vector<4x2xi32>
    %c2_i32_180 = arith.constant 2 : i32
    %377 = vector.broadcast %c2_i32_180 : i32 to vector<4x2xi32>
    %378 = arith.muli %376, %377 : vector<4x2xi32>
    %c1_i32_181 = arith.constant 1 : i32
    %379 = vector.broadcast %c1_i32_181 : i32 to vector<4x2xi32>
    %380 = arith.addi %378, %379 : vector<4x2xi32>
    %381 = arith.cmpi eq, %375, %380 : vector<4x2xi32>
    %cst_182 = arith.constant 1.000000e+00 : f32
    %cst_183 = arith.constant 0.000000e+00 : f32
    %382 = vector.broadcast %cst_182 : f32 to vector<4x2xf32>
    %383 = vector.broadcast %cst_183 : f32 to vector<4x2xf32>
    %384 = arith.select %381, %382, %383 : vector<4x2xi1>, vector<4x2xf32>
    %cst_184 = arith.constant dense<0.000000e+00> : vector<32x2xf32>
    %385 = tpu.matmul %363, %384, %cst_184 {dimension_numbers = #tpu.dot_dimension_numbers<[1], [0], [0], [1], [0, 0, 1, 1], [], []>} : vector<32x4xf32>, vector<4x2xf32>, vector<32x2xf32> -> vector<32x2xf32>
    %386 = arith.maximumf %374, %385 : vector<32x2xf32>
    %c0_185 = arith.constant 0 : index
    %c16 = arith.constant 16 : index
    %387 = vector.load %arg3[%c0_185, %c16] : memref<32x36xf32, #tpu.memory_space<vmem>>, vector<32x1xf32>
    %c0_186 = arith.constant 0 : index
    %c17 = arith.constant 17 : index
    %388 = vector.load %arg3[%c0_186, %c17] : memref<32x36xf32, #tpu.memory_space<vmem>>, vector<32x1xf32>
    %cst_187 = arith.constant 0.000000e+00 : f32
    %389 = vector.broadcast %cst_187 : f32 to vector<32x2xf32>
    %390 = arith.maximumf %386, %389 : vector<32x2xf32>
    %391 = vector.broadcast %387 : vector<32x1xf32> to vector<32x2xf32>
    %392 = arith.mulf %390, %391 : vector<32x2xf32>
    %393 = vector.broadcast %388 : vector<32x1xf32> to vector<32x2xf32>
    %394 = arith.addf %392, %393 : vector<32x2xf32>
    %c0_188 = arith.constant 0 : index
    %c0_189 = arith.constant 0 : index
    %c0_190 = arith.constant 0 : index
    %395 = vector.load %arg4[%c0_188, %c0_189, %c0_190] : memref<1x8x8xf32, #tpu.memory_space<vmem>>, vector<1x8x8xf32>
    %396 = vector.shape_cast %395 : vector<1x8x8xf32> to vector<8x8xf32>
    %397 = vector.shape_cast %132 : vector<8x8xf32> to vector<1x8x8xf32>
    tpu.vector_store %arg4[%c0_188, %c0_189, %c0_190], %397 {strides = array<i32>} : memref<1x8x8xf32, #tpu.memory_space<vmem>>, vector<1x8x8xf32>,
    %c0_191 = arith.constant 0 : index
    %c0_192 = arith.constant 0 : index
    %c0_193 = arith.constant 0 : index
    %398 = vector.load %arg5[%c0_191, %c0_192, %c0_193] : memref<1x16x4xf32, #tpu.memory_space<vmem>>, vector<1x16x4xf32>
    %399 = vector.shape_cast %398 : vector<1x16x4xf32> to vector<16x4xf32>
    %400 = vector.shape_cast %263 : vector<16x4xf32> to vector<1x16x4xf32>
    tpu.vector_store %arg5[%c0_191, %c0_192, %c0_193], %400 {strides = array<i32>} : memref<1x16x4xf32, #tpu.memory_space<vmem>>, vector<1x16x4xf32>,
    %c0_194 = arith.constant 0 : index
    %c0_195 = arith.constant 0 : index
    %c0_196 = arith.constant 0 : index
    %401 = vector.load %arg6[%c0_194, %c0_195, %c0_196] : memref<1x32x2xf32, #tpu.memory_space<vmem>>, vector<1x32x2xf32>
    %402 = vector.shape_cast %401 : vector<1x32x2xf32> to vector<32x2xf32>
    %403 = vector.shape_cast %394 : vector<32x2xf32> to vector<1x32x2xf32>
    tpu.vector_store %arg6[%c0_194, %c0_195, %c0_196], %403 {strides = array<i32>} : memref<1x32x2xf32, #tpu.memory_space<vmem>>, vector<1x32x2xf32>,
    %c0_197 = arith.constant 0 : index
    %c18 = arith.constant 18 : index
    %404 = vector.load %arg3[%c0_197, %c18] : memref<32x36xf32, #tpu.memory_space<vmem>>, vector<32x1xf32>
    %c0_198 = arith.constant 0 : index
    %c19 = arith.constant 19 : index
    %405 = vector.load %arg3[%c0_198, %c19] : memref<32x36xf32, #tpu.memory_space<vmem>>, vector<32x1xf32>
    %cst_199 = arith.constant 0.000000e+00 : f32
    %406 = vector.broadcast %cst_199 : f32 to vector<32x2xf32>
    %407 = arith.maximumf %394, %406 : vector<32x2xf32>
    %408 = vector.broadcast %404 : vector<32x1xf32> to vector<32x2xf32>
    %409 = arith.mulf %407, %408 : vector<32x2xf32>
    %410 = vector.broadcast %405 : vector<32x1xf32> to vector<32x2xf32>
    %411 = arith.addf %409, %410 : vector<32x2xf32>
    %cst_200 = arith.constant 0.000000e+00 : f32
    %412 = vector.broadcast %cst_200 : f32 to vector<32x4xf32>
    %c0_201 = arith.constant 0 : index
    %c252 = arith.constant 252 : index
    %413 = vector.load %arg2[%c0_201, %c252] : memref<32x532xf32, #tpu.memory_space<vmem>>, vector<32x32xf32>
    %cst_202 = arith.constant dense<0.000000e+00> : vector<32x2xf32>
    %414 = tpu.matmul %413, %411, %cst_202 {dimension_numbers = #tpu.dot_dimension_numbers<[1], [0], [0], [1], [0, 0, 1, 1], [], []>} : vector<32x32xf32>, vector<32x2xf32>, vector<32x2xf32> -> vector<32x2xf32>
    %415 = tpu.iota {dimensions = array<i32: 0>} : vector<2x4xi32>
    %416 = tpu.iota {dimensions = array<i32: 1>} : vector<2x4xi32>
    %c2_i32_203 = arith.constant 2 : i32
    %417 = vector.broadcast %c2_i32_203 : i32 to vector<2x4xi32>
    %418 = arith.muli %415, %417 : vector<2x4xi32>
    %c0_i32_204 = arith.constant 0 : i32
    %419 = vector.broadcast %c0_i32_204 : i32 to vector<2x4xi32>
    %420 = arith.addi %418, %419 : vector<2x4xi32>
    %421 = arith.cmpi eq, %416, %420 : vector<2x4xi32>
    %cst_205 = arith.constant 1.000000e+00 : f32
    %cst_206 = arith.constant 0.000000e+00 : f32
    %422 = vector.broadcast %cst_205 : f32 to vector<2x4xf32>
    %423 = vector.broadcast %cst_206 : f32 to vector<2x4xf32>
    %424 = arith.select %421, %422, %423 : vector<2x4xi1>, vector<2x4xf32>
    %cst_207 = arith.constant dense<0.000000e+00> : vector<32x4xf32>
    %425 = tpu.matmul %414, %424, %cst_207 {dimension_numbers = #tpu.dot_dimension_numbers<[1], [0], [0], [1], [0, 0, 1, 1], [], []>} : vector<32x2xf32>, vector<2x4xf32>, vector<32x4xf32> -> vector<32x4xf32>
    %426 = arith.addf %412, %425 : vector<32x4xf32>
    %c0_208 = arith.constant 0 : index
    %c284 = arith.constant 284 : index
    %427 = vector.load %arg2[%c0_208, %c284] : memref<32x532xf32, #tpu.memory_space<vmem>>, vector<32x32xf32>
    %cst_209 = arith.constant dense<0.000000e+00> : vector<32x2xf32>
    %428 = tpu.matmul %427, %411, %cst_209 {dimension_numbers = #tpu.dot_dimension_numbers<[1], [0], [0], [1], [0, 0, 1, 1], [], []>} : vector<32x32xf32>, vector<32x2xf32>, vector<32x2xf32> -> vector<32x2xf32>
    %429 = tpu.iota {dimensions = array<i32: 0>} : vector<2x4xi32>
    %430 = tpu.iota {dimensions = array<i32: 1>} : vector<2x4xi32>
    %c2_i32_210 = arith.constant 2 : i32
    %431 = vector.broadcast %c2_i32_210 : i32 to vector<2x4xi32>
    %432 = arith.muli %429, %431 : vector<2x4xi32>
    %c1_i32_211 = arith.constant 1 : i32
    %433 = vector.broadcast %c1_i32_211 : i32 to vector<2x4xi32>
    %434 = arith.addi %432, %433 : vector<2x4xi32>
    %435 = arith.cmpi eq, %430, %434 : vector<2x4xi32>
    %cst_212 = arith.constant 1.000000e+00 : f32
    %cst_213 = arith.constant 0.000000e+00 : f32
    %436 = vector.broadcast %cst_212 : f32 to vector<2x4xf32>
    %437 = vector.broadcast %cst_213 : f32 to vector<2x4xf32>
    %438 = arith.select %435, %436, %437 : vector<2x4xi1>, vector<2x4xf32>
    %cst_214 = arith.constant dense<0.000000e+00> : vector<32x4xf32>
    %439 = tpu.matmul %428, %438, %cst_214 {dimension_numbers = #tpu.dot_dimension_numbers<[1], [0], [0], [1], [0, 0, 1, 1], [], []>} : vector<32x2xf32>, vector<2x4xf32>, vector<32x4xf32> -> vector<32x4xf32>
    %440 = arith.addf %426, %439 : vector<32x4xf32>
    %c0_215 = arith.constant 0 : index
    %c20_216 = arith.constant 20 : index
    %441 = vector.load %arg3[%c0_215, %c20_216] : memref<32x36xf32, #tpu.memory_space<vmem>>, vector<32x1xf32>
    %442 = vector.broadcast %441 : vector<32x1xf32> to vector<32x4xf32>
    %443 = arith.addf %440, %442 : vector<32x4xf32>
    %c0_217 = arith.constant 0 : index
    %c21 = arith.constant 21 : index
    %444 = vector.load %arg3[%c0_217, %c21] : memref<32x36xf32, #tpu.memory_space<vmem>>, vector<32x1xf32>
    %c0_218 = arith.constant 0 : index
    %c22 = arith.constant 22 : index
    %445 = vector.load %arg3[%c0_218, %c22] : memref<32x36xf32, #tpu.memory_space<vmem>>, vector<32x1xf32>
    %cst_219 = arith.constant 0.000000e+00 : f32
    %446 = vector.broadcast %cst_219 : f32 to vector<32x4xf32>
    %447 = arith.maximumf %443, %446 : vector<32x4xf32>
    %448 = vector.broadcast %444 : vector<32x1xf32> to vector<32x4xf32>
    %449 = arith.mulf %447, %448 : vector<32x4xf32>
    %450 = vector.broadcast %445 : vector<32x1xf32> to vector<32x4xf32>
    %451 = arith.addf %449, %450 : vector<32x4xf32>
    %cst_220 = arith.constant 0.000000e+00 : f32
    %452 = vector.broadcast %cst_220 : f32 to vector<16x4xf32>
    %c0_221 = arith.constant 0 : index
    %c316 = arith.constant 316 : index
    %453 = vector.load %arg2[%c0_221, %c316] : memref<32x532xf32, #tpu.memory_space<vmem>>, vector<16x32xf32>
    %454 = tpu.iota {dimensions = array<i32: 0>} : vector<4x4xi32>
    %455 = tpu.iota {dimensions = array<i32: 1>} : vector<4x4xi32>
    %c1_i32_222 = arith.constant 1 : i32
    %456 = vector.broadcast %c1_i32_222 : i32 to vector<4x4xi32>
    %457 = arith.muli %455, %456 : vector<4x4xi32>
    %c-1_i32_223 = arith.constant -1 : i32
    %458 = vector.broadcast %c-1_i32_223 : i32 to vector<4x4xi32>
    %459 = arith.addi %457, %458 : vector<4x4xi32>
    %460 = arith.cmpi eq, %454, %459 : vector<4x4xi32>
    %cst_224 = arith.constant 1.000000e+00 : f32
    %cst_225 = arith.constant 0.000000e+00 : f32
    %461 = vector.broadcast %cst_224 : f32 to vector<4x4xf32>
    %462 = vector.broadcast %cst_225 : f32 to vector<4x4xf32>
    %463 = arith.select %460, %461, %462 : vector<4x4xi1>, vector<4x4xf32>
    %cst_226 = arith.constant dense<0.000000e+00> : vector<32x4xf32>
    %464 = tpu.matmul %451, %463, %cst_226 {dimension_numbers = #tpu.dot_dimension_numbers<[1], [0], [0], [1], [0, 0, 1, 1], [], []>} : vector<32x4xf32>, vector<4x4xf32>, vector<32x4xf32> -> vector<32x4xf32>
    %cst_227 = arith.constant dense<0.000000e+00> : vector<16x4xf32>
    %465 = tpu.matmul %453, %464, %cst_227 {dimension_numbers = #tpu.dot_dimension_numbers<[1], [0], [0], [1], [0, 0, 1, 1], [], []>} : vector<16x32xf32>, vector<32x4xf32>, vector<16x4xf32> -> vector<16x4xf32>
    %466 = arith.addf %452, %465 : vector<16x4xf32>
    %c0_228 = arith.constant 0 : index
    %c348 = arith.constant 348 : index
    %467 = vector.load %arg2[%c0_228, %c348] : memref<32x532xf32, #tpu.memory_space<vmem>>, vector<16x32xf32>
    %468 = tpu.iota {dimensions = array<i32: 0>} : vector<4x4xi32>
    %469 = tpu.iota {dimensions = array<i32: 1>} : vector<4x4xi32>
    %c1_i32_229 = arith.constant 1 : i32
    %470 = vector.broadcast %c1_i32_229 : i32 to vector<4x4xi32>
    %471 = arith.muli %469, %470 : vector<4x4xi32>
    %c0_i32_230 = arith.constant 0 : i32
    %472 = vector.broadcast %c0_i32_230 : i32 to vector<4x4xi32>
    %473 = arith.addi %471, %472 : vector<4x4xi32>
    %474 = arith.cmpi eq, %468, %473 : vector<4x4xi32>
    %cst_231 = arith.constant 1.000000e+00 : f32
    %cst_232 = arith.constant 0.000000e+00 : f32
    %475 = vector.broadcast %cst_231 : f32 to vector<4x4xf32>
    %476 = vector.broadcast %cst_232 : f32 to vector<4x4xf32>
    %477 = arith.select %474, %475, %476 : vector<4x4xi1>, vector<4x4xf32>
    %cst_233 = arith.constant dense<0.000000e+00> : vector<32x4xf32>
    %478 = tpu.matmul %451, %477, %cst_233 {dimension_numbers = #tpu.dot_dimension_numbers<[1], [0], [0], [1], [0, 0, 1, 1], [], []>} : vector<32x4xf32>, vector<4x4xf32>, vector<32x4xf32> -> vector<32x4xf32>
    %cst_234 = arith.constant dense<0.000000e+00> : vector<16x4xf32>
    %479 = tpu.matmul %467, %478, %cst_234 {dimension_numbers = #tpu.dot_dimension_numbers<[1], [0], [0], [1], [0, 0, 1, 1], [], []>} : vector<16x32xf32>, vector<32x4xf32>, vector<16x4xf32> -> vector<16x4xf32>
    %480 = arith.addf %466, %479 : vector<16x4xf32>
    %c0_235 = arith.constant 0 : index
    %c380 = arith.constant 380 : index
    %481 = vector.load %arg2[%c0_235, %c380] : memref<32x532xf32, #tpu.memory_space<vmem>>, vector<16x32xf32>
    %482 = tpu.iota {dimensions = array<i32: 0>} : vector<4x4xi32>
    %483 = tpu.iota {dimensions = array<i32: 1>} : vector<4x4xi32>
    %c1_i32_236 = arith.constant 1 : i32
    %484 = vector.broadcast %c1_i32_236 : i32 to vector<4x4xi32>
    %485 = arith.muli %483, %484 : vector<4x4xi32>
    %c1_i32_237 = arith.constant 1 : i32
    %486 = vector.broadcast %c1_i32_237 : i32 to vector<4x4xi32>
    %487 = arith.addi %485, %486 : vector<4x4xi32>
    %488 = arith.cmpi eq, %482, %487 : vector<4x4xi32>
    %cst_238 = arith.constant 1.000000e+00 : f32
    %cst_239 = arith.constant 0.000000e+00 : f32
    %489 = vector.broadcast %cst_238 : f32 to vector<4x4xf32>
    %490 = vector.broadcast %cst_239 : f32 to vector<4x4xf32>
    %491 = arith.select %488, %489, %490 : vector<4x4xi1>, vector<4x4xf32>
    %cst_240 = arith.constant dense<0.000000e+00> : vector<32x4xf32>
    %492 = tpu.matmul %451, %491, %cst_240 {dimension_numbers = #tpu.dot_dimension_numbers<[1], [0], [0], [1], [0, 0, 1, 1], [], []>} : vector<32x4xf32>, vector<4x4xf32>, vector<32x4xf32> -> vector<32x4xf32>
    %cst_241 = arith.constant dense<0.000000e+00> : vector<16x4xf32>
    %493 = tpu.matmul %481, %492, %cst_241 {dimension_numbers = #tpu.dot_dimension_numbers<[1], [0], [0], [1], [0, 0, 1, 1], [], []>} : vector<16x32xf32>, vector<32x4xf32>, vector<16x4xf32> -> vector<16x4xf32>
    %494 = arith.addf %480, %493 : vector<16x4xf32>
    %c0_242 = arith.constant 0 : index
    %c23 = arith.constant 23 : index
    %495 = vector.load %arg3[%c0_242, %c23] : memref<32x36xf32, #tpu.memory_space<vmem>>, vector<16x1xf32>
    %496 = vector.broadcast %495 : vector<16x1xf32> to vector<16x4xf32>
    %497 = arith.addf %494, %496 : vector<16x4xf32>
    %c0_243 = arith.constant 0 : index
    %c24 = arith.constant 24 : index
    %498 = vector.load %arg3[%c0_243, %c24] : memref<32x36xf32, #tpu.memory_space<vmem>>, vector<16x1xf32>
    %c0_244 = arith.constant 0 : index
    %c25 = arith.constant 25 : index
    %499 = vector.load %arg3[%c0_244, %c25] : memref<32x36xf32, #tpu.memory_space<vmem>>, vector<16x1xf32>
    %cst_245 = arith.constant 0.000000e+00 : f32
    %500 = vector.broadcast %cst_245 : f32 to vector<16x4xf32>
    %501 = arith.maximumf %497, %500 : vector<16x4xf32>
    %502 = vector.broadcast %498 : vector<16x1xf32> to vector<16x4xf32>
    %503 = arith.mulf %501, %502 : vector<16x4xf32>
    %504 = vector.broadcast %499 : vector<16x1xf32> to vector<16x4xf32>
    %505 = arith.addf %503, %504 : vector<16x4xf32>
    %cst_246 = arith.constant 0.000000e+00 : f32
    %506 = vector.broadcast %cst_246 : f32 to vector<16x8xf32>
    %c0_247 = arith.constant 0 : index
    %c412 = arith.constant 412 : index
    %507 = vector.load %arg2[%c0_247, %c412] : memref<32x532xf32, #tpu.memory_space<vmem>>, vector<16x16xf32>
    %cst_248 = arith.constant dense<0.000000e+00> : vector<16x4xf32>
    %508 = tpu.matmul %507, %505, %cst_248 {dimension_numbers = #tpu.dot_dimension_numbers<[1], [0], [0], [1], [0, 0, 1, 1], [], []>} : vector<16x16xf32>, vector<16x4xf32>, vector<16x4xf32> -> vector<16x4xf32>
    %509 = tpu.iota {dimensions = array<i32: 0>} : vector<4x8xi32>
    %510 = tpu.iota {dimensions = array<i32: 1>} : vector<4x8xi32>
    %c2_i32_249 = arith.constant 2 : i32
    %511 = vector.broadcast %c2_i32_249 : i32 to vector<4x8xi32>
    %512 = arith.muli %509, %511 : vector<4x8xi32>
    %c0_i32_250 = arith.constant 0 : i32
    %513 = vector.broadcast %c0_i32_250 : i32 to vector<4x8xi32>
    %514 = arith.addi %512, %513 : vector<4x8xi32>
    %515 = arith.cmpi eq, %510, %514 : vector<4x8xi32>
    %cst_251 = arith.constant 1.000000e+00 : f32
    %cst_252 = arith.constant 0.000000e+00 : f32
    %516 = vector.broadcast %cst_251 : f32 to vector<4x8xf32>
    %517 = vector.broadcast %cst_252 : f32 to vector<4x8xf32>
    %518 = arith.select %515, %516, %517 : vector<4x8xi1>, vector<4x8xf32>
    %cst_253 = arith.constant dense<0.000000e+00> : vector<16x8xf32>
    %519 = tpu.matmul %508, %518, %cst_253 {dimension_numbers = #tpu.dot_dimension_numbers<[1], [0], [0], [1], [0, 0, 1, 1], [], []>} : vector<16x4xf32>, vector<4x8xf32>, vector<16x8xf32> -> vector<16x8xf32>
    %520 = arith.addf %506, %519 : vector<16x8xf32>
    %c0_254 = arith.constant 0 : index
    %c428 = arith.constant 428 : index
    %521 = vector.load %arg2[%c0_254, %c428] : memref<32x532xf32, #tpu.memory_space<vmem>>, vector<16x16xf32>
    %cst_255 = arith.constant dense<0.000000e+00> : vector<16x4xf32>
    %522 = tpu.matmul %521, %505, %cst_255 {dimension_numbers = #tpu.dot_dimension_numbers<[1], [0], [0], [1], [0, 0, 1, 1], [], []>} : vector<16x16xf32>, vector<16x4xf32>, vector<16x4xf32> -> vector<16x4xf32>
    %523 = tpu.iota {dimensions = array<i32: 0>} : vector<4x8xi32>
    %524 = tpu.iota {dimensions = array<i32: 1>} : vector<4x8xi32>
    %c2_i32_256 = arith.constant 2 : i32
    %525 = vector.broadcast %c2_i32_256 : i32 to vector<4x8xi32>
    %526 = arith.muli %523, %525 : vector<4x8xi32>
    %c1_i32_257 = arith.constant 1 : i32
    %527 = vector.broadcast %c1_i32_257 : i32 to vector<4x8xi32>
    %528 = arith.addi %526, %527 : vector<4x8xi32>
    %529 = arith.cmpi eq, %524, %528 : vector<4x8xi32>
    %cst_258 = arith.constant 1.000000e+00 : f32
    %cst_259 = arith.constant 0.000000e+00 : f32
    %530 = vector.broadcast %cst_258 : f32 to vector<4x8xf32>
    %531 = vector.broadcast %cst_259 : f32 to vector<4x8xf32>
    %532 = arith.select %529, %530, %531 : vector<4x8xi1>, vector<4x8xf32>
    %cst_260 = arith.constant dense<0.000000e+00> : vector<16x8xf32>
    %533 = tpu.matmul %522, %532, %cst_260 {dimension_numbers = #tpu.dot_dimension_numbers<[1], [0], [0], [1], [0, 0, 1, 1], [], []>} : vector<16x4xf32>, vector<4x8xf32>, vector<16x8xf32> -> vector<16x8xf32>
    %534 = arith.addf %520, %533 : vector<16x8xf32>
    %c0_261 = arith.constant 0 : index
    %c26 = arith.constant 26 : index
    %535 = vector.load %arg3[%c0_261, %c26] : memref<32x36xf32, #tpu.memory_space<vmem>>, vector<16x1xf32>
    %536 = vector.broadcast %535 : vector<16x1xf32> to vector<16x8xf32>
    %537 = arith.addf %534, %536 : vector<16x8xf32>
    %c0_262 = arith.constant 0 : index
    %c27 = arith.constant 27 : index
    %538 = vector.load %arg3[%c0_262, %c27] : memref<32x36xf32, #tpu.memory_space<vmem>>, vector<16x1xf32>
    %c0_263 = arith.constant 0 : index
    %c28_264 = arith.constant 28 : index
    %539 = vector.load %arg3[%c0_263, %c28_264] : memref<32x36xf32, #tpu.memory_space<vmem>>, vector<16x1xf32>
    %cst_265 = arith.constant 0.000000e+00 : f32
    %540 = vector.broadcast %cst_265 : f32 to vector<16x8xf32>
    %541 = arith.maximumf %537, %540 : vector<16x8xf32>
    %542 = vector.broadcast %538 : vector<16x1xf32> to vector<16x8xf32>
    %543 = arith.mulf %541, %542 : vector<16x8xf32>
    %544 = vector.broadcast %539 : vector<16x1xf32> to vector<16x8xf32>
    %545 = arith.addf %543, %544 : vector<16x8xf32>
    %cst_266 = arith.constant 0.000000e+00 : f32
    %546 = vector.broadcast %cst_266 : f32 to vector<8x8xf32>
    %c0_267 = arith.constant 0 : index
    %c444 = arith.constant 444 : index
    %547 = vector.load %arg2[%c0_267, %c444] : memref<32x532xf32, #tpu.memory_space<vmem>>, vector<8x16xf32>
    %548 = tpu.iota {dimensions = array<i32: 0>} : vector<8x8xi32>
    %549 = tpu.iota {dimensions = array<i32: 1>} : vector<8x8xi32>
    %c1_i32_268 = arith.constant 1 : i32
    %550 = vector.broadcast %c1_i32_268 : i32 to vector<8x8xi32>
    %551 = arith.muli %549, %550 : vector<8x8xi32>
    %c-1_i32_269 = arith.constant -1 : i32
    %552 = vector.broadcast %c-1_i32_269 : i32 to vector<8x8xi32>
    %553 = arith.addi %551, %552 : vector<8x8xi32>
    %554 = arith.cmpi eq, %548, %553 : vector<8x8xi32>
    %cst_270 = arith.constant 1.000000e+00 : f32
    %cst_271 = arith.constant 0.000000e+00 : f32
    %555 = vector.broadcast %cst_270 : f32 to vector<8x8xf32>
    %556 = vector.broadcast %cst_271 : f32 to vector<8x8xf32>
    %557 = arith.select %554, %555, %556 : vector<8x8xi1>, vector<8x8xf32>
    %cst_272 = arith.constant dense<0.000000e+00> : vector<16x8xf32>
    %558 = tpu.matmul %545, %557, %cst_272 {dimension_numbers = #tpu.dot_dimension_numbers<[1], [0], [0], [1], [0, 0, 1, 1], [], []>} : vector<16x8xf32>, vector<8x8xf32>, vector<16x8xf32> -> vector<16x8xf32>
    %cst_273 = arith.constant dense<0.000000e+00> : vector<8x8xf32>
    %559 = tpu.matmul %547, %558, %cst_273 {dimension_numbers = #tpu.dot_dimension_numbers<[1], [0], [0], [1], [0, 0, 1, 1], [], []>} : vector<8x16xf32>, vector<16x8xf32>, vector<8x8xf32> -> vector<8x8xf32>
    %560 = arith.addf %546, %559 : vector<8x8xf32>
    %c0_274 = arith.constant 0 : index
    %c460 = arith.constant 460 : index
    %561 = vector.load %arg2[%c0_274, %c460] : memref<32x532xf32, #tpu.memory_space<vmem>>, vector<8x16xf32>
    %562 = tpu.iota {dimensions = array<i32: 0>} : vector<8x8xi32>
    %563 = tpu.iota {dimensions = array<i32: 1>} : vector<8x8xi32>
    %c1_i32_275 = arith.constant 1 : i32
    %564 = vector.broadcast %c1_i32_275 : i32 to vector<8x8xi32>
    %565 = arith.muli %563, %564 : vector<8x8xi32>
    %c0_i32_276 = arith.constant 0 : i32
    %566 = vector.broadcast %c0_i32_276 : i32 to vector<8x8xi32>
    %567 = arith.addi %565, %566 : vector<8x8xi32>
    %568 = arith.cmpi eq, %562, %567 : vector<8x8xi32>
    %cst_277 = arith.constant 1.000000e+00 : f32
    %cst_278 = arith.constant 0.000000e+00 : f32
    %569 = vector.broadcast %cst_277 : f32 to vector<8x8xf32>
    %570 = vector.broadcast %cst_278 : f32 to vector<8x8xf32>
    %571 = arith.select %568, %569, %570 : vector<8x8xi1>, vector<8x8xf32>
    %cst_279 = arith.constant dense<0.000000e+00> : vector<16x8xf32>
    %572 = tpu.matmul %545, %571, %cst_279 {dimension_numbers = #tpu.dot_dimension_numbers<[1], [0], [0], [1], [0, 0, 1, 1], [], []>} : vector<16x8xf32>, vector<8x8xf32>, vector<16x8xf32> -> vector<16x8xf32>
    %cst_280 = arith.constant dense<0.000000e+00> : vector<8x8xf32>
    %573 = tpu.matmul %561, %572, %cst_280 {dimension_numbers = #tpu.dot_dimension_numbers<[1], [0], [0], [1], [0, 0, 1, 1], [], []>} : vector<8x16xf32>, vector<16x8xf32>, vector<8x8xf32> -> vector<8x8xf32>
    %574 = arith.addf %560, %573 : vector<8x8xf32>
    %c0_281 = arith.constant 0 : index
    %c476 = arith.constant 476 : index
    %575 = vector.load %arg2[%c0_281, %c476] : memref<32x532xf32, #tpu.memory_space<vmem>>, vector<8x16xf32>
    %576 = tpu.iota {dimensions = array<i32: 0>} : vector<8x8xi32>
    %577 = tpu.iota {dimensions = array<i32: 1>} : vector<8x8xi32>
    %c1_i32_282 = arith.constant 1 : i32
    %578 = vector.broadcast %c1_i32_282 : i32 to vector<8x8xi32>
    %579 = arith.muli %577, %578 : vector<8x8xi32>
    %c1_i32_283 = arith.constant 1 : i32
    %580 = vector.broadcast %c1_i32_283 : i32 to vector<8x8xi32>
    %581 = arith.addi %579, %580 : vector<8x8xi32>
    %582 = arith.cmpi eq, %576, %581 : vector<8x8xi32>
    %cst_284 = arith.constant 1.000000e+00 : f32
    %cst_285 = arith.constant 0.000000e+00 : f32
    %583 = vector.broadcast %cst_284 : f32 to vector<8x8xf32>
    %584 = vector.broadcast %cst_285 : f32 to vector<8x8xf32>
    %585 = arith.select %582, %583, %584 : vector<8x8xi1>, vector<8x8xf32>
    %cst_286 = arith.constant dense<0.000000e+00> : vector<16x8xf32>
    %586 = tpu.matmul %545, %585, %cst_286 {dimension_numbers = #tpu.dot_dimension_numbers<[1], [0], [0], [1], [0, 0, 1, 1], [], []>} : vector<16x8xf32>, vector<8x8xf32>, vector<16x8xf32> -> vector<16x8xf32>
    %cst_287 = arith.constant dense<0.000000e+00> : vector<8x8xf32>
    %587 = tpu.matmul %575, %586, %cst_287 {dimension_numbers = #tpu.dot_dimension_numbers<[1], [0], [0], [1], [0, 0, 1, 1], [], []>} : vector<8x16xf32>, vector<16x8xf32>, vector<8x8xf32> -> vector<8x8xf32>
    %588 = arith.addf %574, %587 : vector<8x8xf32>
    %c0_288 = arith.constant 0 : index
    %c29 = arith.constant 29 : index
    %589 = vector.load %arg3[%c0_288, %c29] : memref<32x36xf32, #tpu.memory_space<vmem>>, vector<8x1xf32>
    %590 = vector.broadcast %589 : vector<8x1xf32> to vector<8x8xf32>
    %591 = arith.addf %588, %590 : vector<8x8xf32>
    %c0_289 = arith.constant 0 : index
    %c30 = arith.constant 30 : index
    %592 = vector.load %arg3[%c0_289, %c30] : memref<32x36xf32, #tpu.memory_space<vmem>>, vector<8x1xf32>
    %c0_290 = arith.constant 0 : index
    %c31 = arith.constant 31 : index
    %593 = vector.load %arg3[%c0_290, %c31] : memref<32x36xf32, #tpu.memory_space<vmem>>, vector<8x1xf32>
    %cst_291 = arith.constant 0.000000e+00 : f32
    %594 = vector.broadcast %cst_291 : f32 to vector<8x8xf32>
    %595 = arith.maximumf %591, %594 : vector<8x8xf32>
    %596 = vector.broadcast %592 : vector<8x1xf32> to vector<8x8xf32>
    %597 = arith.mulf %595, %596 : vector<8x8xf32>
    %598 = vector.broadcast %593 : vector<8x1xf32> to vector<8x8xf32>
    %599 = arith.addf %597, %598 : vector<8x8xf32>
    %cst_292 = arith.constant 0.000000e+00 : f32
    %600 = vector.broadcast %cst_292 : f32 to vector<8x16xf32>
    %c0_293 = arith.constant 0 : index
    %c492 = arith.constant 492 : index
    %601 = vector.load %arg2[%c0_293, %c492] : memref<32x532xf32, #tpu.memory_space<vmem>>, vector<8x8xf32>
    %cst_294 = arith.constant dense<0.000000e+00> : vector<8x8xf32>
    %602 = tpu.matmul %601, %599, %cst_294 {dimension_numbers = #tpu.dot_dimension_numbers<[1], [0], [0], [1], [0, 0, 1, 1], [], []>} : vector<8x8xf32>, vector<8x8xf32>, vector<8x8xf32> -> vector<8x8xf32>
    %603 = tpu.iota {dimensions = array<i32: 0>} : vector<8x16xi32>
    %604 = tpu.iota {dimensions = array<i32: 1>} : vector<8x16xi32>
    %c2_i32_295 = arith.constant 2 : i32
    %605 = vector.broadcast %c2_i32_295 : i32 to vector<8x16xi32>
    %606 = arith.muli %603, %605 : vector<8x16xi32>
    %c0_i32_296 = arith.constant 0 : i32
    %607 = vector.broadcast %c0_i32_296 : i32 to vector<8x16xi32>
    %608 = arith.addi %606, %607 : vector<8x16xi32>
    %609 = arith.cmpi eq, %604, %608 : vector<8x16xi32>
    %cst_297 = arith.constant 1.000000e+00 : f32
    %cst_298 = arith.constant 0.000000e+00 : f32
    %610 = vector.broadcast %cst_297 : f32 to vector<8x16xf32>
    %611 = vector.broadcast %cst_298 : f32 to vector<8x16xf32>
    %612 = arith.select %609, %610, %611 : vector<8x16xi1>, vector<8x16xf32>
    %cst_299 = arith.constant dense<0.000000e+00> : vector<8x16xf32>
    %613 = tpu.matmul %602, %612, %cst_299 {dimension_numbers = #tpu.dot_dimension_numbers<[1], [0], [0], [1], [0, 0, 1, 1], [], []>} : vector<8x8xf32>, vector<8x16xf32>, vector<8x16xf32> -> vector<8x16xf32>
    %614 = arith.addf %600, %613 : vector<8x16xf32>
    %c0_300 = arith.constant 0 : index
    %c500 = arith.constant 500 : index
    %615 = vector.load %arg2[%c0_300, %c500] : memref<32x532xf32, #tpu.memory_space<vmem>>, vector<8x8xf32>
    %cst_301 = arith.constant dense<0.000000e+00> : vector<8x8xf32>
    %616 = tpu.matmul %615, %599, %cst_301 {dimension_numbers = #tpu.dot_dimension_numbers<[1], [0], [0], [1], [0, 0, 1, 1], [], []>} : vector<8x8xf32>, vector<8x8xf32>, vector<8x8xf32> -> vector<8x8xf32>
    %617 = tpu.iota {dimensions = array<i32: 0>} : vector<8x16xi32>
    %618 = tpu.iota {dimensions = array<i32: 1>} : vector<8x16xi32>
    %c2_i32_302 = arith.constant 2 : i32
    %619 = vector.broadcast %c2_i32_302 : i32 to vector<8x16xi32>
    %620 = arith.muli %617, %619 : vector<8x16xi32>
    %c1_i32_303 = arith.constant 1 : i32
    %621 = vector.broadcast %c1_i32_303 : i32 to vector<8x16xi32>
    %622 = arith.addi %620, %621 : vector<8x16xi32>
    %623 = arith.cmpi eq, %618, %622 : vector<8x16xi32>
    %cst_304 = arith.constant 1.000000e+00 : f32
    %cst_305 = arith.constant 0.000000e+00 : f32
    %624 = vector.broadcast %cst_304 : f32 to vector<8x16xf32>
    %625 = vector.broadcast %cst_305 : f32 to vector<8x16xf32>
    %626 = arith.select %623, %624, %625 : vector<8x16xi1>, vector<8x16xf32>
    %cst_306 = arith.constant dense<0.000000e+00> : vector<8x16xf32>
    %627 = tpu.matmul %616, %626, %cst_306 {dimension_numbers = #tpu.dot_dimension_numbers<[1], [0], [0], [1], [0, 0, 1, 1], [], []>} : vector<8x8xf32>, vector<8x16xf32>, vector<8x16xf32> -> vector<8x16xf32>
    %628 = arith.addf %614, %627 : vector<8x16xf32>
    %c0_307 = arith.constant 0 : index
    %c32 = arith.constant 32 : index
    %629 = vector.load %arg3[%c0_307, %c32] : memref<32x36xf32, #tpu.memory_space<vmem>>, vector<8x1xf32>
    %630 = vector.broadcast %629 : vector<8x1xf32> to vector<8x16xf32>
    %631 = arith.addf %628, %630 : vector<8x16xf32>
    %c0_308 = arith.constant 0 : index
    %c33 = arith.constant 33 : index
    %632 = vector.load %arg3[%c0_308, %c33] : memref<32x36xf32, #tpu.memory_space<vmem>>, vector<8x1xf32>
    %c0_309 = arith.constant 0 : index
    %c34 = arith.constant 34 : index
    %633 = vector.load %arg3[%c0_309, %c34] : memref<32x36xf32, #tpu.memory_space<vmem>>, vector<8x1xf32>
    %cst_310 = arith.constant 0.000000e+00 : f32
    %634 = vector.broadcast %cst_310 : f32 to vector<8x16xf32>
    %635 = arith.maximumf %631, %634 : vector<8x16xf32>
    %636 = vector.broadcast %632 : vector<8x1xf32> to vector<8x16xf32>
    %637 = arith.mulf %635, %636 : vector<8x16xf32>
    %638 = vector.broadcast %633 : vector<8x1xf32> to vector<8x16xf32>
    %639 = arith.addf %637, %638 : vector<8x16xf32>
    %cst_311 = arith.constant 0.000000e+00 : f32
    %640 = vector.broadcast %cst_311 : f32 to vector<4x16xf32>
    %c0_312 = arith.constant 0 : index
    %c508 = arith.constant 508 : index
    %641 = vector.load %arg2[%c0_312, %c508] : memref<32x532xf32, #tpu.memory_space<vmem>>, vector<4x8xf32>
    %642 = tpu.iota {dimensions = array<i32: 0>} : vector<16x16xi32>
    %643 = tpu.iota {dimensions = array<i32: 1>} : vector<16x16xi32>
    %c1_i32_313 = arith.constant 1 : i32
    %644 = vector.broadcast %c1_i32_313 : i32 to vector<16x16xi32>
    %645 = arith.muli %643, %644 : vector<16x16xi32>
    %c-1_i32_314 = arith.constant -1 : i32
    %646 = vector.broadcast %c-1_i32_314 : i32 to vector<16x16xi32>
    %647 = arith.addi %645, %646 : vector<16x16xi32>
    %648 = arith.cmpi eq, %642, %647 : vector<16x16xi32>
    %cst_315 = arith.constant 1.000000e+00 : f32
    %cst_316 = arith.constant 0.000000e+00 : f32
    %649 = vector.broadcast %cst_315 : f32 to vector<16x16xf32>
    %650 = vector.broadcast %cst_316 : f32 to vector<16x16xf32>
    %651 = arith.select %648, %649, %650 : vector<16x16xi1>, vector<16x16xf32>
    %cst_317 = arith.constant dense<0.000000e+00> : vector<8x16xf32>
    %652 = tpu.matmul %639, %651, %cst_317 {dimension_numbers = #tpu.dot_dimension_numbers<[1], [0], [0], [1], [0, 0, 1, 1], [], []>} : vector<8x16xf32>, vector<16x16xf32>, vector<8x16xf32> -> vector<8x16xf32>
    %cst_318 = arith.constant dense<0.000000e+00> : vector<4x16xf32>
    %653 = tpu.matmul %641, %652, %cst_318 {dimension_numbers = #tpu.dot_dimension_numbers<[1], [0], [0], [1], [0, 0, 1, 1], [], []>} : vector<4x8xf32>, vector<8x16xf32>, vector<4x16xf32> -> vector<4x16xf32>
    %654 = arith.addf %640, %653 : vector<4x16xf32>
    %c0_319 = arith.constant 0 : index
    %c516 = arith.constant 516 : index
    %655 = vector.load %arg2[%c0_319, %c516] : memref<32x532xf32, #tpu.memory_space<vmem>>, vector<4x8xf32>
    %656 = tpu.iota {dimensions = array<i32: 0>} : vector<16x16xi32>
    %657 = tpu.iota {dimensions = array<i32: 1>} : vector<16x16xi32>
    %c1_i32_320 = arith.constant 1 : i32
    %658 = vector.broadcast %c1_i32_320 : i32 to vector<16x16xi32>
    %659 = arith.muli %657, %658 : vector<16x16xi32>
    %c0_i32_321 = arith.constant 0 : i32
    %660 = vector.broadcast %c0_i32_321 : i32 to vector<16x16xi32>
    %661 = arith.addi %659, %660 : vector<16x16xi32>
    %662 = arith.cmpi eq, %656, %661 : vector<16x16xi32>
    %cst_322 = arith.constant 1.000000e+00 : f32
    %cst_323 = arith.constant 0.000000e+00 : f32
    %663 = vector.broadcast %cst_322 : f32 to vector<16x16xf32>
    %664 = vector.broadcast %cst_323 : f32 to vector<16x16xf32>
    %665 = arith.select %662, %663, %664 : vector<16x16xi1>, vector<16x16xf32>
    %cst_324 = arith.constant dense<0.000000e+00> : vector<8x16xf32>
    %666 = tpu.matmul %639, %665, %cst_324 {dimension_numbers = #tpu.dot_dimension_numbers<[1], [0], [0], [1], [0, 0, 1, 1], [], []>} : vector<8x16xf32>, vector<16x16xf32>, vector<8x16xf32> -> vector<8x16xf32>
    %cst_325 = arith.constant dense<0.000000e+00> : vector<4x16xf32>
    %667 = tpu.matmul %655, %666, %cst_325 {dimension_numbers = #tpu.dot_dimension_numbers<[1], [0], [0], [1], [0, 0, 1, 1], [], []>} : vector<4x8xf32>, vector<8x16xf32>, vector<4x16xf32> -> vector<4x16xf32>
    %668 = arith.addf %654, %667 : vector<4x16xf32>
    %c0_326 = arith.constant 0 : index
    %c524 = arith.constant 524 : index
    %669 = vector.load %arg2[%c0_326, %c524] : memref<32x532xf32, #tpu.memory_space<vmem>>, vector<4x8xf32>
    %670 = tpu.iota {dimensions = array<i32: 0>} : vector<16x16xi32>
    %671 = tpu.iota {dimensions = array<i32: 1>} : vector<16x16xi32>
    %c1_i32_327 = arith.constant 1 : i32
    %672 = vector.broadcast %c1_i32_327 : i32 to vector<16x16xi32>
    %673 = arith.muli %671, %672 : vector<16x16xi32>
    %c1_i32_328 = arith.constant 1 : i32
    %674 = vector.broadcast %c1_i32_328 : i32 to vector<16x16xi32>
    %675 = arith.addi %673, %674 : vector<16x16xi32>
    %676 = arith.cmpi eq, %670, %675 : vector<16x16xi32>
    %cst_329 = arith.constant 1.000000e+00 : f32
    %cst_330 = arith.constant 0.000000e+00 : f32
    %677 = vector.broadcast %cst_329 : f32 to vector<16x16xf32>
    %678 = vector.broadcast %cst_330 : f32 to vector<16x16xf32>
    %679 = arith.select %676, %677, %678 : vector<16x16xi1>, vector<16x16xf32>
    %cst_331 = arith.constant dense<0.000000e+00> : vector<8x16xf32>
    %680 = tpu.matmul %639, %679, %cst_331 {dimension_numbers = #tpu.dot_dimension_numbers<[1], [0], [0], [1], [0, 0, 1, 1], [], []>} : vector<8x16xf32>, vector<16x16xf32>, vector<8x16xf32> -> vector<8x16xf32>
    %cst_332 = arith.constant dense<0.000000e+00> : vector<4x16xf32>
    %681 = tpu.matmul %669, %680, %cst_332 {dimension_numbers = #tpu.dot_dimension_numbers<[1], [0], [0], [1], [0, 0, 1, 1], [], []>} : vector<4x8xf32>, vector<8x16xf32>, vector<4x16xf32> -> vector<4x16xf32>
    %682 = arith.addf %668, %681 : vector<4x16xf32>
    %c0_333 = arith.constant 0 : index
    %c35 = arith.constant 35 : index
    %683 = vector.load %arg3[%c0_333, %c35] : memref<32x36xf32, #tpu.memory_space<vmem>>, vector<4x1xf32>
    %684 = vector.broadcast %683 : vector<4x1xf32> to vector<4x16xf32>
    %685 = arith.addf %682, %684 : vector<4x16xf32>
    %cst_334 = arith.constant 0.000000e+00 : f32
    %686 = vector.broadcast %cst_334 : f32 to vector<4x16xf32>
    %687 = arith.maximumf %685, %686 : vector<4x16xf32>
    %688 = math.absf %685 : vector<4x16xf32>
    %cst_335 = arith.constant 0.000000e+00 : f32
    %689 = vector.broadcast %cst_335 : f32 to vector<4x16xf32>
    %690 = arith.subf %689, %688 : vector<4x16xf32>
    %691 = math.exp %690 : vector<4x16xf32>
    %cst_336 = arith.constant 1.000000e+00 : f32
    %692 = vector.broadcast %cst_336 : f32 to vector<4x16xf32>
    %693 = arith.addf %692, %691 : vector<4x16xf32>
    %694 = math.log %693 : vector<4x16xf32>
    %695 = arith.addf %687, %694 : vector<4x16xf32>
    %c0_337 = arith.constant 0 : index
    %c0_338 = arith.constant 0 : index
    %c0_339 = arith.constant 0 : index
    %696 = vector.load %arg7[%c0_337, %c0_338, %c0_339] : memref<1x4x16xf32, #tpu.memory_space<vmem>>, vector<1x4x16xf32>
    %697 = vector.shape_cast %696 : vector<1x4x16xf32> to vector<4x16xf32>
    %698 = vector.shape_cast %695 : vector<4x16xf32> to vector<1x4x16xf32>
    tpu.vector_store %arg7[%c0_337, %c0_338, %c0_339], %698 {strides = array<i32>} : memref<1x4x16xf32, #tpu.memory_space<vmem>>, vector<1x4x16xf32>,
    return
  }
  func.func @transform_0(%arg0: i32) -> (i32, i32, i32) {
    %c0_i32 = arith.constant 0 : i32
    %c0_i32_0 = arith.constant 0 : i32
    %c0_i32_1 = arith.constant 0 : i32
    return %arg0, %c0_i32, %c0_i32_0 : i32, i32, i32
  }
  func.func @transform_1(%arg0: i32) -> (i32, i32) {
    %c0_i32 = arith.constant 0 : i32
    %c0_i32_0 = arith.constant 0 : i32
    %c0_i32_1 = arith.constant 0 : i32
    return %c0_i32, %c0_i32_0 : i32, i32
  }
  func.func @transform_2(%arg0: i32) -> (i32, i32) {
    %c0_i32 = arith.constant 0 : i32
    %c0_i32_0 = arith.constant 0 : i32
    %c0_i32_1 = arith.constant 0 : i32
    return %c0_i32, %c0_i32_0 : i32, i32
  }
  func.func @transform_3(%arg0: i32) -> (i32, i32, i32) {
    %c0_i32 = arith.constant 0 : i32
    %c0_i32_0 = arith.constant 0 : i32
    %c0_i32_1 = arith.constant 0 : i32
    return %arg0, %c0_i32, %c0_i32_0 : i32, i32, i32
  }
  func.func @transform_4(%arg0: i32) -> (i32, i32, i32) {
    %c0_i32 = arith.constant 0 : i32
    %c0_i32_0 = arith.constant 0 : i32
    %c0_i32_1 = arith.constant 0 : i32
    return %arg0, %c0_i32, %c0_i32_0 : i32, i32, i32
  }
  func.func @transform_5(%arg0: i32) -> (i32, i32, i32) {
    %c0_i32 = arith.constant 0 : i32
    %c0_i32_0 = arith.constant 0 : i32
    %c0_i32_1 = arith.constant 0 : i32
    return %arg0, %c0_i32, %c0_i32_0 : i32, i32, i32
  }
  func.func @transform_6(%arg0: i32) -> (i32, i32, i32) {
    %c0_i32 = arith.constant 0 : i32
    %c0_i32_0 = arith.constant 0 : i32
    %c0_i32_1 = arith.constant 0 : i32
    return %arg0, %c0_i32, %c0_i32_0 : i32, i32, i32
  }
}

</mosaic_0001>

<llo_original>
// kernel: forward.1
$region0: #{forward.1}
  #allocation0 [shape = 'u32[]', space=smem, size = 0x4, offset = 0x4, fixed_abs, tag = 'smem constant byte address 0x4 - core index']
  #allocation1 [shape = 'u32[144,128]{1,0:T(1,128)}', space=vmem, size = 0x12000, scoped, tag = 'internal scratch']
  %s0 = inlined_call_operand.vmem [shape: f32[2,4,16], index: 0, kind: input, shape index: {}]
  %s1 = inlined_call_operand.hbm [shape: f32[32,532], index: 1, kind: input, shape index: {}]
  %s2 = inlined_call_operand.vmem [shape: f32[32,36], index: 2, kind: input, shape index: {}]
  %s3 = inlined_call_operand.hbm [shape: f32[2,8,8], index: 3, kind: output, shape index: {0}]
  %s4 = inlined_call_operand.vmem [shape: f32[2,16,4], index: 4, kind: output, shape index: {1}]
  %s5 = inlined_call_operand.vmem [shape: f32[2,32,2], index: 5, kind: output, shape index: {2}]
  %s6 = inlined_call_operand.vmem [shape: f32[2,4,16], index: 6, kind: output, shape index: {3}]
  %7 = xla_tuple %s3, %s4, %s5, %s6
  %s8 = sld [smem:[#allocation0]]
  $region73: #{forward.1} parent=0
    _
  %s10 = ssub.s32 1, %s8
  %s11 = scalar_select 0, %s10, %s8
  $region1: #{forward.1} parent=0
    #allocation2 [shape = 'u8[81920]{0}', space=vmem, size = 0x14000, scoped, tag = 'input window, operand 1, single buffered']
    #allocation3 [shape = 's32[2]{0}', space=sflag, size = 0x8, scoped, tag = 'scoped memory for forward.1']
    #allocation4 [shape = 's32[2]{0}', space=sflag, size = 0x8, scoped, tag = 'scoped memory for forward.1']
    #allocation5 [shape = 'u8[8192]{0}', space=vmem, size = 0x2000, scoped, tag = 'output window, operand 0']
    %12 = vsyncpa [#allocation3], 0
    %13 = vsyncpa [#allocation4], 0
    %s14 = scalar_lea.sflag [#allocation4], 1
    %15 = vsyncpa %s14, 0
    loop: start=0, step=1, limit=4
    $region2: #{forward.1} parent=1 // loop_pre_header
      _
    $region3: #{forward.1} parent=1 // loop_header
      %s17 = sphi 0, %s21
      %p18 = scmp.ge.s32.totalorder %s17, 4
      %s27 = sphi 0, %s29
      %s30 = sphi 0, %s27
      %s31 = sphi 0, %s30
      %s47 = sphi 0, %s31
      %s51 = sphi 0, %s51
      %s53 = sphi 0, %s51
      %s54 = sphi 0, %s53
      %s68 = sphi 0, %s54
      %s72 = sphi 0, %s72
      %s74 = sphi 0, %s72
      %s75 = sphi 0, %s74
      %s89 = sphi 0, %s75
      %s95 = sphi 0, %s97
      %s98 = sphi 0, %s95
      %s99 = sphi 0, %s98
      %s115 = sphi 0, %s99
      %s121 = sphi 0, %s123
      %s124 = sphi 0, %s121
      %s125 = sphi 0, %s124
      %s141 = sphi 0, %s125
      %s147 = sphi 0, %s149
      %s150 = sphi 0, %s147
      %s151 = sphi 0, %s150
      %s167 = sphi 0, %s151
      %s173 = sphi 0, %s175
      %s176 = sphi 0, %s173
      %s177 = sphi 0, %s176
      %s193 = sphi 0, %s177
    $region4: #{forward.1} parent=1 // loop_header_branch
      %20 = sbr.rel (%p18) target = $region8
    $region5: #{forward.1} parent=1 // loop_body
      %s22 = ssub.s32 %s17, 1
      %s23 = ssub.s32 %s17, 2
      %s24 = sadd.s32 %s17, 1
      %s25 = ssub.s32 %s17, %s24
      %p26 = scmp.eq.s32.totalorder %s25, 0
      %s28 = sadd.s32 %s27, 1
      %s29 = scalar_select %p26, %s27, %s28
      %p32 = pneg %p26
      %p33 = scmp.eq.s32.totalorder %s17, 1
      %p34 = por %p32, %p33
      %p35 = scmp.ne.s32.totalorder %s27, %s30
      %p36 = scmp.eq.s32.totalorder %s17, 0
      %p37 = por %p35, %p36
      %p38 = scmp.ne.s32.totalorder %s27, %s30
      %p39 = scmp.eq.s32.totalorder %s22, 1
      %p40 = por %p38, %p39
      %p41 = scmp.ne.s32.totalorder %s30, %s31
      %p42 = scmp.eq.s32.totalorder %s22, 0
      %p43 = por %p41, %p42
      %p44 = scmp.ne.s32.totalorder %s30, %s31
      %p45 = scmp.eq.s32.totalorder %s23, 1
      %p46 = por %p44, %p45
      %p48 = scmp.ne.s32.totalorder %s31, %s47
      %p49 = scmp.eq.s32.totalorder %s23, 0
      %p50 = por %p48, %p49
      %s52 = sadd.s32 %s51, 1
      %p55 = scmp.eq.s32.totalorder %s17, 1
      %p56 = scmp.ne.s32.totalorder %s51, %s53
      %p57 = scmp.eq.s32.totalorder %s17, 0
      %p58 = por %p56, %p57
      %p59 = scmp.ne.s32.totalorder %s51, %s53
      %p60 = scmp.eq.s32.totalorder %s22, 1
      %p61 = por %p59, %p60
      %p62 = scmp.ne.s32.totalorder %s53, %s54
      %p63 = scmp.eq.s32.totalorder %s22, 0
      %p64 = por %p62, %p63
      %p65 = scmp.ne.s32.totalorder %s53, %s54
      %p66 = scmp.eq.s32.totalorder %s23, 1
      %p67 = por %p65, %p66
      %p69 = scmp.ne.s32.totalorder %s54, %s68
      %p70 = scmp.eq.s32.totalorder %s23, 0
      %p71 = por %p69, %p70
      %s73 = sadd.s32 %s72, 1
      %p76 = scmp.eq.s32.totalorder %s17, 1
      %p77 = scmp.ne.s32.totalorder %s72, %s74
      %p78 = scmp.eq.s32.totalorder %s17, 0
      %p79 = por %p77, %p78
      %p80 = scmp.ne.s32.totalorder %s72, %s74
      %p81 = scmp.eq.s32.totalorder %s22, 1
      %p82 = por %p80, %p81
      %p83 = scmp.ne.s32.totalorder %s74, %s75
      %p84 = scmp.eq.s32.totalorder %s22, 0
      %p85 = por %p83, %p84
      %p86 = scmp.ne.s32.totalorder %s74, %s75
      %p87 = scmp.eq.s32.totalorder %s23, 1
      %p88 = por %p86, %p87
      %p90 = scmp.ne.s32.totalorder %s75, %s89
      %p91 = scmp.eq.s32.totalorder %s23, 0
      %p92 = por %p90, %p91
      %s93 = ssub.s32 %s17, %s24
      %p94 = scmp.eq.s32.totalorder %s93, 0
      %s96 = sadd.s32 %s95, 1
      %s97 = scalar_select %p94, %s95, %s96
      %p100 = pneg %p94
      %p101 = scmp.eq.s32.totalorder %s17, 1
      %p102 = por %p100, %p101
      %p103 = scmp.ne.s32.totalorder %s95, %s98
      %p104 = scmp.eq.s32.totalorder %s17, 0
      %p105 = por %p103, %p104
      %p106 = scmp.ne.s32.totalorder %s95, %s98
      %p107 = scmp.eq.s32.totalorder %s22, 1
      %p108 = por %p106, %p107
      %p109 = scmp.ne.s32.totalorder %s98, %s99
      %p110 = scmp.eq.s32.totalorder %s22, 0
      %p111 = por %p109, %p110
      %p112 = scmp.ne.s32.totalorder %s98, %s99
      %p113 = scmp.eq.s32.totalorder %s23, 1
      %p114 = por %p112, %p113
      %p116 = scmp.ne.s32.totalorder %s99, %s115
      %p117 = scmp.eq.s32.totalorder %s23, 0
      %p118 = por %p116, %p117
      %s119 = ssub.s32 %s17, %s24
      %p120 = scmp.eq.s32.totalorder %s119, 0
      %s122 = sadd.s32 %s121, 1
      %s123 = scalar_select %p120, %s121, %s122
      %p126 = pneg %p120
      %p127 = scmp.eq.s32.totalorder %s17, 1
      %p128 = por %p126, %p127
      %p129 = scmp.ne.s32.totalorder %s121, %s124
      %p130 = scmp.eq.s32.totalorder %s17, 0
      %p131 = por %p129, %p130
      %p132 = scmp.ne.s32.totalorder %s121, %s124
      %p133 = scmp.eq.s32.totalorder %s22, 1
      %p134 = por %p132, %p133
      %p135 = scmp.ne.s32.totalorder %s124, %s125
      %p136 = scmp.eq.s32.totalorder %s22, 0
      %p137 = por %p135, %p136
      %p138 = scmp.ne.s32.totalorder %s124, %s125
      %p139 = scmp.eq.s32.totalorder %s23, 1
      %p140 = por %p138, %p139
      %p142 = scmp.ne.s32.totalorder %s125, %s141
      %p143 = scmp.eq.s32.totalorder %s23, 0
      %p144 = por %p142, %p143
      %s145 = ssub.s32 %s17, %s24
      %p146 = scmp.eq.s32.totalorder %s145, 0
      %s148 = sadd.s32 %s147, 1
      %s149 = scalar_select %p146, %s147, %s148
      %p152 = pneg %p146
      %p153 = scmp.eq.s32.totalorder %s17, 1
      %p154 = por %p152, %p153
      %p155 = scmp.ne.s32.totalorder %s147, %s150
      %p156 = scmp.eq.s32.totalorder %s17, 0
      %p157 = por %p155, %p156
      %p158 = scmp.ne.s32.totalorder %s147, %s150
      %p159 = scmp.eq.s32.totalorder %s22, 1
      %p160 = por %p158, %p159
      %p161 = scmp.ne.s32.totalorder %s150, %s151
      %p162 = scmp.eq.s32.totalorder %s22, 0
      %p163 = por %p161, %p162
      %p164 = scmp.ne.s32.totalorder %s150, %s151
      %p165 = scmp.eq.s32.totalorder %s23, 1
      %p166 = por %p164, %p165
      %p168 = scmp.ne.s32.totalorder %s151, %s167
      %p169 = scmp.eq.s32.totalorder %s23, 0
      %p170 = por %p168, %p169
      %s171 = ssub.s32 %s17, %s24
      %p172 = scmp.eq.s32.totalorder %s171, 0
      %s174 = sadd.s32 %s173, 1
      %s175 = scalar_select %p172, %s173, %s174
      %p178 = pneg %p172
      %p179 = scmp.eq.s32.totalorder %s17, 1
      %p180 = por %p178, %p179
      %p181 = scmp.ne.s32.totalorder %s173, %s176
      %p182 = scmp.eq.s32.totalorder %s17, 0
      %p183 = por %p181, %p182
      %p184 = scmp.ne.s32.totalorder %s173, %s176
      %p185 = scmp.eq.s32.totalorder %s22, 1
      %p186 = por %p184, %p185
      %p187 = scmp.ne.s32.totalorder %s176, %s177
      %p188 = scmp.eq.s32.totalorder %s22, 0
      %p189 = por %p187, %p188
      %p190 = scmp.ne.s32.totalorder %s176, %s177
      %p191 = scmp.eq.s32.totalorder %s23, 1
      %p192 = por %p190, %p191
      %p194 = scmp.ne.s32.totalorder %s177, %s193
      %p195 = scmp.eq.s32.totalorder %s23, 0
      %p196 = por %p194, %p195
      %p197 = scmp.le.s32.totalorder 1, %s17
      %p198 = scmp.lt.s32.totalorder %s17, 3
      %p199 = pnand %p197, %p198
      %p200 = pneg %p199
      // Predicated region
      $region9: #{forward.1} parent=5 // pred_check
        _
      $region10: #{forward.1} parent=5 // pred_check_branch
        %202 = sbr.rel (%p199) target = $region12
      $region11: #{forward.1} parent=5 // pred_region
        %s203 = ssub.s32 %s17, 1
        // Predicated region
        $region13: #{forward.1} parent=11 // pred_check
          %p204 = pneg %p64
        $region14: #{forward.1} parent=11 // pred_check_branch
          %206 = sbr.rel (%p204) target = $region16
        $region15: #{forward.1} parent=11 // pred_region
          %s208 = ssub.s32 2560, 2560
          %209 = vsyncadd [#allocation3], %s208
          %s210 = sshll.u32 [#allocation2], 4
          %s211 = int_to_ptr.vmem [resolvable:$true] %s210
          %216 = dma.hbm_to_vmem [thread:$0]  %s1, 2560, %s211, [#allocation3], 640, 640, 40
        $region16: #{forward.1} parent=11 // pred_fallthru
          _
        // Predicated region
        $region17: #{forward.1} parent=11 // pred_check
          %p217 = pneg %p85
        $region18: #{forward.1} parent=11 // pred_check_branch
          %219 = sbr.rel (%p217) target = $region20
        $region19: #{forward.1} parent=11 // pred_region
          _
        $region20: #{forward.1} parent=11 // pred_fallthru
          _
      $region12: #{forward.1} parent=5 // pred_fallthru
        _
      %p220 = scmp.lt.s32.totalorder %s17, 2
      // Predicated region
      $region21: #{forward.1} parent=5 // pred_check
        %p221 = pneg %p220
      $region22: #{forward.1} parent=5 // pred_check_branch
        %223 = sbr.rel (%p221) target = $region24
      $region23: #{forward.1} parent=5 // pred_region
        // Predicated region
        $region25: #{forward.1} parent=23 // pred_check
          %p224 = pneg %p37
        $region26: #{forward.1} parent=23 // pred_check_branch
          %226 = sbr.rel (%p224) target = $region28
        $region27: #{forward.1} parent=23 // pred_region
          %p227 = scmp.lt.s32.totalorder %s17, 1
          %s228 = scalar_select %p227, %s17, 1
          %s229 = smul.addr %s228, 4
          %s230 = scalar_lea.vmem %s0, %s229
        $region28: #{forward.1} parent=23 // pred_fallthru
          _
      $region24: #{forward.1} parent=5 // pred_fallthru
        _
      %p231 = scmp.le.s32.totalorder 1, %s17
      %p232 = scmp.lt.s32.totalorder %s17, 3
      %p233 = pnand %p231, %p232
      %p234 = pneg %p233
      // Predicated region
      $region29: #{forward.1} parent=5 // pred_check
        _
      $region30: #{forward.1} parent=5 // pred_check_branch
        %236 = sbr.rel (%p233) target = $region32
      $region31: #{forward.1} parent=5 // pred_region
        %s237 = ssub.s32 %s17, 1
        // Predicated region
        $region33: #{forward.1} parent=31 // pred_check
          %p238 = pneg %p64
        $region34: #{forward.1} parent=31 // pred_check_branch
          %240 = sbr.rel (%p238) target = $region36
        $region35: #{forward.1} parent=31 // pred_region
          %241 = dma.done [#allocation3], 2560
        $region36: #{forward.1} parent=31 // pred_fallthru
          _
        %p242 = scmp.lt.s32.totalorder %s22, 1
        %s243 = scalar_select %p242, %s22, 1
        %s244 = smul.addr %s243, 4
        %s245 = scalar_lea.vmem %s0, %s244
        %p246 = pneg %p43
        %p247 = pneg %p40
        %p248 = pneg %p64
        %p249 = pneg %p61
        %p250 = pneg %p85
        %p251 = pneg %p82
        %p252 = pneg %p111
        %p253 = pneg %p108
        %s254 = sand.u32 %s98, 1
        %s255 = scalar_lea.sflag [#allocation4], %s254
        %s256 = sand.u32 %s98, 1
        %s257 = smul.addr %s256, 8
        %s258 = scalar_lea.vmem [#allocation5], %s257
        %p259 = pneg %p137
        %p260 = pneg %p134
        %p261 = scmp.lt.s32.totalorder %s22, 1
        %s262 = scalar_select %p261, %s22, 1
        %s263 = smul.addr %s262, 2
        %s264 = smul.addr %s263, 8
        %s265 = scalar_lea.vmem %s4, %s264
        %p266 = pneg %p163
        %p267 = pneg %p160
        %p268 = scmp.lt.s32.totalorder %s22, 1
        %s269 = scalar_select %p268, %s22, 1
        %s270 = smul.addr %s269, 4
        %s271 = smul.addr %s270, 8
        %s272 = scalar_lea.vmem %s5, %s271
        %p273 = pneg %p189
        %p274 = pneg %p186
        %p275 = scmp.lt.s32.totalorder %s22, 1
        %s276 = scalar_select %p275, %s22, 1
        %s277 = smul.addr %s276, 4
        %s278 = scalar_lea.vmem %s6, %s277
        %p279 = scmp.lt.s32.totalorder %s22, 1
        %s280 = scalar_select %p279, %s22, 1
        %s281 = smul.addr %s280, 4
        %s282 = scalar_lea.vmem %s0, %s281
        %p283 = scmp.lt.s32.totalorder %s22, 1
        %s284 = scalar_select %p283, %s22, 1
        %s285 = smul.addr %s284, 2
        %s286 = smul.addr %s285, 8
        %s287 = scalar_lea.vmem %s4, %s286
        %p288 = scmp.lt.s32.totalorder %s22, 1
        %s289 = scalar_select %p288, %s22, 1
        %s290 = smul.addr %s289, 4
        %s291 = smul.addr %s290, 8
        %s292 = scalar_lea.vmem %s5, %s291
        %p293 = scmp.lt.s32.totalorder %s22, 1
        %s294 = scalar_select %p293, %s22, 1
        %s295 = smul.addr %s294, 4
        %s296 = scalar_lea.vmem %s6, %s295
        %v297 = vld [vmem:[%s282] sm:$0xf]
        %v298 = vld [vmem:[#allocation2] sm:$0xff]
        %v299 = vlaneseq
        %v300 = vshrl.u32 %v299, 7
        %v301 = vadd.s32 %v300, 8
        %v302 = vlaneseq
        %v303 = vand.u32 %v302, 127
        %v304 = vadd.s32 %v303, 4294967295
        %vm305 = vcmp.eq.s32.totalorder %v300, %v304
        %vm306 = vcmp.eq.s32.totalorder %v301, %v304
        %v307 = vsel %vm305, 1.0, 0.0
        %v308 = vsel %vm306, 1.0, 0.0
        %vm309 = vcmask 130048
        %v311 = vsel %vm309, %v297, 0
        %313 = vmatprep.subr.mxu0 0.0
        %314 = vmatpush1.msra.mxu0 %v307
        %315 = vmatprep.subr.mxu0 0.0
        %316 = vmatpush1.msra.mxu0 %v308
        %317 = vmatprep.subr.mxu0 0.0
        %318 = vmatpush1.msra.mxu0 0.0
        %319 = vmatprep.subr.mxu0 0.0
        %320 = vmatpush1.msra.mxu0 0.0
        %321 = vmatprep.subr.mxu0 0.0
        %322 = vmatpush1.msra.mxu0 0.0
        %323 = vmatprep.subr.mxu0 0.0
        %324 = vmatpush1.msra.mxu0 0.0
        %325 = vmatprep.subr.mxu0 0.0
        %326 = vmatpush1.msra.mxu0 0.0
        %327 = vmatprep.subr.mxu0 0.0
        %328 = vmatpush1.msra.mxu0 0.0
        %329 = vmatprep.subr.mxu0 0.0
        %330 = vmatpush1.msra.mxu0 0.0
        %331 = vmatprep.subr.mxu0 0.0
        %332 = vmatpush1.msra.mxu0 0.0
        %333 = vmatprep.subr.mxu0 0.0
        %334 = vmatpush1.msra.mxu0 0.0
        %335 = vmatprep.subr.mxu0 0.0
        %336 = vmatpush1.msra.mxu0 0.0
        %337 = vmatprep.subr.mxu0 0.0
        %338 = vmatpush1.msra.mxu0 0.0
        %339 = vmatprep.subr.mxu0 0.0
        %340 = vmatpush1.msra.mxu0 0.0
        %341 = vmatprep.subr.mxu0 0.0
        %342 = vmatpush1.msra.mxu0 0.0
        %343 = vmatprep.subr.mxu0 0.0
        %344 = vmatpush1.msra.mxu0 0.0
        %345 = vmatprep.subr.mxu0 0.0
        %346 = vmatpush1.msra.mxu0 0.0
        %347 = vmatprep.subr.mxu0 0.0
        %348 = vmatpush1.msra.mxu0 0.0
        %349 = vmatprep.subr.mxu0 0.0
        %350 = vmatpush1.msra.mxu0 0.0
        %351 = vmatprep.subr.mxu0 0.0
        %352 = vmatpush1.msra.mxu0 0.0
        %353 = vmatprep.subr.mxu0 0.0
        %354 = vmatpush1.msra.mxu0 0.0
        %355 = vmatprep.subr.mxu0 0.0
        %356 = vmatpush1.msra.mxu0 0.0
        %357 = vmatprep.subr.mxu0 0.0
        %358 = vmatpush1.msra.mxu0 0.0
        %359 = vmatprep.subr.mxu0 0.0
        %360 = vmatpush1.msra.mxu0 0.0
        %361 = vmatprep.subr.mxu0 0.0
        %362 = vmatpush1.msra.mxu0 0.0
        %363 = vmatprep.subr.mxu0 0.0
        %364 = vmatpush1.msra.mxu0 0.0
        %365 = vmatprep.subr.mxu0 0.0
        %366 = vmatpush1.msra.mxu0 0.0
        %367 = vmatprep.subr.mxu0 0.0
        %368 = vmatpush1.msra.mxu0 0.0
        %369 = vmatprep.subr.mxu0 0.0
        %370 = vmatpush1.msra.mxu0 0.0
        %371 = vmatprep.subr.mxu0 0.0
        %372 = vmatpush1.msra.mxu0 0.0
        %373 = vmatprep.subr.mxu0 0.0
        %374 = vmatpush1.msra.mxu0 0.0
        %375 = vmatprep.subr.mxu0 0.0
        %376 = vmatpush1.msra.mxu0 0.0
        %377 = vmatprep.mubr.f32.mxu0 0.0
        %378 = vmatmul.mubr.f32.gmra.mrb[0].mxu0 %v311
        %v379 = vpop.f32.mrb[0].mxu0
        %v380 = vadd.f32 0.0, %v379
        %v381 = vpop.f32.mrb[0].mxu0
        %382 = vdwg.mxu0
        %vm383 = vcmp.eq.s32.totalorder %v300, %v303
        %vm384 = vcmp.eq.s32.totalorder %v301, %v303
        %v385 = vsel %vm383, 1.0, 0.0
        %v386 = vsel %vm384, 1.0, 0.0
        %387 = vmatprep.subr.mxu0 0.0
        %388 = vmatpush1.msra.mxu0 %v385
        %389 = vmatprep.subr.mxu0 0.0
        %390 = vmatpush1.msra.mxu0 %v386
        %391 = vmatprep.subr.mxu0 0.0
        %392 = vmatpush1.msra.mxu0 0.0
        %393 = vmatprep.subr.mxu0 0.0
        %394 = vmatpush1.msra.mxu0 0.0
        %395 = vmatprep.subr.mxu0 0.0
        %396 = vmatpush1.msra.mxu0 0.0
        %397 = vmatprep.subr.mxu0 0.0
        %398 = vmatpush1.msra.mxu0 0.0
        %399 = vmatprep.subr.mxu0 0.0
        %400 = vmatpush1.msra.mxu0 0.0
        %401 = vmatprep.subr.mxu0 0.0
        %402 = vmatpush1.msra.mxu0 0.0
        %403 = vmatprep.subr.mxu0 0.0
        %404 = vmatpush1.msra.mxu0 0.0
        %405 = vmatprep.subr.mxu0 0.0
        %406 = vmatpush1.msra.mxu0 0.0
        %407 = vmatprep.subr.mxu0 0.0
        %408 = vmatpush1.msra.mxu0 0.0
        %409 = vmatprep.subr.mxu0 0.0
        %410 = vmatpush1.msra.mxu0 0.0
        %411 = vmatprep.subr.mxu0 0.0
        %412 = vmatpush1.msra.mxu0 0.0
        %413 = vmatprep.subr.mxu0 0.0
        %414 = vmatpush1.msra.mxu0 0.0
        %415 = vmatprep.subr.mxu0 0.0
        %416 = vmatpush1.msra.mxu0 0.0
        %417 = vmatprep.subr.mxu0 0.0
        %418 = vmatpush1.msra.mxu0 0.0
        %419 = vmatprep.subr.mxu0 0.0
        %420 = vmatpush1.msra.mxu0 0.0
        %421 = vmatprep.subr.mxu0 0.0
        %422 = vmatpush1.msra.mxu0 0.0
        %423 = vmatprep.subr.mxu0 0.0
        %424 = vmatpush1.msra.mxu0 0.0
        %425 = vmatprep.subr.mxu0 0.0
        %426 = vmatpush1.msra.mxu0 0.0
        %427 = vmatprep.subr.mxu0 0.0
        %428 = vmatpush1.msra.mxu0 0.0
        %429 = vmatprep.subr.mxu0 0.0
        %430 = vmatpush1.msra.mxu0 0.0
        %431 = vmatprep.subr.mxu0 0.0
        %432 = vmatpush1.msra.mxu0 0.0
        %433 = vmatprep.subr.mxu0 0.0
        %434 = vmatpush1.msra.mxu0 0.0
        %435 = vmatprep.subr.mxu0 0.0
        %436 = vmatpush1.msra.mxu0 0.0
        %437 = vmatprep.subr.mxu0 0.0
        %438 = vmatpush1.msra.mxu0 0.0
        %439 = vmatprep.subr.mxu0 0.0
        %440 = vmatpush1.msra.mxu0 0.0
        %441 = vmatprep.subr.mxu0 0.0
        %442 = vmatpush1.msra.mxu0 0.0
        %443 = vmatprep.subr.mxu0 0.0
        %444 = vmatpush1.msra.mxu0 0.0
        %445 = vmatprep.subr.mxu0 0.0
        %446 = vmatpush1.msra.mxu0 0.0
        %447 = vmatprep.subr.mxu0 0.0
        %448 = vmatpush1.msra.mxu0 0.0
        %449 = vmatprep.subr.mxu0 0.0
        %450 = vmatpush1.msra.mxu0 0.0
        %451 = vmatprep.mubr.f32.mxu0 0.0
        %452 = vmatmul.mubr.f32.gmra.mrb[0].mxu0 %v311
        %v453 = vpop.f32.mrb[0].mxu0
        %v454 = vadd.f32 0.0, %v453
        %v455 = vpop.f32.mrb[0].mxu0
        %456 = vdwg.mxu0
        %458 = vrot.lane.b32.xlu0 %v298, 124
        %v459 = vpop.permute.xlu0 %458
        %vm460 = vcmask 31744
        %v461 = vsel %vm460, %v459, 0
        %vm463 = vcmask 1043456
        %v465 = vsel %vm463, %v454, 0
        %467 = vmatprep.subr.mxu0 0.0
        %468 = vmatpush1.msra.mxu0 %v465
        %469 = vmatprep.subr.mxu0 0.0
        %470 = vmatpush1.msra.mxu0 0.0
        %471 = vmatprep.subr.mxu0 0.0
        %472 = vmatpush1.msra.mxu0 0.0
        %473 = vmatprep.subr.mxu0 0.0
        %474 = vmatpush1.msra.mxu0 0.0
        %475 = vmatprep.subr.mxu0 0.0
        %476 = vmatpush1.msra.mxu0 0.0
        %477 = vmatprep.subr.mxu0 0.0
        %478 = vmatpush1.msra.mxu0 0.0
        %479 = vmatprep.subr.mxu0 0.0
        %480 = vmatpush1.msra.mxu0 0.0
        %481 = vmatprep.subr.mxu0 0.0
        %482 = vmatpush1.msra.mxu0 0.0
        %483 = vmatprep.subr.mxu0 0.0
        %484 = vmatpush1.msra.mxu0 0.0
        %485 = vmatprep.subr.mxu0 0.0
        %486 = vmatpush1.msra.mxu0 0.0
        %487 = vmatprep.subr.mxu0 0.0
        %488 = vmatpush1.msra.mxu0 0.0
        %489 = vmatprep.subr.mxu0 0.0
        %490 = vmatpush1.msra.mxu0 0.0
        %491 = vmatprep.subr.mxu0 0.0
        %492 = vmatpush1.msra.mxu0 0.0
        %493 = vmatprep.subr.mxu0 0.0
        %494 = vmatpush1.msra.mxu0 0.0
        %495 = vmatprep.subr.mxu0 0.0
        %496 = vmatpush1.msra.mxu0 0.0
        %497 = vmatprep.subr.mxu0 0.0
        %498 = vmatpush1.msra.mxu0 0.0
        %499 = vmatprep.subr.mxu0 0.0
        %500 = vmatpush1.msra.mxu0 0.0
        %501 = vmatprep.subr.mxu0 0.0
        %502 = vmatpush1.msra.mxu0 0.0
        %503 = vmatprep.subr.mxu0 0.0
        %504 = vmatpush1.msra.mxu0 0.0
        %505 = vmatprep.subr.mxu0 0.0
        %506 = vmatpush1.msra.mxu0 0.0
        %507 = vmatprep.subr.mxu0 0.0
        %508 = vmatpush1.msra.mxu0 0.0
        %509 = vmatprep.subr.mxu0 0.0
        %510 = vmatpush1.msra.mxu0 0.0
        %511 = vmatprep.subr.mxu0 0.0
        %512 = vmatpush1.msra.mxu0 0.0
        %513 = vmatprep.subr.mxu0 0.0
        %514 = vmatpush1.msra.mxu0 0.0
        %515 = vmatprep.subr.mxu0 0.0
        %516 = vmatpush1.msra.mxu0 0.0
        %517 = vmatprep.subr.mxu0 0.0
        %518 = vmatpush1.msra.mxu0 0.0
        %519 = vmatprep.subr.mxu0 0.0
        %520 = vmatpush1.msra.mxu0 0.0
        %521 = vmatprep.subr.mxu0 0.0
        %522 = vmatpush1.msra.mxu0 0.0
        %523 = vmatprep.subr.mxu0 0.0
        %524 = vmatpush1.msra.mxu0 0.0
        %525 = vmatprep.subr.mxu0 0.0
        %526 = vmatpush1.msra.mxu0 0.0
        %527 = vmatprep.subr.mxu0 0.0
        %528 = vmatpush1.msra.mxu0 0.0
        %529 = vmatprep.subr.mxu0 0.0
        %530 = vmatpush1.msra.mxu0 0.0
        %531 = vmatprep.mubr.f32.mxu0 0.0
        %532 = vmatmul.mubr.f32.gmra.mrb[0].mxu0 %v461
        %v533 = vpop.f32.mrb[0].mxu0
        %v534 = vadd.f32 0.0, %v533
        %v535 = vpop.f32.mrb[0].mxu0
        %536 = vdwg.mxu0
        %v537 = vsel %vm460, %v298, 0
        %v540 = vsel %vm463, %v380, 0
        %542 = vmatprep.subr.mxu0 0.0
        %543 = vmatpush1.msra.mxu0 %v540
        %544 = vmatprep.subr.mxu0 0.0
        %545 = vmatpush1.msra.mxu0 0.0
        %546 = vmatprep.subr.mxu0 0.0
        %547 = vmatpush1.msra.mxu0 0.0
        %548 = vmatprep.subr.mxu0 0.0
        %549 = vmatpush1.msra.mxu0 0.0
        %550 = vmatprep.subr.mxu0 0.0
        %551 = vmatpush1.msra.mxu0 0.0
        %552 = vmatprep.subr.mxu0 0.0
        %553 = vmatpush1.msra.mxu0 0.0
        %554 = vmatprep.subr.mxu0 0.0
        %555 = vmatpush1.msra.mxu0 0.0
        %556 = vmatprep.subr.mxu0 0.0
        %557 = vmatpush1.msra.mxu0 0.0
        %558 = vmatprep.subr.mxu0 0.0
        %559 = vmatpush1.msra.mxu0 0.0
        %560 = vmatprep.subr.mxu0 0.0
        %561 = vmatpush1.msra.mxu0 0.0
        %562 = vmatprep.subr.mxu0 0.0
        %563 = vmatpush1.msra.mxu0 0.0
        %564 = vmatprep.subr.mxu0 0.0
        %565 = vmatpush1.msra.mxu0 0.0
        %566 = vmatprep.subr.mxu0 0.0
        %567 = vmatpush1.msra.mxu0 0.0
        %568 = vmatprep.subr.mxu0 0.0
        %569 = vmatpush1.msra.mxu0 0.0
        %570 = vmatprep.subr.mxu0 0.0
        %571 = vmatpush1.msra.mxu0 0.0
        %572 = vmatprep.subr.mxu0 0.0
        %573 = vmatpush1.msra.mxu0 0.0
        %574 = vmatprep.subr.mxu0 0.0
        %575 = vmatpush1.msra.mxu0 0.0
        %576 = vmatprep.subr.mxu0 0.0
        %577 = vmatpush1.msra.mxu0 0.0
        %578 = vmatprep.subr.mxu0 0.0
        %579 = vmatpush1.msra.mxu0 0.0
        %580 = vmatprep.subr.mxu0 0.0
        %581 = vmatpush1.msra.mxu0 0.0
        %582 = vmatprep.subr.mxu0 0.0
        %583 = vmatpush1.msra.mxu0 0.0
        %584 = vmatprep.subr.mxu0 0.0
        %585 = vmatpush1.msra.mxu0 0.0
        %586 = vmatprep.subr.mxu0 0.0
        %587 = vmatpush1.msra.mxu0 0.0
        %588 = vmatprep.subr.mxu0 0.0
        %589 = vmatpush1.msra.mxu0 0.0
        %590 = vmatprep.subr.mxu0 0.0
        %591 = vmatpush1.msra.mxu0 0.0
        %592 = vmatprep.subr.mxu0 0.0
        %593 = vmatpush1.msra.mxu0 0.0
        %594 = vmatprep.subr.mxu0 0.0
        %595 = vmatpush1.msra.mxu0 0.0
        %596 = vmatprep.subr.mxu0 0.0
        %597 = vmatpush1.msra.mxu0 0.0
        %598 = vmatprep.subr.mxu0 0.0
        %599 = vmatpush1.msra.mxu0 0.0
        %600 = vmatprep.subr.mxu0 0.0
        %601 = vmatpush1.msra.mxu0 0.0
        %602 = vmatprep.subr.mxu0 0.0
        %603 = vmatpush1.msra.mxu0 0.0
        %604 = vmatprep.subr.mxu0 0.0
        %605 = vmatpush1.msra.mxu0 0.0
        %606 = vmatprep.mubr.f32.mxu0 0.0
        %607 = vmatmul.mubr.f32.gmra.mrb[0].mxu0 %v537
        %v608 = vpop.f32.mrb[0].mxu0
        %v609 = vadd.f32 %v534, %v608
        %v610 = vpop.f32.mrb[0].mxu0
        %611 = vdwg.mxu0
        %v612 = vadd.s32 %v303, 1
        %vm613 = vcmp.eq.s32.totalorder %v300, %v612
        %vm614 = vcmp.eq.s32.totalorder %v301, %v612
        %v615 = vsel %vm613, 1.0, 0.0
        %v616 = vsel %vm614, 1.0, 0.0
        %617 = vmatprep.subr.mxu0 0.0
        %618 = vmatpush1.msra.mxu0 %v615
        %619 = vmatprep.subr.mxu0 0.0
        %620 = vmatpush1.msra.mxu0 %v616
        %621 = vmatprep.subr.mxu0 0.0
        %622 = vmatpush1.msra.mxu0 0.0
        %623 = vmatprep.subr.mxu0 0.0
        %624 = vmatpush1.msra.mxu0 0.0
        %625 = vmatprep.subr.mxu0 0.0
        %626 = vmatpush1.msra.mxu0 0.0
        %627 = vmatprep.subr.mxu0 0.0
        %628 = vmatpush1.msra.mxu0 0.0
        %629 = vmatprep.subr.mxu0 0.0
        %630 = vmatpush1.msra.mxu0 0.0
        %631 = vmatprep.subr.mxu0 0.0
        %632 = vmatpush1.msra.mxu0 0.0
        %633 = vmatprep.subr.mxu0 0.0
        %634 = vmatpush1.msra.mxu0 0.0
        %635 = vmatprep.subr.mxu0 0.0
        %636 = vmatpush1.msra.mxu0 0.0
        %637 = vmatprep.subr.mxu0 0.0
        %638 = vmatpush1.msra.mxu0 0.0
        %639 = vmatprep.subr.mxu0 0.0
        %640 = vmatpush1.msra.mxu0 0.0
        %641 = vmatprep.subr.mxu0 0.0
        %642 = vmatpush1.msra.mxu0 0.0
        %643 = vmatprep.subr.mxu0 0.0
        %644 = vmatpush1.msra.mxu0 0.0
        %645 = vmatprep.subr.mxu0 0.0
        %646 = vmatpush1.msra.mxu0 0.0
        %647 = vmatprep.subr.mxu0 0.0
        %648 = vmatpush1.msra.mxu0 0.0
        %649 = vmatprep.subr.mxu0 0.0
        %650 = vmatpush1.msra.mxu0 0.0
        %651 = vmatprep.subr.mxu0 0.0
        %652 = vmatpush1.msra.mxu0 0.0
        %653 = vmatprep.subr.mxu0 0.0
        %654 = vmatpush1.msra.mxu0 0.0
        %655 = vmatprep.subr.mxu0 0.0
        %656 = vmatpush1.msra.mxu0 0.0
        %657 = vmatprep.subr.mxu0 0.0
        %658 = vmatpush1.msra.mxu0 0.0
        %659 = vmatprep.subr.mxu0 0.0
        %660 = vmatpush1.msra.mxu0 0.0
        %661 = vmatprep.subr.mxu0 0.0
        %662 = vmatpush1.msra.mxu0 0.0
        %663 = vmatprep.subr.mxu0 0.0
        %664 = vmatpush1.msra.mxu0 0.0
        %665 = vmatprep.subr.mxu0 0.0
        %666 = vmatpush1.msra.mxu0 0.0
        %667 = vmatprep.subr.mxu0 0.0
        %668 = vmatpush1.msra.mxu0 0.0
        %669 = vmatprep.subr.mxu0 0.0
        %670 = vmatpush1.msra.mxu0 0.0
        %671 = vmatprep.subr.mxu0 0.0
        %672 = vmatpush1.msra.mxu0 0.0
        %673 = vmatprep.subr.mxu0 0.0
        %674 = vmatpush1.msra.mxu0 0.0
        %675 = vmatprep.subr.mxu0 0.0
        %676 = vmatpush1.msra.mxu0 0.0
        %677 = vmatprep.subr.mxu0 0.0
        %678 = vmatpush1.msra.mxu0 0.0
        %679 = vmatprep.subr.mxu0 0.0
        %680 = vmatpush1.msra.mxu0 0.0
        %681 = vmatprep.mubr.f32.mxu0 0.0
        %682 = vmatmul.mubr.f32.gmra.mrb[0].mxu0 %v311
        %v683 = vpop.f32.mrb[0].mxu0
        %v684 = vadd.f32 0.0, %v683
        %v685 = vpop.f32.mrb[0].mxu0
        %686 = vdwg.mxu0
        %687 = vrot.lane.b32.xlu0 %v298, 120
        %v688 = vpop.permute.xlu0 %687
        %v689 = vsel %vm460, %v688, 0
        %v692 = vsel %vm463, %v684, 0
        %694 = vmatprep.subr.mxu0 0.0
        %695 = vmatpush1.msra.mxu0 %v692
        %696 = vmatprep.subr.mxu0 0.0
        %697 = vmatpush1.msra.mxu0 0.0
        %698 = vmatprep.subr.mxu0 0.0
        %699 = vmatpush1.msra.mxu0 0.0
        %700 = vmatprep.subr.mxu0 0.0
        %701 = vmatpush1.msra.mxu0 0.0
        %702 = vmatprep.subr.mxu0 0.0
        %703 = vmatpush1.msra.mxu0 0.0
        %704 = vmatprep.subr.mxu0 0.0
        %705 = vmatpush1.msra.mxu0 0.0
        %706 = vmatprep.subr.mxu0 0.0
        %707 = vmatpush1.msra.mxu0 0.0
        %708 = vmatprep.subr.mxu0 0.0
        %709 = vmatpush1.msra.mxu0 0.0
        %710 = vmatprep.subr.mxu0 0.0
        %711 = vmatpush1.msra.mxu0 0.0
        %712 = vmatprep.subr.mxu0 0.0
        %713 = vmatpush1.msra.mxu0 0.0
        %714 = vmatprep.subr.mxu0 0.0
        %715 = vmatpush1.msra.mxu0 0.0
        %716 = vmatprep.subr.mxu0 0.0
        %717 = vmatpush1.msra.mxu0 0.0
        %718 = vmatprep.subr.mxu0 0.0
        %719 = vmatpush1.msra.mxu0 0.0
        %720 = vmatprep.subr.mxu0 0.0
        %721 = vmatpush1.msra.mxu0 0.0
        %722 = vmatprep.subr.mxu0 0.0
        %723 = vmatpush1.msra.mxu0 0.0
        %724 = vmatprep.subr.mxu0 0.0
        %725 = vmatpush1.msra.mxu0 0.0
        %726 = vmatprep.subr.mxu0 0.0
        %727 = vmatpush1.msra.mxu0 0.0
        %728 = vmatprep.subr.mxu0 0.0
        %729 = vmatpush1.msra.mxu0 0.0
        %730 = vmatprep.subr.mxu0 0.0
        %731 = vmatpush1.msra.mxu0 0.0
        %732 = vmatprep.subr.mxu0 0.0
        %733 = vmatpush1.msra.mxu0 0.0
        %734 = vmatprep.subr.mxu0 0.0
        %735 = vmatpush1.msra.mxu0 0.0
        %736 = vmatprep.subr.mxu0 0.0
        %737 = vmatpush1.msra.mxu0 0.0
        %738 = vmatprep.subr.mxu0 0.0
        %739 = vmatpush1.msra.mxu0 0.0
        %740 = vmatprep.subr.mxu0 0.0
        %741 = vmatpush1.msra.mxu0 0.0
        %742 = vmatprep.subr.mxu0 0.0
        %743 = vmatpush1.msra.mxu0 0.0
        %744 = vmatprep.subr.mxu0 0.0
        %745 = vmatpush1.msra.mxu0 0.0
        %746 = vmatprep.subr.mxu0 0.0
        %747 = vmatpush1.msra.mxu0 0.0
        %748 = vmatprep.subr.mxu0 0.0
        %749 = vmatpush1.msra.mxu0 0.0
        %750 = vmatprep.subr.mxu0 0.0
        %751 = vmatpush1.msra.mxu0 0.0
        %752 = vmatprep.subr.mxu0 0.0
        %753 = vmatpush1.msra.mxu0 0.0
        %754 = vmatprep.subr.mxu0 0.0
        %755 = vmatpush1.msra.mxu0 0.0
        %756 = vmatprep.subr.mxu0 0.0
        %757 = vmatpush1.msra.mxu0 0.0
        %758 = vmatprep.mubr.f32.mxu0 0.0
        %759 = vmatmul.mubr.f32.gmra.mrb[0].mxu0 %v689
        %v760 = vpop.f32.mrb[0].mxu0
        %v761 = vadd.f32 0.0, %v760
        %v762 = vpop.f32.mrb[0].mxu0
        %763 = vdwg.mxu0
        %v764 = vadd.f32 %v609, %v761
        %v765 = vld [vmem:[%s2] sm:$0xff]
        %767 = vset.pattern.permute.xlu0 0
        %768 = vperm.xlu0 %767, %v765
        %v769 = vpop.permute.xlu0 %768
        %v771 = vadd.f32 %v764, %v769
        %v772 = vmax.f32 %v771, 0.0
        %773 = vset.pattern.permute.xlu0 1
        %774 = vperm.xlu0 %773, %v765
        %v775 = vpop.permute.xlu0 %774
        %v777 = vmul.f32 %v772, %v775
        %778 = vset.pattern.permute.xlu0 2
        %779 = vperm.xlu0 %778, %v765
        %v780 = vpop.permute.xlu0 %779
        %v782 = vadd.f32 %v777, %v780
        %v784 = vsel %vm309, %v782, 0
        %786 = vmatprep.subr.mxu0 0.0
        %787 = vmatpush1.msra.mxu0 %v307
        %788 = vmatprep.subr.mxu0 0.0
        %789 = vmatpush1.msra.mxu0 %v308
        %790 = vmatprep.subr.mxu0 0.0
        %791 = vmatpush1.msra.mxu0 0.0
        %792 = vmatprep.subr.mxu0 0.0
        %793 = vmatpush1.msra.mxu0 0.0
        %794 = vmatprep.subr.mxu0 0.0
        %795 = vmatpush1.msra.mxu0 0.0
        %796 = vmatprep.subr.mxu0 0.0
        %797 = vmatpush1.msra.mxu0 0.0
        %798 = vmatprep.subr.mxu0 0.0
        %799 = vmatpush1.msra.mxu0 0.0
        %800 = vmatprep.subr.mxu0 0.0
        %801 = vmatpush1.msra.mxu0 0.0
        %802 = vmatprep.subr.mxu0 0.0
        %803 = vmatpush1.msra.mxu0 0.0
        %804 = vmatprep.subr.mxu0 0.0
        %805 = vmatpush1.msra.mxu0 0.0
        %806 = vmatprep.subr.mxu0 0.0
        %807 = vmatpush1.msra.mxu0 0.0
        %808 = vmatprep.subr.mxu0 0.0
        %809 = vmatpush1.msra.mxu0 0.0
        %810 = vmatprep.subr.mxu0 0.0
        %811 = vmatpush1.msra.mxu0 0.0
        %812 = vmatprep.subr.mxu0 0.0
        %813 = vmatpush1.msra.mxu0 0.0
        %814 = vmatprep.subr.mxu0 0.0
        %815 = vmatpush1.msra.mxu0 0.0
        %816 = vmatprep.subr.mxu0 0.0
        %817 = vmatpush1.msra.mxu0 0.0
        %818 = vmatprep.subr.mxu0 0.0
        %819 = vmatpush1.msra.mxu0 0.0
        %820 = vmatprep.subr.mxu0 0.0
        %821 = vmatpush1.msra.mxu0 0.0
        %822 = vmatprep.subr.mxu0 0.0
        %823 = vmatpush1.msra.mxu0 0.0
        %824 = vmatprep.subr.mxu0 0.0
        %825 = vmatpush1.msra.mxu0 0.0
        %826 = vmatprep.subr.mxu0 0.0
        %827 = vmatpush1.msra.mxu0 0.0
        %828 = vmatprep.subr.mxu0 0.0
        %829 = vmatpush1.msra.mxu0 0.0
        %830 = vmatprep.subr.mxu0 0.0
        %831 = vmatpush1.msra.mxu0 0.0
        %832 = vmatprep.subr.mxu0 0.0
        %833 = vmatpush1.msra.mxu0 0.0
        %834 = vmatprep.subr.mxu0 0.0
        %835 = vmatpush1.msra.mxu0 0.0
        %836 = vmatprep.subr.mxu0 0.0
        %837 = vmatpush1.msra.mxu0 0.0
        %838 = vmatprep.subr.mxu0 0.0
        %839 = vmatpush1.msra.mxu0 0.0
        %840 = vmatprep.subr.mxu0 0.0
        %841 = vmatpush1.msra.mxu0 0.0
        %842 = vmatprep.subr.mxu0 0.0
        %843 = vmatpush1.msra.mxu0 0.0
        %844 = vmatprep.subr.mxu0 0.0
        %845 = vmatpush1.msra.mxu0 0.0
        %846 = vmatprep.subr.mxu0 0.0
        %847 = vmatpush1.msra.mxu0 0.0
        %848 = vmatprep.subr.mxu0 0.0
        %849 = vmatpush1.msra.mxu0 0.0
        %850 = vmatprep.mubr.f32.mxu0 0.0
        %851 = vmatmul.mubr.f32.gmra.mrb[0].mxu0 %v784
        %v852 = vpop.f32.mrb[0].mxu0
        %v853 = vadd.f32 0.0, %v852
        %v854 = vpop.f32.mrb[0].mxu0
        %855 = vdwg.mxu0
        %856 = vmatprep.subr.mxu0 0.0
        %857 = vmatpush1.msra.mxu0 %v385
        %858 = vmatprep.subr.mxu0 0.0
        %859 = vmatpush1.msra.mxu0 %v386
        %860 = vmatprep.subr.mxu0 0.0
        %861 = vmatpush1.msra.mxu0 0.0
        %862 = vmatprep.subr.mxu0 0.0
        %863 = vmatpush1.msra.mxu0 0.0
        %864 = vmatprep.subr.mxu0 0.0
        %865 = vmatpush1.msra.mxu0 0.0
        %866 = vmatprep.subr.mxu0 0.0
        %867 = vmatpush1.msra.mxu0 0.0
        %868 = vmatprep.subr.mxu0 0.0
        %869 = vmatpush1.msra.mxu0 0.0
        %870 = vmatprep.subr.mxu0 0.0
        %871 = vmatpush1.msra.mxu0 0.0
        %872 = vmatprep.subr.mxu0 0.0
        %873 = vmatpush1.msra.mxu0 0.0
        %874 = vmatprep.subr.mxu0 0.0
        %875 = vmatpush1.msra.mxu0 0.0
        %876 = vmatprep.subr.mxu0 0.0
        %877 = vmatpush1.msra.mxu0 0.0
        %878 = vmatprep.subr.mxu0 0.0
        %879 = vmatpush1.msra.mxu0 0.0
        %880 = vmatprep.subr.mxu0 0.0
        %881 = vmatpush1.msra.mxu0 0.0
        %882 = vmatprep.subr.mxu0 0.0
        %883 = vmatpush1.msra.mxu0 0.0
        %884 = vmatprep.subr.mxu0 0.0
        %885 = vmatpush1.msra.mxu0 0.0
        %886 = vmatprep.subr.mxu0 0.0
        %887 = vmatpush1.msra.mxu0 0.0
        %888 = vmatprep.subr.mxu0 0.0
        %889 = vmatpush1.msra.mxu0 0.0
        %890 = vmatprep.subr.mxu0 0.0
        %891 = vmatpush1.msra.mxu0 0.0
        %892 = vmatprep.subr.mxu0 0.0
        %893 = vmatpush1.msra.mxu0 0.0
        %894 = vmatprep.subr.mxu0 0.0
        %895 = vmatpush1.msra.mxu0 0.0
        %896 = vmatprep.subr.mxu0 0.0
        %897 = vmatpush1.msra.mxu0 0.0
        %898 = vmatprep.subr.mxu0 0.0
        %899 = vmatpush1.msra.mxu0 0.0
        %900 = vmatprep.subr.mxu0 0.0
        %901 = vmatpush1.msra.mxu0 0.0
        %902 = vmatprep.subr.mxu0 0.0
        %903 = vmatpush1.msra.mxu0 0.0
        %904 = vmatprep.subr.mxu0 0.0
        %905 = vmatpush1.msra.mxu0 0.0
        %906 = vmatprep.subr.mxu0 0.0
        %907 = vmatpush1.msra.mxu0 0.0
        %908 = vmatprep.subr.mxu0 0.0
        %909 = vmatpush1.msra.mxu0 0.0
        %910 = vmatprep.subr.mxu0 0.0
        %911 = vmatpush1.msra.mxu0 0.0
        %912 = vmatprep.subr.mxu0 0.0
        %913 = vmatpush1.msra.mxu0 0.0
        %914 = vmatprep.subr.mxu0 0.0
        %915 = vmatpush1.msra.mxu0 0.0
        %916 = vmatprep.subr.mxu0 0.0
        %917 = vmatpush1.msra.mxu0 0.0
        %918 = vmatprep.subr.mxu0 0.0
        %919 = vmatpush1.msra.mxu0 0.0
        %920 = vmatprep.mubr.f32.mxu0 0.0
        %921 = vmatmul.mubr.f32.gmra.mrb[0].mxu0 %v784
        %v922 = vpop.f32.mrb[0].mxu0
        %v923 = vadd.f32 0.0, %v922
        %v924 = vpop.f32.mrb[0].mxu0
        %925 = vdwg.mxu0
        %926 = vrot.lane.b32.xlu0 %v298, 108
        %v927 = vpop.permute.xlu0 %926
        %vm928 = vcmask 64512
        %v929 = vsel %vm928, %v927, 0
        %931 = vmatprep.subr.mxu0 0.0
        %932 = vmatpush1.msra.mxu0 %v923
        %933 = vmatprep.subr.mxu0 0.0
        %934 = vmatpush1.msra.mxu0 0.0
        %935 = vmatprep.subr.mxu0 0.0
        %936 = vmatpush1.msra.mxu0 0.0
        %937 = vmatprep.subr.mxu0 0.0
        %938 = vmatpush1.msra.mxu0 0.0
        %939 = vmatprep.subr.mxu0 0.0
        %940 = vmatpush1.msra.mxu0 0.0
        %941 = vmatprep.subr.mxu0 0.0
        %942 = vmatpush1.msra.mxu0 0.0
        %943 = vmatprep.subr.mxu0 0.0
        %944 = vmatpush1.msra.mxu0 0.0
        %945 = vmatprep.subr.mxu0 0.0
        %946 = vmatpush1.msra.mxu0 0.0
        %947 = vmatprep.subr.mxu0 0.0
        %948 = vmatpush1.msra.mxu0 0.0
        %949 = vmatprep.subr.mxu0 0.0
        %950 = vmatpush1.msra.mxu0 0.0
        %951 = vmatprep.subr.mxu0 0.0
        %952 = vmatpush1.msra.mxu0 0.0
        %953 = vmatprep.subr.mxu0 0.0
        %954 = vmatpush1.msra.mxu0 0.0
        %955 = vmatprep.subr.mxu0 0.0
        %956 = vmatpush1.msra.mxu0 0.0
        %957 = vmatprep.subr.mxu0 0.0
        %958 = vmatpush1.msra.mxu0 0.0
        %959 = vmatprep.subr.mxu0 0.0
        %960 = vmatpush1.msra.mxu0 0.0
        %961 = vmatprep.subr.mxu0 0.0
        %962 = vmatpush1.msra.mxu0 0.0
        %963 = vmatprep.subr.mxu0 0.0
        %964 = vmatpush1.msra.mxu0 0.0
        %965 = vmatprep.subr.mxu0 0.0
        %966 = vmatpush1.msra.mxu0 0.0
        %967 = vmatprep.subr.mxu0 0.0
        %968 = vmatpush1.msra.mxu0 0.0
        %969 = vmatprep.subr.mxu0 0.0
        %970 = vmatpush1.msra.mxu0 0.0
        %971 = vmatprep.subr.mxu0 0.0
        %972 = vmatpush1.msra.mxu0 0.0
        %973 = vmatprep.subr.mxu0 0.0
        %974 = vmatpush1.msra.mxu0 0.0
        %975 = vmatprep.subr.mxu0 0.0
        %976 = vmatpush1.msra.mxu0 0.0
        %977 = vmatprep.subr.mxu0 0.0
        %978 = vmatpush1.msra.mxu0 0.0
        %979 = vmatprep.subr.mxu0 0.0
        %980 = vmatpush1.msra.mxu0 0.0
        %981 = vmatprep.subr.mxu0 0.0
        %982 = vmatpush1.msra.mxu0 0.0
        %983 = vmatprep.subr.mxu0 0.0
        %984 = vmatpush1.msra.mxu0 0.0
        %985 = vmatprep.subr.mxu0 0.0
        %986 = vmatpush1.msra.mxu0 0.0
        %987 = vmatprep.subr.mxu0 0.0
        %988 = vmatpush1.msra.mxu0 0.0
        %989 = vmatprep.subr.mxu0 0.0
        %990 = vmatpush1.msra.mxu0 0.0
        %991 = vmatprep.subr.mxu0 0.0
        %992 = vmatpush1.msra.mxu0 0.0
        %993 = vmatprep.subr.mxu0 0.0
        %994 = vmatpush1.msra.mxu0 0.0
        %995 = vmatprep.mubr.f32.mxu0 0.0
        %996 = vmatmul.mubr.f32.gmra.mrb[0].mxu0 %v929
        %v997 = vpop.f32.mrb[0].mxu0
        %v998 = vadd.f32 0.0, %v997
        %v999 = vpop.f32.mrb[0].mxu0
        %1000 = vdwg.mxu0
        %1001 = vrot.lane.b32.xlu0 %v298, 116
        %v1002 = vpop.permute.xlu0 %1001
        %v1003 = vsel %vm928, %v1002, 0
        %1005 = vmatprep.subr.mxu0 0.0
        %1006 = vmatpush1.msra.mxu0 %v853
        %1007 = vmatprep.subr.mxu0 0.0
        %1008 = vmatpush1.msra.mxu0 0.0
        %1009 = vmatprep.subr.mxu0 0.0
        %1010 = vmatpush1.msra.mxu0 0.0
        %1011 = vmatprep.subr.mxu0 0.0
        %1012 = vmatpush1.msra.mxu0 0.0
        %1013 = vmatprep.subr.mxu0 0.0
        %1014 = vmatpush1.msra.mxu0 0.0
        %1015 = vmatprep.subr.mxu0 0.0
        %1016 = vmatpush1.msra.mxu0 0.0
        %1017 = vmatprep.subr.mxu0 0.0
        %1018 = vmatpush1.msra.mxu0 0.0
        %1019 = vmatprep.subr.mxu0 0.0
        %1020 = vmatpush1.msra.mxu0 0.0
        %1021 = vmatprep.subr.mxu0 0.0
        %1022 = vmatpush1.msra.mxu0 0.0
        %1023 = vmatprep.subr.mxu0 0.0
        %1024 = vmatpush1.msra.mxu0 0.0
        %1025 = vmatprep.subr.mxu0 0.0
        %1026 = vmatpush1.msra.mxu0 0.0
        %1027 = vmatprep.subr.mxu0 0.0
        %1028 = vmatpush1.msra.mxu0 0.0
        %1029 = vmatprep.subr.mxu0 0.0
        %1030 = vmatpush1.msra.mxu0 0.0
        %1031 = vmatprep.subr.mxu0 0.0
        %1032 = vmatpush1.msra.mxu0 0.0
        %1033 = vmatprep.subr.mxu0 0.0
        %1034 = vmatpush1.msra.mxu0 0.0
        %1035 = vmatprep.subr.mxu0 0.0
        %1036 = vmatpush1.msra.mxu0 0.0
        %1037 = vmatprep.subr.mxu0 0.0
        %1038 = vmatpush1.msra.mxu0 0.0
        %1039 = vmatprep.subr.mxu0 0.0
        %1040 = vmatpush1.msra.mxu0 0.0
        %1041 = vmatprep.subr.mxu0 0.0
        %1042 = vmatpush1.msra.mxu0 0.0
        %1043 = vmatprep.subr.mxu0 0.0
        %1044 = vmatpush1.msra.mxu0 0.0
        %1045 = vmatprep.subr.mxu0 0.0
        %1046 = vmatpush1.msra.mxu0 0.0
        %1047 = vmatprep.subr.mxu0 0.0
        %1048 = vmatpush1.msra.mxu0 0.0
        %1049 = vmatprep.subr.mxu0 0.0
        %1050 = vmatpush1.msra.mxu0 0.0
        %1051 = vmatprep.subr.mxu0 0.0
        %1052 = vmatpush1.msra.mxu0 0.0
        %1053 = vmatprep.subr.mxu0 0.0
        %1054 = vmatpush1.msra.mxu0 0.0
        %1055 = vmatprep.subr.mxu0 0.0
        %1056 = vmatpush1.msra.mxu0 0.0
        %1057 = vmatprep.subr.mxu0 0.0
        %1058 = vmatpush1.msra.mxu0 0.0
        %1059 = vmatprep.subr.mxu0 0.0
        %1060 = vmatpush1.msra.mxu0 0.0
        %1061 = vmatprep.subr.mxu0 0.0
        %1062 = vmatpush1.msra.mxu0 0.0
        %1063 = vmatprep.subr.mxu0 0.0
        %1064 = vmatpush1.msra.mxu0 0.0
        %1065 = vmatprep.subr.mxu0 0.0
        %1066 = vmatpush1.msra.mxu0 0.0
        %1067 = vmatprep.subr.mxu0 0.0
        %1068 = vmatpush1.msra.mxu0 0.0
        %1069 = vmatprep.mubr.f32.mxu0 0.0
        %1070 = vmatmul.mubr.f32.gmra.mrb[0].mxu0 %v1003
        %v1071 = vpop.f32.mrb[0].mxu0
        %v1072 = vadd.f32 %v998, %v1071
        %v1073 = vpop.f32.mrb[0].mxu0
        %1074 = vdwg.mxu0
        %1075 = vmatprep.subr.mxu0 0.0
        %1076 = vmatpush1.msra.mxu0 %v615
        %1077 = vmatprep.subr.mxu0 0.0
        %1078 = vmatpush1.msra.mxu0 %v616
        %1079 = vmatprep.subr.mxu0 0.0
        %1080 = vmatpush1.msra.mxu0 0.0
        %1081 = vmatprep.subr.mxu0 0.0
        %1082 = vmatpush1.msra.mxu0 0.0
        %1083 = vmatprep.subr.mxu0 0.0
        %1084 = vmatpush1.msra.mxu0 0.0
        %1085 = vmatprep.subr.mxu0 0.0
        %1086 = vmatpush1.msra.mxu0 0.0
        %1087 = vmatprep.subr.mxu0 0.0
        %1088 = vmatpush1.msra.mxu0 0.0
        %1089 = vmatprep.subr.mxu0 0.0
        %1090 = vmatpush1.msra.mxu0 0.0
        %1091 = vmatprep.subr.mxu0 0.0
        %1092 = vmatpush1.msra.mxu0 0.0
        %1093 = vmatprep.subr.mxu0 0.0
        %1094 = vmatpush1.msra.mxu0 0.0
        %1095 = vmatprep.subr.mxu0 0.0
        %1096 = vmatpush1.msra.mxu0 0.0
        %1097 = vmatprep.subr.mxu0 0.0
        %1098 = vmatpush1.msra.mxu0 0.0
        %1099 = vmatprep.subr.mxu0 0.0
        %1100 = vmatpush1.msra.mxu0 0.0
        %1101 = vmatprep.subr.mxu0 0.0
        %1102 = vmatpush1.msra.mxu0 0.0
        %1103 = vmatprep.subr.mxu0 0.0
        %1104 = vmatpush1.msra.mxu0 0.0
        %1105 = vmatprep.subr.mxu0 0.0
        %1106 = vmatpush1.msra.mxu0 0.0
        %1107 = vmatprep.subr.mxu0 0.0
        %1108 = vmatpush1.msra.mxu0 0.0
        %1109 = vmatprep.subr.mxu0 0.0
        %1110 = vmatpush1.msra.mxu0 0.0
        %1111 = vmatprep.subr.mxu0 0.0
        %1112 = vmatpush1.msra.mxu0 0.0
        %1113 = vmatprep.subr.mxu0 0.0
        %1114 = vmatpush1.msra.mxu0 0.0
        %1115 = vmatprep.subr.mxu0 0.0
        %1116 = vmatpush1.msra.mxu0 0.0
        %1117 = vmatprep.subr.mxu0 0.0
        %1118 = vmatpush1.msra.mxu0 0.0
        %1119 = vmatprep.subr.mxu0 0.0
        %1120 = vmatpush1.msra.mxu0 0.0
        %1121 = vmatprep.subr.mxu0 0.0
        %1122 = vmatpush1.msra.mxu0 0.0
        %1123 = vmatprep.subr.mxu0 0.0
        %1124 = vmatpush1.msra.mxu0 0.0
        %1125 = vmatprep.subr.mxu0 0.0
        %1126 = vmatpush1.msra.mxu0 0.0
        %1127 = vmatprep.subr.mxu0 0.0
        %1128 = vmatpush1.msra.mxu0 0.0
        %1129 = vmatprep.subr.mxu0 0.0
        %1130 = vmatpush1.msra.mxu0 0.0
        %1131 = vmatprep.subr.mxu0 0.0
        %1132 = vmatpush1.msra.mxu0 0.0
        %1133 = vmatprep.subr.mxu0 0.0
        %1134 = vmatpush1.msra.mxu0 0.0
        %1135 = vmatprep.subr.mxu0 0.0
        %1136 = vmatpush1.msra.mxu0 0.0
        %1137 = vmatprep.subr.mxu0 0.0
        %1138 = vmatpush1.msra.mxu0 0.0
        %1139 = vmatprep.mubr.f32.mxu0 0.0
        %1140 = vmatmul.mubr.f32.gmra.mrb[0].mxu0 %v784
        %v1141 = vpop.f32.mrb[0].mxu0
        %v1142 = vadd.f32 0.0, %v1141
        %v1143 = vpop.f32.mrb[0].mxu0
        %1144 = vdwg.mxu0
        %1145 = vrot.lane.b32.xlu0 %v298, 100
        %v1146 = vpop.permute.xlu0 %1145
        %v1147 = vsel %vm928, %v1146, 0
        %1149 = vmatprep.subr.mxu0 0.0
        %1150 = vmatpush1.msra.mxu0 %v1142
        %1151 = vmatprep.subr.mxu0 0.0
        %1152 = vmatpush1.msra.mxu0 0.0
        %1153 = vmatprep.subr.mxu0 0.0
        %1154 = vmatpush1.msra.mxu0 0.0
        %1155 = vmatprep.subr.mxu0 0.0
        %1156 = vmatpush1.msra.mxu0 0.0
        %1157 = vmatprep.subr.mxu0 0.0
        %1158 = vmatpush1.msra.mxu0 0.0
        %1159 = vmatprep.subr.mxu0 0.0
        %1160 = vmatpush1.msra.mxu0 0.0
        %1161 = vmatprep.subr.mxu0 0.0
        %1162 = vmatpush1.msra.mxu0 0.0
        %1163 = vmatprep.subr.mxu0 0.0
        %1164 = vmatpush1.msra.mxu0 0.0
        %1165 = vmatprep.subr.mxu0 0.0
        %1166 = vmatpush1.msra.mxu0 0.0
        %1167 = vmatprep.subr.mxu0 0.0
        %1168 = vmatpush1.msra.mxu0 0.0
        %1169 = vmatprep.subr.mxu0 0.0
        %1170 = vmatpush1.msra.mxu0 0.0
        %1171 = vmatprep.subr.mxu0 0.0
        %1172 = vmatpush1.msra.mxu0 0.0
        %1173 = vmatprep.subr.mxu0 0.0
        %1174 = vmatpush1.msra.mxu0 0.0
        %1175 = vmatprep.subr.mxu0 0.0
        %1176 = vmatpush1.msra.mxu0 0.0
        %1177 = vmatprep.subr.mxu0 0.0
        %1178 = vmatpush1.msra.mxu0 0.0
        %1179 = vmatprep.subr.mxu0 0.0
        %1180 = vmatpush1.msra.mxu0 0.0
        %1181 = vmatprep.subr.mxu0 0.0
        %1182 = vmatpush1.msra.mxu0 0.0
        %1183 = vmatprep.subr.mxu0 0.0
        %1184 = vmatpush1.msra.mxu0 0.0
        %1185 = vmatprep.subr.mxu0 0.0
        %1186 = vmatpush1.msra.mxu0 0.0
        %1187 = vmatprep.subr.mxu0 0.0
        %1188 = vmatpush1.msra.mxu0 0.0
        %1189 = vmatprep.subr.mxu0 0.0
        %1190 = vmatpush1.msra.mxu0 0.0
        %1191 = vmatprep.subr.mxu0 0.0
        %1192 = vmatpush1.msra.mxu0 0.0
        %1193 = vmatprep.subr.mxu0 0.0
        %1194 = vmatpush1.msra.mxu0 0.0
        %1195 = vmatprep.subr.mxu0 0.0
        %1196 = vmatpush1.msra.mxu0 0.0
        %1197 = vmatprep.subr.mxu0 0.0
        %1198 = vmatpush1.msra.mxu0 0.0
        %1199 = vmatprep.subr.mxu0 0.0
        %1200 = vmatpush1.msra.mxu0 0.0
        %1201 = vmatprep.subr.mxu0 0.0
        %1202 = vmatpush1.msra.mxu0 0.0
        %1203 = vmatprep.subr.mxu0 0.0
        %1204 = vmatpush1.msra.mxu0 0.0
        %1205 = vmatprep.subr.mxu0 0.0
        %1206 = vmatpush1.msra.mxu0 0.0
        %1207 = vmatprep.subr.mxu0 0.0
        %1208 = vmatpush1.msra.mxu0 0.0
        %1209 = vmatprep.subr.mxu0 0.0
        %1210 = vmatpush1.msra.mxu0 0.0
        %1211 = vmatprep.subr.mxu0 0.0
        %1212 = vmatpush1.msra.mxu0 0.0
        %1213 = vmatprep.mubr.f32.mxu0 0.0
        %1214 = vmatmul.mubr.f32.gmra.mrb[0].mxu0 %v1147
        %v1215 = vpop.f32.mrb[0].mxu0
        %v1216 = vadd.f32 0.0, %v1215
        %v1217 = vpop.f32.mrb[0].mxu0
        %1218 = vdwg.mxu0
        %v1219 = vadd.f32 %v1072, %v1216
        %1220 = vset.pattern.permute.xlu0 3
        %1221 = vperm.xlu0 %1220, %v765
        %v1222 = vpop.permute.xlu0 %1221
        %v1224 = vadd.f32 %v1219, %v1222
        %v1225 = vmul.u32 %v303, 2
        %vm1226 = vcmp.eq.s32.totalorder %v300, %v1225
        %vm1227 = vcmp.eq.s32.totalorder %v301, %v1225
        %v1228 = vsel %vm1226, 1.0, 0.0
        %v1229 = vsel %vm1227, 1.0, 0.0
        %v1231 = vsel %vm309, %v1224, 0
        %1233 = vmatprep.subr.mxu0 0.0
        %1234 = vmatpush1.msra.mxu0 %v1228
        %1235 = vmatprep.subr.mxu0 0.0
        %1236 = vmatpush1.msra.mxu0 %v1229
        %1237 = vmatprep.subr.mxu0 0.0
        %1238 = vmatpush1.msra.mxu0 0.0
        %1239 = vmatprep.subr.mxu0 0.0
        %1240 = vmatpush1.msra.mxu0 0.0
        %1241 = vmatprep.subr.mxu0 0.0
        %1242 = vmatpush1.msra.mxu0 0.0
        %1243 = vmatprep.subr.mxu0 0.0
        %1244 = vmatpush1.msra.mxu0 0.0
        %1245 = vmatprep.subr.mxu0 0.0
        %1246 = vmatpush1.msra.mxu0 0.0
        %1247 = vmatprep.subr.mxu0 0.0
        %1248 = vmatpush1.msra.mxu0 0.0
        %1249 = vmatprep.subr.mxu0 0.0
        %1250 = vmatpush1.msra.mxu0 0.0
        %1251 = vmatprep.subr.mxu0 0.0
        %1252 = vmatpush1.msra.mxu0 0.0
        %1253 = vmatprep.subr.mxu0 0.0
        %1254 = vmatpush1.msra.mxu0 0.0
        %1255 = vmatprep.subr.mxu0 0.0
        %1256 = vmatpush1.msra.mxu0 0.0
        %1257 = vmatprep.subr.mxu0 0.0
        %1258 = vmatpush1.msra.mxu0 0.0
        %1259 = vmatprep.subr.mxu0 0.0
        %1260 = vmatpush1.msra.mxu0 0.0
        %1261 = vmatprep.subr.mxu0 0.0
        %1262 = vmatpush1.msra.mxu0 0.0
        %1263 = vmatprep.subr.mxu0 0.0
        %1264 = vmatpush1.msra.mxu0 0.0
        %1265 = vmatprep.subr.mxu0 0.0
        %1266 = vmatpush1.msra.mxu0 0.0
        %1267 = vmatprep.subr.mxu0 0.0
        %1268 = vmatpush1.msra.mxu0 0.0
        %1269 = vmatprep.subr.mxu0 0.0
        %1270 = vmatpush1.msra.mxu0 0.0
        %1271 = vmatprep.subr.mxu0 0.0
        %1272 = vmatpush1.msra.mxu0 0.0
        %1273 = vmatprep.subr.mxu0 0.0
        %1274 = vmatpush1.msra.mxu0 0.0
        %1275 = vmatprep.subr.mxu0 0.0
        %1276 = vmatpush1.msra.mxu0 0.0
        %1277 = vmatprep.subr.mxu0 0.0
        %1278 = vmatpush1.msra.mxu0 0.0
        %1279 = vmatprep.subr.mxu0 0.0
        %1280 = vmatpush1.msra.mxu0 0.0
        %1281 = vmatprep.subr.mxu0 0.0
        %1282 = vmatpush1.msra.mxu0 0.0
        %1283 = vmatprep.subr.mxu0 0.0
        %1284 = vmatpush1.msra.mxu0 0.0
        %1285 = vmatprep.subr.mxu0 0.0
        %1286 = vmatpush1.msra.mxu0 0.0
        %1287 = vmatprep.subr.mxu0 0.0
        %1288 = vmatpush1.msra.mxu0 0.0
        %1289 = vmatprep.subr.mxu0 0.0
        %1290 = vmatpush1.msra.mxu0 0.0
        %1291 = vmatprep.subr.mxu0 0.0
        %1292 = vmatpush1.msra.mxu0 0.0
        %1293 = vmatprep.subr.mxu0 0.0
        %1294 = vmatpush1.msra.mxu0 0.0
        %1295 = vmatprep.subr.mxu0 0.0
        %1296 = vmatpush1.msra.mxu0 0.0
        %1297 = vmatprep.mubr.f32.mxu0 0.0
        %1298 = vmatmul.mubr.f32.gmra.mrb[0].mxu0 %v1231
        %v1299 = vpop.f32.mrb[0].mxu0
        %v1300 = vadd.f32 0.0, %v1299
        %v1301 = vpop.f32.mrb[0].mxu0
        %1302 = vdwg.mxu0
        %v1303 = vadd.s32 %v1225, 1
        %vm1304 = vcmp.eq.s32.totalorder %v300, %v1303
        %vm1305 = vcmp.eq.s32.totalorder %v301, %v1303
        %v1306 = vsel %vm1304, 1.0, 0.0
        %v1307 = vsel %vm1305, 1.0, 0.0
        %1308 = vmatprep.subr.mxu0 0.0
        %1309 = vmatpush1.msra.mxu0 %v1306
        %1310 = vmatprep.subr.mxu0 0.0
        %1311 = vmatpush1.msra.mxu0 %v1307
        %1312 = vmatprep.subr.mxu0 0.0
        %1313 = vmatpush1.msra.mxu0 0.0
        %1314 = vmatprep.subr.mxu0 0.0
        %1315 = vmatpush1.msra.mxu0 0.0
        %1316 = vmatprep.subr.mxu0 0.0
        %1317 = vmatpush1.msra.mxu0 0.0
        %1318 = vmatprep.subr.mxu0 0.0
        %1319 = vmatpush1.msra.mxu0 0.0
        %1320 = vmatprep.subr.mxu0 0.0
        %1321 = vmatpush1.msra.mxu0 0.0
        %1322 = vmatprep.subr.mxu0 0.0
        %1323 = vmatpush1.msra.mxu0 0.0
        %1324 = vmatprep.subr.mxu0 0.0
        %1325 = vmatpush1.msra.mxu0 0.0
        %1326 = vmatprep.subr.mxu0 0.0
        %1327 = vmatpush1.msra.mxu0 0.0
        %1328 = vmatprep.subr.mxu0 0.0
        %1329 = vmatpush1.msra.mxu0 0.0
        %1330 = vmatprep.subr.mxu0 0.0
        %1331 = vmatpush1.msra.mxu0 0.0
        %1332 = vmatprep.subr.mxu0 0.0
        %1333 = vmatpush1.msra.mxu0 0.0
        %1334 = vmatprep.subr.mxu0 0.0
        %1335 = vmatpush1.msra.mxu0 0.0
        %1336 = vmatprep.subr.mxu0 0.0
        %1337 = vmatpush1.msra.mxu0 0.0
        %1338 = vmatprep.subr.mxu0 0.0
        %1339 = vmatpush1.msra.mxu0 0.0
        %1340 = vmatprep.subr.mxu0 0.0
        %1341 = vmatpush1.msra.mxu0 0.0
        %1342 = vmatprep.subr.mxu0 0.0
        %1343 = vmatpush1.msra.mxu0 0.0
        %1344 = vmatprep.subr.mxu0 0.0
        %1345 = vmatpush1.msra.mxu0 0.0
        %1346 = vmatprep.subr.mxu0 0.0
        %1347 = vmatpush1.msra.mxu0 0.0
        %1348 = vmatprep.subr.mxu0 0.0
        %1349 = vmatpush1.msra.mxu0 0.0
        %1350 = vmatprep.subr.mxu0 0.0
        %1351 = vmatpush1.msra.mxu0 0.0
        %1352 = vmatprep.subr.mxu0 0.0
        %1353 = vmatpush1.msra.mxu0 0.0
        %1354 = vmatprep.subr.mxu0 0.0
        %1355 = vmatpush1.msra.mxu0 0.0
        %1356 = vmatprep.subr.mxu0 0.0
        %1357 = vmatpush1.msra.mxu0 0.0
        %1358 = vmatprep.subr.mxu0 0.0
        %1359 = vmatpush1.msra.mxu0 0.0
        %1360 = vmatprep.subr.mxu0 0.0
        %1361 = vmatpush1.msra.mxu0 0.0
        %1362 = vmatprep.subr.mxu0 0.0
        %1363 = vmatpush1.msra.mxu0 0.0
        %1364 = vmatprep.subr.mxu0 0.0
        %1365 = vmatpush1.msra.mxu0 0.0
        %1366 = vmatprep.subr.mxu0 0.0
        %1367 = vmatpush1.msra.mxu0 0.0
        %1368 = vmatprep.subr.mxu0 0.0
        %1369 = vmatpush1.msra.mxu0 0.0
        %1370 = vmatprep.subr.mxu0 0.0
        %1371 = vmatpush1.msra.mxu0 0.0
        %1372 = vmatprep.mubr.f32.mxu0 0.0
        %1373 = vmatmul.mubr.f32.gmra.mrb[0].mxu0 %v1231
        %v1374 = vpop.f32.mrb[0].mxu0
        %v1375 = vadd.f32 0.0, %v1374
        %v1376 = vpop.f32.mrb[0].mxu0
        %1377 = vdwg.mxu0
        %v1378 = vmax.f32 %v1300, %v1375
        %v1379 = vmax.f32 %v1378, 0.0
        %1380 = vset.pattern.permute.xlu0 4
        %1381 = vperm.xlu0 %1380, %v765
        %v1382 = vpop.permute.xlu0 %1381
        %v1384 = vmul.f32 %v1379, %v1382
        %1385 = vset.pattern.permute.xlu0 5
        %1386 = vperm.xlu0 %1385, %v765
        %v1387 = vpop.permute.xlu0 %1386
        %v1389 = vadd.f32 %v1384, %v1387
        %v1390 = vld [vmem:[#allocation2] sm:$0xff]
        %v1391 = vld [vmem:[#allocation2 + $0x28] sm:$0xff]
        %v1393 = vsel %vm928, %v1389, 0
        %1395 = vmatprep.subr.mxu0 0.0
        %1396 = vmatpush1.msra.mxu0 %v307
        %1397 = vmatprep.subr.mxu0 0.0
        %1398 = vmatpush1.msra.mxu0 0.0
        %1399 = vmatprep.subr.mxu0 0.0
        %1400 = vmatpush1.msra.mxu0 0.0
        %1401 = vmatprep.subr.mxu0 0.0
        %1402 = vmatpush1.msra.mxu0 0.0
        %1403 = vmatprep.subr.mxu0 0.0
        %1404 = vmatpush1.msra.mxu0 0.0
        %1405 = vmatprep.subr.mxu0 0.0
        %1406 = vmatpush1.msra.mxu0 0.0
        %1407 = vmatprep.subr.mxu0 0.0
        %1408 = vmatpush1.msra.mxu0 0.0
        %1409 = vmatprep.subr.mxu0 0.0
        %1410 = vmatpush1.msra.mxu0 0.0
        %1411 = vmatprep.subr.mxu0 0.0
        %1412 = vmatpush1.msra.mxu0 0.0
        %1413 = vmatprep.subr.mxu0 0.0
        %1414 = vmatpush1.msra.mxu0 0.0
        %1415 = vmatprep.subr.mxu0 0.0
        %1416 = vmatpush1.msra.mxu0 0.0
        %1417 = vmatprep.subr.mxu0 0.0
        %1418 = vmatpush1.msra.mxu0 0.0
        %1419 = vmatprep.subr.mxu0 0.0
        %1420 = vmatpush1.msra.mxu0 0.0
        %1421 = vmatprep.subr.mxu0 0.0
        %1422 = vmatpush1.msra.mxu0 0.0
        %1423 = vmatprep.subr.mxu0 0.0
        %1424 = vmatpush1.msra.mxu0 0.0
        %1425 = vmatprep.subr.mxu0 0.0
        %1426 = vmatpush1.msra.mxu0 0.0
        %1427 = vmatprep.subr.mxu0 0.0
        %1428 = vmatpush1.msra.mxu0 0.0
        %1429 = vmatprep.subr.mxu0 0.0
        %1430 = vmatpush1.msra.mxu0 0.0
        %1431 = vmatprep.subr.mxu0 0.0
        %1432 = vmatpush1.msra.mxu0 0.0
        %1433 = vmatprep.subr.mxu0 0.0
        %1434 = vmatpush1.msra.mxu0 0.0
        %1435 = vmatprep.subr.mxu0 0.0
        %1436 = vmatpush1.msra.mxu0 0.0
        %1437 = vmatprep.subr.mxu0 0.0
        %1438 = vmatpush1.msra.mxu0 0.0
        %1439 = vmatprep.subr.mxu0 0.0
        %1440 = vmatpush1.msra.mxu0 0.0
        %1441 = vmatprep.subr.mxu0 0.0
        %1442 = vmatpush1.msra.mxu0 0.0
        %1443 = vmatprep.subr.mxu0 0.0
        %1444 = vmatpush1.msra.mxu0 0.0
        %1445 = vmatprep.subr.mxu0 0.0
        %1446 = vmatpush1.msra.mxu0 0.0
        %1447 = vmatprep.subr.mxu0 0.0
        %1448 = vmatpush1.msra.mxu0 0.0
        %1449 = vmatprep.subr.mxu0 0.0
        %1450 = vmatpush1.msra.mxu0 0.0
        %1451 = vmatprep.subr.mxu0 0.0
        %1452 = vmatpush1.msra.mxu0 0.0
        %1453 = vmatprep.subr.mxu0 0.0
        %1454 = vmatpush1.msra.mxu0 0.0
        %1455 = vmatprep.subr.mxu0 0.0
        %1456 = vmatpush1.msra.mxu0 0.0
        %1457 = vmatprep.subr.mxu0 0.0
        %1458 = vmatpush1.msra.mxu0 0.0
        %1459 = vmatprep.mubr.f32.mxu0 0.0
        %1460 = vmatmul.mubr.f32.gmra.mrb[0].mxu0 %v1393
        %v1461 = vpop.f32.mrb[0].mxu0
        %v1462 = vadd.f32 0.0, %v1461
        %v1463 = vpop.f32.mrb[0].mxu0
        %1464 = vdwg.mxu0
        %1465 = vmatprep.subr.mxu0 0.0
        %1466 = vmatpush1.msra.mxu0 %v385
        %1467 = vmatprep.subr.mxu0 0.0
        %1468 = vmatpush1.msra.mxu0 0.0
        %1469 = vmatprep.subr.mxu0 0.0
        %1470 = vmatpush1.msra.mxu0 0.0
        %1471 = vmatprep.subr.mxu0 0.0
        %1472 = vmatpush1.msra.mxu0 0.0
        %1473 = vmatprep.subr.mxu0 0.0
        %1474 = vmatpush1.msra.mxu0 0.0
        %1475 = vmatprep.subr.mxu0 0.0
        %1476 = vmatpush1.msra.mxu0 0.0
        %1477 = vmatprep.subr.mxu0 0.0
        %1478 = vmatpush1.msra.mxu0 0.0
        %1479 = vmatprep.subr.mxu0 0.0
        %1480 = vmatpush1.msra.mxu0 0.0
        %1481 = vmatprep.subr.mxu0 0.0
        %1482 = vmatpush1.msra.mxu0 0.0
        %1483 = vmatprep.subr.mxu0 0.0
        %1484 = vmatpush1.msra.mxu0 0.0
        %1485 = vmatprep.subr.mxu0 0.0
        %1486 = vmatpush1.msra.mxu0 0.0
        %1487 = vmatprep.subr.mxu0 0.0
        %1488 = vmatpush1.msra.mxu0 0.0
        %1489 = vmatprep.subr.mxu0 0.0
        %1490 = vmatpush1.msra.mxu0 0.0
        %1491 = vmatprep.subr.mxu0 0.0
        %1492 = vmatpush1.msra.mxu0 0.0
        %1493 = vmatprep.subr.mxu0 0.0
        %1494 = vmatpush1.msra.mxu0 0.0
        %1495 = vmatprep.subr.mxu0 0.0
        %1496 = vmatpush1.msra.mxu0 0.0
        %1497 = vmatprep.subr.mxu0 0.0
        %1498 = vmatpush1.msra.mxu0 0.0
        %1499 = vmatprep.subr.mxu0 0.0
        %1500 = vmatpush1.msra.mxu0 0.0
        %1501 = vmatprep.subr.mxu0 0.0
        %1502 = vmatpush1.msra.mxu0 0.0
        %1503 = vmatprep.subr.mxu0 0.0
        %1504 = vmatpush1.msra.mxu0 0.0
        %1505 = vmatprep.subr.mxu0 0.0
        %1506 = vmatpush1.msra.mxu0 0.0
        %1507 = vmatprep.subr.mxu0 0.0
        %1508 = vmatpush1.msra.mxu0 0.0
        %1509 = vmatprep.subr.mxu0 0.0
        %1510 = vmatpush1.msra.mxu0 0.0
        %1511 = vmatprep.subr.mxu0 0.0
        %1512 = vmatpush1.msra.mxu0 0.0
        %1513 = vmatprep.subr.mxu0 0.0
        %1514 = vmatpush1.msra.mxu0 0.0
        %1515 = vmatprep.subr.mxu0 0.0
        %1516 = vmatpush1.msra.mxu0 0.0
        %1517 = vmatprep.subr.mxu0 0.0
        %1518 = vmatpush1.msra.mxu0 0.0
        %1519 = vmatprep.subr.mxu0 0.0
        %1520 = vmatpush1.msra.mxu0 0.0
        %1521 = vmatprep.subr.mxu0 0.0
        %1522 = vmatpush1.msra.mxu0 0.0
        %1523 = vmatprep.subr.mxu0 0.0
        %1524 = vmatpush1.msra.mxu0 0.0
        %1525 = vmatprep.subr.mxu0 0.0
        %1526 = vmatpush1.msra.mxu0 0.0
        %1527 = vmatprep.subr.mxu0 0.0
        %1528 = vmatpush1.msra.mxu0 0.0
        %1529 = vmatprep.mubr.f32.mxu0 0.0
        %1530 = vmatmul.mubr.f32.gmra.mrb[0].mxu0 %v1393
        %v1531 = vpop.f32.mrb[0].mxu0
        %v1532 = vadd.f32 0.0, %v1531
        %v1533 = vpop.f32.mrb[0].mxu0
        %1534 = vdwg.mxu0
        %1537 = vrot.lane.b32.xlu0 %v1390, 84
        %v1538 = vpop.permute.xlu0 %1537
        %1539 = vrot.lane.b32.xlu0 %v1391, 84
        %v1540 = vpop.permute.xlu0 %1539
        %v1541 = vsel %vm928, %v1538, 0
        %v1543 = vsel %vm928, %v1540, 0
        %1545 = vmatprep.subr.mxu0 0.0
        %1546 = vmatpush1.msra.mxu0 %v1532
        %1547 = vmatprep.subr.mxu0 0.0
        %1548 = vmatpush1.msra.mxu0 0.0
        %1549 = vmatprep.subr.mxu0 0.0
        %1550 = vmatpush1.msra.mxu0 0.0
        %1551 = vmatprep.subr.mxu0 0.0
        %1552 = vmatpush1.msra.mxu0 0.0
        %1553 = vmatprep.subr.mxu0 0.0
        %1554 = vmatpush1.msra.mxu0 0.0
        %1555 = vmatprep.subr.mxu0 0.0
        %1556 = vmatpush1.msra.mxu0 0.0
        %1557 = vmatprep.subr.mxu0 0.0
        %1558 = vmatpush1.msra.mxu0 0.0
        %1559 = vmatprep.subr.mxu0 0.0
        %1560 = vmatpush1.msra.mxu0 0.0
        %1561 = vmatprep.subr.mxu0 0.0
        %1562 = vmatpush1.msra.mxu0 0.0
        %1563 = vmatprep.subr.mxu0 0.0
        %1564 = vmatpush1.msra.mxu0 0.0
        %1565 = vmatprep.subr.mxu0 0.0
        %1566 = vmatpush1.msra.mxu0 0.0
        %1567 = vmatprep.subr.mxu0 0.0
        %1568 = vmatpush1.msra.mxu0 0.0
        %1569 = vmatprep.subr.mxu0 0.0
        %1570 = vmatpush1.msra.mxu0 0.0
        %1571 = vmatprep.subr.mxu0 0.0
        %1572 = vmatpush1.msra.mxu0 0.0
        %1573 = vmatprep.subr.mxu0 0.0
        %1574 = vmatpush1.msra.mxu0 0.0
        %1575 = vmatprep.subr.mxu0 0.0
        %1576 = vmatpush1.msra.mxu0 0.0
        %1577 = vmatprep.subr.mxu0 0.0
        %1578 = vmatpush1.msra.mxu0 0.0
        %1579 = vmatprep.subr.mxu0 0.0
        %1580 = vmatpush1.msra.mxu0 0.0
        %1581 = vmatprep.subr.mxu0 0.0
        %1582 = vmatpush1.msra.mxu0 0.0
        %1583 = vmatprep.subr.mxu0 0.0
        %1584 = vmatpush1.msra.mxu0 0.0
        %1585 = vmatprep.subr.mxu0 0.0
        %1586 = vmatpush1.msra.mxu0 0.0
        %1587 = vmatprep.subr.mxu0 0.0
        %1588 = vmatpush1.msra.mxu0 0.0
        %1589 = vmatprep.subr.mxu0 0.0
        %1590 = vmatpush1.msra.mxu0 0.0
        %1591 = vmatprep.subr.mxu0 0.0
        %1592 = vmatpush1.msra.mxu0 0.0
        %1593 = vmatprep.subr.mxu0 0.0
        %1594 = vmatpush1.msra.mxu0 0.0
        %1595 = vmatprep.subr.mxu0 0.0
        %1596 = vmatpush1.msra.mxu0 0.0
        %1597 = vmatprep.subr.mxu0 0.0
        %1598 = vmatpush1.msra.mxu0 0.0
        %1599 = vmatprep.subr.mxu0 0.0
        %1600 = vmatpush1.msra.mxu0 0.0
        %1601 = vmatprep.subr.mxu0 0.0
        %1602 = vmatpush1.msra.mxu0 0.0
        %1603 = vmatprep.subr.mxu0 0.0
        %1604 = vmatpush1.msra.mxu0 0.0
        %1605 = vmatprep.subr.mxu0 0.0
        %1606 = vmatpush1.msra.mxu0 0.0
        %1607 = vmatprep.subr.mxu0 0.0
        %1608 = vmatpush1.msra.mxu0 0.0
        %1609 = vmatprep.mubr.f32.mxu0 0.0
        %1610 = vmatmul.mubr.f32.gmra.mrb[0].mxu0 %v1541
        %v1611 = vpop.f32.mrb[0].mxu0
        %v1612 = vadd.f32 0.0, %v1611
        %v1613 = vpop.f32.mrb[0].mxu0
        %1614 = vmatprep.mubr.f32.mxu0 0.0
        %1615 = vmatmul.mubr.f32.gmra.mrb[0].mxu0 %v1543
        %v1616 = vpop.f32.mrb[0].mxu0
        %v1617 = vadd.f32 0.0, %v1616
        %v1618 = vpop.f32.mrb[0].mxu0
        %1619 = vdwg.mxu0
        %1620 = vrot.lane.b32.xlu0 %v1390, 92
        %v1621 = vpop.permute.xlu0 %1620
        %1622 = vrot.lane.b32.xlu0 %v1391, 92
        %v1623 = vpop.permute.xlu0 %1622
        %v1624 = vsel %vm928, %v1621, 0
        %v1626 = vsel %vm928, %v1623, 0
        %1628 = vmatprep.subr.mxu0 0.0
        %1629 = vmatpush1.msra.mxu0 %v1462
        %1630 = vmatprep.subr.mxu0 0.0
        %1631 = vmatpush1.msra.mxu0 0.0
        %1632 = vmatprep.subr.mxu0 0.0
        %1633 = vmatpush1.msra.mxu0 0.0
        %1634 = vmatprep.subr.mxu0 0.0
        %1635 = vmatpush1.msra.mxu0 0.0
        %1636 = vmatprep.subr.mxu0 0.0
        %1637 = vmatpush1.msra.mxu0 0.0
        %1638 = vmatprep.subr.mxu0 0.0
        %1639 = vmatpush1.msra.mxu0 0.0
        %1640 = vmatprep.subr.mxu0 0.0
        %1641 = vmatpush1.msra.mxu0 0.0
        %1642 = vmatprep.subr.mxu0 0.0
        %1643 = vmatpush1.msra.mxu0 0.0
        %1644 = vmatprep.subr.mxu0 0.0
        %1645 = vmatpush1.msra.mxu0 0.0
        %1646 = vmatprep.subr.mxu0 0.0
        %1647 = vmatpush1.msra.mxu0 0.0
        %1648 = vmatprep.subr.mxu0 0.0
        %1649 = vmatpush1.msra.mxu0 0.0
        %1650 = vmatprep.subr.mxu0 0.0
        %1651 = vmatpush1.msra.mxu0 0.0
        %1652 = vmatprep.subr.mxu0 0.0
        %1653 = vmatpush1.msra.mxu0 0.0
        %1654 = vmatprep.subr.mxu0 0.0
        %1655 = vmatpush1.msra.mxu0 0.0
        %1656 = vmatprep.subr.mxu0 0.0
        %1657 = vmatpush1.msra.mxu0 0.0
        %1658 = vmatprep.subr.mxu0 0.0
        %1659 = vmatpush1.msra.mxu0 0.0
        %1660 = vmatprep.subr.mxu0 0.0
        %1661 = vmatpush1.msra.mxu0 0.0
        %1662 = vmatprep.subr.mxu0 0.0
        %1663 = vmatpush1.msra.mxu0 0.0
        %1664 = vmatprep.subr.mxu0 0.0
        %1665 = vmatpush1.msra.mxu0 0.0
        %1666 = vmatprep.subr.mxu0 0.0
        %1667 = vmatpush1.msra.mxu0 0.0
        %1668 = vmatprep.subr.mxu0 0.0
        %1669 = vmatpush1.msra.mxu0 0.0
        %1670 = vmatprep.subr.mxu0 0.0
        %1671 = vmatpush1.msra.mxu0 0.0
        %1672 = vmatprep.subr.mxu0 0.0
        %1673 = vmatpush1.msra.mxu0 0.0
        %1674 = vmatprep.subr.mxu0 0.0
        %1675 = vmatpush1.msra.mxu0 0.0
        %1676 = vmatprep.subr.mxu0 0.0
        %1677 = vmatpush1.msra.mxu0 0.0
        %1678 = vmatprep.subr.mxu0 0.0
        %1679 = vmatpush1.msra.mxu0 0.0
        %1680 = vmatprep.subr.mxu0 0.0
        %1681 = vmatpush1.msra.mxu0 0.0
        %1682 = vmatprep.subr.mxu0 0.0
        %1683 = vmatpush1.msra.mxu0 0.0
        %1684 = vmatprep.subr.mxu0 0.0
        %1685 = vmatpush1.msra.mxu0 0.0
        %1686 = vmatprep.subr.mxu0 0.0
        %1687 = vmatpush1.msra.mxu0 0.0
        %1688 = vmatprep.subr.mxu0 0.0
        %1689 = vmatpush1.msra.mxu0 0.0
        %1690 = vmatprep.subr.mxu0 0.0
        %1691 = vmatpush1.msra.mxu0 0.0
        %1692 = vmatprep.mubr.f32.mxu0 0.0
        %1693 = vmatmul.mubr.f32.gmra.mrb[0].mxu0 %v1624
        %v1694 = vpop.f32.mrb[0].mxu0
        %v1695 = vadd.f32 %v1612, %v1694
        %v1696 = vpop.f32.mrb[0].mxu0
        %1697 = vmatprep.mubr.f32.mxu0 0.0
        %1698 = vmatmul.mubr.f32.gmra.mrb[0].mxu0 %v1626
        %v1699 = vpop.f32.mrb[0].mxu0
        %v1700 = vadd.f32 %v1617, %v1699
        %v1701 = vpop.f32.mrb[0].mxu0
        %1702 = vdwg.mxu0
        %1703 = vmatprep.subr.mxu0 0.0
        %1704 = vmatpush1.msra.mxu0 %v615
        %1705 = vmatprep.subr.mxu0 0.0
        %1706 = vmatpush1.msra.mxu0 0.0
        %1707 = vmatprep.subr.mxu0 0.0
        %1708 = vmatpush1.msra.mxu0 0.0
        %1709 = vmatprep.subr.mxu0 0.0
        %1710 = vmatpush1.msra.mxu0 0.0
        %1711 = vmatprep.subr.mxu0 0.0
        %1712 = vmatpush1.msra.mxu0 0.0
        %1713 = vmatprep.subr.mxu0 0.0
        %1714 = vmatpush1.msra.mxu0 0.0
        %1715 = vmatprep.subr.mxu0 0.0
        %1716 = vmatpush1.msra.mxu0 0.0
        %1717 = vmatprep.subr.mxu0 0.0
        %1718 = vmatpush1.msra.mxu0 0.0
        %1719 = vmatprep.subr.mxu0 0.0
        %1720 = vmatpush1.msra.mxu0 0.0
        %1721 = vmatprep.subr.mxu0 0.0
        %1722 = vmatpush1.msra.mxu0 0.0
        %1723 = vmatprep.subr.mxu0 0.0
        %1724 = vmatpush1.msra.mxu0 0.0
        %1725 = vmatprep.subr.mxu0 0.0
        %1726 = vmatpush1.msra.mxu0 0.0
        %1727 = vmatprep.subr.mxu0 0.0
        %1728 = vmatpush1.msra.mxu0 0.0
        %1729 = vmatprep.subr.mxu0 0.0
        %1730 = vmatpush1.msra.mxu0 0.0
        %1731 = vmatprep.subr.mxu0 0.0
        %1732 = vmatpush1.msra.mxu0 0.0
        %1733 = vmatprep.subr.mxu0 0.0
        %1734 = vmatpush1.msra.mxu0 0.0
        %1735 = vmatprep.subr.mxu0 0.0
        %1736 = vmatpush1.msra.mxu0 0.0
        %1737 = vmatprep.subr.mxu0 0.0
        %1738 = vmatpush1.msra.mxu0 0.0
        %1739 = vmatprep.subr.mxu0 0.0
        %1740 = vmatpush1.msra.mxu0 0.0
        %1741 = vmatprep.subr.mxu0 0.0
        %1742 = vmatpush1.msra.mxu0 0.0
        %1743 = vmatprep.subr.mxu0 0.0
        %1744 = vmatpush1.msra.mxu0 0.0
        %1745 = vmatprep.subr.mxu0 0.0
        %1746 = vmatpush1.msra.mxu0 0.0
        %1747 = vmatprep.subr.mxu0 0.0
        %1748 = vmatpush1.msra.mxu0 0.0
        %1749 = vmatprep.subr.mxu0 0.0
        %1750 = vmatpush1.msra.mxu0 0.0
        %1751 = vmatprep.subr.mxu0 0.0
        %1752 = vmatpush1.msra.mxu0 0.0
        %1753 = vmatprep.subr.mxu0 0.0
        %1754 = vmatpush1.msra.mxu0 0.0
        %1755 = vmatprep.subr.mxu0 0.0
        %1756 = vmatpush1.msra.mxu0 0.0
        %1757 = vmatprep.subr.mxu0 0.0
        %1758 = vmatpush1.msra.mxu0 0.0
        %1759 = vmatprep.subr.mxu0 0.0
        %1760 = vmatpush1.msra.mxu0 0.0
        %1761 = vmatprep.subr.mxu0 0.0
        %1762 = vmatpush1.msra.mxu0 0.0
        %1763 = vmatprep.subr.mxu0 0.0
        %1764 = vmatpush1.msra.mxu0 0.0
        %1765 = vmatprep.subr.mxu0 0.0
        %1766 = vmatpush1.msra.mxu0 0.0
        %1767 = vmatprep.mubr.f32.mxu0 0.0
        %1768 = vmatmul.mubr.f32.gmra.mrb[0].mxu0 %v1393
        %v1769 = vpop.f32.mrb[0].mxu0
        %v1770 = vadd.f32 0.0, %v1769
        %v1771 = vpop.f32.mrb[0].mxu0
        %1772 = vdwg.mxu0
        %1773 = vrot.lane.b32.xlu0 %v1390, 76
        %v1774 = vpop.permute.xlu0 %1773
        %1775 = vrot.lane.b32.xlu0 %v1391, 76
        %v1776 = vpop.permute.xlu0 %1775
        %v1777 = vsel %vm928, %v1774, 0
        %v1779 = vsel %vm928, %v1776, 0
        %1781 = vmatprep.subr.mxu0 0.0
        %1782 = vmatpush1.msra.mxu0 %v1770
        %1783 = vmatprep.subr.mxu0 0.0
        %1784 = vmatpush1.msra.mxu0 0.0
        %1785 = vmatprep.subr.mxu0 0.0
        %1786 = vmatpush1.msra.mxu0 0.0
        %1787 = vmatprep.subr.mxu0 0.0
        %1788 = vmatpush1.msra.mxu0 0.0
        %1789 = vmatprep.subr.mxu0 0.0
        %1790 = vmatpush1.msra.mxu0 0.0
        %1791 = vmatprep.subr.mxu0 0.0
        %1792 = vmatpush1.msra.mxu0 0.0
        %1793 = vmatprep.subr.mxu0 0.0
        %1794 = vmatpush1.msra.mxu0 0.0
        %1795 = vmatprep.subr.mxu0 0.0
        %1796 = vmatpush1.msra.mxu0 0.0
        %1797 = vmatprep.subr.mxu0 0.0
        %1798 = vmatpush1.msra.mxu0 0.0
        %1799 = vmatprep.subr.mxu0 0.0
        %1800 = vmatpush1.msra.mxu0 0.0
        %1801 = vmatprep.subr.mxu0 0.0
        %1802 = vmatpush1.msra.mxu0 0.0
        %1803 = vmatprep.subr.mxu0 0.0
        %1804 = vmatpush1.msra.mxu0 0.0
        %1805 = vmatprep.subr.mxu0 0.0
        %1806 = vmatpush1.msra.mxu0 0.0
        %1807 = vmatprep.subr.mxu0 0.0
        %1808 = vmatpush1.msra.mxu0 0.0
        %1809 = vmatprep.subr.mxu0 0.0
        %1810 = vmatpush1.msra.mxu0 0.0
        %1811 = vmatprep.subr.mxu0 0.0
        %1812 = vmatpush1.msra.mxu0 0.0
        %1813 = vmatprep.subr.mxu0 0.0
        %1814 = vmatpush1.msra.mxu0 0.0
        %1815 = vmatprep.subr.mxu0 0.0
        %1816 = vmatpush1.msra.mxu0 0.0
        %1817 = vmatprep.subr.mxu0 0.0
        %1818 = vmatpush1.msra.mxu0 0.0
        %1819 = vmatprep.subr.mxu0 0.0
        %1820 = vmatpush1.msra.mxu0 0.0
        %1821 = vmatprep.subr.mxu0 0.0
        %1822 = vmatpush1.msra.mxu0 0.0
        %1823 = vmatprep.subr.mxu0 0.0
        %1824 = vmatpush1.msra.mxu0 0.0
        %1825 = vmatprep.subr.mxu0 0.0
        %1826 = vmatpush1.msra.mxu0 0.0
        %1827 = vmatprep.subr.mxu0 0.0
        %1828 = vmatpush1.msra.mxu0 0.0
        %1829 = vmatprep.subr.mxu0 0.0
        %1830 = vmatpush1.msra.mxu0 0.0
        %1831 = vmatprep.subr.mxu0 0.0
        %1832 = vmatpush1.msra.mxu0 0.0
        %1833 = vmatprep.subr.mxu0 0.0
        %1834 = vmatpush1.msra.mxu0 0.0
        %1835 = vmatprep.subr.mxu0 0.0
        %1836 = vmatpush1.msra.mxu0 0.0
        %1837 = vmatprep.subr.mxu0 0.0
        %1838 = vmatpush1.msra.mxu0 0.0
        %1839 = vmatprep.subr.mxu0 0.0
        %1840 = vmatpush1.msra.mxu0 0.0
        %1841 = vmatprep.subr.mxu0 0.0
        %1842 = vmatpush1.msra.mxu0 0.0
        %1843 = vmatprep.subr.mxu0 0.0
        %1844 = vmatpush1.msra.mxu0 0.0
        %1845 = vmatprep.mubr.f32.mxu0 0.0
        %1846 = vmatmul.mubr.f32.gmra.mrb[0].mxu0 %v1777
        %v1847 = vpop.f32.mrb[0].mxu0
        %v1848 = vadd.f32 0.0, %v1847
        %v1849 = vpop.f32.mrb[0].mxu0
        %1850 = vmatprep.mubr.f32.mxu0 0.0
        %1851 = vmatmul.mubr.f32.gmra.mrb[0].mxu0 %v1779
        %v1852 = vpop.f32.mrb[0].mxu0
        %v1853 = vadd.f32 0.0, %v1852
        %v1854 = vpop.f32.mrb[0].mxu0
        %1855 = vdwg.mxu0
        %v1856 = vadd.f32 %v1695, %v1848
        %v1857 = vadd.f32 %v1700, %v1853
        %v1858 = vld [vmem:[%s2] sm:$0xff]
        %v1859 = vld [vmem:[%s2 + $0x8] sm:$0xff]
        %1861 = vset.pattern.permute.xlu0 6
        %1862 = vperm.xlu0 %1861, %v1858
        %v1863 = vpop.permute.xlu0 %1862
        %1866 = vset.pattern.permute.xlu0 6
        %1867 = vperm.xlu0 %1866, %v1859
        %v1868 = vpop.permute.xlu0 %1867
        %v1870 = vadd.f32 %v1856, %v1863
        %v1871 = vadd.f32 %v1857, %v1868
        %v1872 = vmax.f32 %v1870, 0.0
        %v1873 = vmax.f32 %v1871, 0.0
        %1874 = vset.pattern.permute.xlu0 7
        %1875 = vperm.xlu0 %1874, %v1858
        %v1876 = vpop.permute.xlu0 %1875
        %1878 = vset.pattern.permute.xlu0 7
        %1879 = vperm.xlu0 %1878, %v1859
        %v1880 = vpop.permute.xlu0 %1879
        %v1882 = vmul.f32 %v1872, %v1876
        %v1883 = vmul.f32 %v1873, %v1880
        %1884 = vset.pattern.permute.xlu0 8
        %1885 = vperm.xlu0 %1884, %v1858
        %v1886 = vpop.permute.xlu0 %1885
        %1888 = vset.pattern.permute.xlu0 8
        %1889 = vperm.xlu0 %1888, %v1859
        %v1890 = vpop.permute.xlu0 %1889
        %v1892 = vadd.f32 %v1882, %v1886
        %v1893 = vadd.f32 %v1883, %v1890
        %v1895 = vsel %vm928, %v1892, 0
        %v1898 = vsel %vm928, %v1893, 0
        %1900 = vmatprep.subr.mxu0 0.0
        %1901 = vmatpush1.msra.mxu0 %v307
        %1902 = vmatprep.subr.mxu0 0.0
        %1903 = vmatpush1.msra.mxu0 0.0
        %1904 = vmatprep.subr.mxu0 0.0
        %1905 = vmatpush1.msra.mxu0 0.0
        %1906 = vmatprep.subr.mxu0 0.0
        %1907 = vmatpush1.msra.mxu0 0.0
        %1908 = vmatprep.subr.mxu0 0.0
        %1909 = vmatpush1.msra.mxu0 0.0
        %1910 = vmatprep.subr.mxu0 0.0
        %1911 = vmatpush1.msra.mxu0 0.0
        %1912 = vmatprep.subr.mxu0 0.0
        %1913 = vmatpush1.msra.mxu0 0.0
        %1914 = vmatprep.subr.mxu0 0.0
        %1915 = vmatpush1.msra.mxu0 0.0
        %1916 = vmatprep.subr.mxu0 0.0
        %1917 = vmatpush1.msra.mxu0 0.0
        %1918 = vmatprep.subr.mxu0 0.0
        %1919 = vmatpush1.msra.mxu0 0.0
        %1920 = vmatprep.subr.mxu0 0.0
        %1921 = vmatpush1.msra.mxu0 0.0
        %1922 = vmatprep.subr.mxu0 0.0
        %1923 = vmatpush1.msra.mxu0 0.0
        %1924 = vmatprep.subr.mxu0 0.0
        %1925 = vmatpush1.msra.mxu0 0.0
        %1926 = vmatprep.subr.mxu0 0.0
        %1927 = vmatpush1.msra.mxu0 0.0
        %1928 = vmatprep.subr.mxu0 0.0
        %1929 = vmatpush1.msra.mxu0 0.0
        %1930 = vmatprep.subr.mxu0 0.0
        %1931 = vmatpush1.msra.mxu0 0.0
        %1932 = vmatprep.subr.mxu0 0.0
        %1933 = vmatpush1.msra.mxu0 0.0
        %1934 = vmatprep.subr.mxu0 0.0
        %1935 = vmatpush1.msra.mxu0 0.0
        %1936 = vmatprep.subr.mxu0 0.0
        %1937 = vmatpush1.msra.mxu0 0.0
        %1938 = vmatprep.subr.mxu0 0.0
        %1939 = vmatpush1.msra.mxu0 0.0
        %1940 = vmatprep.subr.mxu0 0.0
        %1941 = vmatpush1.msra.mxu0 0.0
        %1942 = vmatprep.subr.mxu0 0.0
        %1943 = vmatpush1.msra.mxu0 0.0
        %1944 = vmatprep.subr.mxu0 0.0
        %1945 = vmatpush1.msra.mxu0 0.0
        %1946 = vmatprep.subr.mxu0 0.0
        %1947 = vmatpush1.msra.mxu0 0.0
        %1948 = vmatprep.subr.mxu0 0.0
        %1949 = vmatpush1.msra.mxu0 0.0
        %1950 = vmatprep.subr.mxu0 0.0
        %1951 = vmatpush1.msra.mxu0 0.0
        %1952 = vmatprep.subr.mxu0 0.0
        %1953 = vmatpush1.msra.mxu0 0.0
        %1954 = vmatprep.subr.mxu0 0.0
        %1955 = vmatpush1.msra.mxu0 0.0
        %1956 = vmatprep.subr.mxu0 0.0
        %1957 = vmatpush1.msra.mxu0 0.0
        %1958 = vmatprep.subr.mxu0 0.0
        %1959 = vmatpush1.msra.mxu0 0.0
        %1960 = vmatprep.subr.mxu0 0.0
        %1961 = vmatpush1.msra.mxu0 0.0
        %1962 = vmatprep.subr.mxu0 0.0
        %1963 = vmatpush1.msra.mxu0 0.0
        %1964 = vmatprep.mubr.f32.mxu0 0.0
        %1965 = vmatmul.mubr.f32.gmra.mrb[0].mxu0 %v1895
        %v1966 = vpop.f32.mrb[0].mxu0
        %v1967 = vadd.f32 0.0, %v1966
        %v1968 = vpop.f32.mrb[0].mxu0
        %1969 = vmatprep.mubr.f32.mxu0 0.0
        %1970 = vmatmul.mubr.f32.gmra.mrb[0].mxu0 %v1898
        %v1971 = vpop.f32.mrb[0].mxu0
        %v1972 = vadd.f32 0.0, %v1971
        %v1973 = vpop.f32.mrb[0].mxu0
        %1974 = vdwg.mxu0
        %1975 = vmatprep.subr.mxu0 0.0
        %1976 = vmatpush1.msra.mxu0 %v385
        %1977 = vmatprep.subr.mxu0 0.0
        %1978 = vmatpush1.msra.mxu0 0.0
        %1979 = vmatprep.subr.mxu0 0.0
        %1980 = vmatpush1.msra.mxu0 0.0
        %1981 = vmatprep.subr.mxu0 0.0
        %1982 = vmatpush1.msra.mxu0 0.0
        %1983 = vmatprep.subr.mxu0 0.0
        %1984 = vmatpush1.msra.mxu0 0.0
        %1985 = vmatprep.subr.mxu0 0.0
        %1986 = vmatpush1.msra.mxu0 0.0
        %1987 = vmatprep.subr.mxu0 0.0
        %1988 = vmatpush1.msra.mxu0 0.0
        %1989 = vmatprep.subr.mxu0 0.0
        %1990 = vmatpush1.msra.mxu0 0.0
        %1991 = vmatprep.subr.mxu0 0.0
        %1992 = vmatpush1.msra.mxu0 0.0
        %1993 = vmatprep.subr.mxu0 0.0
        %1994 = vmatpush1.msra.mxu0 0.0
        %1995 = vmatprep.subr.mxu0 0.0
        %1996 = vmatpush1.msra.mxu0 0.0
        %1997 = vmatprep.subr.mxu0 0.0
        %1998 = vmatpush1.msra.mxu0 0.0
        %1999 = vmatprep.subr.mxu0 0.0
        %2000 = vmatpush1.msra.mxu0 0.0
        %2001 = vmatprep.subr.mxu0 0.0
        %2002 = vmatpush1.msra.mxu0 0.0
        %2003 = vmatprep.subr.mxu0 0.0
        %2004 = vmatpush1.msra.mxu0 0.0
        %2005 = vmatprep.subr.mxu0 0.0
        %2006 = vmatpush1.msra.mxu0 0.0
        %2007 = vmatprep.subr.mxu0 0.0
        %2008 = vmatpush1.msra.mxu0 0.0
        %2009 = vmatprep.subr.mxu0 0.0
        %2010 = vmatpush1.msra.mxu0 0.0
        %2011 = vmatprep.subr.mxu0 0.0
        %2012 = vmatpush1.msra.mxu0 0.0
        %2013 = vmatprep.subr.mxu0 0.0
        %2014 = vmatpush1.msra.mxu0 0.0
        %2015 = vmatprep.subr.mxu0 0.0
        %2016 = vmatpush1.msra.mxu0 0.0
        %2017 = vmatprep.subr.mxu0 0.0
        %2018 = vmatpush1.msra.mxu0 0.0
        %2019 = vmatprep.subr.mxu0 0.0
        %2020 = vmatpush1.msra.mxu0 0.0
        %2021 = vmatprep.subr.mxu0 0.0
        %2022 = vmatpush1.msra.mxu0 0.0
        %2023 = vmatprep.subr.mxu0 0.0
        %2024 = vmatpush1.msra.mxu0 0.0
        %2025 = vmatprep.subr.mxu0 0.0
        %2026 = vmatpush1.msra.mxu0 0.0
        %2027 = vmatprep.subr.mxu0 0.0
        %2028 = vmatpush1.msra.mxu0 0.0
        %2029 = vmatprep.subr.mxu0 0.0
        %2030 = vmatpush1.msra.mxu0 0.0
        %2031 = vmatprep.subr.mxu0 0.0
        %2032 = vmatpush1.msra.mxu0 0.0
        %2033 = vmatprep.subr.mxu0 0.0
        %2034 = vmatpush1.msra.mxu0 0.0
        %2035 = vmatprep.subr.mxu0 0.0
        %2036 = vmatpush1.msra.mxu0 0.0
        %2037 = vmatprep.subr.mxu0 0.0
        %2038 = vmatpush1.msra.mxu0 0.0
        %2039 = vmatprep.mubr.f32.mxu0 0.0
        %2040 = vmatmul.mubr.f32.gmra.mrb[0].mxu0 %v1895
        %v2041 = vpop.f32.mrb[0].mxu0
        %v2042 = vadd.f32 0.0, %v2041
        %v2043 = vpop.f32.mrb[0].mxu0
        %2044 = vmatprep.mubr.f32.mxu0 0.0
        %2045 = vmatmul.mubr.f32.gmra.mrb[0].mxu0 %v1898
        %v2046 = vpop.f32.mrb[0].mxu0
        %v2047 = vadd.f32 0.0, %v2046
        %v2048 = vpop.f32.mrb[0].mxu0
        %2049 = vdwg.mxu0
        %2050 = vrot.lane.b32.xlu0 %v1390, 52
        %v2051 = vpop.permute.xlu0 %2050
        %2052 = vrot.lane.b32.xlu0 %v1391, 52
        %v2053 = vpop.permute.xlu0 %2052
        %v2054 = vsel %vm309, %v2051, 0
        %v2056 = vsel %vm309, %v2053, 0
        %2058 = vmatprep.subr.mxu0 0.0
        %2059 = vmatpush1.msra.mxu0 %v2042
        %2060 = vmatprep.subr.mxu0 0.0
        %2061 = vmatpush1.msra.mxu0 %v2047
        %2062 = vmatprep.subr.mxu0 0.0
        %2063 = vmatpush1.msra.mxu0 0.0
        %2064 = vmatprep.subr.mxu0 0.0
        %2065 = vmatpush1.msra.mxu0 0.0
        %2066 = vmatprep.subr.mxu0 0.0
        %2067 = vmatpush1.msra.mxu0 0.0
        %2068 = vmatprep.subr.mxu0 0.0
        %2069 = vmatpush1.msra.mxu0 0.0
        %2070 = vmatprep.subr.mxu0 0.0
        %2071 = vmatpush1.msra.mxu0 0.0
        %2072 = vmatprep.subr.mxu0 0.0
        %2073 = vmatpush1.msra.mxu0 0.0
        %2074 = vmatprep.subr.mxu0 0.0
        %2075 = vmatpush1.msra.mxu0 0.0
        %2076 = vmatprep.subr.mxu0 0.0
        %2077 = vmatpush1.msra.mxu0 0.0
        %2078 = vmatprep.subr.mxu0 0.0
        %2079 = vmatpush1.msra.mxu0 0.0
        %2080 = vmatprep.subr.mxu0 0.0
        %2081 = vmatpush1.msra.mxu0 0.0
        %2082 = vmatprep.subr.mxu0 0.0
        %2083 = vmatpush1.msra.mxu0 0.0
        %2084 = vmatprep.subr.mxu0 0.0
        %2085 = vmatpush1.msra.mxu0 0.0
        %2086 = vmatprep.subr.mxu0 0.0
        %2087 = vmatpush1.msra.mxu0 0.0
        %2088 = vmatprep.subr.mxu0 0.0
        %2089 = vmatpush1.msra.mxu0 0.0
        %2090 = vmatprep.subr.mxu0 0.0
        %2091 = vmatpush1.msra.mxu0 0.0
        %2092 = vmatprep.subr.mxu0 0.0
        %2093 = vmatpush1.msra.mxu0 0.0
        %2094 = vmatprep.subr.mxu0 0.0
        %2095 = vmatpush1.msra.mxu0 0.0
        %2096 = vmatprep.subr.mxu0 0.0
        %2097 = vmatpush1.msra.mxu0 0.0
        %2098 = vmatprep.subr.mxu0 0.0
        %2099 = vmatpush1.msra.mxu0 0.0
        %2100 = vmatprep.subr.mxu0 0.0
        %2101 = vmatpush1.msra.mxu0 0.0
        %2102 = vmatprep.subr.mxu0 0.0
        %2103 = vmatpush1.msra.mxu0 0.0
        %2104 = vmatprep.subr.mxu0 0.0
        %2105 = vmatpush1.msra.mxu0 0.0
        %2106 = vmatprep.subr.mxu0 0.0
        %2107 = vmatpush1.msra.mxu0 0.0
        %2108 = vmatprep.subr.mxu0 0.0
        %2109 = vmatpush1.msra.mxu0 0.0
        %2110 = vmatprep.subr.mxu0 0.0
        %2111 = vmatpush1.msra.mxu0 0.0
        %2112 = vmatprep.subr.mxu0 0.0
        %2113 = vmatpush1.msra.mxu0 0.0
        %2114 = vmatprep.subr.mxu0 0.0
        %2115 = vmatpush1.msra.mxu0 0.0
        %2116 = vmatprep.subr.mxu0 0.0
        %2117 = vmatpush1.msra.mxu0 0.0
        %2118 = vmatprep.subr.mxu0 0.0
        %2119 = vmatpush1.msra.mxu0 0.0
        %2120 = vmatprep.subr.mxu0 0.0
        %2121 = vmatpush1.msra.mxu0 0.0
        %2122 = vmatprep.mubr.f32.mxu0 0.0
        %2123 = vmatmul.mubr.f32.gmra.mrb[0].mxu0 %v2054
        %v2124 = vpop.f32.mrb[0].mxu0
        %v2125 = vadd.f32 0.0, %v2124
        %v2126 = vpop.f32.mrb[0].mxu0
        %2127 = vmatprep.mubr.f32.mxu0 0.0
        %2128 = vmatmul.mubr.f32.gmra.mrb[0].mxu0 %v2056
        %v2129 = vpop.f32.mrb[0].mxu0
        %v2130 = vadd.f32 0.0, %v2129
        %v2131 = vpop.f32.mrb[0].mxu0
        %2132 = vdwg.mxu0
        %2133 = vrot.lane.b32.xlu0 %v1390, 68
        %v2134 = vpop.permute.xlu0 %2133
        %2135 = vrot.lane.b32.xlu0 %v1391, 68
        %v2136 = vpop.permute.xlu0 %2135
        %v2137 = vsel %vm309, %v2134, 0
        %v2139 = vsel %vm309, %v2136, 0
        %2141 = vmatprep.subr.mxu0 0.0
        %2142 = vmatpush1.msra.mxu0 %v1967
        %2143 = vmatprep.subr.mxu0 0.0
        %2144 = vmatpush1.msra.mxu0 %v1972
        %2145 = vmatprep.subr.mxu0 0.0
        %2146 = vmatpush1.msra.mxu0 0.0
        %2147 = vmatprep.subr.mxu0 0.0
        %2148 = vmatpush1.msra.mxu0 0.0
        %2149 = vmatprep.subr.mxu0 0.0
        %2150 = vmatpush1.msra.mxu0 0.0
        %2151 = vmatprep.subr.mxu0 0.0
        %2152 = vmatpush1.msra.mxu0 0.0
        %2153 = vmatprep.subr.mxu0 0.0
        %2154 = vmatpush1.msra.mxu0 0.0
        %2155 = vmatprep.subr.mxu0 0.0
        %2156 = vmatpush1.msra.mxu0 0.0
        %2157 = vmatprep.subr.mxu0 0.0
        %2158 = vmatpush1.msra.mxu0 0.0
        %2159 = vmatprep.subr.mxu0 0.0
        %2160 = vmatpush1.msra.mxu0 0.0
        %2161 = vmatprep.subr.mxu0 0.0
        %2162 = vmatpush1.msra.mxu0 0.0
        %2163 = vmatprep.subr.mxu0 0.0
        %2164 = vmatpush1.msra.mxu0 0.0
        %2165 = vmatprep.subr.mxu0 0.0
        %2166 = vmatpush1.msra.mxu0 0.0
        %2167 = vmatprep.subr.mxu0 0.0
        %2168 = vmatpush1.msra.mxu0 0.0
        %2169 = vmatprep.subr.mxu0 0.0
        %2170 = vmatpush1.msra.mxu0 0.0
        %2171 = vmatprep.subr.mxu0 0.0
        %2172 = vmatpush1.msra.mxu0 0.0
        %2173 = vmatprep.subr.mxu0 0.0
        %2174 = vmatpush1.msra.mxu0 0.0
        %2175 = vmatprep.subr.mxu0 0.0
        %2176 = vmatpush1.msra.mxu0 0.0
        %2177 = vmatprep.subr.mxu0 0.0
        %2178 = vmatpush1.msra.mxu0 0.0
        %2179 = vmatprep.subr.mxu0 0.0
        %2180 = vmatpush1.msra.mxu0 0.0
        %2181 = vmatprep.subr.mxu0 0.0
        %2182 = vmatpush1.msra.mxu0 0.0
        %2183 = vmatprep.subr.mxu0 0.0
        %2184 = vmatpush1.msra.mxu0 0.0
        %2185 = vmatprep.subr.mxu0 0.0
        %2186 = vmatpush1.msra.mxu0 0.0
        %2187 = vmatprep.subr.mxu0 0.0
        %2188 = vmatpush1.msra.mxu0 0.0
        %2189 = vmatprep.subr.mxu0 0.0
        %2190 = vmatpush1.msra.mxu0 0.0
        %2191 = vmatprep.subr.mxu0 0.0
        %2192 = vmatpush1.msra.mxu0 0.0
        %2193 = vmatprep.subr.mxu0 0.0
        %2194 = vmatpush1.msra.mxu0 0.0
        %2195 = vmatprep.subr.mxu0 0.0
        %2196 = vmatpush1.msra.mxu0 0.0
        %2197 = vmatprep.subr.mxu0 0.0
        %2198 = vmatpush1.msra.mxu0 0.0
        %2199 = vmatprep.subr.mxu0 0.0
        %2200 = vmatpush1.msra.mxu0 0.0
        %2201 = vmatprep.subr.mxu0 0.0
        %2202 = vmatpush1.msra.mxu0 0.0
        %2203 = vmatprep.subr.mxu0 0.0
        %2204 = vmatpush1.msra.mxu0 0.0
        %2205 = vmatprep.mubr.f32.mxu0 0.0
        %2206 = vmatmul.mubr.f32.gmra.mrb[0].mxu0 %v2137
        %v2207 = vpop.f32.mrb[0].mxu0
        %v2208 = vadd.f32 %v2125, %v2207
        %v2209 = vpop.f32.mrb[0].mxu0
        %2210 = vmatprep.mubr.f32.mxu0 0.0
        %2211 = vmatmul.mubr.f32.gmra.mrb[0].mxu0 %v2139
        %v2212 = vpop.f32.mrb[0].mxu0
        %v2213 = vadd.f32 %v2130, %v2212
        %v2214 = vpop.f32.mrb[0].mxu0
        %2215 = vdwg.mxu0
        %2216 = vmatprep.subr.mxu0 0.0
        %2217 = vmatpush1.msra.mxu0 %v615
        %2218 = vmatprep.subr.mxu0 0.0
        %2219 = vmatpush1.msra.mxu0 0.0
        %2220 = vmatprep.subr.mxu0 0.0
        %2221 = vmatpush1.msra.mxu0 0.0
        %2222 = vmatprep.subr.mxu0 0.0
        %2223 = vmatpush1.msra.mxu0 0.0
        %2224 = vmatprep.subr.mxu0 0.0
        %2225 = vmatpush1.msra.mxu0 0.0
        %2226 = vmatprep.subr.mxu0 0.0
        %2227 = vmatpush1.msra.mxu0 0.0
        %2228 = vmatprep.subr.mxu0 0.0
        %2229 = vmatpush1.msra.mxu0 0.0
        %2230 = vmatprep.subr.mxu0 0.0
        %2231 = vmatpush1.msra.mxu0 0.0
        %2232 = vmatprep.subr.mxu0 0.0
        %2233 = vmatpush1.msra.mxu0 0.0
        %2234 = vmatprep.subr.mxu0 0.0
        %2235 = vmatpush1.msra.mxu0 0.0
        %2236 = vmatprep.subr.mxu0 0.0
        %2237 = vmatpush1.msra.mxu0 0.0
        %2238 = vmatprep.subr.mxu0 0.0
        %2239 = vmatpush1.msra.mxu0 0.0
        %2240 = vmatprep.subr.mxu0 0.0
        %2241 = vmatpush1.msra.mxu0 0.0
        %2242 = vmatprep.subr.mxu0 0.0
        %2243 = vmatpush1.msra.mxu0 0.0
        %2244 = vmatprep.subr.mxu0 0.0
        %2245 = vmatpush1.msra.mxu0 0.0
        %2246 = vmatprep.subr.mxu0 0.0
        %2247 = vmatpush1.msra.mxu0 0.0
        %2248 = vmatprep.subr.mxu0 0.0
        %2249 = vmatpush1.msra.mxu0 0.0
        %2250 = vmatprep.subr.mxu0 0.0
        %2251 = vmatpush1.msra.mxu0 0.0
        %2252 = vmatprep.subr.mxu0 0.0
        %2253 = vmatpush1.msra.mxu0 0.0
        %2254 = vmatprep.subr.mxu0 0.0
        %2255 = vmatpush1.msra.mxu0 0.0
        %2256 = vmatprep.subr.mxu0 0.0
        %2257 = vmatpush1.msra.mxu0 0.0
        %2258 = vmatprep.subr.mxu0 0.0
        %2259 = vmatpush1.msra.mxu0 0.0
        %2260 = vmatprep.subr.mxu0 0.0
        %2261 = vmatpush1.msra.mxu0 0.0
        %2262 = vmatprep.subr.mxu0 0.0
        %2263 = vmatpush1.msra.mxu0 0.0
        %2264 = vmatprep.subr.mxu0 0.0
        %2265 = vmatpush1.msra.mxu0 0.0
        %2266 = vmatprep.subr.mxu0 0.0
        %2267 = vmatpush1.msra.mxu0 0.0
        %2268 = vmatprep.subr.mxu0 0.0
        %2269 = vmatpush1.msra.mxu0 0.0
        %2270 = vmatprep.subr.mxu0 0.0
        %2271 = vmatpush1.msra.mxu0 0.0
        %2272 = vmatprep.subr.mxu0 0.0
        %2273 = vmatpush1.msra.mxu0 0.0
        %2274 = vmatprep.subr.mxu0 0.0
        %2275 = vmatpush1.msra.mxu0 0.0
        %2276 = vmatprep.subr.mxu0 0.0
        %2277 = vmatpush1.msra.mxu0 0.0
        %2278 = vmatprep.subr.mxu0 0.0
        %2279 = vmatpush1.msra.mxu0 0.0
        %2280 = vmatprep.mubr.f32.mxu0 0.0
        %2281 = vmatmul.mubr.f32.gmra.mrb[0].mxu0 %v1895
        %v2282 = vpop.f32.mrb[0].mxu0
        %v2283 = vadd.f32 0.0, %v2282
        %v2284 = vpop.f32.mrb[0].mxu0
        %2285 = vmatprep.mubr.f32.mxu0 0.0
        %2286 = vmatmul.mubr.f32.gmra.mrb[0].mxu0 %v1898
        %v2287 = vpop.f32.mrb[0].mxu0
        %v2288 = vadd.f32 0.0, %v2287
        %v2289 = vpop.f32.mrb[0].mxu0
        %2290 = vdwg.mxu0
        %2291 = vrot.lane.b32.xlu0 %v1390, 36
        %v2292 = vpop.permute.xlu0 %2291
        %2293 = vrot.lane.b32.xlu0 %v1391, 36
        %v2294 = vpop.permute.xlu0 %2293
        %v2295 = vsel %vm309, %v2292, 0
        %v2297 = vsel %vm309, %v2294, 0
        %2299 = vmatprep.subr.mxu0 0.0
        %2300 = vmatpush1.msra.mxu0 %v2283
        %2301 = vmatprep.subr.mxu0 0.0
        %2302 = vmatpush1.msra.mxu0 %v2288
        %2303 = vmatprep.subr.mxu0 0.0
        %2304 = vmatpush1.msra.mxu0 0.0
        %2305 = vmatprep.subr.mxu0 0.0
        %2306 = vmatpush1.msra.mxu0 0.0
        %2307 = vmatprep.subr.mxu0 0.0
        %2308 = vmatpush1.msra.mxu0 0.0
        %2309 = vmatprep.subr.mxu0 0.0
        %2310 = vmatpush1.msra.mxu0 0.0
        %2311 = vmatprep.subr.mxu0 0.0
        %2312 = vmatpush1.msra.mxu0 0.0
        %2313 = vmatprep.subr.mxu0 0.0
        %2314 = vmatpush1.msra.mxu0 0.0
        %2315 = vmatprep.subr.mxu0 0.0
        %2316 = vmatpush1.msra.mxu0 0.0
        %2317 = vmatprep.subr.mxu0 0.0
        %2318 = vmatpush1.msra.mxu0 0.0
        %2319 = vmatprep.subr.mxu0 0.0
        %2320 = vmatpush1.msra.mxu0 0.0
        %2321 = vmatprep.subr.mxu0 0.0
        %2322 = vmatpush1.msra.mxu0 0.0
        %2323 = vmatprep.subr.mxu0 0.0
        %2324 = vmatpush1.msra.mxu0 0.0
        %2325 = vmatprep.subr.mxu0 0.0
        %2326 = vmatpush1.msra.mxu0 0.0
        %2327 = vmatprep.subr.mxu0 0.0
        %2328 = vmatpush1.msra.mxu0 0.0
        %2329 = vmatprep.subr.mxu0 0.0
        %2330 = vmatpush1.msra.mxu0 0.0
        %2331 = vmatprep.subr.mxu0 0.0
        %2332 = vmatpush1.msra.mxu0 0.0
        %2333 = vmatprep.subr.mxu0 0.0
        %2334 = vmatpush1.msra.mxu0 0.0
        %2335 = vmatprep.subr.mxu0 0.0
        %2336 = vmatpush1.msra.mxu0 0.0
        %2337 = vmatprep.subr.mxu0 0.0
        %2338 = vmatpush1.msra.mxu0 0.0
        %2339 = vmatprep.subr.mxu0 0.0
        %2340 = vmatpush1.msra.mxu0 0.0
        %2341 = vmatprep.subr.mxu0 0.0
        %2342 = vmatpush1.msra.mxu0 0.0
        %2343 = vmatprep.subr.mxu0 0.0
        %2344 = vmatpush1.msra.mxu0 0.0
        %2345 = vmatprep.subr.mxu0 0.0
        %2346 = vmatpush1.msra.mxu0 0.0
        %2347 = vmatprep.subr.mxu0 0.0
        %2348 = vmatpush1.msra.mxu0 0.0
        %2349 = vmatprep.subr.mxu0 0.0
        %2350 = vmatpush1.msra.mxu0 0.0
        %2351 = vmatprep.subr.mxu0 0.0
        %2352 = vmatpush1.msra.mxu0 0.0
        %2353 = vmatprep.subr.mxu0 0.0
        %2354 = vmatpush1.msra.mxu0 0.0
        %2355 = vmatprep.subr.mxu0 0.0
        %2356 = vmatpush1.msra.mxu0 0.0
        %2357 = vmatprep.subr.mxu0 0.0
        %2358 = vmatpush1.msra.mxu0 0.0
        %2359 = vmatprep.subr.mxu0 0.0
        %2360 = vmatpush1.msra.mxu0 0.0
        %2361 = vmatprep.subr.mxu0 0.0
        %2362 = vmatpush1.msra.mxu0 0.0
        %2363 = vmatprep.mubr.f32.mxu0 0.0
        %2364 = vmatmul.mubr.f32.gmra.mrb[0].mxu0 %v2295
        %v2365 = vpop.f32.mrb[0].mxu0
        %v2366 = vadd.f32 0.0, %v2365
        %v2367 = vpop.f32.mrb[0].mxu0
        %2368 = vmatprep.mubr.f32.mxu0 0.0
        %2369 = vmatmul.mubr.f32.gmra.mrb[0].mxu0 %v2297
        %v2370 = vpop.f32.mrb[0].mxu0
        %v2371 = vadd.f32 0.0, %v2370
        %v2372 = vpop.f32.mrb[0].mxu0
        %2373 = vdwg.mxu0
        %v2374 = vadd.f32 %v2208, %v2366
        %v2375 = vadd.f32 %v2213, %v2371
        %2376 = vset.pattern.permute.xlu0 9
        %2377 = vperm.xlu0 %2376, %v1858
        %v2378 = vpop.permute.xlu0 %2377
        %2380 = vset.pattern.permute.xlu0 9
        %2381 = vperm.xlu0 %2380, %v1859
        %v2382 = vpop.permute.xlu0 %2381
        %v2384 = vadd.f32 %v2374, %v2378
        %v2385 = vadd.f32 %v2375, %v2382
        %v2387 = vsel %vm928, %v2384, 0
        %v2390 = vsel %vm928, %v2385, 0
        %2392 = vmatprep.subr.mxu0 0.0
        %2393 = vmatpush1.msra.mxu0 %v1228
        %2394 = vmatprep.subr.mxu0 0.0
        %2395 = vmatpush1.msra.mxu0 0.0
        %2396 = vmatprep.subr.mxu0 0.0
        %2397 = vmatpush1.msra.mxu0 0.0
        %2398 = vmatprep.subr.mxu0 0.0
        %2399 = vmatpush1.msra.mxu0 0.0
        %2400 = vmatprep.subr.mxu0 0.0
        %2401 = vmatpush1.msra.mxu0 0.0
        %2402 = vmatprep.subr.mxu0 0.0
        %2403 = vmatpush1.msra.mxu0 0.0
        %2404 = vmatprep.subr.mxu0 0.0
        %2405 = vmatpush1.msra.mxu0 0.0
        %2406 = vmatprep.subr.mxu0 0.0
        %2407 = vmatpush1.msra.mxu0 0.0
        %2408 = vmatprep.subr.mxu0 0.0
        %2409 = vmatpush1.msra.mxu0 0.0
        %2410 = vmatprep.subr.mxu0 0.0
        %2411 = vmatpush1.msra.mxu0 0.0
        %2412 = vmatprep.subr.mxu0 0.0
        %2413 = vmatpush1.msra.mxu0 0.0
        %2414 = vmatprep.subr.mxu0 0.0
        %2415 = vmatpush1.msra.mxu0 0.0
        %2416 = vmatprep.subr.mxu0 0.0
        %2417 = vmatpush1.msra.mxu0 0.0
        %2418 = vmatprep.subr.mxu0 0.0
        %2419 = vmatpush1.msra.mxu0 0.0
        %2420 = vmatprep.subr.mxu0 0.0
        %2421 = vmatpush1.msra.mxu0 0.0
        %2422 = vmatprep.subr.mxu0 0.0
        %2423 = vmatpush1.msra.mxu0 0.0
        %2424 = vmatprep.subr.mxu0 0.0
        %2425 = vmatpush1.msra.mxu0 0.0
        %2426 = vmatprep.subr.mxu0 0.0
        %2427 = vmatpush1.msra.mxu0 0.0
        %2428 = vmatprep.subr.mxu0 0.0
        %2429 = vmatpush1.msra.mxu0 0.0
        %2430 = vmatprep.subr.mxu0 0.0
        %2431 = vmatpush1.msra.mxu0 0.0
        %2432 = vmatprep.subr.mxu0 0.0
        %2433 = vmatpush1.msra.mxu0 0.0
        %2434 = vmatprep.subr.mxu0 0.0
        %2435 = vmatpush1.msra.mxu0 0.0
        %2436 = vmatprep.subr.mxu0 0.0
        %2437 = vmatpush1.msra.mxu0 0.0
        %2438 = vmatprep.subr.mxu0 0.0
        %2439 = vmatpush1.msra.mxu0 0.0
        %2440 = vmatprep.subr.mxu0 0.0
        %2441 = vmatpush1.msra.mxu0 0.0
        %2442 = vmatprep.subr.mxu0 0.0
        %2443 = vmatpush1.msra.mxu0 0.0
        %2444 = vmatprep.subr.mxu0 0.0
        %2445 = vmatpush1.msra.mxu0 0.0
        %2446 = vmatprep.subr.mxu0 0.0
        %2447 = vmatpush1.msra.mxu0 0.0
        %2448 = vmatprep.subr.mxu0 0.0
        %2449 = vmatpush1.msra.mxu0 0.0
        %2450 = vmatprep.subr.mxu0 0.0
        %2451 = vmatpush1.msra.mxu0 0.0
        %2452 = vmatprep.subr.mxu0 0.0
        %2453 = vmatpush1.msra.mxu0 0.0
        %2454 = vmatprep.subr.mxu0 0.0
        %2455 = vmatpush1.msra.mxu0 0.0
        %2456 = vmatprep.mubr.f32.mxu0 0.0
        %2457 = vmatmul.mubr.f32.gmra.mrb[0].mxu0 %v2387
        %v2458 = vpop.f32.mrb[0].mxu0
        %v2459 = vadd.f32 0.0, %v2458
        %v2460 = vpop.f32.mrb[0].mxu0
        %2461 = vmatprep.mubr.f32.mxu0 0.0
        %2462 = vmatmul.mubr.f32.gmra.mrb[0].mxu0 %v2390
        %v2463 = vpop.f32.mrb[0].mxu0
        %v2464 = vadd.f32 0.0, %v2463
        %v2465 = vpop.f32.mrb[0].mxu0
        %2466 = vdwg.mxu0
        %2467 = vmatprep.subr.mxu0 0.0
        %2468 = vmatpush1.msra.mxu0 %v1306
        %2469 = vmatprep.subr.mxu0 0.0
        %2470 = vmatpush1.msra.mxu0 0.0
        %2471 = vmatprep.subr.mxu0 0.0
        %2472 = vmatpush1.msra.mxu0 0.0
        %2473 = vmatprep.subr.mxu0 0.0
        %2474 = vmatpush1.msra.mxu0 0.0
        %2475 = vmatprep.subr.mxu0 0.0
        %2476 = vmatpush1.msra.mxu0 0.0
        %2477 = vmatprep.subr.mxu0 0.0
        %2478 = vmatpush1.msra.mxu0 0.0
        %2479 = vmatprep.subr.mxu0 0.0
        %2480 = vmatpush1.msra.mxu0 0.0
        %2481 = vmatprep.subr.mxu0 0.0
        %2482 = vmatpush1.msra.mxu0 0.0
        %2483 = vmatprep.subr.mxu0 0.0
        %2484 = vmatpush1.msra.mxu0 0.0
        %2485 = vmatprep.subr.mxu0 0.0
        %2486 = vmatpush1.msra.mxu0 0.0
        %2487 = vmatprep.subr.mxu0 0.0
        %2488 = vmatpush1.msra.mxu0 0.0
        %2489 = vmatprep.subr.mxu0 0.0
        %2490 = vmatpush1.msra.mxu0 0.0
        %2491 = vmatprep.subr.mxu0 0.0
        %2492 = vmatpush1.msra.mxu0 0.0
        %2493 = vmatprep.subr.mxu0 0.0
        %2494 = vmatpush1.msra.mxu0 0.0
        %2495 = vmatprep.subr.mxu0 0.0
        %2496 = vmatpush1.msra.mxu0 0.0
        %2497 = vmatprep.subr.mxu0 0.0
        %2498 = vmatpush1.msra.mxu0 0.0
        %2499 = vmatprep.subr.mxu0 0.0
        %2500 = vmatpush1.msra.mxu0 0.0
        %2501 = vmatprep.subr.mxu0 0.0
        %2502 = vmatpush1.msra.mxu0 0.0
        %2503 = vmatprep.subr.mxu0 0.0
        %2504 = vmatpush1.msra.mxu0 0.0
        %2505 = vmatprep.subr.mxu0 0.0
        %2506 = vmatpush1.msra.mxu0 0.0
        %2507 = vmatprep.subr.mxu0 0.0
        %2508 = vmatpush1.msra.mxu0 0.0
        %2509 = vmatprep.subr.mxu0 0.0
        %2510 = vmatpush1.msra.mxu0 0.0
        %2511 = vmatprep.subr.mxu0 0.0
        %2512 = vmatpush1.msra.mxu0 0.0
        %2513 = vmatprep.subr.mxu0 0.0
        %2514 = vmatpush1.msra.mxu0 0.0
        %2515 = vmatprep.subr.mxu0 0.0
        %2516 = vmatpush1.msra.mxu0 0.0
        %2517 = vmatprep.subr.mxu0 0.0
        %2518 = vmatpush1.msra.mxu0 0.0
        %2519 = vmatprep.subr.mxu0 0.0
        %2520 = vmatpush1.msra.mxu0 0.0
        %2521 = vmatprep.subr.mxu0 0.0
        %2522 = vmatpush1.msra.mxu0 0.0
        %2523 = vmatprep.subr.mxu0 0.0
        %2524 = vmatpush1.msra.mxu0 0.0
        %2525 = vmatprep.subr.mxu0 0.0
        %2526 = vmatpush1.msra.mxu0 0.0
        %2527 = vmatprep.subr.mxu0 0.0
        %2528 = vmatpush1.msra.mxu0 0.0
        %2529 = vmatprep.subr.mxu0 0.0
        %2530 = vmatpush1.msra.mxu0 0.0
        %2531 = vmatprep.mubr.f32.mxu0 0.0
        %2532 = vmatmul.mubr.f32.gmra.mrb[0].mxu0 %v2387
        %v2533 = vpop.f32.mrb[0].mxu0
        %v2534 = vadd.f32 0.0, %v2533
        %v2535 = vpop.f32.mrb[0].mxu0
        %2536 = vmatprep.mubr.f32.mxu0 0.0
        %2537 = vmatmul.mubr.f32.gmra.mrb[0].mxu0 %v2390
        %v2538 = vpop.f32.mrb[0].mxu0
        %v2539 = vadd.f32 0.0, %v2538
        %v2540 = vpop.f32.mrb[0].mxu0
        %2541 = vdwg.mxu0
        %v2542 = vmax.f32 %v2459, %v2534
        %v2543 = vmax.f32 %v2464, %v2539
        %v2544 = vmax.f32 %v2542, 0.0
        %v2545 = vmax.f32 %v2543, 0.0
        %2546 = vset.pattern.permute.xlu0 10
        %2547 = vperm.xlu0 %2546, %v1858
        %v2548 = vpop.permute.xlu0 %2547
        %2550 = vset.pattern.permute.xlu0 10
        %2551 = vperm.xlu0 %2550, %v1859
        %v2552 = vpop.permute.xlu0 %2551
        %v2554 = vmul.f32 %v2544, %v2548
        %v2555 = vmul.f32 %v2545, %v2552
        %2556 = vset.pattern.permute.xlu0 11
        %2557 = vperm.xlu0 %2556, %v1858
        %v2558 = vpop.permute.xlu0 %2557
        %2560 = vset.pattern.permute.xlu0 11
        %2561 = vperm.xlu0 %2560, %v1859
        %v2562 = vpop.permute.xlu0 %2561
        %v2564 = vadd.f32 %v2554, %v2558
        %v2565 = vadd.f32 %v2555, %v2562
        %v2566 = vld [vmem:[#allocation2] sm:$0xff]
        %v2567 = vld [vmem:[#allocation2 + $0x28] sm:$0xff]
        %v2568 = vld [vmem:[#allocation2 + $0x50] sm:$0xff]
        %v2569 = vld [vmem:[#allocation2 + $0x78] sm:$0xff]
        %v2571 = vsel %vm460, %v2564, 0
        %v2574 = vsel %vm460, %v2565, 0
        %v2577 = vsel %vm463, %v307, 0
        %2579 = vmatprep.subr.mxu0 0.0
        %2580 = vmatpush1.msra.mxu0 %v2577
        %2581 = vmatprep.subr.mxu0 0.0
        %2582 = vmatpush1.msra.mxu0 0.0
        %2583 = vmatprep.subr.mxu0 0.0
        %2584 = vmatpush1.msra.mxu0 0.0
        %2585 = vmatprep.subr.mxu0 0.0
        %2586 = vmatpush1.msra.mxu0 0.0
        %2587 = vmatprep.subr.mxu0 0.0
        %2588 = vmatpush1.msra.mxu0 0.0
        %2589 = vmatprep.subr.mxu0 0.0
        %2590 = vmatpush1.msra.mxu0 0.0
        %2591 = vmatprep.subr.mxu0 0.0
        %2592 = vmatpush1.msra.mxu0 0.0
        %2593 = vmatprep.subr.mxu0 0.0
        %2594 = vmatpush1.msra.mxu0 0.0
        %2595 = vmatprep.subr.mxu0 0.0
        %2596 = vmatpush1.msra.mxu0 0.0
        %2597 = vmatprep.subr.mxu0 0.0
        %2598 = vmatpush1.msra.mxu0 0.0
        %2599 = vmatprep.subr.mxu0 0.0
        %2600 = vmatpush1.msra.mxu0 0.0
        %2601 = vmatprep.subr.mxu0 0.0
        %2602 = vmatpush1.msra.mxu0 0.0
        %2603 = vmatprep.subr.mxu0 0.0
        %2604 = vmatpush1.msra.mxu0 0.0
        %2605 = vmatprep.subr.mxu0 0.0
        %2606 = vmatpush1.msra.mxu0 0.0
        %2607 = vmatprep.subr.mxu0 0.0
        %2608 = vmatpush1.msra.mxu0 0.0
        %2609 = vmatprep.subr.mxu0 0.0
        %2610 = vmatpush1.msra.mxu0 0.0
        %2611 = vmatprep.subr.mxu0 0.0
        %2612 = vmatpush1.msra.mxu0 0.0
        %2613 = vmatprep.subr.mxu0 0.0
        %2614 = vmatpush1.msra.mxu0 0.0
        %2615 = vmatprep.subr.mxu0 0.0
        %2616 = vmatpush1.msra.mxu0 0.0
        %2617 = vmatprep.subr.mxu0 0.0
        %2618 = vmatpush1.msra.mxu0 0.0
        %2619 = vmatprep.subr.mxu0 0.0
        %2620 = vmatpush1.msra.mxu0 0.0
        %2621 = vmatprep.subr.mxu0 0.0
        %2622 = vmatpush1.msra.mxu0 0.0
        %2623 = vmatprep.subr.mxu0 0.0
        %2624 = vmatpush1.msra.mxu0 0.0
        %2625 = vmatprep.subr.mxu0 0.0
        %2626 = vmatpush1.msra.mxu0 0.0
        %2627 = vmatprep.subr.mxu0 0.0
        %2628 = vmatpush1.msra.mxu0 0.0
        %2629 = vmatprep.subr.mxu0 0.0
        %2630 = vmatpush1.msra.mxu0 0.0
        %2631 = vmatprep.subr.mxu0 0.0
        %2632 = vmatpush1.msra.mxu0 0.0
        %2633 = vmatprep.subr.mxu0 0.0
        %2634 = vmatpush1.msra.mxu0 0.0
        %2635 = vmatprep.subr.mxu0 0.0
        %2636 = vmatpush1.msra.mxu0 0.0
        %2637 = vmatprep.subr.mxu0 0.0
        %2638 = vmatpush1.msra.mxu0 0.0
        %2639 = vmatprep.subr.mxu0 0.0
        %2640 = vmatpush1.msra.mxu0 0.0
        %2641 = vmatprep.subr.mxu0 0.0
        %2642 = vmatpush1.msra.mxu0 0.0
        %2643 = vmatprep.mubr.f32.mxu0 0.0
        %2644 = vmatmul.mubr.f32.gmra.mrb[0].mxu0 %v2571
        %v2645 = vpop.f32.mrb[0].mxu0
        %v2646 = vadd.f32 0.0, %v2645
        %v2647 = vpop.f32.mrb[0].mxu0
        %2648 = vmatprep.mubr.f32.mxu0 0.0
        %2649 = vmatmul.mubr.f32.gmra.mrb[0].mxu0 %v2574
        %v2650 = vpop.f32.mrb[0].mxu0
        %v2651 = vadd.f32 0.0, %v2650
        %v2652 = vpop.f32.mrb[0].mxu0
        %2653 = vdwg.mxu0
        %v2654 = vld [vmem:[#allocation2] sm:$0xff]
        %v2655 = vld [vmem:[#allocation2 + $0x8] sm:$0xff]
        %v2656 = vld [vmem:[#allocation2 + $0x28] sm:$0xff]
        %v2657 = vld [vmem:[#allocation2 + $0x30] sm:$0xff]
        %v2658 = vld [vmem:[#allocation2 + $0x50] sm:$0xff]
        %v2659 = vld [vmem:[#allocation2 + $0x58] sm:$0xff]
        %v2660 = vld [vmem:[#allocation2 + $0x78] sm:$0xff]
        %v2661 = vld [vmem:[#allocation2 + $0x80] sm:$0xff]
        %v2663 = vsel %vm463, %v385, 0
        %2665 = vmatprep.subr.mxu0 0.0
        %2666 = vmatpush1.msra.mxu0 %v2663
        %2667 = vmatprep.subr.mxu0 0.0
        %2668 = vmatpush1.msra.mxu0 0.0
        %2669 = vmatprep.subr.mxu0 0.0
        %2670 = vmatpush1.msra.mxu0 0.0
        %2671 = vmatprep.subr.mxu0 0.0
        %2672 = vmatpush1.msra.mxu0 0.0
        %2673 = vmatprep.subr.mxu0 0.0
        %2674 = vmatpush1.msra.mxu0 0.0
        %2675 = vmatprep.subr.mxu0 0.0
        %2676 = vmatpush1.msra.mxu0 0.0
        %2677 = vmatprep.subr.mxu0 0.0
        %2678 = vmatpush1.msra.mxu0 0.0
        %2679 = vmatprep.subr.mxu0 0.0
        %2680 = vmatpush1.msra.mxu0 0.0
        %2681 = vmatprep.subr.mxu0 0.0
        %2682 = vmatpush1.msra.mxu0 0.0
        %2683 = vmatprep.subr.mxu0 0.0
        %2684 = vmatpush1.msra.mxu0 0.0
        %2685 = vmatprep.subr.mxu0 0.0
        %2686 = vmatpush1.msra.mxu0 0.0
        %2687 = vmatprep.subr.mxu0 0.0
        %2688 = vmatpush1.msra.mxu0 0.0
        %2689 = vmatprep.subr.mxu0 0.0
        %2690 = vmatpush1.msra.mxu0 0.0
        %2691 = vmatprep.subr.mxu0 0.0
        %2692 = vmatpush1.msra.mxu0 0.0
        %2693 = vmatprep.subr.mxu0 0.0
        %2694 = vmatpush1.msra.mxu0 0.0
        %2695 = vmatprep.subr.mxu0 0.0
        %2696 = vmatpush1.msra.mxu0 0.0
        %2697 = vmatprep.subr.mxu0 0.0
        %2698 = vmatpush1.msra.mxu0 0.0
        %2699 = vmatprep.subr.mxu0 0.0
        %2700 = vmatpush1.msra.mxu0 0.0
        %2701 = vmatprep.subr.mxu0 0.0
        %2702 = vmatpush1.msra.mxu0 0.0
        %2703 = vmatprep.subr.mxu0 0.0
        %2704 = vmatpush1.msra.mxu0 0.0
        %2705 = vmatprep.subr.mxu0 0.0
        %2706 = vmatpush1.msra.mxu0 0.0
        %2707 = vmatprep.subr.mxu0 0.0
        %2708 = vmatpush1.msra.mxu0 0.0
        %2709 = vmatprep.subr.mxu0 0.0
        %2710 = vmatpush1.msra.mxu0 0.0
        %2711 = vmatprep.subr.mxu0 0.0
        %2712 = vmatpush1.msra.mxu0 0.0
        %2713 = vmatprep.subr.mxu0 0.0
        %2714 = vmatpush1.msra.mxu0 0.0
        %2715 = vmatprep.subr.mxu0 0.0
        %2716 = vmatpush1.msra.mxu0 0.0
        %2717 = vmatprep.subr.mxu0 0.0
        %2718 = vmatpush1.msra.mxu0 0.0
        %2719 = vmatprep.subr.mxu0 0.0
        %2720 = vmatpush1.msra.mxu0 0.0
        %2721 = vmatprep.subr.mxu0 0.0
        %2722 = vmatpush1.msra.mxu0 0.0
        %2723 = vmatprep.subr.mxu0 0.0
        %2724 = vmatpush1.msra.mxu0 0.0
        %2725 = vmatprep.subr.mxu0 0.0
        %2726 = vmatpush1.msra.mxu0 0.0
        %2727 = vmatprep.subr.mxu0 0.0
        %2728 = vmatpush1.msra.mxu0 0.0
        %2729 = vmatprep.mubr.f32.mxu0 0.0
        %2730 = vmatmul.mubr.f32.gmra.mrb[0].mxu0 %v2571
        %v2731 = vpop.f32.mrb[0].mxu0
        %v2732 = vadd.f32 0.0, %v2731
        %v2733 = vpop.f32.mrb[0].mxu0
        %2734 = vmatprep.mubr.f32.mxu0 0.0
        %2735 = vmatmul.mubr.f32.gmra.mrb[0].mxu0 %v2574
        %v2736 = vpop.f32.mrb[0].mxu0
        %v2737 = vadd.f32 0.0, %v2736
        %v2738 = vpop.f32.mrb[0].mxu0
        %2739 = vdwg.mxu0
        %2748 = vrot.lane.b32.xlu0 %v2654, 4
        %v2749 = vpop.permute.xlu0 %2748
        %2750 = vrot.lane.b32.xlu0 %v2655, 4
        %v2751 = vpop.permute.xlu0 %2750
        %2752 = vrot.lane.b32.xlu0 %v2656, 4
        %v2753 = vpop.permute.xlu0 %2752
        %2754 = vrot.lane.b32.xlu0 %v2657, 4
        %v2755 = vpop.permute.xlu0 %2754
        %2756 = vrot.lane.b32.xlu0 %v2658, 4
        %v2757 = vpop.permute.xlu0 %2756
        %2758 = vrot.lane.b32.xlu0 %v2659, 4
        %v2759 = vpop.permute.xlu0 %2758
        %2760 = vrot.lane.b32.xlu0 %v2660, 4
        %v2761 = vpop.permute.xlu0 %2760
        %2762 = vrot.lane.b32.xlu0 %v2661, 4
        %v2763 = vpop.permute.xlu0 %2762
        %v2764 = vsel %vm460, %v2749, %v2751
        %v2765 = vsel %vm460, %v2753, %v2755
        %v2766 = vsel %vm460, %v2757, %v2759
        %v2767 = vsel %vm460, %v2761, %v2763
        %v2768 = vsel %vm309, %v2764, 0
        %v2770 = vsel %vm309, %v2765, 0
        %v2772 = vsel %vm309, %v2766, 0
        %v2774 = vsel %vm309, %v2767, 0
        %2776 = vmatprep.subr.mxu0 0.0
        %2777 = vmatpush1.msra.mxu0 %v2732
        %2778 = vmatprep.subr.mxu0 0.0
        %2779 = vmatpush1.msra.mxu0 %v2737
        %2780 = vmatprep.subr.mxu0 0.0
        %2781 = vmatpush1.msra.mxu0 0.0
        %2782 = vmatprep.subr.mxu0 0.0
        %2783 = vmatpush1.msra.mxu0 0.0
        %2784 = vmatprep.subr.mxu0 0.0
        %2785 = vmatpush1.msra.mxu0 0.0
        %2786 = vmatprep.subr.mxu0 0.0
        %2787 = vmatpush1.msra.mxu0 0.0
        %2788 = vmatprep.subr.mxu0 0.0
        %2789 = vmatpush1.msra.mxu0 0.0
        %2790 = vmatprep.subr.mxu0 0.0
        %2791 = vmatpush1.msra.mxu0 0.0
        %2792 = vmatprep.subr.mxu0 0.0
        %2793 = vmatpush1.msra.mxu0 0.0
        %2794 = vmatprep.subr.mxu0 0.0
        %2795 = vmatpush1.msra.mxu0 0.0
        %2796 = vmatprep.subr.mxu0 0.0
        %2797 = vmatpush1.msra.mxu0 0.0
        %2798 = vmatprep.subr.mxu0 0.0
        %2799 = vmatpush1.msra.mxu0 0.0
        %2800 = vmatprep.subr.mxu0 0.0
        %2801 = vmatpush1.msra.mxu0 0.0
        %2802 = vmatprep.subr.mxu0 0.0
        %2803 = vmatpush1.msra.mxu0 0.0
        %2804 = vmatprep.subr.mxu0 0.0
        %2805 = vmatpush1.msra.mxu0 0.0
        %2806 = vmatprep.subr.mxu0 0.0
        %2807 = vmatpush1.msra.mxu0 0.0
        %2808 = vmatprep.subr.mxu0 0.0
        %2809 = vmatpush1.msra.mxu0 0.0
        %2810 = vmatprep.subr.mxu0 0.0
        %2811 = vmatpush1.msra.mxu0 0.0
        %2812 = vmatprep.subr.mxu0 0.0
        %2813 = vmatpush1.msra.mxu0 0.0
        %2814 = vmatprep.subr.mxu0 0.0
        %2815 = vmatpush1.msra.mxu0 0.0
        %2816 = vmatprep.subr.mxu0 0.0
        %2817 = vmatpush1.msra.mxu0 0.0
        %2818 = vmatprep.subr.mxu0 0.0
        %2819 = vmatpush1.msra.mxu0 0.0
        %2820 = vmatprep.subr.mxu0 0.0
        %2821 = vmatpush1.msra.mxu0 0.0
        %2822 = vmatprep.subr.mxu0 0.0
        %2823 = vmatpush1.msra.mxu0 0.0
        %2824 = vmatprep.subr.mxu0 0.0
        %2825 = vmatpush1.msra.mxu0 0.0
        %2826 = vmatprep.subr.mxu0 0.0
        %2827 = vmatpush1.msra.mxu0 0.0
        %2828 = vmatprep.subr.mxu0 0.0
        %2829 = vmatpush1.msra.mxu0 0.0
        %2830 = vmatprep.subr.mxu0 0.0
        %2831 = vmatpush1.msra.mxu0 0.0
        %2832 = vmatprep.subr.mxu0 0.0
        %2833 = vmatpush1.msra.mxu0 0.0
        %2834 = vmatprep.subr.mxu0 0.0
        %2835 = vmatpush1.msra.mxu0 0.0
        %2836 = vmatprep.subr.mxu0 0.0
        %2837 = vmatpush1.msra.mxu0 0.0
        %2838 = vmatprep.subr.mxu0 0.0
        %2839 = vmatpush1.msra.mxu0 0.0
        %2840 = vmatprep.mubr.f32.mxu0 0.0
        %2841 = vmatmul.mubr.f32.gmra.mrb[0].mxu0 %v2768
        %v2842 = vpop.f32.mrb[0].mxu0
        %v2843 = vadd.f32 0.0, %v2842
        %v2844 = vpop.f32.mrb[0].mxu0
        %2845 = vmatprep.mubr.f32.mxu0 0.0
        %2846 = vmatmul.mubr.f32.gmra.mrb[0].mxu0 %v2770
        %v2847 = vpop.f32.mrb[0].mxu0
        %v2848 = vadd.f32 0.0, %v2847
        %v2849 = vpop.f32.mrb[0].mxu0
        %2850 = vmatprep.mubr.f32.mxu0 0.0
        %2851 = vmatmul.mubr.f32.gmra.mrb[0].mxu0 %v2772
        %v2852 = vpop.f32.mrb[0].mxu0
        %v2853 = vadd.f32 0.0, %v2852
        %v2854 = vpop.f32.mrb[0].mxu0
        %2855 = vmatprep.mubr.f32.mxu0 0.0
        %2856 = vmatmul.mubr.f32.gmra.mrb[0].mxu0 %v2774
        %v2857 = vpop.f32.mrb[0].mxu0
        %v2858 = vadd.f32 0.0, %v2857
        %v2859 = vpop.f32.mrb[0].mxu0
        %2860 = vdwg.mxu0
        %2865 = vrot.lane.b32.xlu0 %v2566, 20
        %v2866 = vpop.permute.xlu0 %2865
        %2867 = vrot.lane.b32.xlu0 %v2567, 20
        %v2868 = vpop.permute.xlu0 %2867
        %2869 = vrot.lane.b32.xlu0 %v2568, 20
        %v2870 = vpop.permute.xlu0 %2869
        %2871 = vrot.lane.b32.xlu0 %v2569, 20
        %v2872 = vpop.permute.xlu0 %2871
        %v2873 = vsel %vm309, %v2866, 0
        %v2875 = vsel %vm309, %v2868, 0
        %v2877 = vsel %vm309, %v2870, 0
        %v2879 = vsel %vm309, %v2872, 0
        %2881 = vmatprep.subr.mxu0 0.0
        %2882 = vmatpush1.msra.mxu0 %v2646
        %2883 = vmatprep.subr.mxu0 0.0
        %2884 = vmatpush1.msra.mxu0 %v2651
        %2885 = vmatprep.subr.mxu0 0.0
        %2886 = vmatpush1.msra.mxu0 0.0
        %2887 = vmatprep.subr.mxu0 0.0
        %2888 = vmatpush1.msra.mxu0 0.0
        %2889 = vmatprep.subr.mxu0 0.0
        %2890 = vmatpush1.msra.mxu0 0.0
        %2891 = vmatprep.subr.mxu0 0.0
        %2892 = vmatpush1.msra.mxu0 0.0
        %2893 = vmatprep.subr.mxu0 0.0
        %2894 = vmatpush1.msra.mxu0 0.0
        %2895 = vmatprep.subr.mxu0 0.0
        %2896 = vmatpush1.msra.mxu0 0.0
        %2897 = vmatprep.subr.mxu0 0.0
        %2898 = vmatpush1.msra.mxu0 0.0
        %2899 = vmatprep.subr.mxu0 0.0
        %2900 = vmatpush1.msra.mxu0 0.0
        %2901 = vmatprep.subr.mxu0 0.0
        %2902 = vmatpush1.msra.mxu0 0.0
        %2903 = vmatprep.subr.mxu0 0.0
        %2904 = vmatpush1.msra.mxu0 0.0
        %2905 = vmatprep.subr.mxu0 0.0
        %2906 = vmatpush1.msra.mxu0 0.0
        %2907 = vmatprep.subr.mxu0 0.0
        %2908 = vmatpush1.msra.mxu0 0.0
        %2909 = vmatprep.subr.mxu0 0.0
        %2910 = vmatpush1.msra.mxu0 0.0
        %2911 = vmatprep.subr.mxu0 0.0
        %2912 = vmatpush1.msra.mxu0 0.0
        %2913 = vmatprep.subr.mxu0 0.0
        %2914 = vmatpush1.msra.mxu0 0.0
        %2915 = vmatprep.subr.mxu0 0.0
        %2916 = vmatpush1.msra.mxu0 0.0
        %2917 = vmatprep.subr.mxu0 0.0
        %2918 = vmatpush1.msra.mxu0 0.0
        %2919 = vmatprep.subr.mxu0 0.0
        %2920 = vmatpush1.msra.mxu0 0.0
        %2921 = vmatprep.subr.mxu0 0.0
        %2922 = vmatpush1.msra.mxu0 0.0
        %2923 = vmatprep.subr.mxu0 0.0
        %2924 = vmatpush1.msra.mxu0 0.0
        %2925 = vmatprep.subr.mxu0 0.0
        %2926 = vmatpush1.msra.mxu0 0.0
        %2927 = vmatprep.subr.mxu0 0.0
        %2928 = vmatpush1.msra.mxu0 0.0
        %2929 = vmatprep.subr.mxu0 0.0
        %2930 = vmatpush1.msra.mxu0 0.0
        %2931 = vmatprep.subr.mxu0 0.0
        %2932 = vmatpush1.msra.mxu0 0.0
        %2933 = vmatprep.subr.mxu0 0.0
        %2934 = vmatpush1.msra.mxu0 0.0
        %2935 = vmatprep.subr.mxu0 0.0
        %2936 = vmatpush1.msra.mxu0 0.0
        %2937 = vmatprep.subr.mxu0 0.0
        %2938 = vmatpush1.msra.mxu0 0.0
        %2939 = vmatprep.subr.mxu0 0.0
        %2940 = vmatpush1.msra.mxu0 0.0
        %2941 = vmatprep.subr.mxu0 0.0
        %2942 = vmatpush1.msra.mxu0 0.0
        %2943 = vmatprep.subr.mxu0 0.0
        %2944 = vmatpush1.msra.mxu0 0.0
        %2945 = vmatprep.mubr.f32.mxu0 0.0
        %2946 = vmatmul.mubr.f32.gmra.mrb[0].mxu0 %v2873
        %v2947 = vpop.f32.mrb[0].mxu0
        %v2948 = vadd.f32 %v2843, %v2947
        %v2949 = vpop.f32.mrb[0].mxu0
        %2950 = vmatprep.mubr.f32.mxu0 0.0
        %2951 = vmatmul.mubr.f32.gmra.mrb[0].mxu0 %v2875
        %v2952 = vpop.f32.mrb[0].mxu0
        %v2953 = vadd.f32 %v2848, %v2952
        %v2954 = vpop.f32.mrb[0].mxu0
        %2955 = vmatprep.mubr.f32.mxu0 0.0
        %2956 = vmatmul.mubr.f32.gmra.mrb[0].mxu0 %v2877
        %v2957 = vpop.f32.mrb[0].mxu0
        %v2958 = vadd.f32 %v2853, %v2957
        %v2959 = vpop.f32.mrb[0].mxu0
        %2960 = vmatprep.mubr.f32.mxu0 0.0
        %2961 = vmatmul.mubr.f32.gmra.mrb[0].mxu0 %v2879
        %v2962 = vpop.f32.mrb[0].mxu0
        %v2963 = vadd.f32 %v2858, %v2962
        %v2964 = vpop.f32.mrb[0].mxu0
        %2965 = vdwg.mxu0
        %v2967 = vsel %vm463, %v615, 0
        %2969 = vmatprep.subr.mxu0 0.0
        %2970 = vmatpush1.msra.mxu0 %v2967
        %2971 = vmatprep.subr.mxu0 0.0
        %2972 = vmatpush1.msra.mxu0 0.0
        %2973 = vmatprep.subr.mxu0 0.0
        %2974 = vmatpush1.msra.mxu0 0.0
        %2975 = vmatprep.subr.mxu0 0.0
        %2976 = vmatpush1.msra.mxu0 0.0
        %2977 = vmatprep.subr.mxu0 0.0
        %2978 = vmatpush1.msra.mxu0 0.0
        %2979 = vmatprep.subr.mxu0 0.0
        %2980 = vmatpush1.msra.mxu0 0.0
        %2981 = vmatprep.subr.mxu0 0.0
        %2982 = vmatpush1.msra.mxu0 0.0
        %2983 = vmatprep.subr.mxu0 0.0
        %2984 = vmatpush1.msra.mxu0 0.0
        %2985 = vmatprep.subr.mxu0 0.0
        %2986 = vmatpush1.msra.mxu0 0.0
        %2987 = vmatprep.subr.mxu0 0.0
        %2988 = vmatpush1.msra.mxu0 0.0
        %2989 = vmatprep.subr.mxu0 0.0
        %2990 = vmatpush1.msra.mxu0 0.0
        %2991 = vmatprep.subr.mxu0 0.0
        %2992 = vmatpush1.msra.mxu0 0.0
        %2993 = vmatprep.subr.mxu0 0.0
        %2994 = vmatpush1.msra.mxu0 0.0
        %2995 = vmatprep.subr.mxu0 0.0
        %2996 = vmatpush1.msra.mxu0 0.0
        %2997 = vmatprep.subr.mxu0 0.0
        %2998 = vmatpush1.msra.mxu0 0.0
        %2999 = vmatprep.subr.mxu0 0.0
        %3000 = vmatpush1.msra.mxu0 0.0
        %3001 = vmatprep.subr.mxu0 0.0
        %3002 = vmatpush1.msra.mxu0 0.0
        %3003 = vmatprep.subr.mxu0 0.0
        %3004 = vmatpush1.msra.mxu0 0.0
        %3005 = vmatprep.subr.mxu0 0.0
        %3006 = vmatpush1.msra.mxu0 0.0
        %3007 = vmatprep.subr.mxu0 0.0
        %3008 = vmatpush1.msra.mxu0 0.0
        %3009 = vmatprep.subr.mxu0 0.0
        %3010 = vmatpush1.msra.mxu0 0.0
        %3011 = vmatprep.subr.mxu0 0.0
        %3012 = vmatpush1.msra.mxu0 0.0
        %3013 = vmatprep.subr.mxu0 0.0
        %3014 = vmatpush1.msra.mxu0 0.0
        %3015 = vmatprep.subr.mxu0 0.0
        %3016 = vmatpush1.msra.mxu0 0.0
        %3017 = vmatprep.subr.mxu0 0.0
        %3018 = vmatpush1.msra.mxu0 0.0
        %3019 = vmatprep.subr.mxu0 0.0
        %3020 = vmatpush1.msra.mxu0 0.0
        %3021 = vmatprep.subr.mxu0 0.0
        %3022 = vmatpush1.msra.mxu0 0.0
        %3023 = vmatprep.subr.mxu0 0.0
        %3024 = vmatpush1.msra.mxu0 0.0
        %3025 = vmatprep.subr.mxu0 0.0
        %3026 = vmatpush1.msra.mxu0 0.0
        %3027 = vmatprep.subr.mxu0 0.0
        %3028 = vmatpush1.msra.mxu0 0.0
        %3029 = vmatprep.subr.mxu0 0.0
        %3030 = vmatpush1.msra.mxu0 0.0
        %3031 = vmatprep.subr.mxu0 0.0
        %3032 = vmatpush1.msra.mxu0 0.0
        %3033 = vmatprep.mubr.f32.mxu0 0.0
        %3034 = vmatmul.mubr.f32.gmra.mrb[0].mxu0 %v2571
        %v3035 = vpop.f32.mrb[0].mxu0
        %v3036 = vadd.f32 0.0, %v3035
        %v3037 = vpop.f32.mrb[0].mxu0
        %3038 = vmatprep.mubr.f32.mxu0 0.0
        %3039 = vmatmul.mubr.f32.gmra.mrb[0].mxu0 %v2574
        %v3040 = vpop.f32.mrb[0].mxu0
        %v3041 = vadd.f32 0.0, %v3040
        %v3042 = vpop.f32.mrb[0].mxu0
        %3043 = vdwg.mxu0
        %3044 = vrot.lane.b32.xlu0 %v2655, 116
        %v3045 = vpop.permute.xlu0 %3044
        %3046 = vrot.lane.b32.xlu0 %v2657, 116
        %v3047 = vpop.permute.xlu0 %3046
        %3048 = vrot.lane.b32.xlu0 %v2659, 116
        %v3049 = vpop.permute.xlu0 %3048
        %3050 = vrot.lane.b32.xlu0 %v2661, 116
        %v3051 = vpop.permute.xlu0 %3050
        %v3052 = vsel %vm309, %v3045, 0
        %v3054 = vsel %vm309, %v3047, 0
        %v3056 = vsel %vm309, %v3049, 0
        %v3058 = vsel %vm309, %v3051, 0
        %3060 = vmatprep.subr.mxu0 0.0
        %3061 = vmatpush1.msra.mxu0 %v3036
        %3062 = vmatprep.subr.mxu0 0.0
        %3063 = vmatpush1.msra.mxu0 %v3041
        %3064 = vmatprep.subr.mxu0 0.0
        %3065 = vmatpush1.msra.mxu0 0.0
        %3066 = vmatprep.subr.mxu0 0.0
        %3067 = vmatpush1.msra.mxu0 0.0
        %3068 = vmatprep.subr.mxu0 0.0
        %3069 = vmatpush1.msra.mxu0 0.0
        %3070 = vmatprep.subr.mxu0 0.0
        %3071 = vmatpush1.msra.mxu0 0.0
        %3072 = vmatprep.subr.mxu0 0.0
        %3073 = vmatpush1.msra.mxu0 0.0
        %3074 = vmatprep.subr.mxu0 0.0
        %3075 = vmatpush1.msra.mxu0 0.0
        %3076 = vmatprep.subr.mxu0 0.0
        %3077 = vmatpush1.msra.mxu0 0.0
        %3078 = vmatprep.subr.mxu0 0.0
        %3079 = vmatpush1.msra.mxu0 0.0
        %3080 = vmatprep.subr.mxu0 0.0
        %3081 = vmatpush1.msra.mxu0 0.0
        %3082 = vmatprep.subr.mxu0 0.0
        %3083 = vmatpush1.msra.mxu0 0.0
        %3084 = vmatprep.subr.mxu0 0.0
        %3085 = vmatpush1.msra.mxu0 0.0
        %3086 = vmatprep.subr.mxu0 0.0
        %3087 = vmatpush1.msra.mxu0 0.0
        %3088 = vmatprep.subr.mxu0 0.0
        %3089 = vmatpush1.msra.mxu0 0.0
        %3090 = vmatprep.subr.mxu0 0.0
        %3091 = vmatpush1.msra.mxu0 0.0
        %3092 = vmatprep.subr.mxu0 0.0
        %3093 = vmatpush1.msra.mxu0 0.0
        %3094 = vmatprep.subr.mxu0 0.0
        %3095 = vmatpush1.msra.mxu0 0.0
        %3096 = vmatprep.subr.mxu0 0.0
        %3097 = vmatpush1.msra.mxu0 0.0
        %3098 = vmatprep.subr.mxu0 0.0
        %3099 = vmatpush1.msra.mxu0 0.0
        %3100 = vmatprep.subr.mxu0 0.0
        %3101 = vmatpush1.msra.mxu0 0.0
        %3102 = vmatprep.subr.mxu0 0.0
        %3103 = vmatpush1.msra.mxu0 0.0
        %3104 = vmatprep.subr.mxu0 0.0
        %3105 = vmatpush1.msra.mxu0 0.0
        %3106 = vmatprep.subr.mxu0 0.0
        %3107 = vmatpush1.msra.mxu0 0.0
        %3108 = vmatprep.subr.mxu0 0.0
        %3109 = vmatpush1.msra.mxu0 0.0
        %3110 = vmatprep.subr.mxu0 0.0
        %3111 = vmatpush1.msra.mxu0 0.0
        %3112 = vmatprep.subr.mxu0 0.0
        %3113 = vmatpush1.msra.mxu0 0.0
        %3114 = vmatprep.subr.mxu0 0.0
        %3115 = vmatpush1.msra.mxu0 0.0
        %3116 = vmatprep.subr.mxu0 0.0
        %3117 = vmatpush1.msra.mxu0 0.0
        %3118 = vmatprep.subr.mxu0 0.0
        %3119 = vmatpush1.msra.mxu0 0.0
        %3120 = vmatprep.subr.mxu0 0.0
        %3121 = vmatpush1.msra.mxu0 0.0
        %3122 = vmatprep.subr.mxu0 0.0
        %3123 = vmatpush1.msra.mxu0 0.0
        %3124 = vmatprep.mubr.f32.mxu0 0.0
        %3125 = vmatmul.mubr.f32.gmra.mrb[0].mxu0 %v3052
        %v3126 = vpop.f32.mrb[0].mxu0
        %v3127 = vadd.f32 0.0, %v3126
        %v3128 = vpop.f32.mrb[0].mxu0
        %3129 = vmatprep.mubr.f32.mxu0 0.0
        %3130 = vmatmul.mubr.f32.gmra.mrb[0].mxu0 %v3054
        %v3131 = vpop.f32.mrb[0].mxu0
        %v3132 = vadd.f32 0.0, %v3131
        %v3133 = vpop.f32.mrb[0].mxu0
        %3134 = vmatprep.mubr.f32.mxu0 0.0
        %3135 = vmatmul.mubr.f32.gmra.mrb[0].mxu0 %v3056
        %v3136 = vpop.f32.mrb[0].mxu0
        %v3137 = vadd.f32 0.0, %v3136
        %v3138 = vpop.f32.mrb[0].mxu0
        %3139 = vmatprep.mubr.f32.mxu0 0.0
        %3140 = vmatmul.mubr.f32.gmra.mrb[0].mxu0 %v3058
        %v3141 = vpop.f32.mrb[0].mxu0
        %v3142 = vadd.f32 0.0, %v3141
        %v3143 = vpop.f32.mrb[0].mxu0
        %3144 = vdwg.mxu0
        %v3145 = vadd.f32 %v2948, %v3127
        %v3146 = vadd.f32 %v2953, %v3132
        %v3147 = vadd.f32 %v2958, %v3137
        %v3148 = vadd.f32 %v2963, %v3142
        %v3149 = vld [vmem:[%s2] sm:$0xff]
        %v3150 = vld [vmem:[%s2 + $0x8] sm:$0xff]
        %v3151 = vld [vmem:[%s2 + $0x10] sm:$0xff]
        %v3152 = vld [vmem:[%s2 + $0x18] sm:$0xff]
        %3154 = vset.pattern.permute.xlu0 12
        %3155 = vperm.xlu0 %3154, %v3149
        %v3156 = vpop.permute.xlu0 %3155
        %3159 = vset.pattern.permute.xlu0 12
        %3160 = vperm.xlu0 %3159, %v3150
        %v3161 = vpop.permute.xlu0 %3160
        %3164 = vset.pattern.permute.xlu0 12
        %3165 = vperm.xlu0 %3164, %v3151
        %v3166 = vpop.permute.xlu0 %3165
        %3169 = vset.pattern.permute.xlu0 12
        %3170 = vperm.xlu0 %3169, %v3152
        %v3171 = vpop.permute.xlu0 %3170
        %v3173 = vadd.f32 %v3145, %v3156
        %v3174 = vadd.f32 %v3146, %v3161
        %v3175 = vadd.f32 %v3147, %v3166
        %v3176 = vadd.f32 %v3148, %v3171
        %v3177 = vmax.f32 %v3173, 0.0
        %v3178 = vmax.f32 %v3174, 0.0
        %v3179 = vmax.f32 %v3175, 0.0
        %v3180 = vmax.f32 %v3176, 0.0
        %3181 = vset.pattern.permute.xlu0 13
        %3182 = vperm.xlu0 %3181, %v3149
        %v3183 = vpop.permute.xlu0 %3182
        %3185 = vset.pattern.permute.xlu0 13
        %3186 = vperm.xlu0 %3185, %v3150
        %v3187 = vpop.permute.xlu0 %3186
        %3189 = vset.pattern.permute.xlu0 13
        %3190 = vperm.xlu0 %3189, %v3151
        %v3191 = vpop.permute.xlu0 %3190
        %3193 = vset.pattern.permute.xlu0 13
        %3194 = vperm.xlu0 %3193, %v3152
        %v3195 = vpop.permute.xlu0 %3194
        %v3197 = vmul.f32 %v3177, %v3183
        %v3198 = vmul.f32 %v3178, %v3187
        %v3199 = vmul.f32 %v3179, %v3191
        %v3200 = vmul.f32 %v3180, %v3195
        %3201 = vset.pattern.permute.xlu0 14
        %3202 = vperm.xlu0 %3201, %v3149
        %v3203 = vpop.permute.xlu0 %3202
        %3205 = vset.pattern.permute.xlu0 14
        %3206 = vperm.xlu0 %3205, %v3150
        %v3207 = vpop.permute.xlu0 %3206
        %3209 = vset.pattern.permute.xlu0 14
        %3210 = vperm.xlu0 %3209, %v3151
        %v3211 = vpop.permute.xlu0 %3210
        %3213 = vset.pattern.permute.xlu0 14
        %3214 = vperm.xlu0 %3213, %v3152
        %v3215 = vpop.permute.xlu0 %3214
        %v3217 = vadd.f32 %v3197, %v3203
        %v3218 = vadd.f32 %v3198, %v3207
        %v3219 = vadd.f32 %v3199, %v3211
        %v3220 = vadd.f32 %v3200, %v3215
        %v3222 = vsel %vm460, %v3217, 0
        %v3225 = vsel %vm460, %v3218, 0
        %v3228 = vsel %vm460, %v3219, 0
        %v3231 = vsel %vm460, %v3220, 0
        %3233 = vmatprep.subr.mxu0 0.0
        %3234 = vmatpush1.msra.mxu0 %v2577
        %3235 = vmatprep.subr.mxu0 0.0
        %3236 = vmatpush1.msra.mxu0 0.0
        %3237 = vmatprep.subr.mxu0 0.0
        %3238 = vmatpush1.msra.mxu0 0.0
        %3239 = vmatprep.subr.mxu0 0.0
        %3240 = vmatpush1.msra.mxu0 0.0
        %3241 = vmatprep.subr.mxu0 0.0
        %3242 = vmatpush1.msra.mxu0 0.0
        %3243 = vmatprep.subr.mxu0 0.0
        %3244 = vmatpush1.msra.mxu0 0.0
        %3245 = vmatprep.subr.mxu0 0.0
        %3246 = vmatpush1.msra.mxu0 0.0
        %3247 = vmatprep.subr.mxu0 0.0
        %3248 = vmatpush1.msra.mxu0 0.0
        %3249 = vmatprep.subr.mxu0 0.0
        %3250 = vmatpush1.msra.mxu0 0.0
        %3251 = vmatprep.subr.mxu0 0.0
        %3252 = vmatpush1.msra.mxu0 0.0
        %3253 = vmatprep.subr.mxu0 0.0
        %3254 = vmatpush1.msra.mxu0 0.0
        %3255 = vmatprep.subr.mxu0 0.0
        %3256 = vmatpush1.msra.mxu0 0.0
        %3257 = vmatprep.subr.mxu0 0.0
        %3258 = vmatpush1.msra.mxu0 0.0
        %3259 = vmatprep.subr.mxu0 0.0
        %3260 = vmatpush1.msra.mxu0 0.0
        %3261 = vmatprep.subr.mxu0 0.0
        %3262 = vmatpush1.msra.mxu0 0.0
        %3263 = vmatprep.subr.mxu0 0.0
        %3264 = vmatpush1.msra.mxu0 0.0
        %3265 = vmatprep.subr.mxu0 0.0
        %3266 = vmatpush1.msra.mxu0 0.0
        %3267 = vmatprep.subr.mxu0 0.0
        %3268 = vmatpush1.msra.mxu0 0.0
        %3269 = vmatprep.subr.mxu0 0.0
        %3270 = vmatpush1.msra.mxu0 0.0
        %3271 = vmatprep.subr.mxu0 0.0
        %3272 = vmatpush1.msra.mxu0 0.0
        %3273 = vmatprep.subr.mxu0 0.0
        %3274 = vmatpush1.msra.mxu0 0.0
        %3275 = vmatprep.subr.mxu0 0.0
        %3276 = vmatpush1.msra.mxu0 0.0
        %3277 = vmatprep.subr.mxu0 0.0
        %3278 = vmatpush1.msra.mxu0 0.0
        %3279 = vmatprep.subr.mxu0 0.0
        %3280 = vmatpush1.msra.mxu0 0.0
        %3281 = vmatprep.subr.mxu0 0.0
        %3282 = vmatpush1.msra.mxu0 0.0
        %3283 = vmatprep.subr.mxu0 0.0
        %3284 = vmatpush1.msra.mxu0 0.0
        %3285 = vmatprep.subr.mxu0 0.0
        %3286 = vmatpush1.msra.mxu0 0.0
        %3287 = vmatprep.subr.mxu0 0.0
        %3288 = vmatpush1.msra.mxu0 0.0
        %3289 = vmatprep.subr.mxu0 0.0
        %3290 = vmatpush1.msra.mxu0 0.0
        %3291 = vmatprep.subr.mxu0 0.0
        %3292 = vmatpush1.msra.mxu0 0.0
        %3293 = vmatprep.subr.mxu0 0.0
        %3294 = vmatpush1.msra.mxu0 0.0
        %3295 = vmatprep.subr.mxu0 0.0
        %3296 = vmatpush1.msra.mxu0 0.0
        %3297 = vmatprep.mubr.f32.mxu0 0.0
        %3298 = vmatmul.mubr.f32.gmra.mrb[0].mxu0 %v3222
        %v3299 = vpop.f32.mrb[0].mxu0
        %v3300 = vadd.f32 0.0, %v3299
        %v3301 = vpop.f32.mrb[0].mxu0
        %3302 = vmatprep.mubr.f32.mxu0 0.0
        %3303 = vmatmul.mubr.f32.gmra.mrb[0].mxu0 %v3225
        %v3304 = vpop.f32.mrb[0].mxu0
        %v3305 = vadd.f32 0.0, %v3304
        %v3306 = vpop.f32.mrb[0].mxu0
        %3307 = vmatprep.mubr.f32.mxu0 0.0
        %3308 = vmatmul.mubr.f32.gmra.mrb[0].mxu0 %v3228
        %v3309 = vpop.f32.mrb[0].mxu0
        %v3310 = vadd.f32 0.0, %v3309
        %v3311 = vpop.f32.mrb[0].mxu0
        %3312 = vmatprep.mubr.f32.mxu0 0.0
        %3313 = vmatmul.mubr.f32.gmra.mrb[0].mxu0 %v3231
        %v3314 = vpop.f32.mrb[0].mxu0
        %v3315 = vadd.f32 0.0, %v3314
        %v3316 = vpop.f32.mrb[0].mxu0
        %3317 = vdwg.mxu0
        %3318 = vmatprep.subr.mxu0 0.0
        %3319 = vmatpush1.msra.mxu0 %v2663
        %3320 = vmatprep.subr.mxu0 0.0
        %3321 = vmatpush1.msra.mxu0 0.0
        %3322 = vmatprep.subr.mxu0 0.0
        %3323 = vmatpush1.msra.mxu0 0.0
        %3324 = vmatprep.subr.mxu0 0.0
        %3325 = vmatpush1.msra.mxu0 0.0
        %3326 = vmatprep.subr.mxu0 0.0
        %3327 = vmatpush1.msra.mxu0 0.0
        %3328 = vmatprep.subr.mxu0 0.0
        %3329 = vmatpush1.msra.mxu0 0.0
        %3330 = vmatprep.subr.mxu0 0.0
        %3331 = vmatpush1.msra.mxu0 0.0
        %3332 = vmatprep.subr.mxu0 0.0
        %3333 = vmatpush1.msra.mxu0 0.0
        %3334 = vmatprep.subr.mxu0 0.0
        %3335 = vmatpush1.msra.mxu0 0.0
        %3336 = vmatprep.subr.mxu0 0.0
        %3337 = vmatpush1.msra.mxu0 0.0
        %3338 = vmatprep.subr.mxu0 0.0
        %3339 = vmatpush1.msra.mxu0 0.0
        %3340 = vmatprep.subr.mxu0 0.0
        %3341 = vmatpush1.msra.mxu0 0.0
        %3342 = vmatprep.subr.mxu0 0.0
        %3343 = vmatpush1.msra.mxu0 0.0
        %3344 = vmatprep.subr.mxu0 0.0
        %3345 = vmatpush1.msra.mxu0 0.0
        %3346 = vmatprep.subr.mxu0 0.0
        %3347 = vmatpush1.msra.mxu0 0.0
        %3348 = vmatprep.subr.mxu0 0.0
        %3349 = vmatpush1.msra.mxu0 0.0
        %3350 = vmatprep.subr.mxu0 0.0
        %3351 = vmatpush1.msra.mxu0 0.0
        %3352 = vmatprep.subr.mxu0 0.0
        %3353 = vmatpush1.msra.mxu0 0.0
        %3354 = vmatprep.subr.mxu0 0.0
        %3355 = vmatpush1.msra.mxu0 0.0
        %3356 = vmatprep.subr.mxu0 0.0
        %3357 = vmatpush1.msra.mxu0 0.0
        %3358 = vmatprep.subr.mxu0 0.0
        %3359 = vmatpush1.msra.mxu0 0.0
        %3360 = vmatprep.subr.mxu0 0.0
        %3361 = vmatpush1.msra.mxu0 0.0
        %3362 = vmatprep.subr.mxu0 0.0
        %3363 = vmatpush1.msra.mxu0 0.0
        %3364 = vmatprep.subr.mxu0 0.0
        %3365 = vmatpush1.msra.mxu0 0.0
        %3366 = vmatprep.subr.mxu0 0.0
        %3367 = vmatpush1.msra.mxu0 0.0
        %3368 = vmatprep.subr.mxu0 0.0
        %3369 = vmatpush1.msra.mxu0 0.0
        %3370 = vmatprep.subr.mxu0 0.0
        %3371 = vmatpush1.msra.mxu0 0.0
        %3372 = vmatprep.subr.mxu0 0.0
        %3373 = vmatpush1.msra.mxu0 0.0
        %3374 = vmatprep.subr.mxu0 0.0
        %3375 = vmatpush1.msra.mxu0 0.0
        %3376 = vmatprep.subr.mxu0 0.0
        %3377 = vmatpush1.msra.mxu0 0.0
        %3378 = vmatprep.subr.mxu0 0.0
        %3379 = vmatpush1.msra.mxu0 0.0
        %3380 = vmatprep.subr.mxu0 0.0
        %3381 = vmatpush1.msra.mxu0 0.0
        %3382 = vmatprep.mubr.f32.mxu0 0.0
        %3383 = vmatmul.mubr.f32.gmra.mrb[0].mxu0 %v3222
        %v3384 = vpop.f32.mrb[0].mxu0
        %v3385 = vadd.f32 0.0, %v3384
        %v3386 = vpop.f32.mrb[0].mxu0
        %3387 = vmatprep.mubr.f32.mxu0 0.0
        %3388 = vmatmul.mubr.f32.gmra.mrb[0].mxu0 %v3225
        %v3389 = vpop.f32.mrb[0].mxu0
        %v3390 = vadd.f32 0.0, %v3389
        %v3391 = vpop.f32.mrb[0].mxu0
        %3392 = vmatprep.mubr.f32.mxu0 0.0
        %3393 = vmatmul.mubr.f32.gmra.mrb[0].mxu0 %v3228
        %v3394 = vpop.f32.mrb[0].mxu0
        %v3395 = vadd.f32 0.0, %v3394
        %v3396 = vpop.f32.mrb[0].mxu0
        %3397 = vmatprep.mubr.f32.mxu0 0.0
        %3398 = vmatmul.mubr.f32.gmra.mrb[0].mxu0 %v3231
        %v3399 = vpop.f32.mrb[0].mxu0
        %v3400 = vadd.f32 0.0, %v3399
        %v3401 = vpop.f32.mrb[0].mxu0
        %3402 = vdwg.mxu0
        %3403 = vrot.lane.b32.xlu0 %v2655, 68
        %v3404 = vpop.permute.xlu0 %3403
        %3405 = vrot.lane.b32.xlu0 %v2657, 68
        %v3406 = vpop.permute.xlu0 %3405
        %3407 = vrot.lane.b32.xlu0 %v2659, 68
        %v3408 = vpop.permute.xlu0 %3407
        %3409 = vrot.lane.b32.xlu0 %v2661, 68
        %v3410 = vpop.permute.xlu0 %3409
        %vm3411 = vcmask 261120
        %v3412 = vsel %vm3411, %v3404, 0
        %v3414 = vsel %vm3411, %v3406, 0
        %v3416 = vsel %vm3411, %v3408, 0
        %v3418 = vsel %vm3411, %v3410, 0
        %3420 = vmatprep.subr.mxu0 0.0
        %3421 = vmatpush1.msra.mxu0 %v3385
        %3422 = vmatprep.subr.mxu0 0.0
        %3423 = vmatpush1.msra.mxu0 %v3390
        %3424 = vmatprep.subr.mxu0 0.0
        %3425 = vmatpush1.msra.mxu0 %v3395
        %3426 = vmatprep.subr.mxu0 0.0
        %3427 = vmatpush1.msra.mxu0 %v3400
        %3428 = vmatprep.subr.mxu0 0.0
        %3429 = vmatpush1.msra.mxu0 0.0
        %3430 = vmatprep.subr.mxu0 0.0
        %3431 = vmatpush1.msra.mxu0 0.0
        %3432 = vmatprep.subr.mxu0 0.0
        %3433 = vmatpush1.msra.mxu0 0.0
        %3434 = vmatprep.subr.mxu0 0.0
        %3435 = vmatpush1.msra.mxu0 0.0
        %3436 = vmatprep.subr.mxu0 0.0
        %3437 = vmatpush1.msra.mxu0 0.0
        %3438 = vmatprep.subr.mxu0 0.0
        %3439 = vmatpush1.msra.mxu0 0.0
        %3440 = vmatprep.subr.mxu0 0.0
        %3441 = vmatpush1.msra.mxu0 0.0
        %3442 = vmatprep.subr.mxu0 0.0
        %3443 = vmatpush1.msra.mxu0 0.0
        %3444 = vmatprep.subr.mxu0 0.0
        %3445 = vmatpush1.msra.mxu0 0.0
        %3446 = vmatprep.subr.mxu0 0.0
        %3447 = vmatpush1.msra.mxu0 0.0
        %3448 = vmatprep.subr.mxu0 0.0
        %3449 = vmatpush1.msra.mxu0 0.0
        %3450 = vmatprep.subr.mxu0 0.0
        %3451 = vmatpush1.msra.mxu0 0.0
        %3452 = vmatprep.subr.mxu0 0.0
        %3453 = vmatpush1.msra.mxu0 0.0
        %3454 = vmatprep.subr.mxu0 0.0
        %3455 = vmatpush1.msra.mxu0 0.0
        %3456 = vmatprep.subr.mxu0 0.0
        %3457 = vmatpush1.msra.mxu0 0.0
        %3458 = vmatprep.subr.mxu0 0.0
        %3459 = vmatpush1.msra.mxu0 0.0
        %3460 = vmatprep.subr.mxu0 0.0
        %3461 = vmatpush1.msra.mxu0 0.0
        %3462 = vmatprep.subr.mxu0 0.0
        %3463 = vmatpush1.msra.mxu0 0.0
        %3464 = vmatprep.subr.mxu0 0.0
        %3465 = vmatpush1.msra.mxu0 0.0
        %3466 = vmatprep.subr.mxu0 0.0
        %3467 = vmatpush1.msra.mxu0 0.0
        %3468 = vmatprep.subr.mxu0 0.0
        %3469 = vmatpush1.msra.mxu0 0.0
        %3470 = vmatprep.subr.mxu0 0.0
        %3471 = vmatpush1.msra.mxu0 0.0
        %3472 = vmatprep.subr.mxu0 0.0
        %3473 = vmatpush1.msra.mxu0 0.0
        %3474 = vmatprep.subr.mxu0 0.0
        %3475 = vmatpush1.msra.mxu0 0.0
        %3476 = vmatprep.subr.mxu0 0.0
        %3477 = vmatpush1.msra.mxu0 0.0
        %3478 = vmatprep.subr.mxu0 0.0
        %3479 = vmatpush1.msra.mxu0 0.0
        %3480 = vmatprep.subr.mxu0 0.0
        %3481 = vmatpush1.msra.mxu0 0.0
        %3482 = vmatprep.subr.mxu0 0.0
        %3483 = vmatpush1.msra.mxu0 0.0
        %3484 = vmatprep.mubr.f32.mxu0 0.0
        %3485 = vmatmul.mubr.f32.gmra.mrb[0].mxu0 %v3412
        %v3486 = vpop.f32.mrb[0].mxu0
        %v3487 = vadd.f32 0.0, %v3486
        %v3488 = vpop.f32.mrb[0].mxu0
        %3489 = vmatprep.mubr.f32.mxu0 0.0
        %3490 = vmatmul.mubr.f32.gmra.mrb[0].mxu0 %v3414
        %v3491 = vpop.f32.mrb[0].mxu0
        %v3492 = vadd.f32 0.0, %v3491
        %v3493 = vpop.f32.mrb[0].mxu0
        %3494 = vmatprep.mubr.f32.mxu0 0.0
        %3495 = vmatmul.mubr.f32.gmra.mrb[0].mxu0 %v3416
        %v3496 = vpop.f32.mrb[0].mxu0
        %v3497 = vadd.f32 0.0, %v3496
        %v3498 = vpop.f32.mrb[0].mxu0
        %3499 = vmatprep.mubr.f32.mxu0 0.0
        %3500 = vmatmul.mubr.f32.gmra.mrb[0].mxu0 %v3418
        %v3501 = vpop.f32.mrb[0].mxu0
        %v3502 = vadd.f32 0.0, %v3501
        %v3503 = vpop.f32.mrb[0].mxu0
        %3504 = vdwg.mxu0
        %3505 = vrot.lane.b32.xlu0 %v2655, 100
        %v3506 = vpop.permute.xlu0 %3505
        %3507 = vrot.lane.b32.xlu0 %v2657, 100
        %v3508 = vpop.permute.xlu0 %3507
        %3509 = vrot.lane.b32.xlu0 %v2659, 100
        %v3510 = vpop.permute.xlu0 %3509
        %3511 = vrot.lane.b32.xlu0 %v2661, 100
        %v3512 = vpop.permute.xlu0 %3511
        %v3513 = vsel %vm3411, %v3506, 0
        %v3515 = vsel %vm3411, %v3508, 0
        %v3517 = vsel %vm3411, %v3510, 0
        %v3519 = vsel %vm3411, %v3512, 0
        %3521 = vmatprep.subr.mxu0 0.0
        %3522 = vmatpush1.msra.mxu0 %v3300
        %3523 = vmatprep.subr.mxu0 0.0
        %3524 = vmatpush1.msra.mxu0 %v3305
        %3525 = vmatprep.subr.mxu0 0.0
        %3526 = vmatpush1.msra.mxu0 %v3310
        %3527 = vmatprep.subr.mxu0 0.0
        %3528 = vmatpush1.msra.mxu0 %v3315
        %3529 = vmatprep.subr.mxu0 0.0
        %3530 = vmatpush1.msra.mxu0 0.0
        %3531 = vmatprep.subr.mxu0 0.0
        %3532 = vmatpush1.msra.mxu0 0.0
        %3533 = vmatprep.subr.mxu0 0.0
        %3534 = vmatpush1.msra.mxu0 0.0
        %3535 = vmatprep.subr.mxu0 0.0
        %3536 = vmatpush1.msra.mxu0 0.0
        %3537 = vmatprep.subr.mxu0 0.0
        %3538 = vmatpush1.msra.mxu0 0.0
        %3539 = vmatprep.subr.mxu0 0.0
        %3540 = vmatpush1.msra.mxu0 0.0
        %3541 = vmatprep.subr.mxu0 0.0
        %3542 = vmatpush1.msra.mxu0 0.0
        %3543 = vmatprep.subr.mxu0 0.0
        %3544 = vmatpush1.msra.mxu0 0.0
        %3545 = vmatprep.subr.mxu0 0.0
        %3546 = vmatpush1.msra.mxu0 0.0
        %3547 = vmatprep.subr.mxu0 0.0
        %3548 = vmatpush1.msra.mxu0 0.0
        %3549 = vmatprep.subr.mxu0 0.0
        %3550 = vmatpush1.msra.mxu0 0.0
        %3551 = vmatprep.subr.mxu0 0.0
        %3552 = vmatpush1.msra.mxu0 0.0
        %3553 = vmatprep.subr.mxu0 0.0
        %3554 = vmatpush1.msra.mxu0 0.0
        %3555 = vmatprep.subr.mxu0 0.0
        %3556 = vmatpush1.msra.mxu0 0.0
        %3557 = vmatprep.subr.mxu0 0.0
        %3558 = vmatpush1.msra.mxu0 0.0
        %3559 = vmatprep.subr.mxu0 0.0
        %3560 = vmatpush1.msra.mxu0 0.0
        %3561 = vmatprep.subr.mxu0 0.0
        %3562 = vmatpush1.msra.mxu0 0.0
        %3563 = vmatprep.subr.mxu0 0.0
        %3564 = vmatpush1.msra.mxu0 0.0
        %3565 = vmatprep.subr.mxu0 0.0
        %3566 = vmatpush1.msra.mxu0 0.0
        %3567 = vmatprep.subr.mxu0 0.0
        %3568 = vmatpush1.msra.mxu0 0.0
        %3569 = vmatprep.subr.mxu0 0.0
        %3570 = vmatpush1.msra.mxu0 0.0
        %3571 = vmatprep.subr.mxu0 0.0
        %3572 = vmatpush1.msra.mxu0 0.0
        %3573 = vmatprep.subr.mxu0 0.0
        %3574 = vmatpush1.msra.mxu0 0.0
        %3575 = vmatprep.subr.mxu0 0.0
        %3576 = vmatpush1.msra.mxu0 0.0
        %3577 = vmatprep.subr.mxu0 0.0
        %3578 = vmatpush1.msra.mxu0 0.0
        %3579 = vmatprep.subr.mxu0 0.0
        %3580 = vmatpush1.msra.mxu0 0.0
        %3581 = vmatprep.subr.mxu0 0.0
        %3582 = vmatpush1.msra.mxu0 0.0
        %3583 = vmatprep.subr.mxu0 0.0
        %3584 = vmatpush1.msra.mxu0 0.0
        %3585 = vmatprep.mubr.f32.mxu0 0.0
        %3586 = vmatmul.mubr.f32.gmra.mrb[0].mxu0 %v3513
        %v3587 = vpop.f32.mrb[0].mxu0
        %v3588 = vadd.f32 %v3487, %v3587
        %v3589 = vpop.f32.mrb[0].mxu0
        %3590 = vmatprep.mubr.f32.mxu0 0.0
        %3591 = vmatmul.mubr.f32.gmra.mrb[0].mxu0 %v3515
        %v3592 = vpop.f32.mrb[0].mxu0
        %v3593 = vadd.f32 %v3492, %v3592
        %v3594 = vpop.f32.mrb[0].mxu0
        %3595 = vmatprep.mubr.f32.mxu0 0.0
        %3596 = vmatmul.mubr.f32.gmra.mrb[0].mxu0 %v3517
        %v3597 = vpop.f32.mrb[0].mxu0
        %v3598 = vadd.f32 %v3497, %v3597
        %v3599 = vpop.f32.mrb[0].mxu0
        %3600 = vmatprep.mubr.f32.mxu0 0.0
        %3601 = vmatmul.mubr.f32.gmra.mrb[0].mxu0 %v3519
        %v3602 = vpop.f32.mrb[0].mxu0
        %v3603 = vadd.f32 %v3502, %v3602
        %v3604 = vpop.f32.mrb[0].mxu0
        %3605 = vdwg.mxu0
        %3606 = vmatprep.subr.mxu0 0.0
        %3607 = vmatpush1.msra.mxu0 %v2967
        %3608 = vmatprep.subr.mxu0 0.0
        %3609 = vmatpush1.msra.mxu0 0.0
        %3610 = vmatprep.subr.mxu0 0.0
        %3611 = vmatpush1.msra.mxu0 0.0
        %3612 = vmatprep.subr.mxu0 0.0
        %3613 = vmatpush1.msra.mxu0 0.0
        %3614 = vmatprep.subr.mxu0 0.0
        %3615 = vmatpush1.msra.mxu0 0.0
        %3616 = vmatprep.subr.mxu0 0.0
        %3617 = vmatpush1.msra.mxu0 0.0
        %3618 = vmatprep.subr.mxu0 0.0
        %3619 = vmatpush1.msra.mxu0 0.0
        %3620 = vmatprep.subr.mxu0 0.0
        %3621 = vmatpush1.msra.mxu0 0.0
        %3622 = vmatprep.subr.mxu0 0.0
        %3623 = vmatpush1.msra.mxu0 0.0
        %3624 = vmatprep.subr.mxu0 0.0
        %3625 = vmatpush1.msra.mxu0 0.0
        %3626 = vmatprep.subr.mxu0 0.0
        %3627 = vmatpush1.msra.mxu0 0.0
        %3628 = vmatprep.subr.mxu0 0.0
        %3629 = vmatpush1.msra.mxu0 0.0
        %3630 = vmatprep.subr.mxu0 0.0
        %3631 = vmatpush1.msra.mxu0 0.0
        %3632 = vmatprep.subr.mxu0 0.0
        %3633 = vmatpush1.msra.mxu0 0.0
        %3634 = vmatprep.subr.mxu0 0.0
        %3635 = vmatpush1.msra.mxu0 0.0
        %3636 = vmatprep.subr.mxu0 0.0
        %3637 = vmatpush1.msra.mxu0 0.0
        %3638 = vmatprep.subr.mxu0 0.0
        %3639 = vmatpush1.msra.mxu0 0.0
        %3640 = vmatprep.subr.mxu0 0.0
        %3641 = vmatpush1.msra.mxu0 0.0
        %3642 = vmatprep.subr.mxu0 0.0
        %3643 = vmatpush1.msra.mxu0 0.0
        %3644 = vmatprep.subr.mxu0 0.0
        %3645 = vmatpush1.msra.mxu0 0.0
        %3646 = vmatprep.subr.mxu0 0.0
        %3647 = vmatpush1.msra.mxu0 0.0
        %3648 = vmatprep.subr.mxu0 0.0
        %3649 = vmatpush1.msra.mxu0 0.0
        %3650 = vmatprep.subr.mxu0 0.0
        %3651 = vmatpush1.msra.mxu0 0.0
        %3652 = vmatprep.subr.mxu0 0.0
        %3653 = vmatpush1.msra.mxu0 0.0
        %3654 = vmatprep.subr.mxu0 0.0
        %3655 = vmatpush1.msra.mxu0 0.0
        %3656 = vmatprep.subr.mxu0 0.0
        %3657 = vmatpush1.msra.mxu0 0.0
        %3658 = vmatprep.subr.mxu0 0.0
        %3659 = vmatpush1.msra.mxu0 0.0
        %3660 = vmatprep.subr.mxu0 0.0
        %3661 = vmatpush1.msra.mxu0 0.0
        %3662 = vmatprep.subr.mxu0 0.0
        %3663 = vmatpush1.msra.mxu0 0.0
        %3664 = vmatprep.subr.mxu0 0.0
        %3665 = vmatpush1.msra.mxu0 0.0
        %3666 = vmatprep.subr.mxu0 0.0
        %3667 = vmatpush1.msra.mxu0 0.0
        %3668 = vmatprep.subr.mxu0 0.0
        %3669 = vmatpush1.msra.mxu0 0.0
        %3670 = vmatprep.mubr.f32.mxu0 0.0
        %3671 = vmatmul.mubr.f32.gmra.mrb[0].mxu0 %v3222
        %v3672 = vpop.f32.mrb[0].mxu0
        %v3673 = vadd.f32 0.0, %v3672
        %v3674 = vpop.f32.mrb[0].mxu0
        %3675 = vmatprep.mubr.f32.mxu0 0.0
        %3676 = vmatmul.mubr.f32.gmra.mrb[0].mxu0 %v3225
        %v3677 = vpop.f32.mrb[0].mxu0
        %v3678 = vadd.f32 0.0, %v3677
        %v3679 = vpop.f32.mrb[0].mxu0
        %3680 = vmatprep.mubr.f32.mxu0 0.0
        %3681 = vmatmul.mubr.f32.gmra.mrb[0].mxu0 %v3228
        %v3682 = vpop.f32.mrb[0].mxu0
        %v3683 = vadd.f32 0.0, %v3682
        %v3684 = vpop.f32.mrb[0].mxu0
        %3685 = vmatprep.mubr.f32.mxu0 0.0
        %3686 = vmatmul.mubr.f32.gmra.mrb[0].mxu0 %v3231
        %v3687 = vpop.f32.mrb[0].mxu0
        %v3688 = vadd.f32 0.0, %v3687
        %v3689 = vpop.f32.mrb[0].mxu0
        %3690 = vdwg.mxu0
        %3691 = vrot.lane.b32.xlu0 %v2655, 36
        %v3692 = vpop.permute.xlu0 %3691
        %3693 = vrot.lane.b32.xlu0 %v2657, 36
        %v3694 = vpop.permute.xlu0 %3693
        %3695 = vrot.lane.b32.xlu0 %v2659, 36
        %v3696 = vpop.permute.xlu0 %3695
        %3697 = vrot.lane.b32.xlu0 %v2661, 36
        %v3698 = vpop.permute.xlu0 %3697
        %v3699 = vsel %vm3411, %v3692, 0
        %v3701 = vsel %vm3411, %v3694, 0
        %v3703 = vsel %vm3411, %v3696, 0
        %v3705 = vsel %vm3411, %v3698, 0
        %3707 = vmatprep.subr.mxu0 0.0
        %3708 = vmatpush1.msra.mxu0 %v3673
        %3709 = vmatprep.subr.mxu0 0.0
        %3710 = vmatpush1.msra.mxu0 %v3678
        %3711 = vmatprep.subr.mxu0 0.0
        %3712 = vmatpush1.msra.mxu0 %v3683
        %3713 = vmatprep.subr.mxu0 0.0
        %3714 = vmatpush1.msra.mxu0 %v3688
        %3715 = vmatprep.subr.mxu0 0.0
        %3716 = vmatpush1.msra.mxu0 0.0
        %3717 = vmatprep.subr.mxu0 0.0
        %3718 = vmatpush1.msra.mxu0 0.0
        %3719 = vmatprep.subr.mxu0 0.0
        %3720 = vmatpush1.msra.mxu0 0.0
        %3721 = vmatprep.subr.mxu0 0.0
        %3722 = vmatpush1.msra.mxu0 0.0
        %3723 = vmatprep.subr.mxu0 0.0
        %3724 = vmatpush1.msra.mxu0 0.0
        %3725 = vmatprep.subr.mxu0 0.0
        %3726 = vmatpush1.msra.mxu0 0.0
        %3727 = vmatprep.subr.mxu0 0.0
        %3728 = vmatpush1.msra.mxu0 0.0
        %3729 = vmatprep.subr.mxu0 0.0
        %3730 = vmatpush1.msra.mxu0 0.0
        %3731 = vmatprep.subr.mxu0 0.0
        %3732 = vmatpush1.msra.mxu0 0.0
        %3733 = vmatprep.subr.mxu0 0.0
        %3734 = vmatpush1.msra.mxu0 0.0
        %3735 = vmatprep.subr.mxu0 0.0
        %3736 = vmatpush1.msra.mxu0 0.0
        %3737 = vmatprep.subr.mxu0 0.0
        %3738 = vmatpush1.msra.mxu0 0.0
        %3739 = vmatprep.subr.mxu0 0.0
        %3740 = vmatpush1.msra.mxu0 0.0
        %3741 = vmatprep.subr.mxu0 0.0
        %3742 = vmatpush1.msra.mxu0 0.0
        %3743 = vmatprep.subr.mxu0 0.0
        %3744 = vmatpush1.msra.mxu0 0.0
        %3745 = vmatprep.subr.mxu0 0.0
        %3746 = vmatpush1.msra.mxu0 0.0
        %3747 = vmatprep.subr.mxu0 0.0
        %3748 = vmatpush1.msra.mxu0 0.0
        %3749 = vmatprep.subr.mxu0 0.0
        %3750 = vmatpush1.msra.mxu0 0.0
        %3751 = vmatprep.subr.mxu0 0.0
        %3752 = vmatpush1.msra.mxu0 0.0
        %3753 = vmatprep.subr.mxu0 0.0
        %3754 = vmatpush1.msra.mxu0 0.0
        %3755 = vmatprep.subr.mxu0 0.0
        %3756 = vmatpush1.msra.mxu0 0.0
        %3757 = vmatprep.subr.mxu0 0.0
        %3758 = vmatpush1.msra.mxu0 0.0
        %3759 = vmatprep.subr.mxu0 0.0
        %3760 = vmatpush1.msra.mxu0 0.0
        %3761 = vmatprep.subr.mxu0 0.0
        %3762 = vmatpush1.msra.mxu0 0.0
        %3763 = vmatprep.subr.mxu0 0.0
        %3764 = vmatpush1.msra.mxu0 0.0
        %3765 = vmatprep.subr.mxu0 0.0
        %3766 = vmatpush1.msra.mxu0 0.0
        %3767 = vmatprep.subr.mxu0 0.0
        %3768 = vmatpush1.msra.mxu0 0.0
        %3769 = vmatprep.subr.mxu0 0.0
        %3770 = vmatpush1.msra.mxu0 0.0
        %3771 = vmatprep.mubr.f32.mxu0 0.0
        %3772 = vmatmul.mubr.f32.gmra.mrb[0].mxu0 %v3699
        %v3773 = vpop.f32.mrb[0].mxu0
        %v3774 = vadd.f32 0.0, %v3773
        %v3775 = vpop.f32.mrb[0].mxu0
        %3776 = vmatprep.mubr.f32.mxu0 0.0
        %3777 = vmatmul.mubr.f32.gmra.mrb[0].mxu0 %v3701
        %v3778 = vpop.f32.mrb[0].mxu0
        %v3779 = vadd.f32 0.0, %v3778
        %v3780 = vpop.f32.mrb[0].mxu0
        %3781 = vmatprep.mubr.f32.mxu0 0.0
        %3782 = vmatmul.mubr.f32.gmra.mrb[0].mxu0 %v3703
        %v3783 = vpop.f32.mrb[0].mxu0
        %v3784 = vadd.f32 0.0, %v3783
        %v3785 = vpop.f32.mrb[0].mxu0
        %3786 = vmatprep.mubr.f32.mxu0 0.0
        %3787 = vmatmul.mubr.f32.gmra.mrb[0].mxu0 %v3705
        %v3788 = vpop.f32.mrb[0].mxu0
        %v3789 = vadd.f32 0.0, %v3788
        %v3790 = vpop.f32.mrb[0].mxu0
        %3791 = vdwg.mxu0
        %v3792 = vadd.f32 %v3588, %v3774
        %v3793 = vadd.f32 %v3593, %v3779
        %v3794 = vadd.f32 %v3598, %v3784
        %v3795 = vadd.f32 %v3603, %v3789
        %3796 = vset.pattern.permute.xlu0 15
        %3797 = vperm.xlu0 %3796, %v3149
        %v3798 = vpop.permute.xlu0 %3797
        %3800 = vset.pattern.permute.xlu0 15
        %3801 = vperm.xlu0 %3800, %v3150
        %v3802 = vpop.permute.xlu0 %3801
        %3804 = vset.pattern.permute.xlu0 15
        %3805 = vperm.xlu0 %3804, %v3151
        %v3806 = vpop.permute.xlu0 %3805
        %3808 = vset.pattern.permute.xlu0 15
        %3809 = vperm.xlu0 %3808, %v3152
        %v3810 = vpop.permute.xlu0 %3809
        %v3812 = vadd.f32 %v3792, %v3798
        %v3813 = vadd.f32 %v3793, %v3802
        %v3814 = vadd.f32 %v3794, %v3806
        %v3815 = vadd.f32 %v3795, %v3810
        %v3817 = vsel %vm460, %v3812, 0
        %v3820 = vsel %vm460, %v3813, 0
        %v3823 = vsel %vm460, %v3814, 0
        %v3826 = vsel %vm460, %v3815, 0
        %v3829 = vsel %vm463, %v1228, 0
        %3831 = vmatprep.subr.mxu0 0.0
        %3832 = vmatpush1.msra.mxu0 %v3829
        %3833 = vmatprep.subr.mxu0 0.0
        %3834 = vmatpush1.msra.mxu0 0.0
        %3835 = vmatprep.subr.mxu0 0.0
        %3836 = vmatpush1.msra.mxu0 0.0
        %3837 = vmatprep.subr.mxu0 0.0
        %3838 = vmatpush1.msra.mxu0 0.0
        %3839 = vmatprep.subr.mxu0 0.0
        %3840 = vmatpush1.msra.mxu0 0.0
        %3841 = vmatprep.subr.mxu0 0.0
        %3842 = vmatpush1.msra.mxu0 0.0
        %3843 = vmatprep.subr.mxu0 0.0
        %3844 = vmatpush1.msra.mxu0 0.0
        %3845 = vmatprep.subr.mxu0 0.0
        %3846 = vmatpush1.msra.mxu0 0.0
        %3847 = vmatprep.subr.mxu0 0.0
        %3848 = vmatpush1.msra.mxu0 0.0
        %3849 = vmatprep.subr.mxu0 0.0
        %3850 = vmatpush1.msra.mxu0 0.0
        %3851 = vmatprep.subr.mxu0 0.0
        %3852 = vmatpush1.msra.mxu0 0.0
        %3853 = vmatprep.subr.mxu0 0.0
        %3854 = vmatpush1.msra.mxu0 0.0
        %3855 = vmatprep.subr.mxu0 0.0
        %3856 = vmatpush1.msra.mxu0 0.0
        %3857 = vmatprep.subr.mxu0 0.0
        %3858 = vmatpush1.msra.mxu0 0.0
        %3859 = vmatprep.subr.mxu0 0.0
        %3860 = vmatpush1.msra.mxu0 0.0
        %3861 = vmatprep.subr.mxu0 0.0
        %3862 = vmatpush1.msra.mxu0 0.0
        %3863 = vmatprep.subr.mxu0 0.0
        %3864 = vmatpush1.msra.mxu0 0.0
        %3865 = vmatprep.subr.mxu0 0.0
        %3866 = vmatpush1.msra.mxu0 0.0
        %3867 = vmatprep.subr.mxu0 0.0
        %3868 = vmatpush1.msra.mxu0 0.0
        %3869 = vmatprep.subr.mxu0 0.0
        %3870 = vmatpush1.msra.mxu0 0.0
        %3871 = vmatprep.subr.mxu0 0.0
        %3872 = vmatpush1.msra.mxu0 0.0
        %3873 = vmatprep.subr.mxu0 0.0
        %3874 = vmatpush1.msra.mxu0 0.0
        %3875 = vmatprep.subr.mxu0 0.0
        %3876 = vmatpush1.msra.mxu0 0.0
        %3877 = vmatprep.subr.mxu0 0.0
        %3878 = vmatpush1.msra.mxu0 0.0
        %3879 = vmatprep.subr.mxu0 0.0
        %3880 = vmatpush1.msra.mxu0 0.0
        %3881 = vmatprep.subr.mxu0 0.0
        %3882 = vmatpush1.msra.mxu0 0.0
        %3883 = vmatprep.subr.mxu0 0.0
        %3884 = vmatpush1.msra.mxu0 0.0
        %3885 = vmatprep.subr.mxu0 0.0
        %3886 = vmatpush1.msra.mxu0 0.0
        %3887 = vmatprep.subr.mxu0 0.0
        %3888 = vmatpush1.msra.mxu0 0.0
        %3889 = vmatprep.subr.mxu0 0.0
        %3890 = vmatpush1.msra.mxu0 0.0
        %3891 = vmatprep.subr.mxu0 0.0
        %3892 = vmatpush1.msra.mxu0 0.0
        %3893 = vmatprep.subr.mxu0 0.0
        %3894 = vmatpush1.msra.mxu0 0.0
        %3895 = vmatprep.mubr.f32.mxu0 0.0
        %3896 = vmatmul.mubr.f32.gmra.mrb[0].mxu0 %v3817
        %v3897 = vpop.f32.mrb[0].mxu0
        %v3898 = vadd.f32 0.0, %v3897
        %v3899 = vpop.f32.mrb[0].mxu0
        %3900 = vmatprep.mubr.f32.mxu0 0.0
        %3901 = vmatmul.mubr.f32.gmra.mrb[0].mxu0 %v3820
        %v3902 = vpop.f32.mrb[0].mxu0
        %v3903 = vadd.f32 0.0, %v3902
        %v3904 = vpop.f32.mrb[0].mxu0
        %3905 = vmatprep.mubr.f32.mxu0 0.0
        %3906 = vmatmul.mubr.f32.gmra.mrb[0].mxu0 %v3823
        %v3907 = vpop.f32.mrb[0].mxu0
        %v3908 = vadd.f32 0.0, %v3907
        %v3909 = vpop.f32.mrb[0].mxu0
        %3910 = vmatprep.mubr.f32.mxu0 0.0
        %3911 = vmatmul.mubr.f32.gmra.mrb[0].mxu0 %v3826
        %v3912 = vpop.f32.mrb[0].mxu0
        %v3913 = vadd.f32 0.0, %v3912
        %v3914 = vpop.f32.mrb[0].mxu0
        %3915 = vdwg.mxu0
        %v3917 = vsel %vm463, %v1306, 0
        %3919 = vmatprep.subr.mxu0 0.0
        %3920 = vmatpush1.msra.mxu0 %v3917
        %3921 = vmatprep.subr.mxu0 0.0
        %3922 = vmatpush1.msra.mxu0 0.0
        %3923 = vmatprep.subr.mxu0 0.0
        %3924 = vmatpush1.msra.mxu0 0.0
        %3925 = vmatprep.subr.mxu0 0.0
        %3926 = vmatpush1.msra.mxu0 0.0
        %3927 = vmatprep.subr.mxu0 0.0
        %3928 = vmatpush1.msra.mxu0 0.0
        %3929 = vmatprep.subr.mxu0 0.0
        %3930 = vmatpush1.msra.mxu0 0.0
        %3931 = vmatprep.subr.mxu0 0.0
        %3932 = vmatpush1.msra.mxu0 0.0
        %3933 = vmatprep.subr.mxu0 0.0
        %3934 = vmatpush1.msra.mxu0 0.0
        %3935 = vmatprep.subr.mxu0 0.0
        %3936 = vmatpush1.msra.mxu0 0.0
        %3937 = vmatprep.subr.mxu0 0.0
        %3938 = vmatpush1.msra.mxu0 0.0
        %3939 = vmatprep.subr.mxu0 0.0
        %3940 = vmatpush1.msra.mxu0 0.0
        %3941 = vmatprep.subr.mxu0 0.0
        %3942 = vmatpush1.msra.mxu0 0.0
        %3943 = vmatprep.subr.mxu0 0.0
        %3944 = vmatpush1.msra.mxu0 0.0
        %3945 = vmatprep.subr.mxu0 0.0
        %3946 = vmatpush1.msra.mxu0 0.0
        %3947 = vmatprep.subr.mxu0 0.0
        %3948 = vmatpush1.msra.mxu0 0.0
        %3949 = vmatprep.subr.mxu0 0.0
        %3950 = vmatpush1.msra.mxu0 0.0
        %3951 = vmatprep.subr.mxu0 0.0
        %3952 = vmatpush1.msra.mxu0 0.0
        %3953 = vmatprep.subr.mxu0 0.0
        %3954 = vmatpush1.msra.mxu0 0.0
        %3955 = vmatprep.subr.mxu0 0.0
        %3956 = vmatpush1.msra.mxu0 0.0
        %3957 = vmatprep.subr.mxu0 0.0
        %3958 = vmatpush1.msra.mxu0 0.0
        %3959 = vmatprep.subr.mxu0 0.0
        %3960 = vmatpush1.msra.mxu0 0.0
        %3961 = vmatprep.subr.mxu0 0.0
        %3962 = vmatpush1.msra.mxu0 0.0
        %3963 = vmatprep.subr.mxu0 0.0
        %3964 = vmatpush1.msra.mxu0 0.0
        %3965 = vmatprep.subr.mxu0 0.0
        %3966 = vmatpush1.msra.mxu0 0.0
        %3967 = vmatprep.subr.mxu0 0.0
        %3968 = vmatpush1.msra.mxu0 0.0
        %3969 = vmatprep.subr.mxu0 0.0
        %3970 = vmatpush1.msra.mxu0 0.0
        %3971 = vmatprep.subr.mxu0 0.0
        %3972 = vmatpush1.msra.mxu0 0.0
        %3973 = vmatprep.subr.mxu0 0.0
        %3974 = vmatpush1.msra.mxu0 0.0
        %3975 = vmatprep.subr.mxu0 0.0
        %3976 = vmatpush1.msra.mxu0 0.0
        %3977 = vmatprep.subr.mxu0 0.0
        %3978 = vmatpush1.msra.mxu0 0.0
        %3979 = vmatprep.subr.mxu0 0.0
        %3980 = vmatpush1.msra.mxu0 0.0
        %3981 = vmatprep.subr.mxu0 0.0
        %3982 = vmatpush1.msra.mxu0 0.0
        %3983 = vmatprep.mubr.f32.mxu0 0.0
        %3984 = vmatmul.mubr.f32.gmra.mrb[0].mxu0 %v3817
        %v3985 = vpop.f32.mrb[0].mxu0
        %v3986 = vadd.f32 0.0, %v3985
        %v3987 = vpop.f32.mrb[0].mxu0
        %3988 = vmatprep.mubr.f32.mxu0 0.0
        %3989 = vmatmul.mubr.f32.gmra.mrb[0].mxu0 %v3820
        %v3990 = vpop.f32.mrb[0].mxu0
        %v3991 = vadd.f32 0.0, %v3990
        %v3992 = vpop.f32.mrb[0].mxu0
        %3993 = vmatprep.mubr.f32.mxu0 0.0
        %3994 = vmatmul.mubr.f32.gmra.mrb[0].mxu0 %v3823
        %v3995 = vpop.f32.mrb[0].mxu0
        %v3996 = vadd.f32 0.0, %v3995
        %v3997 = vpop.f32.mrb[0].mxu0
        %3998 = vmatprep.mubr.f32.mxu0 0.0
        %3999 = vmatmul.mubr.f32.gmra.mrb[0].mxu0 %v3826
        %v4000 = vpop.f32.mrb[0].mxu0
        %v4001 = vadd.f32 0.0, %v4000
        %v4002 = vpop.f32.mrb[0].mxu0
        %4003 = vdwg.mxu0
        %v4004 = vmax.f32 %v3898, %v3986
        %v4005 = vmax.f32 %v3903, %v3991
        %v4006 = vmax.f32 %v3908, %v3996
        %v4007 = vmax.f32 %v3913, %v4001
        %v4008 = vmax.f32 %v4004, 0.0
        %v4009 = vmax.f32 %v4005, 0.0
        %v4010 = vmax.f32 %v4006, 0.0
        %v4011 = vmax.f32 %v4007, 0.0
        %4012 = vset.pattern.permute.xlu0 16
        %4013 = vperm.xlu0 %4012, %v3149
        %v4014 = vpop.permute.xlu0 %4013
        %4016 = vset.pattern.permute.xlu0 16
        %4017 = vperm.xlu0 %4016, %v3150
        %v4018 = vpop.permute.xlu0 %4017
        %4020 = vset.pattern.permute.xlu0 16
        %4021 = vperm.xlu0 %4020, %v3151
        %v4022 = vpop.permute.xlu0 %4021
        %4024 = vset.pattern.permute.xlu0 16
        %4025 = vperm.xlu0 %4024, %v3152
        %v4026 = vpop.permute.xlu0 %4025
        %v4028 = vmul.f32 %v4008, %v4014
        %v4029 = vmul.f32 %v4009, %v4018
        %v4030 = vmul.f32 %v4010, %v4022
        %v4031 = vmul.f32 %v4011, %v4026
        %4032 = vset.pattern.permute.xlu0 17
        %4033 = vperm.xlu0 %4032, %v3149
        %v4034 = vpop.permute.xlu0 %4033
        %4036 = vset.pattern.permute.xlu0 17
        %4037 = vperm.xlu0 %4036, %v3150
        %v4038 = vpop.permute.xlu0 %4037
        %4040 = vset.pattern.permute.xlu0 17
        %4041 = vperm.xlu0 %4040, %v3151
        %v4042 = vpop.permute.xlu0 %4041
        %4044 = vset.pattern.permute.xlu0 17
        %4045 = vperm.xlu0 %4044, %v3152
        %v4046 = vpop.permute.xlu0 %4045
        %v4048 = vadd.f32 %v4028, %v4034
        %v4049 = vadd.f32 %v4029, %v4038
        %v4050 = vadd.f32 %v4030, %v4042
        %v4051 = vadd.f32 %v4031, %v4046
        %4052 = vst.msk [vmem:[%s258] sm:$0xff] %vm928, %v1389
        %4053 = vst.msk [vmem:[%s287] sm:$0xff] %vm460, %v2564
        %4054 = vst.msk [vmem:[%s287 + $0x8] sm:$0xff] %vm460, %v2565
        %vm4055 = vcmask 15360
        %4056 = vst.msk [vmem:[%s292] sm:$0xff] %vm4055, %v4048
        %4057 = vst.msk [vmem:[%s292 + $0x8] sm:$0xff] %vm4055, %v4049
        %4058 = vst.msk [vmem:[%s292 + $0x10] sm:$0xff] %vm4055, %v4050
        %4059 = vst.msk [vmem:[%s292 + $0x18] sm:$0xff] %vm4055, %v4051
        %v4060 = vld [vmem:[%s2] sm:$0xff]
        %v4061 = vld [vmem:[%s2 + $0x8] sm:$0xff]
        %v4062 = vld [vmem:[%s2 + $0x10] sm:$0xff]
        %v4063 = vld [vmem:[%s2 + $0x18] sm:$0xff]
        %v4064 = vmax.f32 %v4048, 0.0
        %v4065 = vmax.f32 %v4049, 0.0
        %v4066 = vmax.f32 %v4050, 0.0
        %v4067 = vmax.f32 %v4051, 0.0
        %4069 = vset.pattern.permute.xlu0 18
        %4070 = vperm.xlu0 %4069, %v4060
        %v4071 = vpop.permute.xlu0 %4070
        %4074 = vset.pattern.permute.xlu0 18
        %4075 = vperm.xlu0 %4074, %v4061
        %v4076 = vpop.permute.xlu0 %4075
        %4079 = vset.pattern.permute.xlu0 18
        %4080 = vperm.xlu0 %4079, %v4062
        %v4081 = vpop.permute.xlu0 %4080
        %4084 = vset.pattern.permute.xlu0 18
        %4085 = vperm.xlu0 %4084, %v4063
        %v4086 = vpop.permute.xlu0 %4085
        %v4088 = vmul.f32 %v4064, %v4071
        %v4089 = vmul.f32 %v4065, %v4076
        %v4090 = vmul.f32 %v4066, %v4081
        %v4091 = vmul.f32 %v4067, %v4086
        %4092 = vset.pattern.permute.xlu0 19
        %4093 = vperm.xlu0 %4092, %v4060
        %v4094 = vpop.permute.xlu0 %4093
        %4096 = vset.pattern.permute.xlu0 19
        %4097 = vperm.xlu0 %4096, %v4061
        %v4098 = vpop.permute.xlu0 %4097
        %4100 = vset.pattern.permute.xlu0 19
        %4101 = vperm.xlu0 %4100, %v4062
        %v4102 = vpop.permute.xlu0 %4101
        %4104 = vset.pattern.permute.xlu0 19
        %4105 = vperm.xlu0 %4104, %v4063
        %v4106 = vpop.permute.xlu0 %4105
        %v4108 = vadd.f32 %v4088, %v4094
        %v4109 = vadd.f32 %v4089, %v4098
        %v4110 = vadd.f32 %v4090, %v4102
        %v4111 = vadd.f32 %v4091, %v4106
        %v4112 = vld [vmem:[#allocation2 + $0x8] sm:$0xff]
        %v4113 = vld [vmem:[#allocation2 + $0x10] sm:$0xff]
        %v4114 = vld [vmem:[#allocation2 + $0x30] sm:$0xff]
        %v4115 = vld [vmem:[#allocation2 + $0x38] sm:$0xff]
        %v4116 = vld [vmem:[#allocation2 + $0x58] sm:$0xff]
        %v4117 = vld [vmem:[#allocation2 + $0x60] sm:$0xff]
        %v4118 = vld [vmem:[#allocation2 + $0x80] sm:$0xff]
        %v4119 = vld [vmem:[#allocation2 + $0x88] sm:$0xff]
        %4128 = vrot.lane.b32.xlu0 %v4112, 4
        %v4129 = vpop.permute.xlu0 %4128
        %4130 = vrot.lane.b32.xlu0 %v4113, 4
        %v4131 = vpop.permute.xlu0 %4130
        %4132 = vrot.lane.b32.xlu0 %v4114, 4
        %v4133 = vpop.permute.xlu0 %4132
        %4134 = vrot.lane.b32.xlu0 %v4115, 4
        %v4135 = vpop.permute.xlu0 %4134
        %4136 = vrot.lane.b32.xlu0 %v4116, 4
        %v4137 = vpop.permute.xlu0 %4136
        %4138 = vrot.lane.b32.xlu0 %v4117, 4
        %v4139 = vpop.permute.xlu0 %4138
        %4140 = vrot.lane.b32.xlu0 %v4118, 4
        %v4141 = vpop.permute.xlu0 %4140
        %4142 = vrot.lane.b32.xlu0 %v4119, 4
        %v4143 = vpop.permute.xlu0 %4142
        %v4144 = vsel %vm460, %v4129, %v4131
        %v4145 = vsel %vm460, %v4133, %v4135
        %v4146 = vsel %vm460, %v4137, %v4139
        %v4147 = vsel %vm460, %v4141, %v4143
        %v4148 = vsel %vm3411, %v4144, 0
        %v4150 = vsel %vm3411, %v4145, 0
        %v4152 = vsel %vm3411, %v4146, 0
        %v4154 = vsel %vm3411, %v4147, 0
        %4156 = vmatprep.subr.mxu0 0.0
        %4157 = vmatpush1.msra.mxu0 %v4108
        %4158 = vmatprep.subr.mxu0 0.0
        %4159 = vmatpush1.msra.mxu0 %v4109
        %4160 = vmatprep.subr.mxu0 0.0
        %4161 = vmatpush1.msra.mxu0 %v4110
        %4162 = vmatprep.subr.mxu0 0.0
        %4163 = vmatpush1.msra.mxu0 %v4111
        %4164 = vmatprep.subr.mxu0 0.0
        %4165 = vmatpush1.msra.mxu0 0.0
        %4166 = vmatprep.subr.mxu0 0.0
        %4167 = vmatpush1.msra.mxu0 0.0
        %4168 = vmatprep.subr.mxu0 0.0
        %4169 = vmatpush1.msra.mxu0 0.0
        %4170 = vmatprep.subr.mxu0 0.0
        %4171 = vmatpush1.msra.mxu0 0.0
        %4172 = vmatprep.subr.mxu0 0.0
        %4173 = vmatpush1.msra.mxu0 0.0
        %4174 = vmatprep.subr.mxu0 0.0
        %4175 = vmatpush1.msra.mxu0 0.0
        %4176 = vmatprep.subr.mxu0 0.0
        %4177 = vmatpush1.msra.mxu0 0.0
        %4178 = vmatprep.subr.mxu0 0.0
        %4179 = vmatpush1.msra.mxu0 0.0
        %4180 = vmatprep.subr.mxu0 0.0
        %4181 = vmatpush1.msra.mxu0 0.0
        %4182 = vmatprep.subr.mxu0 0.0
        %4183 = vmatpush1.msra.mxu0 0.0
        %4184 = vmatprep.subr.mxu0 0.0
        %4185 = vmatpush1.msra.mxu0 0.0
        %4186 = vmatprep.subr.mxu0 0.0
        %4187 = vmatpush1.msra.mxu0 0.0
        %4188 = vmatprep.subr.mxu0 0.0
        %4189 = vmatpush1.msra.mxu0 0.0
        %4190 = vmatprep.subr.mxu0 0.0
        %4191 = vmatpush1.msra.mxu0 0.0
        %4192 = vmatprep.subr.mxu0 0.0
        %4193 = vmatpush1.msra.mxu0 0.0
        %4194 = vmatprep.subr.mxu0 0.0
        %4195 = vmatpush1.msra.mxu0 0.0
        %4196 = vmatprep.subr.mxu0 0.0
        %4197 = vmatpush1.msra.mxu0 0.0
        %4198 = vmatprep.subr.mxu0 0.0
        %4199 = vmatpush1.msra.mxu0 0.0
        %4200 = vmatprep.subr.mxu0 0.0
        %4201 = vmatpush1.msra.mxu0 0.0
        %4202 = vmatprep.subr.mxu0 0.0
        %4203 = vmatpush1.msra.mxu0 0.0
        %4204 = vmatprep.subr.mxu0 0.0
        %4205 = vmatpush1.msra.mxu0 0.0
        %4206 = vmatprep.subr.mxu0 0.0
        %4207 = vmatpush1.msra.mxu0 0.0
        %4208 = vmatprep.subr.mxu0 0.0
        %4209 = vmatpush1.msra.mxu0 0.0
        %4210 = vmatprep.subr.mxu0 0.0
        %4211 = vmatpush1.msra.mxu0 0.0
        %4212 = vmatprep.subr.mxu0 0.0
        %4213 = vmatpush1.msra.mxu0 0.0
        %4214 = vmatprep.subr.mxu0 0.0
        %4215 = vmatpush1.msra.mxu0 0.0
        %4216 = vmatprep.subr.mxu0 0.0
        %4217 = vmatpush1.msra.mxu0 0.0
        %4218 = vmatprep.subr.mxu0 0.0
        %4219 = vmatpush1.msra.mxu0 0.0
        %4220 = vmatprep.mubr.f32.mxu0 0.0
        %4221 = vmatmul.mubr.f32.gmra.mrb[0].mxu0 %v4148
        %v4222 = vpop.f32.mrb[0].mxu0
        %v4223 = vadd.f32 0.0, %v4222
        %v4224 = vpop.f32.mrb[0].mxu0
        %4225 = vmatprep.mubr.f32.mxu0 0.0
        %4226 = vmatmul.mubr.f32.gmra.mrb[0].mxu0 %v4150
        %v4227 = vpop.f32.mrb[0].mxu0
        %v4228 = vadd.f32 0.0, %v4227
        %v4229 = vpop.f32.mrb[0].mxu0
        %4230 = vmatprep.mubr.f32.mxu0 0.0
        %4231 = vmatmul.mubr.f32.gmra.mrb[0].mxu0 %v4152
        %v4232 = vpop.f32.mrb[0].mxu0
        %v4233 = vadd.f32 0.0, %v4232
        %v4234 = vpop.f32.mrb[0].mxu0
        %4235 = vmatprep.mubr.f32.mxu0 0.0
        %4236 = vmatmul.mubr.f32.gmra.mrb[0].mxu0 %v4154
        %v4237 = vpop.f32.mrb[0].mxu0
        %v4238 = vadd.f32 0.0, %v4237
        %v4239 = vpop.f32.mrb[0].mxu0
        %4240 = vdwg.mxu0
        %v4241 = vmul.u32 %v300, 2
        %vm4242 = vcmp.eq.s32.totalorder %v303, %v4241
        %v4243 = vsel %vm4242, 1.0, 0.0
        %4244 = vrot.lane.b32.xlu0 %v4113, 100
        %v4245 = vpop.permute.xlu0 %4244
        %4246 = vrot.lane.b32.xlu0 %v4115, 100
        %v4247 = vpop.permute.xlu0 %4246
        %4248 = vrot.lane.b32.xlu0 %v4117, 100
        %v4249 = vpop.permute.xlu0 %4248
        %4250 = vrot.lane.b32.xlu0 %v4119, 100
        %v4251 = vpop.permute.xlu0 %4250
        %v4252 = vsel %vm3411, %v4245, 0
        %v4254 = vsel %vm3411, %v4247, 0
        %v4256 = vsel %vm3411, %v4249, 0
        %v4258 = vsel %vm3411, %v4251, 0
        %4260 = vmatprep.subr.mxu0 0.0
        %4261 = vmatpush1.msra.mxu0 %v4108
        %4262 = vmatprep.subr.mxu0 0.0
        %4263 = vmatpush1.msra.mxu0 %v4109
        %4264 = vmatprep.subr.mxu0 0.0
        %4265 = vmatpush1.msra.mxu0 %v4110
        %4266 = vmatprep.subr.mxu0 0.0
        %4267 = vmatpush1.msra.mxu0 %v4111
        %4268 = vmatprep.subr.mxu0 0.0
        %4269 = vmatpush1.msra.mxu0 0.0
        %4270 = vmatprep.subr.mxu0 0.0
        %4271 = vmatpush1.msra.mxu0 0.0
        %4272 = vmatprep.subr.mxu0 0.0
        %4273 = vmatpush1.msra.mxu0 0.0
        %4274 = vmatprep.subr.mxu0 0.0
        %4275 = vmatpush1.msra.mxu0 0.0
        %4276 = vmatprep.subr.mxu0 0.0
        %4277 = vmatpush1.msra.mxu0 0.0
        %4278 = vmatprep.subr.mxu0 0.0
        %4279 = vmatpush1.msra.mxu0 0.0
        %4280 = vmatprep.subr.mxu0 0.0
        %4281 = vmatpush1.msra.mxu0 0.0
        %4282 = vmatprep.subr.mxu0 0.0
        %4283 = vmatpush1.msra.mxu0 0.0
        %4284 = vmatprep.subr.mxu0 0.0
        %4285 = vmatpush1.msra.mxu0 0.0
        %4286 = vmatprep.subr.mxu0 0.0
        %4287 = vmatpush1.msra.mxu0 0.0
        %4288 = vmatprep.subr.mxu0 0.0
        %4289 = vmatpush1.msra.mxu0 0.0
        %4290 = vmatprep.subr.mxu0 0.0
        %4291 = vmatpush1.msra.mxu0 0.0
        %4292 = vmatprep.subr.mxu0 0.0
        %4293 = vmatpush1.msra.mxu0 0.0
        %4294 = vmatprep.subr.mxu0 0.0
        %4295 = vmatpush1.msra.mxu0 0.0
        %4296 = vmatprep.subr.mxu0 0.0
        %4297 = vmatpush1.msra.mxu0 0.0
        %4298 = vmatprep.subr.mxu0 0.0
        %4299 = vmatpush1.msra.mxu0 0.0
        %4300 = vmatprep.subr.mxu0 0.0
        %4301 = vmatpush1.msra.mxu0 0.0
        %4302 = vmatprep.subr.mxu0 0.0
        %4303 = vmatpush1.msra.mxu0 0.0
        %4304 = vmatprep.subr.mxu0 0.0
        %4305 = vmatpush1.msra.mxu0 0.0
        %4306 = vmatprep.subr.mxu0 0.0
        %4307 = vmatpush1.msra.mxu0 0.0
        %4308 = vmatprep.subr.mxu0 0.0
        %4309 = vmatpush1.msra.mxu0 0.0
        %4310 = vmatprep.subr.mxu0 0.0
        %4311 = vmatpush1.msra.mxu0 0.0
        %4312 = vmatprep.subr.mxu0 0.0
        %4313 = vmatpush1.msra.mxu0 0.0
        %4314 = vmatprep.subr.mxu0 0.0
        %4315 = vmatpush1.msra.mxu0 0.0
        %4316 = vmatprep.subr.mxu0 0.0
        %4317 = vmatpush1.msra.mxu0 0.0
        %4318 = vmatprep.subr.mxu0 0.0
        %4319 = vmatpush1.msra.mxu0 0.0
        %4320 = vmatprep.subr.mxu0 0.0
        %4321 = vmatpush1.msra.mxu0 0.0
        %4322 = vmatprep.subr.mxu0 0.0
        %4323 = vmatpush1.msra.mxu0 0.0
        %4324 = vmatprep.mubr.f32.mxu0 0.0
        %4325 = vmatmul.mubr.f32.gmra.mrb[0].mxu0 %v4252
        %v4326 = vpop.f32.mrb[0].mxu0
        %v4327 = vadd.f32 0.0, %v4326
        %v4328 = vpop.f32.mrb[0].mxu0
        %4329 = vmatprep.mubr.f32.mxu0 0.0
        %4330 = vmatmul.mubr.f32.gmra.mrb[0].mxu0 %v4254
        %v4331 = vpop.f32.mrb[0].mxu0
        %v4332 = vadd.f32 0.0, %v4331
        %v4333 = vpop.f32.mrb[0].mxu0
        %4334 = vmatprep.mubr.f32.mxu0 0.0
        %4335 = vmatmul.mubr.f32.gmra.mrb[0].mxu0 %v4256
        %v4336 = vpop.f32.mrb[0].mxu0
        %v4337 = vadd.f32 0.0, %v4336
        %v4338 = vpop.f32.mrb[0].mxu0
        %4339 = vmatprep.mubr.f32.mxu0 0.0
        %4340 = vmatmul.mubr.f32.gmra.mrb[0].mxu0 %v4258
        %v4341 = vpop.f32.mrb[0].mxu0
        %v4342 = vadd.f32 0.0, %v4341
        %v4343 = vpop.f32.mrb[0].mxu0
        %4344 = vdwg.mxu0
        %v4345 = vadd.s32 %v4241, 1
        %vm4346 = vcmp.eq.s32.totalorder %v303, %v4345
        %v4347 = vsel %vm4346, 1.0, 0.0
        %v4349 = vsel %vm4055, %v4327, 0
        %v4352 = vsel %vm4055, %v4332, 0
        %v4355 = vsel %vm4055, %v4337, 0
        %v4358 = vsel %vm4055, %v4342, 0
        %vm4360 = vcmask 1041408
        %v4362 = vsel %vm4360, %v4347, 0
        %4364 = vmatprep.subr.mxu0 0.0
        %4365 = vmatpush1.msra.mxu0 %v4362
        %4366 = vmatprep.subr.mxu0 0.0
        %4367 = vmatpush1.msra.mxu0 0.0
        %4368 = vmatprep.subr.mxu0 0.0
        %4369 = vmatpush1.msra.mxu0 0.0
        %4370 = vmatprep.subr.mxu0 0.0
        %4371 = vmatpush1.msra.mxu0 0.0
        %4372 = vmatprep.subr.mxu0 0.0
        %4373 = vmatpush1.msra.mxu0 0.0
        %4374 = vmatprep.subr.mxu0 0.0
        %4375 = vmatpush1.msra.mxu0 0.0
        %4376 = vmatprep.subr.mxu0 0.0
        %4377 = vmatpush1.msra.mxu0 0.0
        %4378 = vmatprep.subr.mxu0 0.0
        %4379 = vmatpush1.msra.mxu0 0.0
        %4380 = vmatprep.subr.mxu0 0.0
        %4381 = vmatpush1.msra.mxu0 0.0
        %4382 = vmatprep.subr.mxu0 0.0
        %4383 = vmatpush1.msra.mxu0 0.0
        %4384 = vmatprep.subr.mxu0 0.0
        %4385 = vmatpush1.msra.mxu0 0.0
        %4386 = vmatprep.subr.mxu0 0.0
        %4387 = vmatpush1.msra.mxu0 0.0
        %4388 = vmatprep.subr.mxu0 0.0
        %4389 = vmatpush1.msra.mxu0 0.0
        %4390 = vmatprep.subr.mxu0 0.0
        %4391 = vmatpush1.msra.mxu0 0.0
        %4392 = vmatprep.subr.mxu0 0.0
        %4393 = vmatpush1.msra.mxu0 0.0
        %4394 = vmatprep.subr.mxu0 0.0
        %4395 = vmatpush1.msra.mxu0 0.0
        %4396 = vmatprep.subr.mxu0 0.0
        %4397 = vmatpush1.msra.mxu0 0.0
        %4398 = vmatprep.subr.mxu0 0.0
        %4399 = vmatpush1.msra.mxu0 0.0
        %4400 = vmatprep.subr.mxu0 0.0
        %4401 = vmatpush1.msra.mxu0 0.0
        %4402 = vmatprep.subr.mxu0 0.0
        %4403 = vmatpush1.msra.mxu0 0.0
        %4404 = vmatprep.subr.mxu0 0.0
        %4405 = vmatpush1.msra.mxu0 0.0
        %4406 = vmatprep.subr.mxu0 0.0
        %4407 = vmatpush1.msra.mxu0 0.0
        %4408 = vmatprep.subr.mxu0 0.0
        %4409 = vmatpush1.msra.mxu0 0.0
        %4410 = vmatprep.subr.mxu0 0.0
        %4411 = vmatpush1.msra.mxu0 0.0
        %4412 = vmatprep.subr.mxu0 0.0
        %4413 = vmatpush1.msra.mxu0 0.0
        %4414 = vmatprep.subr.mxu0 0.0
        %4415 = vmatpush1.msra.mxu0 0.0
        %4416 = vmatprep.subr.mxu0 0.0
        %4417 = vmatpush1.msra.mxu0 0.0
        %4418 = vmatprep.subr.mxu0 0.0
        %4419 = vmatpush1.msra.mxu0 0.0
        %4420 = vmatprep.subr.mxu0 0.0
        %4421 = vmatpush1.msra.mxu0 0.0
        %4422 = vmatprep.subr.mxu0 0.0
        %4423 = vmatpush1.msra.mxu0 0.0
        %4424 = vmatprep.subr.mxu0 0.0
        %4425 = vmatpush1.msra.mxu0 0.0
        %4426 = vmatprep.subr.mxu0 0.0
        %4427 = vmatpush1.msra.mxu0 0.0
        %4428 = vmatprep.mubr.f32.mxu0 0.0
        %4429 = vmatmul.mubr.f32.gmra.mrb[0].mxu0 %v4349
        %v4430 = vpop.f32.mrb[0].mxu0
        %v4431 = vadd.f32 0.0, %v4430
        %v4432 = vpop.f32.mrb[0].mxu0
        %4433 = vmatprep.mubr.f32.mxu0 0.0
        %4434 = vmatmul.mubr.f32.gmra.mrb[0].mxu0 %v4352
        %v4435 = vpop.f32.mrb[0].mxu0
        %v4436 = vadd.f32 0.0, %v4435
        %v4437 = vpop.f32.mrb[0].mxu0
        %4438 = vmatprep.mubr.f32.mxu0 0.0
        %4439 = vmatmul.mubr.f32.gmra.mrb[0].mxu0 %v4355
        %v4440 = vpop.f32.mrb[0].mxu0
        %v4441 = vadd.f32 0.0, %v4440
        %v4442 = vpop.f32.mrb[0].mxu0
        %4443 = vmatprep.mubr.f32.mxu0 0.0
        %4444 = vmatmul.mubr.f32.gmra.mrb[0].mxu0 %v4358
        %v4445 = vpop.f32.mrb[0].mxu0
        %v4446 = vadd.f32 0.0, %v4445
        %v4447 = vpop.f32.mrb[0].mxu0
        %4448 = vdwg.mxu0
        %v4450 = vsel %vm4055, %v4223, 0
        %v4453 = vsel %vm4055, %v4228, 0
        %v4456 = vsel %vm4055, %v4233, 0
        %v4459 = vsel %vm4055, %v4238, 0
        %v4462 = vsel %vm4360, %v4243, 0
        %4464 = vmatprep.subr.mxu0 0.0
        %4465 = vmatpush1.msra.mxu0 %v4462
        %4466 = vmatprep.subr.mxu0 0.0
        %4467 = vmatpush1.msra.mxu0 0.0
        %4468 = vmatprep.subr.mxu0 0.0
        %4469 = vmatpush1.msra.mxu0 0.0
        %4470 = vmatprep.subr.mxu0 0.0
        %4471 = vmatpush1.msra.mxu0 0.0
        %4472 = vmatprep.subr.mxu0 0.0
        %4473 = vmatpush1.msra.mxu0 0.0
        %4474 = vmatprep.subr.mxu0 0.0
        %4475 = vmatpush1.msra.mxu0 0.0
        %4476 = vmatprep.subr.mxu0 0.0
        %4477 = vmatpush1.msra.mxu0 0.0
        %4478 = vmatprep.subr.mxu0 0.0
        %4479 = vmatpush1.msra.mxu0 0.0
        %4480 = vmatprep.subr.mxu0 0.0
        %4481 = vmatpush1.msra.mxu0 0.0
        %4482 = vmatprep.subr.mxu0 0.0
        %4483 = vmatpush1.msra.mxu0 0.0
        %4484 = vmatprep.subr.mxu0 0.0
        %4485 = vmatpush1.msra.mxu0 0.0
        %4486 = vmatprep.subr.mxu0 0.0
        %4487 = vmatpush1.msra.mxu0 0.0
        %4488 = vmatprep.subr.mxu0 0.0
        %4489 = vmatpush1.msra.mxu0 0.0
        %4490 = vmatprep.subr.mxu0 0.0
        %4491 = vmatpush1.msra.mxu0 0.0
        %4492 = vmatprep.subr.mxu0 0.0
        %4493 = vmatpush1.msra.mxu0 0.0
        %4494 = vmatprep.subr.mxu0 0.0
        %4495 = vmatpush1.msra.mxu0 0.0
        %4496 = vmatprep.subr.mxu0 0.0
        %4497 = vmatpush1.msra.mxu0 0.0
        %4498 = vmatprep.subr.mxu0 0.0
        %4499 = vmatpush1.msra.mxu0 0.0
        %4500 = vmatprep.subr.mxu0 0.0
        %4501 = vmatpush1.msra.mxu0 0.0
        %4502 = vmatprep.subr.mxu0 0.0
        %4503 = vmatpush1.msra.mxu0 0.0
        %4504 = vmatprep.subr.mxu0 0.0
        %4505 = vmatpush1.msra.mxu0 0.0
        %4506 = vmatprep.subr.mxu0 0.0
        %4507 = vmatpush1.msra.mxu0 0.0
        %4508 = vmatprep.subr.mxu0 0.0
        %4509 = vmatpush1.msra.mxu0 0.0
        %4510 = vmatprep.subr.mxu0 0.0
        %4511 = vmatpush1.msra.mxu0 0.0
        %4512 = vmatprep.subr.mxu0 0.0
        %4513 = vmatpush1.msra.mxu0 0.0
        %4514 = vmatprep.subr.mxu0 0.0
        %4515 = vmatpush1.msra.mxu0 0.0
        %4516 = vmatprep.subr.mxu0 0.0
        %4517 = vmatpush1.msra.mxu0 0.0
        %4518 = vmatprep.subr.mxu0 0.0
        %4519 = vmatpush1.msra.mxu0 0.0
        %4520 = vmatprep.subr.mxu0 0.0
        %4521 = vmatpush1.msra.mxu0 0.0
        %4522 = vmatprep.subr.mxu0 0.0
        %4523 = vmatpush1.msra.mxu0 0.0
        %4524 = vmatprep.subr.mxu0 0.0
        %4525 = vmatpush1.msra.mxu0 0.0
        %4526 = vmatprep.subr.mxu0 0.0
        %4527 = vmatpush1.msra.mxu0 0.0
        %4528 = vmatprep.mubr.f32.mxu0 0.0
        %4529 = vmatmul.mubr.f32.gmra.mrb[0].mxu0 %v4450
        %v4530 = vpop.f32.mrb[0].mxu0
        %v4531 = vadd.f32 %v4431, %v4530
        %v4532 = vpop.f32.mrb[0].mxu0
        %4533 = vmatprep.mubr.f32.mxu0 0.0
        %4534 = vmatmul.mubr.f32.gmra.mrb[0].mxu0 %v4453
        %v4535 = vpop.f32.mrb[0].mxu0
        %v4536 = vadd.f32 %v4436, %v4535
        %v4537 = vpop.f32.mrb[0].mxu0
        %4538 = vmatprep.mubr.f32.mxu0 0.0
        %4539 = vmatmul.mubr.f32.gmra.mrb[0].mxu0 %v4456
        %v4540 = vpop.f32.mrb[0].mxu0
        %v4541 = vadd.f32 %v4441, %v4540
        %v4542 = vpop.f32.mrb[0].mxu0
        %4543 = vmatprep.mubr.f32.mxu0 0.0
        %4544 = vmatmul.mubr.f32.gmra.mrb[0].mxu0 %v4459
        %v4545 = vpop.f32.mrb[0].mxu0
        %v4546 = vadd.f32 %v4446, %v4545
        %v4547 = vpop.f32.mrb[0].mxu0
        %4548 = vdwg.mxu0
        %4549 = vset.pattern.permute.xlu0 20
        %4550 = vperm.xlu0 %4549, %v4060
        %v4551 = vpop.permute.xlu0 %4550
        %4553 = vset.pattern.permute.xlu0 20
        %4554 = vperm.xlu0 %4553, %v4061
        %v4555 = vpop.permute.xlu0 %4554
        %4557 = vset.pattern.permute.xlu0 20
        %4558 = vperm.xlu0 %4557, %v4062
        %v4559 = vpop.permute.xlu0 %4558
        %4561 = vset.pattern.permute.xlu0 20
        %4562 = vperm.xlu0 %4561, %v4063
        %v4563 = vpop.permute.xlu0 %4562
        %v4565 = vadd.f32 %v4531, %v4551
        %v4566 = vadd.f32 %v4536, %v4555
        %v4567 = vadd.f32 %v4541, %v4559
        %v4568 = vadd.f32 %v4546, %v4563
        %v4569 = vmax.f32 %v4565, 0.0
        %v4570 = vmax.f32 %v4566, 0.0
        %v4571 = vmax.f32 %v4567, 0.0
        %v4572 = vmax.f32 %v4568, 0.0
        %4573 = vset.pattern.permute.xlu0 21
        %4574 = vperm.xlu0 %4573, %v4060
        %v4575 = vpop.permute.xlu0 %4574
        %4577 = vset.pattern.permute.xlu0 21
        %4578 = vperm.xlu0 %4577, %v4061
        %v4579 = vpop.permute.xlu0 %4578
        %4581 = vset.pattern.permute.xlu0 21
        %4582 = vperm.xlu0 %4581, %v4062
        %v4583 = vpop.permute.xlu0 %4582
        %4585 = vset.pattern.permute.xlu0 21
        %4586 = vperm.xlu0 %4585, %v4063
        %v4587 = vpop.permute.xlu0 %4586
        %v4589 = vmul.f32 %v4569, %v4575
        %v4590 = vmul.f32 %v4570, %v4579
        %v4591 = vmul.f32 %v4571, %v4583
        %v4592 = vmul.f32 %v4572, %v4587
        %4593 = vset.pattern.permute.xlu0 22
        %4594 = vperm.xlu0 %4593, %v4060
        %v4595 = vpop.permute.xlu0 %4594
        %4597 = vset.pattern.permute.xlu0 22
        %4598 = vperm.xlu0 %4597, %v4061
        %v4599 = vpop.permute.xlu0 %4598
        %4601 = vset.pattern.permute.xlu0 22
        %4602 = vperm.xlu0 %4601, %v4062
        %v4603 = vpop.permute.xlu0 %4602
        %4605 = vset.pattern.permute.xlu0 22
        %4606 = vperm.xlu0 %4605, %v4063
        %v4607 = vpop.permute.xlu0 %4606
        %v4609 = vadd.f32 %v4589, %v4595
        %v4610 = vadd.f32 %v4590, %v4599
        %v4611 = vadd.f32 %v4591, %v4603
        %v4612 = vadd.f32 %v4592, %v4607
        %v4613 = vld [vmem:[#allocation2 + $0x10] sm:$0xff]
        %v4614 = vld [vmem:[#allocation2 + $0x38] sm:$0xff]
        %v4616 = vsel %vm460, %v4609, 0
        %v4619 = vsel %vm460, %v4610, 0
        %v4622 = vsel %vm460, %v4611, 0
        %v4625 = vsel %vm460, %v4612, 0
        %4627 = vmatprep.subr.mxu0 0.0
        %4628 = vmatpush1.msra.mxu0 %v2577
        %4629 = vmatprep.subr.mxu0 0.0
        %4630 = vmatpush1.msra.mxu0 0.0
        %4631 = vmatprep.subr.mxu0 0.0
        %4632 = vmatpush1.msra.mxu0 0.0
        %4633 = vmatprep.subr.mxu0 0.0
        %4634 = vmatpush1.msra.mxu0 0.0
        %4635 = vmatprep.subr.mxu0 0.0
        %4636 = vmatpush1.msra.mxu0 0.0
        %4637 = vmatprep.subr.mxu0 0.0
        %4638 = vmatpush1.msra.mxu0 0.0
        %4639 = vmatprep.subr.mxu0 0.0
        %4640 = vmatpush1.msra.mxu0 0.0
        %4641 = vmatprep.subr.mxu0 0.0
        %4642 = vmatpush1.msra.mxu0 0.0
        %4643 = vmatprep.subr.mxu0 0.0
        %4644 = vmatpush1.msra.mxu0 0.0
        %4645 = vmatprep.subr.mxu0 0.0
        %4646 = vmatpush1.msra.mxu0 0.0
        %4647 = vmatprep.subr.mxu0 0.0
        %4648 = vmatpush1.msra.mxu0 0.0
        %4649 = vmatprep.subr.mxu0 0.0
        %4650 = vmatpush1.msra.mxu0 0.0
        %4651 = vmatprep.subr.mxu0 0.0
        %4652 = vmatpush1.msra.mxu0 0.0
        %4653 = vmatprep.subr.mxu0 0.0
        %4654 = vmatpush1.msra.mxu0 0.0
        %4655 = vmatprep.subr.mxu0 0.0
        %4656 = vmatpush1.msra.mxu0 0.0
        %4657 = vmatprep.subr.mxu0 0.0
        %4658 = vmatpush1.msra.mxu0 0.0
        %4659 = vmatprep.subr.mxu0 0.0
        %4660 = vmatpush1.msra.mxu0 0.0
        %4661 = vmatprep.subr.mxu0 0.0
        %4662 = vmatpush1.msra.mxu0 0.0
        %4663 = vmatprep.subr.mxu0 0.0
        %4664 = vmatpush1.msra.mxu0 0.0
        %4665 = vmatprep.subr.mxu0 0.0
        %4666 = vmatpush1.msra.mxu0 0.0
        %4667 = vmatprep.subr.mxu0 0.0
        %4668 = vmatpush1.msra.mxu0 0.0
        %4669 = vmatprep.subr.mxu0 0.0
        %4670 = vmatpush1.msra.mxu0 0.0
        %4671 = vmatprep.subr.mxu0 0.0
        %4672 = vmatpush1.msra.mxu0 0.0
        %4673 = vmatprep.subr.mxu0 0.0
        %4674 = vmatpush1.msra.mxu0 0.0
        %4675 = vmatprep.subr.mxu0 0.0
        %4676 = vmatpush1.msra.mxu0 0.0
        %4677 = vmatprep.subr.mxu0 0.0
        %4678 = vmatpush1.msra.mxu0 0.0
        %4679 = vmatprep.subr.mxu0 0.0
        %4680 = vmatpush1.msra.mxu0 0.0
        %4681 = vmatprep.subr.mxu0 0.0
        %4682 = vmatpush1.msra.mxu0 0.0
        %4683 = vmatprep.subr.mxu0 0.0
        %4684 = vmatpush1.msra.mxu0 0.0
        %4685 = vmatprep.subr.mxu0 0.0
        %4686 = vmatpush1.msra.mxu0 0.0
        %4687 = vmatprep.subr.mxu0 0.0
        %4688 = vmatpush1.msra.mxu0 0.0
        %4689 = vmatprep.subr.mxu0 0.0
        %4690 = vmatpush1.msra.mxu0 0.0
        %4691 = vmatprep.mubr.f32.mxu0 0.0
        %4692 = vmatmul.mubr.f32.gmra.mrb[0].mxu0 %v4616
        %v4693 = vpop.f32.mrb[0].mxu0
        %v4694 = vadd.f32 0.0, %v4693
        %v4695 = vpop.f32.mrb[0].mxu0
        %4696 = vmatprep.mubr.f32.mxu0 0.0
        %4697 = vmatmul.mubr.f32.gmra.mrb[0].mxu0 %v4619
        %v4698 = vpop.f32.mrb[0].mxu0
        %v4699 = vadd.f32 0.0, %v4698
        %v4700 = vpop.f32.mrb[0].mxu0
        %4701 = vmatprep.mubr.f32.mxu0 0.0
        %4702 = vmatmul.mubr.f32.gmra.mrb[0].mxu0 %v4622
        %v4703 = vpop.f32.mrb[0].mxu0
        %v4704 = vadd.f32 0.0, %v4703
        %v4705 = vpop.f32.mrb[0].mxu0
        %4706 = vmatprep.mubr.f32.mxu0 0.0
        %4707 = vmatmul.mubr.f32.gmra.mrb[0].mxu0 %v4625
        %v4708 = vpop.f32.mrb[0].mxu0
        %v4709 = vadd.f32 0.0, %v4708
        %v4710 = vpop.f32.mrb[0].mxu0
        %4711 = vdwg.mxu0
        %4712 = vmatprep.subr.mxu0 0.0
        %4713 = vmatpush1.msra.mxu0 %v2663
        %4714 = vmatprep.subr.mxu0 0.0
        %4715 = vmatpush1.msra.mxu0 0.0
        %4716 = vmatprep.subr.mxu0 0.0
        %4717 = vmatpush1.msra.mxu0 0.0
        %4718 = vmatprep.subr.mxu0 0.0
        %4719 = vmatpush1.msra.mxu0 0.0
        %4720 = vmatprep.subr.mxu0 0.0
        %4721 = vmatpush1.msra.mxu0 0.0
        %4722 = vmatprep.subr.mxu0 0.0
        %4723 = vmatpush1.msra.mxu0 0.0
        %4724 = vmatprep.subr.mxu0 0.0
        %4725 = vmatpush1.msra.mxu0 0.0
        %4726 = vmatprep.subr.mxu0 0.0
        %4727 = vmatpush1.msra.mxu0 0.0
        %4728 = vmatprep.subr.mxu0 0.0
        %4729 = vmatpush1.msra.mxu0 0.0
        %4730 = vmatprep.subr.mxu0 0.0
        %4731 = vmatpush1.msra.mxu0 0.0
        %4732 = vmatprep.subr.mxu0 0.0
        %4733 = vmatpush1.msra.mxu0 0.0
        %4734 = vmatprep.subr.mxu0 0.0
        %4735 = vmatpush1.msra.mxu0 0.0
        %4736 = vmatprep.subr.mxu0 0.0
        %4737 = vmatpush1.msra.mxu0 0.0
        %4738 = vmatprep.subr.mxu0 0.0
        %4739 = vmatpush1.msra.mxu0 0.0
        %4740 = vmatprep.subr.mxu0 0.0
        %4741 = vmatpush1.msra.mxu0 0.0
        %4742 = vmatprep.subr.mxu0 0.0
        %4743 = vmatpush1.msra.mxu0 0.0
        %4744 = vmatprep.subr.mxu0 0.0
        %4745 = vmatpush1.msra.mxu0 0.0
        %4746 = vmatprep.subr.mxu0 0.0
        %4747 = vmatpush1.msra.mxu0 0.0
        %4748 = vmatprep.subr.mxu0 0.0
        %4749 = vmatpush1.msra.mxu0 0.0
        %4750 = vmatprep.subr.mxu0 0.0
        %4751 = vmatpush1.msra.mxu0 0.0
        %4752 = vmatprep.subr.mxu0 0.0
        %4753 = vmatpush1.msra.mxu0 0.0
        %4754 = vmatprep.subr.mxu0 0.0
        %4755 = vmatpush1.msra.mxu0 0.0
        %4756 = vmatprep.subr.mxu0 0.0
        %4757 = vmatpush1.msra.mxu0 0.0
        %4758 = vmatprep.subr.mxu0 0.0
        %4759 = vmatpush1.msra.mxu0 0.0
        %4760 = vmatprep.subr.mxu0 0.0
        %4761 = vmatpush1.msra.mxu0 0.0
        %4762 = vmatprep.subr.mxu0 0.0
        %4763 = vmatpush1.msra.mxu0 0.0
        %4764 = vmatprep.subr.mxu0 0.0
        %4765 = vmatpush1.msra.mxu0 0.0
        %4766 = vmatprep.subr.mxu0 0.0
        %4767 = vmatpush1.msra.mxu0 0.0
        %4768 = vmatprep.subr.mxu0 0.0
        %4769 = vmatpush1.msra.mxu0 0.0
        %4770 = vmatprep.subr.mxu0 0.0
        %4771 = vmatpush1.msra.mxu0 0.0
        %4772 = vmatprep.subr.mxu0 0.0
        %4773 = vmatpush1.msra.mxu0 0.0
        %4774 = vmatprep.subr.mxu0 0.0
        %4775 = vmatpush1.msra.mxu0 0.0
        %4776 = vmatprep.mubr.f32.mxu0 0.0
        %4777 = vmatmul.mubr.f32.gmra.mrb[0].mxu0 %v4616
        %v4778 = vpop.f32.mrb[0].mxu0
        %v4779 = vadd.f32 0.0, %v4778
        %v4780 = vpop.f32.mrb[0].mxu0
        %4781 = vmatprep.mubr.f32.mxu0 0.0
        %4782 = vmatmul.mubr.f32.gmra.mrb[0].mxu0 %v4619
        %v4783 = vpop.f32.mrb[0].mxu0
        %v4784 = vadd.f32 0.0, %v4783
        %v4785 = vpop.f32.mrb[0].mxu0
        %4786 = vmatprep.mubr.f32.mxu0 0.0
        %4787 = vmatmul.mubr.f32.gmra.mrb[0].mxu0 %v4622
        %v4788 = vpop.f32.mrb[0].mxu0
        %v4789 = vadd.f32 0.0, %v4788
        %v4790 = vpop.f32.mrb[0].mxu0
        %4791 = vmatprep.mubr.f32.mxu0 0.0
        %4792 = vmatmul.mubr.f32.gmra.mrb[0].mxu0 %v4625
        %v4793 = vpop.f32.mrb[0].mxu0
        %v4794 = vadd.f32 0.0, %v4793
        %v4795 = vpop.f32.mrb[0].mxu0
        %4796 = vdwg.mxu0
        %4799 = vrot.lane.b32.xlu0 %v4613, 36
        %v4800 = vpop.permute.xlu0 %4799
        %4801 = vrot.lane.b32.xlu0 %v4614, 36
        %v4802 = vpop.permute.xlu0 %4801
        %v4803 = vsel %vm3411, %v4800, 0
        %v4805 = vsel %vm3411, %v4802, 0
        %4807 = vmatprep.subr.mxu0 0.0
        %4808 = vmatpush1.msra.mxu0 %v4779
        %4809 = vmatprep.subr.mxu0 0.0
        %4810 = vmatpush1.msra.mxu0 %v4784
        %4811 = vmatprep.subr.mxu0 0.0
        %4812 = vmatpush1.msra.mxu0 %v4789
        %4813 = vmatprep.subr.mxu0 0.0
        %4814 = vmatpush1.msra.mxu0 %v4794
        %4815 = vmatprep.subr.mxu0 0.0
        %4816 = vmatpush1.msra.mxu0 0.0
        %4817 = vmatprep.subr.mxu0 0.0
        %4818 = vmatpush1.msra.mxu0 0.0
        %4819 = vmatprep.subr.mxu0 0.0
        %4820 = vmatpush1.msra.mxu0 0.0
        %4821 = vmatprep.subr.mxu0 0.0
        %4822 = vmatpush1.msra.mxu0 0.0
        %4823 = vmatprep.subr.mxu0 0.0
        %4824 = vmatpush1.msra.mxu0 0.0
        %4825 = vmatprep.subr.mxu0 0.0
        %4826 = vmatpush1.msra.mxu0 0.0
        %4827 = vmatprep.subr.mxu0 0.0
        %4828 = vmatpush1.msra.mxu0 0.0
        %4829 = vmatprep.subr.mxu0 0.0
        %4830 = vmatpush1.msra.mxu0 0.0
        %4831 = vmatprep.subr.mxu0 0.0
        %4832 = vmatpush1.msra.mxu0 0.0
        %4833 = vmatprep.subr.mxu0 0.0
        %4834 = vmatpush1.msra.mxu0 0.0
        %4835 = vmatprep.subr.mxu0 0.0
        %4836 = vmatpush1.msra.mxu0 0.0
        %4837 = vmatprep.subr.mxu0 0.0
        %4838 = vmatpush1.msra.mxu0 0.0
        %4839 = vmatprep.subr.mxu0 0.0
        %4840 = vmatpush1.msra.mxu0 0.0
        %4841 = vmatprep.subr.mxu0 0.0
        %4842 = vmatpush1.msra.mxu0 0.0
        %4843 = vmatprep.subr.mxu0 0.0
        %4844 = vmatpush1.msra.mxu0 0.0
        %4845 = vmatprep.subr.mxu0 0.0
        %4846 = vmatpush1.msra.mxu0 0.0
        %4847 = vmatprep.subr.mxu0 0.0
        %4848 = vmatpush1.msra.mxu0 0.0
        %4849 = vmatprep.subr.mxu0 0.0
        %4850 = vmatpush1.msra.mxu0 0.0
        %4851 = vmatprep.subr.mxu0 0.0
        %4852 = vmatpush1.msra.mxu0 0.0
        %4853 = vmatprep.subr.mxu0 0.0
        %4854 = vmatpush1.msra.mxu0 0.0
        %4855 = vmatprep.subr.mxu0 0.0
        %4856 = vmatpush1.msra.mxu0 0.0
        %4857 = vmatprep.subr.mxu0 0.0
        %4858 = vmatpush1.msra.mxu0 0.0
        %4859 = vmatprep.subr.mxu0 0.0
        %4860 = vmatpush1.msra.mxu0 0.0
        %4861 = vmatprep.subr.mxu0 0.0
        %4862 = vmatpush1.msra.mxu0 0.0
        %4863 = vmatprep.subr.mxu0 0.0
        %4864 = vmatpush1.msra.mxu0 0.0
        %4865 = vmatprep.subr.mxu0 0.0
        %4866 = vmatpush1.msra.mxu0 0.0
        %4867 = vmatprep.subr.mxu0 0.0
        %4868 = vmatpush1.msra.mxu0 0.0
        %4869 = vmatprep.subr.mxu0 0.0
        %4870 = vmatpush1.msra.mxu0 0.0
        %4871 = vmatprep.mubr.f32.mxu0 0.0
        %4872 = vmatmul.mubr.f32.gmra.mrb[0].mxu0 %v4803
        %v4873 = vpop.f32.mrb[0].mxu0
        %v4874 = vadd.f32 0.0, %v4873
        %v4875 = vpop.f32.mrb[0].mxu0
        %4876 = vmatprep.mubr.f32.mxu0 0.0
        %4877 = vmatmul.mubr.f32.gmra.mrb[0].mxu0 %v4805
        %v4878 = vpop.f32.mrb[0].mxu0
        %v4879 = vadd.f32 0.0, %v4878
        %v4880 = vpop.f32.mrb[0].mxu0
        %4881 = vdwg.mxu0
        %4882 = vrot.lane.b32.xlu0 %v4613, 68
        %v4883 = vpop.permute.xlu0 %4882
        %4884 = vrot.lane.b32.xlu0 %v4614, 68
        %v4885 = vpop.permute.xlu0 %4884
        %v4886 = vsel %vm3411, %v4883, 0
        %v4888 = vsel %vm3411, %v4885, 0
        %4890 = vmatprep.subr.mxu0 0.0
        %4891 = vmatpush1.msra.mxu0 %v4694
        %4892 = vmatprep.subr.mxu0 0.0
        %4893 = vmatpush1.msra.mxu0 %v4699
        %4894 = vmatprep.subr.mxu0 0.0
        %4895 = vmatpush1.msra.mxu0 %v4704
        %4896 = vmatprep.subr.mxu0 0.0
        %4897 = vmatpush1.msra.mxu0 %v4709
        %4898 = vmatprep.subr.mxu0 0.0
        %4899 = vmatpush1.msra.mxu0 0.0
        %4900 = vmatprep.subr.mxu0 0.0
        %4901 = vmatpush1.msra.mxu0 0.0
        %4902 = vmatprep.subr.mxu0 0.0
        %4903 = vmatpush1.msra.mxu0 0.0
        %4904 = vmatprep.subr.mxu0 0.0
        %4905 = vmatpush1.msra.mxu0 0.0
        %4906 = vmatprep.subr.mxu0 0.0
        %4907 = vmatpush1.msra.mxu0 0.0
        %4908 = vmatprep.subr.mxu0 0.0
        %4909 = vmatpush1.msra.mxu0 0.0
        %4910 = vmatprep.subr.mxu0 0.0
        %4911 = vmatpush1.msra.mxu0 0.0
        %4912 = vmatprep.subr.mxu0 0.0
        %4913 = vmatpush1.msra.mxu0 0.0
        %4914 = vmatprep.subr.mxu0 0.0
        %4915 = vmatpush1.msra.mxu0 0.0
        %4916 = vmatprep.subr.mxu0 0.0
        %4917 = vmatpush1.msra.mxu0 0.0
        %4918 = vmatprep.subr.mxu0 0.0
        %4919 = vmatpush1.msra.mxu0 0.0
        %4920 = vmatprep.subr.mxu0 0.0
        %4921 = vmatpush1.msra.mxu0 0.0
        %4922 = vmatprep.subr.mxu0 0.0
        %4923 = vmatpush1.msra.mxu0 0.0
        %4924 = vmatprep.subr.mxu0 0.0
        %4925 = vmatpush1.msra.mxu0 0.0
        %4926 = vmatprep.subr.mxu0 0.0
        %4927 = vmatpush1.msra.mxu0 0.0
        %4928 = vmatprep.subr.mxu0 0.0
        %4929 = vmatpush1.msra.mxu0 0.0
        %4930 = vmatprep.subr.mxu0 0.0
        %4931 = vmatpush1.msra.mxu0 0.0
        %4932 = vmatprep.subr.mxu0 0.0
        %4933 = vmatpush1.msra.mxu0 0.0
        %4934 = vmatprep.subr.mxu0 0.0
        %4935 = vmatpush1.msra.mxu0 0.0
        %4936 = vmatprep.subr.mxu0 0.0
        %4937 = vmatpush1.msra.mxu0 0.0
        %4938 = vmatprep.subr.mxu0 0.0
        %4939 = vmatpush1.msra.mxu0 0.0
        %4940 = vmatprep.subr.mxu0 0.0
        %4941 = vmatpush1.msra.mxu0 0.0
        %4942 = vmatprep.subr.mxu0 0.0
        %4943 = vmatpush1.msra.mxu0 0.0
        %4944 = vmatprep.subr.mxu0 0.0
        %4945 = vmatpush1.msra.mxu0 0.0
        %4946 = vmatprep.subr.mxu0 0.0
        %4947 = vmatpush1.msra.mxu0 0.0
        %4948 = vmatprep.subr.mxu0 0.0
        %4949 = vmatpush1.msra.mxu0 0.0
        %4950 = vmatprep.subr.mxu0 0.0
        %4951 = vmatpush1.msra.mxu0 0.0
        %4952 = vmatprep.subr.mxu0 0.0
        %4953 = vmatpush1.msra.mxu0 0.0
        %4954 = vmatprep.mubr.f32.mxu0 0.0
        %4955 = vmatmul.mubr.f32.gmra.mrb[0].mxu0 %v4886
        %v4956 = vpop.f32.mrb[0].mxu0
        %v4957 = vadd.f32 %v4874, %v4956
        %v4958 = vpop.f32.mrb[0].mxu0
        %4959 = vmatprep.mubr.f32.mxu0 0.0
        %4960 = vmatmul.mubr.f32.gmra.mrb[0].mxu0 %v4888
        %v4961 = vpop.f32.mrb[0].mxu0
        %v4962 = vadd.f32 %v4879, %v4961
        %v4963 = vpop.f32.mrb[0].mxu0
        %4964 = vdwg.mxu0
        %v4965 = vld [vmem:[#allocation2 + $0x10] sm:$0xff]
        %v4966 = vld [vmem:[#allocation2 + $0x18] sm:$0xff]
        %v4967 = vld [vmem:[#allocation2 + $0x38] sm:$0xff]
        %v4968 = vld [vmem:[#allocation2 + $0x40] sm:$0xff]
        %4969 = vmatprep.subr.mxu0 0.0
        %4970 = vmatpush1.msra.mxu0 %v2967
        %4971 = vmatprep.subr.mxu0 0.0
        %4972 = vmatpush1.msra.mxu0 0.0
        %4973 = vmatprep.subr.mxu0 0.0
        %4974 = vmatpush1.msra.mxu0 0.0
        %4975 = vmatprep.subr.mxu0 0.0
        %4976 = vmatpush1.msra.mxu0 0.0
        %4977 = vmatprep.subr.mxu0 0.0
        %4978 = vmatpush1.msra.mxu0 0.0
        %4979 = vmatprep.subr.mxu0 0.0
        %4980 = vmatpush1.msra.mxu0 0.0
        %4981 = vmatprep.subr.mxu0 0.0
        %4982 = vmatpush1.msra.mxu0 0.0
        %4983 = vmatprep.subr.mxu0 0.0
        %4984 = vmatpush1.msra.mxu0 0.0
        %4985 = vmatprep.subr.mxu0 0.0
        %4986 = vmatpush1.msra.mxu0 0.0
        %4987 = vmatprep.subr.mxu0 0.0
        %4988 = vmatpush1.msra.mxu0 0.0
        %4989 = vmatprep.subr.mxu0 0.0
        %4990 = vmatpush1.msra.mxu0 0.0
        %4991 = vmatprep.subr.mxu0 0.0
        %4992 = vmatpush1.msra.mxu0 0.0
        %4993 = vmatprep.subr.mxu0 0.0
        %4994 = vmatpush1.msra.mxu0 0.0
        %4995 = vmatprep.subr.mxu0 0.0
        %4996 = vmatpush1.msra.mxu0 0.0
        %4997 = vmatprep.subr.mxu0 0.0
        %4998 = vmatpush1.msra.mxu0 0.0
        %4999 = vmatprep.subr.mxu0 0.0
        %5000 = vmatpush1.msra.mxu0 0.0
        %5001 = vmatprep.subr.mxu0 0.0
        %5002 = vmatpush1.msra.mxu0 0.0
        %5003 = vmatprep.subr.mxu0 0.0
        %5004 = vmatpush1.msra.mxu0 0.0
        %5005 = vmatprep.subr.mxu0 0.0
        %5006 = vmatpush1.msra.mxu0 0.0
        %5007 = vmatprep.subr.mxu0 0.0
        %5008 = vmatpush1.msra.mxu0 0.0
        %5009 = vmatprep.subr.mxu0 0.0
        %5010 = vmatpush1.msra.mxu0 0.0
        %5011 = vmatprep.subr.mxu0 0.0
        %5012 = vmatpush1.msra.mxu0 0.0
        %5013 = vmatprep.subr.mxu0 0.0
        %5014 = vmatpush1.msra.mxu0 0.0
        %5015 = vmatprep.subr.mxu0 0.0
        %5016 = vmatpush1.msra.mxu0 0.0
        %5017 = vmatprep.subr.mxu0 0.0
        %5018 = vmatpush1.msra.mxu0 0.0
        %5019 = vmatprep.subr.mxu0 0.0
        %5020 = vmatpush1.msra.mxu0 0.0
        %5021 = vmatprep.subr.mxu0 0.0
        %5022 = vmatpush1.msra.mxu0 0.0
        %5023 = vmatprep.subr.mxu0 0.0
        %5024 = vmatpush1.msra.mxu0 0.0
        %5025 = vmatprep.subr.mxu0 0.0
        %5026 = vmatpush1.msra.mxu0 0.0
        %5027 = vmatprep.subr.mxu0 0.0
        %5028 = vmatpush1.msra.mxu0 0.0
        %5029 = vmatprep.subr.mxu0 0.0
        %5030 = vmatpush1.msra.mxu0 0.0
        %5031 = vmatprep.subr.mxu0 0.0
        %5032 = vmatpush1.msra.mxu0 0.0
        %5033 = vmatprep.mubr.f32.mxu0 0.0
        %5034 = vmatmul.mubr.f32.gmra.mrb[0].mxu0 %v4616
        %v5035 = vpop.f32.mrb[0].mxu0
        %v5036 = vadd.f32 0.0, %v5035
        %v5037 = vpop.f32.mrb[0].mxu0
        %5038 = vmatprep.mubr.f32.mxu0 0.0
        %5039 = vmatmul.mubr.f32.gmra.mrb[0].mxu0 %v4619
        %v5040 = vpop.f32.mrb[0].mxu0
        %v5041 = vadd.f32 0.0, %v5040
        %v5042 = vpop.f32.mrb[0].mxu0
        %5043 = vmatprep.mubr.f32.mxu0 0.0
        %5044 = vmatmul.mubr.f32.gmra.mrb[0].mxu0 %v4622
        %v5045 = vpop.f32.mrb[0].mxu0
        %v5046 = vadd.f32 0.0, %v5045
        %v5047 = vpop.f32.mrb[0].mxu0
        %5048 = vmatprep.mubr.f32.mxu0 0.0
        %5049 = vmatmul.mubr.f32.gmra.mrb[0].mxu0 %v4625
        %v5050 = vpop.f32.mrb[0].mxu0
        %v5051 = vadd.f32 0.0, %v5050
        %v5052 = vpop.f32.mrb[0].mxu0
        %5053 = vdwg.mxu0
        %5058 = vrot.lane.b32.xlu0 %v4965, 4
        %v5059 = vpop.permute.xlu0 %5058
        %5060 = vrot.lane.b32.xlu0 %v4966, 4
        %v5061 = vpop.permute.xlu0 %5060
        %5062 = vrot.lane.b32.xlu0 %v4967, 4
        %v5063 = vpop.permute.xlu0 %5062
        %5064 = vrot.lane.b32.xlu0 %v4968, 4
        %v5065 = vpop.permute.xlu0 %5064
        %v5066 = vsel %vm460, %v5059, %v5061
        %v5067 = vsel %vm460, %v5063, %v5065
        %v5068 = vsel %vm3411, %v5066, 0
        %v5070 = vsel %vm3411, %v5067, 0
        %5072 = vmatprep.subr.mxu0 0.0
        %5073 = vmatpush1.msra.mxu0 %v5036
        %5074 = vmatprep.subr.mxu0 0.0
        %5075 = vmatpush1.msra.mxu0 %v5041
        %5076 = vmatprep.subr.mxu0 0.0
        %5077 = vmatpush1.msra.mxu0 %v5046
        %5078 = vmatprep.subr.mxu0 0.0
        %5079 = vmatpush1.msra.mxu0 %v5051
        %5080 = vmatprep.subr.mxu0 0.0
        %5081 = vmatpush1.msra.mxu0 0.0
        %5082 = vmatprep.subr.mxu0 0.0
        %5083 = vmatpush1.msra.mxu0 0.0
        %5084 = vmatprep.subr.mxu0 0.0
        %5085 = vmatpush1.msra.mxu0 0.0
        %5086 = vmatprep.subr.mxu0 0.0
        %5087 = vmatpush1.msra.mxu0 0.0
        %5088 = vmatprep.subr.mxu0 0.0
        %5089 = vmatpush1.msra.mxu0 0.0
        %5090 = vmatprep.subr.mxu0 0.0
        %5091 = vmatpush1.msra.mxu0 0.0
        %5092 = vmatprep.subr.mxu0 0.0
        %5093 = vmatpush1.msra.mxu0 0.0
        %5094 = vmatprep.subr.mxu0 0.0
        %5095 = vmatpush1.msra.mxu0 0.0
        %5096 = vmatprep.subr.mxu0 0.0
        %5097 = vmatpush1.msra.mxu0 0.0
        %5098 = vmatprep.subr.mxu0 0.0
        %5099 = vmatpush1.msra.mxu0 0.0
        %5100 = vmatprep.subr.mxu0 0.0
        %5101 = vmatpush1.msra.mxu0 0.0
        %5102 = vmatprep.subr.mxu0 0.0
        %5103 = vmatpush1.msra.mxu0 0.0
        %5104 = vmatprep.subr.mxu0 0.0
        %5105 = vmatpush1.msra.mxu0 0.0
        %5106 = vmatprep.subr.mxu0 0.0
        %5107 = vmatpush1.msra.mxu0 0.0
        %5108 = vmatprep.subr.mxu0 0.0
        %5109 = vmatpush1.msra.mxu0 0.0
        %5110 = vmatprep.subr.mxu0 0.0
        %5111 = vmatpush1.msra.mxu0 0.0
        %5112 = vmatprep.subr.mxu0 0.0
        %5113 = vmatpush1.msra.mxu0 0.0
        %5114 = vmatprep.subr.mxu0 0.0
        %5115 = vmatpush1.msra.mxu0 0.0
        %5116 = vmatprep.subr.mxu0 0.0
        %5117 = vmatpush1.msra.mxu0 0.0
        %5118 = vmatprep.subr.mxu0 0.0
        %5119 = vmatpush1.msra.mxu0 0.0
        %5120 = vmatprep.subr.mxu0 0.0
        %5121 = vmatpush1.msra.mxu0 0.0
        %5122 = vmatprep.subr.mxu0 0.0
        %5123 = vmatpush1.msra.mxu0 0.0
        %5124 = vmatprep.subr.mxu0 0.0
        %5125 = vmatpush1.msra.mxu0 0.0
        %5126 = vmatprep.subr.mxu0 0.0
        %5127 = vmatpush1.msra.mxu0 0.0
        %5128 = vmatprep.subr.mxu0 0.0
        %5129 = vmatpush1.msra.mxu0 0.0
        %5130 = vmatprep.subr.mxu0 0.0
        %5131 = vmatpush1.msra.mxu0 0.0
        %5132 = vmatprep.subr.mxu0 0.0
        %5133 = vmatpush1.msra.mxu0 0.0
        %5134 = vmatprep.subr.mxu0 0.0
        %5135 = vmatpush1.msra.mxu0 0.0
        %5136 = vmatprep.mubr.f32.mxu0 0.0
        %5137 = vmatmul.mubr.f32.gmra.mrb[0].mxu0 %v5068
        %v5138 = vpop.f32.mrb[0].mxu0
        %v5139 = vadd.f32 0.0, %v5138
        %v5140 = vpop.f32.mrb[0].mxu0
        %5141 = vmatprep.mubr.f32.mxu0 0.0
        %5142 = vmatmul.mubr.f32.gmra.mrb[0].mxu0 %v5070
        %v5143 = vpop.f32.mrb[0].mxu0
        %v5144 = vadd.f32 0.0, %v5143
        %v5145 = vpop.f32.mrb[0].mxu0
        %5146 = vdwg.mxu0
        %v5147 = vadd.f32 %v4957, %v5139
        %v5148 = vadd.f32 %v4962, %v5144
        %v5149 = vld [vmem:[%s2] sm:$0xff]
        %v5150 = vld [vmem:[%s2 + $0x8] sm:$0xff]
        %5152 = vset.pattern.permute.xlu0 23
        %5153 = vperm.xlu0 %5152, %v5149
        %v5154 = vpop.permute.xlu0 %5153
        %5157 = vset.pattern.permute.xlu0 23
        %5158 = vperm.xlu0 %5157, %v5150
        %v5159 = vpop.permute.xlu0 %5158
        %v5161 = vadd.f32 %v5147, %v5154
        %v5162 = vadd.f32 %v5148, %v5159
        %v5163 = vmax.f32 %v5161, 0.0
        %v5164 = vmax.f32 %v5162, 0.0
        %5165 = vset.pattern.permute.xlu0 24
        %5166 = vperm.xlu0 %5165, %v5149
        %v5167 = vpop.permute.xlu0 %5166
        %5169 = vset.pattern.permute.xlu0 24
        %5170 = vperm.xlu0 %5169, %v5150
        %v5171 = vpop.permute.xlu0 %5170
        %v5173 = vmul.f32 %v5163, %v5167
        %v5174 = vmul.f32 %v5164, %v5171
        %5175 = vset.pattern.permute.xlu0 25
        %5176 = vperm.xlu0 %5175, %v5149
        %v5177 = vpop.permute.xlu0 %5176
        %5179 = vset.pattern.permute.xlu0 25
        %5180 = vperm.xlu0 %5179, %v5150
        %v5181 = vpop.permute.xlu0 %5180
        %v5183 = vadd.f32 %v5173, %v5177
        %v5184 = vadd.f32 %v5174, %v5181
        %5185 = vrot.lane.b32.xlu0 %v4966, 100
        %v5186 = vpop.permute.xlu0 %5185
        %5187 = vrot.lane.b32.xlu0 %v4968, 100
        %v5188 = vpop.permute.xlu0 %5187
        %v5189 = vsel %vm309, %v5186, 0
        %v5191 = vsel %vm309, %v5188, 0
        %5193 = vmatprep.subr.mxu0 0.0
        %5194 = vmatpush1.msra.mxu0 %v5183
        %5195 = vmatprep.subr.mxu0 0.0
        %5196 = vmatpush1.msra.mxu0 %v5184
        %5197 = vmatprep.subr.mxu0 0.0
        %5198 = vmatpush1.msra.mxu0 0.0
        %5199 = vmatprep.subr.mxu0 0.0
        %5200 = vmatpush1.msra.mxu0 0.0
        %5201 = vmatprep.subr.mxu0 0.0
        %5202 = vmatpush1.msra.mxu0 0.0
        %5203 = vmatprep.subr.mxu0 0.0
        %5204 = vmatpush1.msra.mxu0 0.0
        %5205 = vmatprep.subr.mxu0 0.0
        %5206 = vmatpush1.msra.mxu0 0.0
        %5207 = vmatprep.subr.mxu0 0.0
        %5208 = vmatpush1.msra.mxu0 0.0
        %5209 = vmatprep.subr.mxu0 0.0
        %5210 = vmatpush1.msra.mxu0 0.0
        %5211 = vmatprep.subr.mxu0 0.0
        %5212 = vmatpush1.msra.mxu0 0.0
        %5213 = vmatprep.subr.mxu0 0.0
        %5214 = vmatpush1.msra.mxu0 0.0
        %5215 = vmatprep.subr.mxu0 0.0
        %5216 = vmatpush1.msra.mxu0 0.0
        %5217 = vmatprep.subr.mxu0 0.0
        %5218 = vmatpush1.msra.mxu0 0.0
        %5219 = vmatprep.subr.mxu0 0.0
        %5220 = vmatpush1.msra.mxu0 0.0
        %5221 = vmatprep.subr.mxu0 0.0
        %5222 = vmatpush1.msra.mxu0 0.0
        %5223 = vmatprep.subr.mxu0 0.0
        %5224 = vmatpush1.msra.mxu0 0.0
        %5225 = vmatprep.subr.mxu0 0.0
        %5226 = vmatpush1.msra.mxu0 0.0
        %5227 = vmatprep.subr.mxu0 0.0
        %5228 = vmatpush1.msra.mxu0 0.0
        %5229 = vmatprep.subr.mxu0 0.0
        %5230 = vmatpush1.msra.mxu0 0.0
        %5231 = vmatprep.subr.mxu0 0.0
        %5232 = vmatpush1.msra.mxu0 0.0
        %5233 = vmatprep.subr.mxu0 0.0
        %5234 = vmatpush1.msra.mxu0 0.0
        %5235 = vmatprep.subr.mxu0 0.0
        %5236 = vmatpush1.msra.mxu0 0.0
        %5237 = vmatprep.subr.mxu0 0.0
        %5238 = vmatpush1.msra.mxu0 0.0
        %5239 = vmatprep.subr.mxu0 0.0
        %5240 = vmatpush1.msra.mxu0 0.0
        %5241 = vmatprep.subr.mxu0 0.0
        %5242 = vmatpush1.msra.mxu0 0.0
        %5243 = vmatprep.subr.mxu0 0.0
        %5244 = vmatpush1.msra.mxu0 0.0
        %5245 = vmatprep.subr.mxu0 0.0
        %5246 = vmatpush1.msra.mxu0 0.0
        %5247 = vmatprep.subr.mxu0 0.0
        %5248 = vmatpush1.msra.mxu0 0.0
        %5249 = vmatprep.subr.mxu0 0.0
        %5250 = vmatpush1.msra.mxu0 0.0
        %5251 = vmatprep.subr.mxu0 0.0
        %5252 = vmatpush1.msra.mxu0 0.0
        %5253 = vmatprep.subr.mxu0 0.0
        %5254 = vmatpush1.msra.mxu0 0.0
        %5255 = vmatprep.subr.mxu0 0.0
        %5256 = vmatpush1.msra.mxu0 0.0
        %5257 = vmatprep.mubr.f32.mxu0 0.0
        %5258 = vmatmul.mubr.f32.gmra.mrb[0].mxu0 %v5189
        %v5259 = vpop.f32.mrb[0].mxu0
        %v5260 = vadd.f32 0.0, %v5259
        %v5261 = vpop.f32.mrb[0].mxu0
        %5262 = vmatprep.mubr.f32.mxu0 0.0
        %5263 = vmatmul.mubr.f32.gmra.mrb[0].mxu0 %v5191
        %v5264 = vpop.f32.mrb[0].mxu0
        %v5265 = vadd.f32 0.0, %v5264
        %v5266 = vpop.f32.mrb[0].mxu0
        %5267 = vdwg.mxu0
        %5268 = vrot.lane.b32.xlu0 %v4966, 84
        %v5269 = vpop.permute.xlu0 %5268
        %5270 = vrot.lane.b32.xlu0 %v4968, 84
        %v5271 = vpop.permute.xlu0 %5270
        %v5272 = vsel %vm309, %v5269, 0
        %v5274 = vsel %vm309, %v5271, 0
        %5276 = vmatprep.subr.mxu0 0.0
        %5277 = vmatpush1.msra.mxu0 %v5183
        %5278 = vmatprep.subr.mxu0 0.0
        %5279 = vmatpush1.msra.mxu0 %v5184
        %5280 = vmatprep.subr.mxu0 0.0
        %5281 = vmatpush1.msra.mxu0 0.0
        %5282 = vmatprep.subr.mxu0 0.0
        %5283 = vmatpush1.msra.mxu0 0.0
        %5284 = vmatprep.subr.mxu0 0.0
        %5285 = vmatpush1.msra.mxu0 0.0
        %5286 = vmatprep.subr.mxu0 0.0
        %5287 = vmatpush1.msra.mxu0 0.0
        %5288 = vmatprep.subr.mxu0 0.0
        %5289 = vmatpush1.msra.mxu0 0.0
        %5290 = vmatprep.subr.mxu0 0.0
        %5291 = vmatpush1.msra.mxu0 0.0
        %5292 = vmatprep.subr.mxu0 0.0
        %5293 = vmatpush1.msra.mxu0 0.0
        %5294 = vmatprep.subr.mxu0 0.0
        %5295 = vmatpush1.msra.mxu0 0.0
        %5296 = vmatprep.subr.mxu0 0.0
        %5297 = vmatpush1.msra.mxu0 0.0
        %5298 = vmatprep.subr.mxu0 0.0
        %5299 = vmatpush1.msra.mxu0 0.0
        %5300 = vmatprep.subr.mxu0 0.0
        %5301 = vmatpush1.msra.mxu0 0.0
        %5302 = vmatprep.subr.mxu0 0.0
        %5303 = vmatpush1.msra.mxu0 0.0
        %5304 = vmatprep.subr.mxu0 0.0
        %5305 = vmatpush1.msra.mxu0 0.0
        %5306 = vmatprep.subr.mxu0 0.0
        %5307 = vmatpush1.msra.mxu0 0.0
        %5308 = vmatprep.subr.mxu0 0.0
        %5309 = vmatpush1.msra.mxu0 0.0
        %5310 = vmatprep.subr.mxu0 0.0
        %5311 = vmatpush1.msra.mxu0 0.0
        %5312 = vmatprep.subr.mxu0 0.0
        %5313 = vmatpush1.msra.mxu0 0.0
        %5314 = vmatprep.subr.mxu0 0.0
        %5315 = vmatpush1.msra.mxu0 0.0
        %5316 = vmatprep.subr.mxu0 0.0
        %5317 = vmatpush1.msra.mxu0 0.0
        %5318 = vmatprep.subr.mxu0 0.0
        %5319 = vmatpush1.msra.mxu0 0.0
        %5320 = vmatprep.subr.mxu0 0.0
        %5321 = vmatpush1.msra.mxu0 0.0
        %5322 = vmatprep.subr.mxu0 0.0
        %5323 = vmatpush1.msra.mxu0 0.0
        %5324 = vmatprep.subr.mxu0 0.0
        %5325 = vmatpush1.msra.mxu0 0.0
        %5326 = vmatprep.subr.mxu0 0.0
        %5327 = vmatpush1.msra.mxu0 0.0
        %5328 = vmatprep.subr.mxu0 0.0
        %5329 = vmatpush1.msra.mxu0 0.0
        %5330 = vmatprep.subr.mxu0 0.0
        %5331 = vmatpush1.msra.mxu0 0.0
        %5332 = vmatprep.subr.mxu0 0.0
        %5333 = vmatpush1.msra.mxu0 0.0
        %5334 = vmatprep.subr.mxu0 0.0
        %5335 = vmatpush1.msra.mxu0 0.0
        %5336 = vmatprep.subr.mxu0 0.0
        %5337 = vmatpush1.msra.mxu0 0.0
        %5338 = vmatprep.subr.mxu0 0.0
        %5339 = vmatpush1.msra.mxu0 0.0
        %5340 = vmatprep.mubr.f32.mxu0 0.0
        %5341 = vmatmul.mubr.f32.gmra.mrb[0].mxu0 %v5272
        %v5342 = vpop.f32.mrb[0].mxu0
        %v5343 = vadd.f32 0.0, %v5342
        %v5344 = vpop.f32.mrb[0].mxu0
        %5345 = vmatprep.mubr.f32.mxu0 0.0
        %5346 = vmatmul.mubr.f32.gmra.mrb[0].mxu0 %v5274
        %v5347 = vpop.f32.mrb[0].mxu0
        %v5348 = vadd.f32 0.0, %v5347
        %v5349 = vpop.f32.mrb[0].mxu0
        %5350 = vdwg.mxu0
        %v5352 = vsel %vm460, %v5343, 0
        %v5355 = vsel %vm460, %v5348, 0
        %v5357 = vsel %vm463, %v4347, 0
        %5359 = vmatprep.subr.mxu0 0.0
        %5360 = vmatpush1.msra.mxu0 %v5357
        %5361 = vmatprep.subr.mxu0 0.0
        %5362 = vmatpush1.msra.mxu0 0.0
        %5363 = vmatprep.subr.mxu0 0.0
        %5364 = vmatpush1.msra.mxu0 0.0
        %5365 = vmatprep.subr.mxu0 0.0
        %5366 = vmatpush1.msra.mxu0 0.0
        %5367 = vmatprep.subr.mxu0 0.0
        %5368 = vmatpush1.msra.mxu0 0.0
        %5369 = vmatprep.subr.mxu0 0.0
        %5370 = vmatpush1.msra.mxu0 0.0
        %5371 = vmatprep.subr.mxu0 0.0
        %5372 = vmatpush1.msra.mxu0 0.0
        %5373 = vmatprep.subr.mxu0 0.0
        %5374 = vmatpush1.msra.mxu0 0.0
        %5375 = vmatprep.subr.mxu0 0.0
        %5376 = vmatpush1.msra.mxu0 0.0
        %5377 = vmatprep.subr.mxu0 0.0
        %5378 = vmatpush1.msra.mxu0 0.0
        %5379 = vmatprep.subr.mxu0 0.0
        %5380 = vmatpush1.msra.mxu0 0.0
        %5381 = vmatprep.subr.mxu0 0.0
        %5382 = vmatpush1.msra.mxu0 0.0
        %5383 = vmatprep.subr.mxu0 0.0
        %5384 = vmatpush1.msra.mxu0 0.0
        %5385 = vmatprep.subr.mxu0 0.0
        %5386 = vmatpush1.msra.mxu0 0.0
        %5387 = vmatprep.subr.mxu0 0.0
        %5388 = vmatpush1.msra.mxu0 0.0
        %5389 = vmatprep.subr.mxu0 0.0
        %5390 = vmatpush1.msra.mxu0 0.0
        %5391 = vmatprep.subr.mxu0 0.0
        %5392 = vmatpush1.msra.mxu0 0.0
        %5393 = vmatprep.subr.mxu0 0.0
        %5394 = vmatpush1.msra.mxu0 0.0
        %5395 = vmatprep.subr.mxu0 0.0
        %5396 = vmatpush1.msra.mxu0 0.0
        %5397 = vmatprep.subr.mxu0 0.0
        %5398 = vmatpush1.msra.mxu0 0.0
        %5399 = vmatprep.subr.mxu0 0.0
        %5400 = vmatpush1.msra.mxu0 0.0
        %5401 = vmatprep.subr.mxu0 0.0
        %5402 = vmatpush1.msra.mxu0 0.0
        %5403 = vmatprep.subr.mxu0 0.0
        %5404 = vmatpush1.msra.mxu0 0.0
        %5405 = vmatprep.subr.mxu0 0.0
        %5406 = vmatpush1.msra.mxu0 0.0
        %5407 = vmatprep.subr.mxu0 0.0
        %5408 = vmatpush1.msra.mxu0 0.0
        %5409 = vmatprep.subr.mxu0 0.0
        %5410 = vmatpush1.msra.mxu0 0.0
        %5411 = vmatprep.subr.mxu0 0.0
        %5412 = vmatpush1.msra.mxu0 0.0
        %5413 = vmatprep.subr.mxu0 0.0
        %5414 = vmatpush1.msra.mxu0 0.0
        %5415 = vmatprep.subr.mxu0 0.0
        %5416 = vmatpush1.msra.mxu0 0.0
        %5417 = vmatprep.subr.mxu0 0.0
        %5418 = vmatpush1.msra.mxu0 0.0
        %5419 = vmatprep.subr.mxu0 0.0
        %5420 = vmatpush1.msra.mxu0 0.0
        %5421 = vmatprep.subr.mxu0 0.0
        %5422 = vmatpush1.msra.mxu0 0.0
        %5423 = vmatprep.mubr.f32.mxu0 0.0
        %5424 = vmatmul.mubr.f32.gmra.mrb[0].mxu0 %v5352
        %v5425 = vpop.f32.mrb[0].mxu0
        %v5426 = vadd.f32 0.0, %v5425
        %v5427 = vpop.f32.mrb[0].mxu0
        %5428 = vmatprep.mubr.f32.mxu0 0.0
        %5429 = vmatmul.mubr.f32.gmra.mrb[0].mxu0 %v5355
        %v5430 = vpop.f32.mrb[0].mxu0
        %v5431 = vadd.f32 0.0, %v5430
        %v5432 = vpop.f32.mrb[0].mxu0
        %5433 = vdwg.mxu0
        %v5435 = vsel %vm460, %v5260, 0
        %v5438 = vsel %vm460, %v5265, 0
        %v5440 = vsel %vm463, %v4243, 0
        %5442 = vmatprep.subr.mxu0 0.0
        %5443 = vmatpush1.msra.mxu0 %v5440
        %5444 = vmatprep.subr.mxu0 0.0
        %5445 = vmatpush1.msra.mxu0 0.0
        %5446 = vmatprep.subr.mxu0 0.0
        %5447 = vmatpush1.msra.mxu0 0.0
        %5448 = vmatprep.subr.mxu0 0.0
        %5449 = vmatpush1.msra.mxu0 0.0
        %5450 = vmatprep.subr.mxu0 0.0
        %5451 = vmatpush1.msra.mxu0 0.0
        %5452 = vmatprep.subr.mxu0 0.0
        %5453 = vmatpush1.msra.mxu0 0.0
        %5454 = vmatprep.subr.mxu0 0.0
        %5455 = vmatpush1.msra.mxu0 0.0
        %5456 = vmatprep.subr.mxu0 0.0
        %5457 = vmatpush1.msra.mxu0 0.0
        %5458 = vmatprep.subr.mxu0 0.0
        %5459 = vmatpush1.msra.mxu0 0.0
        %5460 = vmatprep.subr.mxu0 0.0
        %5461 = vmatpush1.msra.mxu0 0.0
        %5462 = vmatprep.subr.mxu0 0.0
        %5463 = vmatpush1.msra.mxu0 0.0
        %5464 = vmatprep.subr.mxu0 0.0
        %5465 = vmatpush1.msra.mxu0 0.0
        %5466 = vmatprep.subr.mxu0 0.0
        %5467 = vmatpush1.msra.mxu0 0.0
        %5468 = vmatprep.subr.mxu0 0.0
        %5469 = vmatpush1.msra.mxu0 0.0
        %5470 = vmatprep.subr.mxu0 0.0
        %5471 = vmatpush1.msra.mxu0 0.0
        %5472 = vmatprep.subr.mxu0 0.0
        %5473 = vmatpush1.msra.mxu0 0.0
        %5474 = vmatprep.subr.mxu0 0.0
        %5475 = vmatpush1.msra.mxu0 0.0
        %5476 = vmatprep.subr.mxu0 0.0
        %5477 = vmatpush1.msra.mxu0 0.0
        %5478 = vmatprep.subr.mxu0 0.0
        %5479 = vmatpush1.msra.mxu0 0.0
        %5480 = vmatprep.subr.mxu0 0.0
        %5481 = vmatpush1.msra.mxu0 0.0
        %5482 = vmatprep.subr.mxu0 0.0
        %5483 = vmatpush1.msra.mxu0 0.0
        %5484 = vmatprep.subr.mxu0 0.0
        %5485 = vmatpush1.msra.mxu0 0.0
        %5486 = vmatprep.subr.mxu0 0.0
        %5487 = vmatpush1.msra.mxu0 0.0
        %5488 = vmatprep.subr.mxu0 0.0
        %5489 = vmatpush1.msra.mxu0 0.0
        %5490 = vmatprep.subr.mxu0 0.0
        %5491 = vmatpush1.msra.mxu0 0.0
        %5492 = vmatprep.subr.mxu0 0.0
        %5493 = vmatpush1.msra.mxu0 0.0
        %5494 = vmatprep.subr.mxu0 0.0
        %5495 = vmatpush1.msra.mxu0 0.0
        %5496 = vmatprep.subr.mxu0 0.0
        %5497 = vmatpush1.msra.mxu0 0.0
        %5498 = vmatprep.subr.mxu0 0.0
        %5499 = vmatpush1.msra.mxu0 0.0
        %5500 = vmatprep.subr.mxu0 0.0
        %5501 = vmatpush1.msra.mxu0 0.0
        %5502 = vmatprep.subr.mxu0 0.0
        %5503 = vmatpush1.msra.mxu0 0.0
        %5504 = vmatprep.subr.mxu0 0.0
        %5505 = vmatpush1.msra.mxu0 0.0
        %5506 = vmatprep.mubr.f32.mxu0 0.0
        %5507 = vmatmul.mubr.f32.gmra.mrb[0].mxu0 %v5435
        %v5508 = vpop.f32.mrb[0].mxu0
        %v5509 = vadd.f32 %v5426, %v5508
        %v5510 = vpop.f32.mrb[0].mxu0
        %5511 = vmatprep.mubr.f32.mxu0 0.0
        %5512 = vmatmul.mubr.f32.gmra.mrb[0].mxu0 %v5438
        %v5513 = vpop.f32.mrb[0].mxu0
        %v5514 = vadd.f32 %v5431, %v5513
        %v5515 = vpop.f32.mrb[0].mxu0
        %5516 = vdwg.mxu0
        %5517 = vset.pattern.permute.xlu0 26
        %5518 = vperm.xlu0 %5517, %v5149
        %v5519 = vpop.permute.xlu0 %5518
        %5521 = vset.pattern.permute.xlu0 26
        %5522 = vperm.xlu0 %5521, %v5150
        %v5523 = vpop.permute.xlu0 %5522
        %v5525 = vadd.f32 %v5509, %v5519
        %v5526 = vadd.f32 %v5514, %v5523
        %v5527 = vmax.f32 %v5525, 0.0
        %v5528 = vmax.f32 %v5526, 0.0
        %5529 = vset.pattern.permute.xlu0 27
        %5530 = vperm.xlu0 %5529, %v5149
        %v5531 = vpop.permute.xlu0 %5530
        %5533 = vset.pattern.permute.xlu0 27
        %5534 = vperm.xlu0 %5533, %v5150
        %v5535 = vpop.permute.xlu0 %5534
        %v5537 = vmul.f32 %v5527, %v5531
        %v5538 = vmul.f32 %v5528, %v5535
        %5539 = vset.pattern.permute.xlu0 28
        %5540 = vperm.xlu0 %5539, %v5149
        %v5541 = vpop.permute.xlu0 %5540
        %5543 = vset.pattern.permute.xlu0 28
        %5544 = vperm.xlu0 %5543, %v5150
        %v5545 = vpop.permute.xlu0 %5544
        %v5547 = vadd.f32 %v5537, %v5541
        %v5548 = vadd.f32 %v5538, %v5545
        %v5549 = vld [vmem:[#allocation2 + $0x18] sm:$0xff]
        %v5551 = vsel %vm928, %v5547, 0
        %v5554 = vsel %vm928, %v5548, 0
        %5556 = vmatprep.subr.mxu0 0.0
        %5557 = vmatpush1.msra.mxu0 %v307
        %5558 = vmatprep.subr.mxu0 0.0
        %5559 = vmatpush1.msra.mxu0 0.0
        %5560 = vmatprep.subr.mxu0 0.0
        %5561 = vmatpush1.msra.mxu0 0.0
        %5562 = vmatprep.subr.mxu0 0.0
        %5563 = vmatpush1.msra.mxu0 0.0
        %5564 = vmatprep.subr.mxu0 0.0
        %5565 = vmatpush1.msra.mxu0 0.0
        %5566 = vmatprep.subr.mxu0 0.0
        %5567 = vmatpush1.msra.mxu0 0.0
        %5568 = vmatprep.subr.mxu0 0.0
        %5569 = vmatpush1.msra.mxu0 0.0
        %5570 = vmatprep.subr.mxu0 0.0
        %5571 = vmatpush1.msra.mxu0 0.0
        %5572 = vmatprep.subr.mxu0 0.0
        %5573 = vmatpush1.msra.mxu0 0.0
        %5574 = vmatprep.subr.mxu0 0.0
        %5575 = vmatpush1.msra.mxu0 0.0
        %5576 = vmatprep.subr.mxu0 0.0
        %5577 = vmatpush1.msra.mxu0 0.0
        %5578 = vmatprep.subr.mxu0 0.0
        %5579 = vmatpush1.msra.mxu0 0.0
        %5580 = vmatprep.subr.mxu0 0.0
        %5581 = vmatpush1.msra.mxu0 0.0
        %5582 = vmatprep.subr.mxu0 0.0
        %5583 = vmatpush1.msra.mxu0 0.0
        %5584 = vmatprep.subr.mxu0 0.0
        %5585 = vmatpush1.msra.mxu0 0.0
        %5586 = vmatprep.subr.mxu0 0.0
        %5587 = vmatpush1.msra.mxu0 0.0
        %5588 = vmatprep.subr.mxu0 0.0
        %5589 = vmatpush1.msra.mxu0 0.0
        %5590 = vmatprep.subr.mxu0 0.0
        %5591 = vmatpush1.msra.mxu0 0.0
        %5592 = vmatprep.subr.mxu0 0.0
        %5593 = vmatpush1.msra.mxu0 0.0
        %5594 = vmatprep.subr.mxu0 0.0
        %5595 = vmatpush1.msra.mxu0 0.0
        %5596 = vmatprep.subr.mxu0 0.0
        %5597 = vmatpush1.msra.mxu0 0.0
        %5598 = vmatprep.subr.mxu0 0.0
        %5599 = vmatpush1.msra.mxu0 0.0
        %5600 = vmatprep.subr.mxu0 0.0
        %5601 = vmatpush1.msra.mxu0 0.0
        %5602 = vmatprep.subr.mxu0 0.0
        %5603 = vmatpush1.msra.mxu0 0.0
        %5604 = vmatprep.subr.mxu0 0.0
        %5605 = vmatpush1.msra.mxu0 0.0
        %5606 = vmatprep.subr.mxu0 0.0
        %5607 = vmatpush1.msra.mxu0 0.0
        %5608 = vmatprep.subr.mxu0 0.0
        %5609 = vmatpush1.msra.mxu0 0.0
        %5610 = vmatprep.subr.mxu0 0.0
        %5611 = vmatpush1.msra.mxu0 0.0
        %5612 = vmatprep.subr.mxu0 0.0
        %5613 = vmatpush1.msra.mxu0 0.0
        %5614 = vmatprep.subr.mxu0 0.0
        %5615 = vmatpush1.msra.mxu0 0.0
        %5616 = vmatprep.subr.mxu0 0.0
        %5617 = vmatpush1.msra.mxu0 0.0
        %5618 = vmatprep.subr.mxu0 0.0
        %5619 = vmatpush1.msra.mxu0 0.0
        %5620 = vmatprep.mubr.f32.mxu0 0.0
        %5621 = vmatmul.mubr.f32.gmra.mrb[0].mxu0 %v5551
        %v5622 = vpop.f32.mrb[0].mxu0
        %v5623 = vadd.f32 0.0, %v5622
        %v5624 = vpop.f32.mrb[0].mxu0
        %5625 = vmatprep.mubr.f32.mxu0 0.0
        %5626 = vmatmul.mubr.f32.gmra.mrb[0].mxu0 %v5554
        %v5627 = vpop.f32.mrb[0].mxu0
        %v5628 = vadd.f32 0.0, %v5627
        %v5629 = vpop.f32.mrb[0].mxu0
        %5630 = vdwg.mxu0
        %5631 = vmatprep.subr.mxu0 0.0
        %5632 = vmatpush1.msra.mxu0 %v385
        %5633 = vmatprep.subr.mxu0 0.0
        %5634 = vmatpush1.msra.mxu0 0.0
        %5635 = vmatprep.subr.mxu0 0.0
        %5636 = vmatpush1.msra.mxu0 0.0
        %5637 = vmatprep.subr.mxu0 0.0
        %5638 = vmatpush1.msra.mxu0 0.0
        %5639 = vmatprep.subr.mxu0 0.0
        %5640 = vmatpush1.msra.mxu0 0.0
        %5641 = vmatprep.subr.mxu0 0.0
        %5642 = vmatpush1.msra.mxu0 0.0
        %5643 = vmatprep.subr.mxu0 0.0
        %5644 = vmatpush1.msra.mxu0 0.0
        %5645 = vmatprep.subr.mxu0 0.0
        %5646 = vmatpush1.msra.mxu0 0.0
        %5647 = vmatprep.subr.mxu0 0.0
        %5648 = vmatpush1.msra.mxu0 0.0
        %5649 = vmatprep.subr.mxu0 0.0
        %5650 = vmatpush1.msra.mxu0 0.0
        %5651 = vmatprep.subr.mxu0 0.0
        %5652 = vmatpush1.msra.mxu0 0.0
        %5653 = vmatprep.subr.mxu0 0.0
        %5654 = vmatpush1.msra.mxu0 0.0
        %5655 = vmatprep.subr.mxu0 0.0
        %5656 = vmatpush1.msra.mxu0 0.0
        %5657 = vmatprep.subr.mxu0 0.0
        %5658 = vmatpush1.msra.mxu0 0.0
        %5659 = vmatprep.subr.mxu0 0.0
        %5660 = vmatpush1.msra.mxu0 0.0
        %5661 = vmatprep.subr.mxu0 0.0
        %5662 = vmatpush1.msra.mxu0 0.0
        %5663 = vmatprep.subr.mxu0 0.0
        %5664 = vmatpush1.msra.mxu0 0.0
        %5665 = vmatprep.subr.mxu0 0.0
        %5666 = vmatpush1.msra.mxu0 0.0
        %5667 = vmatprep.subr.mxu0 0.0
        %5668 = vmatpush1.msra.mxu0 0.0
        %5669 = vmatprep.subr.mxu0 0.0
        %5670 = vmatpush1.msra.mxu0 0.0
        %5671 = vmatprep.subr.mxu0 0.0
        %5672 = vmatpush1.msra.mxu0 0.0
        %5673 = vmatprep.subr.mxu0 0.0
        %5674 = vmatpush1.msra.mxu0 0.0
        %5675 = vmatprep.subr.mxu0 0.0
        %5676 = vmatpush1.msra.mxu0 0.0
        %5677 = vmatprep.subr.mxu0 0.0
        %5678 = vmatpush1.msra.mxu0 0.0
        %5679 = vmatprep.subr.mxu0 0.0
        %5680 = vmatpush1.msra.mxu0 0.0
        %5681 = vmatprep.subr.mxu0 0.0
        %5682 = vmatpush1.msra.mxu0 0.0
        %5683 = vmatprep.subr.mxu0 0.0
        %5684 = vmatpush1.msra.mxu0 0.0
        %5685 = vmatprep.subr.mxu0 0.0
        %5686 = vmatpush1.msra.mxu0 0.0
        %5687 = vmatprep.subr.mxu0 0.0
        %5688 = vmatpush1.msra.mxu0 0.0
        %5689 = vmatprep.subr.mxu0 0.0
        %5690 = vmatpush1.msra.mxu0 0.0
        %5691 = vmatprep.subr.mxu0 0.0
        %5692 = vmatpush1.msra.mxu0 0.0
        %5693 = vmatprep.subr.mxu0 0.0
        %5694 = vmatpush1.msra.mxu0 0.0
        %5695 = vmatprep.mubr.f32.mxu0 0.0
        %5696 = vmatmul.mubr.f32.gmra.mrb[0].mxu0 %v5551
        %v5697 = vpop.f32.mrb[0].mxu0
        %v5698 = vadd.f32 0.0, %v5697
        %v5699 = vpop.f32.mrb[0].mxu0
        %5700 = vmatprep.mubr.f32.mxu0 0.0
        %5701 = vmatmul.mubr.f32.gmra.mrb[0].mxu0 %v5554
        %v5702 = vpop.f32.mrb[0].mxu0
        %v5703 = vadd.f32 0.0, %v5702
        %v5704 = vpop.f32.mrb[0].mxu0
        %5705 = vdwg.mxu0
        %5707 = vrot.lane.b32.xlu0 %v5549, 52
        %v5708 = vpop.permute.xlu0 %5707
        %v5709 = vsel %vm309, %v5708, 0
        %5711 = vmatprep.subr.mxu0 0.0
        %5712 = vmatpush1.msra.mxu0 %v5698
        %5713 = vmatprep.subr.mxu0 0.0
        %5714 = vmatpush1.msra.mxu0 %v5703
        %5715 = vmatprep.subr.mxu0 0.0
        %5716 = vmatpush1.msra.mxu0 0.0
        %5717 = vmatprep.subr.mxu0 0.0
        %5718 = vmatpush1.msra.mxu0 0.0
        %5719 = vmatprep.subr.mxu0 0.0
        %5720 = vmatpush1.msra.mxu0 0.0
        %5721 = vmatprep.subr.mxu0 0.0
        %5722 = vmatpush1.msra.mxu0 0.0
        %5723 = vmatprep.subr.mxu0 0.0
        %5724 = vmatpush1.msra.mxu0 0.0
        %5725 = vmatprep.subr.mxu0 0.0
        %5726 = vmatpush1.msra.mxu0 0.0
        %5727 = vmatprep.subr.mxu0 0.0
        %5728 = vmatpush1.msra.mxu0 0.0
        %5729 = vmatprep.subr.mxu0 0.0
        %5730 = vmatpush1.msra.mxu0 0.0
        %5731 = vmatprep.subr.mxu0 0.0
        %5732 = vmatpush1.msra.mxu0 0.0
        %5733 = vmatprep.subr.mxu0 0.0
        %5734 = vmatpush1.msra.mxu0 0.0
        %5735 = vmatprep.subr.mxu0 0.0
        %5736 = vmatpush1.msra.mxu0 0.0
        %5737 = vmatprep.subr.mxu0 0.0
        %5738 = vmatpush1.msra.mxu0 0.0
        %5739 = vmatprep.subr.mxu0 0.0
        %5740 = vmatpush1.msra.mxu0 0.0
        %5741 = vmatprep.subr.mxu0 0.0
        %5742 = vmatpush1.msra.mxu0 0.0
        %5743 = vmatprep.subr.mxu0 0.0
        %5744 = vmatpush1.msra.mxu0 0.0
        %5745 = vmatprep.subr.mxu0 0.0
        %5746 = vmatpush1.msra.mxu0 0.0
        %5747 = vmatprep.subr.mxu0 0.0
        %5748 = vmatpush1.msra.mxu0 0.0
        %5749 = vmatprep.subr.mxu0 0.0
        %5750 = vmatpush1.msra.mxu0 0.0
        %5751 = vmatprep.subr.mxu0 0.0
        %5752 = vmatpush1.msra.mxu0 0.0
        %5753 = vmatprep.subr.mxu0 0.0
        %5754 = vmatpush1.msra.mxu0 0.0
        %5755 = vmatprep.subr.mxu0 0.0
        %5756 = vmatpush1.msra.mxu0 0.0
        %5757 = vmatprep.subr.mxu0 0.0
        %5758 = vmatpush1.msra.mxu0 0.0
        %5759 = vmatprep.subr.mxu0 0.0
        %5760 = vmatpush1.msra.mxu0 0.0
        %5761 = vmatprep.subr.mxu0 0.0
        %5762 = vmatpush1.msra.mxu0 0.0
        %5763 = vmatprep.subr.mxu0 0.0
        %5764 = vmatpush1.msra.mxu0 0.0
        %5765 = vmatprep.subr.mxu0 0.0
        %5766 = vmatpush1.msra.mxu0 0.0
        %5767 = vmatprep.subr.mxu0 0.0
        %5768 = vmatpush1.msra.mxu0 0.0
        %5769 = vmatprep.subr.mxu0 0.0
        %5770 = vmatpush1.msra.mxu0 0.0
        %5771 = vmatprep.subr.mxu0 0.0
        %5772 = vmatpush1.msra.mxu0 0.0
        %5773 = vmatprep.subr.mxu0 0.0
        %5774 = vmatpush1.msra.mxu0 0.0
        %5775 = vmatprep.mubr.f32.mxu0 0.0
        %5776 = vmatmul.mubr.f32.gmra.mrb[0].mxu0 %v5709
        %v5777 = vpop.f32.mrb[0].mxu0
        %v5778 = vadd.f32 0.0, %v5777
        %v5779 = vpop.f32.mrb[0].mxu0
        %5780 = vdwg.mxu0
        %5781 = vrot.lane.b32.xlu0 %v5549, 68
        %v5782 = vpop.permute.xlu0 %5781
        %v5783 = vsel %vm309, %v5782, 0
        %5785 = vmatprep.subr.mxu0 0.0
        %5786 = vmatpush1.msra.mxu0 %v5623
        %5787 = vmatprep.subr.mxu0 0.0
        %5788 = vmatpush1.msra.mxu0 %v5628
        %5789 = vmatprep.subr.mxu0 0.0
        %5790 = vmatpush1.msra.mxu0 0.0
        %5791 = vmatprep.subr.mxu0 0.0
        %5792 = vmatpush1.msra.mxu0 0.0
        %5793 = vmatprep.subr.mxu0 0.0
        %5794 = vmatpush1.msra.mxu0 0.0
        %5795 = vmatprep.subr.mxu0 0.0
        %5796 = vmatpush1.msra.mxu0 0.0
        %5797 = vmatprep.subr.mxu0 0.0
        %5798 = vmatpush1.msra.mxu0 0.0
        %5799 = vmatprep.subr.mxu0 0.0
        %5800 = vmatpush1.msra.mxu0 0.0
        %5801 = vmatprep.subr.mxu0 0.0
        %5802 = vmatpush1.msra.mxu0 0.0
        %5803 = vmatprep.subr.mxu0 0.0
        %5804 = vmatpush1.msra.mxu0 0.0
        %5805 = vmatprep.subr.mxu0 0.0
        %5806 = vmatpush1.msra.mxu0 0.0
        %5807 = vmatprep.subr.mxu0 0.0
        %5808 = vmatpush1.msra.mxu0 0.0
        %5809 = vmatprep.subr.mxu0 0.0
        %5810 = vmatpush1.msra.mxu0 0.0
        %5811 = vmatprep.subr.mxu0 0.0
        %5812 = vmatpush1.msra.mxu0 0.0
        %5813 = vmatprep.subr.mxu0 0.0
        %5814 = vmatpush1.msra.mxu0 0.0
        %5815 = vmatprep.subr.mxu0 0.0
        %5816 = vmatpush1.msra.mxu0 0.0
        %5817 = vmatprep.subr.mxu0 0.0
        %5818 = vmatpush1.msra.mxu0 0.0
        %5819 = vmatprep.subr.mxu0 0.0
        %5820 = vmatpush1.msra.mxu0 0.0
        %5821 = vmatprep.subr.mxu0 0.0
        %5822 = vmatpush1.msra.mxu0 0.0
        %5823 = vmatprep.subr.mxu0 0.0
        %5824 = vmatpush1.msra.mxu0 0.0
        %5825 = vmatprep.subr.mxu0 0.0
        %5826 = vmatpush1.msra.mxu0 0.0
        %5827 = vmatprep.subr.mxu0 0.0
        %5828 = vmatpush1.msra.mxu0 0.0
        %5829 = vmatprep.subr.mxu0 0.0
        %5830 = vmatpush1.msra.mxu0 0.0
        %5831 = vmatprep.subr.mxu0 0.0
        %5832 = vmatpush1.msra.mxu0 0.0
        %5833 = vmatprep.subr.mxu0 0.0
        %5834 = vmatpush1.msra.mxu0 0.0
        %5835 = vmatprep.subr.mxu0 0.0
        %5836 = vmatpush1.msra.mxu0 0.0
        %5837 = vmatprep.subr.mxu0 0.0
        %5838 = vmatpush1.msra.mxu0 0.0
        %5839 = vmatprep.subr.mxu0 0.0
        %5840 = vmatpush1.msra.mxu0 0.0
        %5841 = vmatprep.subr.mxu0 0.0
        %5842 = vmatpush1.msra.mxu0 0.0
        %5843 = vmatprep.subr.mxu0 0.0
        %5844 = vmatpush1.msra.mxu0 0.0
        %5845 = vmatprep.subr.mxu0 0.0
        %5846 = vmatpush1.msra.mxu0 0.0
        %5847 = vmatprep.subr.mxu0 0.0
        %5848 = vmatpush1.msra.mxu0 0.0
        %5849 = vmatprep.mubr.f32.mxu0 0.0
        %5850 = vmatmul.mubr.f32.gmra.mrb[0].mxu0 %v5783
        %v5851 = vpop.f32.mrb[0].mxu0
        %v5852 = vadd.f32 %v5778, %v5851
        %v5853 = vpop.f32.mrb[0].mxu0
        %5854 = vdwg.mxu0
        %5855 = vmatprep.subr.mxu0 0.0
        %5856 = vmatpush1.msra.mxu0 %v615
        %5857 = vmatprep.subr.mxu0 0.0
        %5858 = vmatpush1.msra.mxu0 0.0
        %5859 = vmatprep.subr.mxu0 0.0
        %5860 = vmatpush1.msra.mxu0 0.0
        %5861 = vmatprep.subr.mxu0 0.0
        %5862 = vmatpush1.msra.mxu0 0.0
        %5863 = vmatprep.subr.mxu0 0.0
        %5864 = vmatpush1.msra.mxu0 0.0
        %5865 = vmatprep.subr.mxu0 0.0
        %5866 = vmatpush1.msra.mxu0 0.0
        %5867 = vmatprep.subr.mxu0 0.0
        %5868 = vmatpush1.msra.mxu0 0.0
        %5869 = vmatprep.subr.mxu0 0.0
        %5870 = vmatpush1.msra.mxu0 0.0
        %5871 = vmatprep.subr.mxu0 0.0
        %5872 = vmatpush1.msra.mxu0 0.0
        %5873 = vmatprep.subr.mxu0 0.0
        %5874 = vmatpush1.msra.mxu0 0.0
        %5875 = vmatprep.subr.mxu0 0.0
        %5876 = vmatpush1.msra.mxu0 0.0
        %5877 = vmatprep.subr.mxu0 0.0
        %5878 = vmatpush1.msra.mxu0 0.0
        %5879 = vmatprep.subr.mxu0 0.0
        %5880 = vmatpush1.msra.mxu0 0.0
        %5881 = vmatprep.subr.mxu0 0.0
        %5882 = vmatpush1.msra.mxu0 0.0
        %5883 = vmatprep.subr.mxu0 0.0
        %5884 = vmatpush1.msra.mxu0 0.0
        %5885 = vmatprep.subr.mxu0 0.0
        %5886 = vmatpush1.msra.mxu0 0.0
        %5887 = vmatprep.subr.mxu0 0.0
        %5888 = vmatpush1.msra.mxu0 0.0
        %5889 = vmatprep.subr.mxu0 0.0
        %5890 = vmatpush1.msra.mxu0 0.0
        %5891 = vmatprep.subr.mxu0 0.0
        %5892 = vmatpush1.msra.mxu0 0.0
        %5893 = vmatprep.subr.mxu0 0.0
        %5894 = vmatpush1.msra.mxu0 0.0
        %5895 = vmatprep.subr.mxu0 0.0
        %5896 = vmatpush1.msra.mxu0 0.0
        %5897 = vmatprep.subr.mxu0 0.0
        %5898 = vmatpush1.msra.mxu0 0.0
        %5899 = vmatprep.subr.mxu0 0.0
        %5900 = vmatpush1.msra.mxu0 0.0
        %5901 = vmatprep.subr.mxu0 0.0
        %5902 = vmatpush1.msra.mxu0 0.0
        %5903 = vmatprep.subr.mxu0 0.0
        %5904 = vmatpush1.msra.mxu0 0.0
        %5905 = vmatprep.subr.mxu0 0.0
        %5906 = vmatpush1.msra.mxu0 0.0
        %5907 = vmatprep.subr.mxu0 0.0
        %5908 = vmatpush1.msra.mxu0 0.0
        %5909 = vmatprep.subr.mxu0 0.0
        %5910 = vmatpush1.msra.mxu0 0.0
        %5911 = vmatprep.subr.mxu0 0.0
        %5912 = vmatpush1.msra.mxu0 0.0
        %5913 = vmatprep.subr.mxu0 0.0
        %5914 = vmatpush1.msra.mxu0 0.0
        %5915 = vmatprep.subr.mxu0 0.0
        %5916 = vmatpush1.msra.mxu0 0.0
        %5917 = vmatprep.subr.mxu0 0.0
        %5918 = vmatpush1.msra.mxu0 0.0
        %5919 = vmatprep.mubr.f32.mxu0 0.0
        %5920 = vmatmul.mubr.f32.gmra.mrb[0].mxu0 %v5551
        %v5921 = vpop.f32.mrb[0].mxu0
        %v5922 = vadd.f32 0.0, %v5921
        %v5923 = vpop.f32.mrb[0].mxu0
        %5924 = vmatprep.mubr.f32.mxu0 0.0
        %5925 = vmatmul.mubr.f32.gmra.mrb[0].mxu0 %v5554
        %v5926 = vpop.f32.mrb[0].mxu0
        %v5927 = vadd.f32 0.0, %v5926
        %v5928 = vpop.f32.mrb[0].mxu0
        %5929 = vdwg.mxu0
        %5930 = vrot.lane.b32.xlu0 %v5549, 36
        %v5931 = vpop.permute.xlu0 %5930
        %v5932 = vsel %vm309, %v5931, 0
        %5934 = vmatprep.subr.mxu0 0.0
        %5935 = vmatpush1.msra.mxu0 %v5922
        %5936 = vmatprep.subr.mxu0 0.0
        %5937 = vmatpush1.msra.mxu0 %v5927
        %5938 = vmatprep.subr.mxu0 0.0
        %5939 = vmatpush1.msra.mxu0 0.0
        %5940 = vmatprep.subr.mxu0 0.0
        %5941 = vmatpush1.msra.mxu0 0.0
        %5942 = vmatprep.subr.mxu0 0.0
        %5943 = vmatpush1.msra.mxu0 0.0
        %5944 = vmatprep.subr.mxu0 0.0
        %5945 = vmatpush1.msra.mxu0 0.0
        %5946 = vmatprep.subr.mxu0 0.0
        %5947 = vmatpush1.msra.mxu0 0.0
        %5948 = vmatprep.subr.mxu0 0.0
        %5949 = vmatpush1.msra.mxu0 0.0
        %5950 = vmatprep.subr.mxu0 0.0
        %5951 = vmatpush1.msra.mxu0 0.0
        %5952 = vmatprep.subr.mxu0 0.0
        %5953 = vmatpush1.msra.mxu0 0.0
        %5954 = vmatprep.subr.mxu0 0.0
        %5955 = vmatpush1.msra.mxu0 0.0
        %5956 = vmatprep.subr.mxu0 0.0
        %5957 = vmatpush1.msra.mxu0 0.0
        %5958 = vmatprep.subr.mxu0 0.0
        %5959 = vmatpush1.msra.mxu0 0.0
        %5960 = vmatprep.subr.mxu0 0.0
        %5961 = vmatpush1.msra.mxu0 0.0
        %5962 = vmatprep.subr.mxu0 0.0
        %5963 = vmatpush1.msra.mxu0 0.0
        %5964 = vmatprep.subr.mxu0 0.0
        %5965 = vmatpush1.msra.mxu0 0.0
        %5966 = vmatprep.subr.mxu0 0.0
        %5967 = vmatpush1.msra.mxu0 0.0
        %5968 = vmatprep.subr.mxu0 0.0
        %5969 = vmatpush1.msra.mxu0 0.0
        %5970 = vmatprep.subr.mxu0 0.0
        %5971 = vmatpush1.msra.mxu0 0.0
        %5972 = vmatprep.subr.mxu0 0.0
        %5973 = vmatpush1.msra.mxu0 0.0
        %5974 = vmatprep.subr.mxu0 0.0
        %5975 = vmatpush1.msra.mxu0 0.0
        %5976 = vmatprep.subr.mxu0 0.0
        %5977 = vmatpush1.msra.mxu0 0.0
        %5978 = vmatprep.subr.mxu0 0.0
        %5979 = vmatpush1.msra.mxu0 0.0
        %5980 = vmatprep.subr.mxu0 0.0
        %5981 = vmatpush1.msra.mxu0 0.0
        %5982 = vmatprep.subr.mxu0 0.0
        %5983 = vmatpush1.msra.mxu0 0.0
        %5984 = vmatprep.subr.mxu0 0.0
        %5985 = vmatpush1.msra.mxu0 0.0
        %5986 = vmatprep.subr.mxu0 0.0
        %5987 = vmatpush1.msra.mxu0 0.0
        %5988 = vmatprep.subr.mxu0 0.0
        %5989 = vmatpush1.msra.mxu0 0.0
        %5990 = vmatprep.subr.mxu0 0.0
        %5991 = vmatpush1.msra.mxu0 0.0
        %5992 = vmatprep.subr.mxu0 0.0
        %5993 = vmatpush1.msra.mxu0 0.0
        %5994 = vmatprep.subr.mxu0 0.0
        %5995 = vmatpush1.msra.mxu0 0.0
        %5996 = vmatprep.subr.mxu0 0.0
        %5997 = vmatpush1.msra.mxu0 0.0
        %5998 = vmatprep.mubr.f32.mxu0 0.0
        %5999 = vmatmul.mubr.f32.gmra.mrb[0].mxu0 %v5932
        %v6000 = vpop.f32.mrb[0].mxu0
        %v6001 = vadd.f32 0.0, %v6000
        %v6002 = vpop.f32.mrb[0].mxu0
        %6003 = vdwg.mxu0
        %v6004 = vadd.f32 %v5852, %v6001
        %v6005 = vld [vmem:[%s2] sm:$0xff]
        %6007 = vset.pattern.permute.xlu0 29
        %6008 = vperm.xlu0 %6007, %v6005
        %v6009 = vpop.permute.xlu0 %6008
        %v6011 = vadd.f32 %v6004, %v6009
        %v6012 = vmax.f32 %v6011, 0.0
        %6013 = vset.pattern.permute.xlu0 30
        %6014 = vperm.xlu0 %6013, %v6005
        %v6015 = vpop.permute.xlu0 %6014
        %v6017 = vmul.f32 %v6012, %v6015
        %6018 = vset.pattern.permute.xlu0 31
        %6019 = vperm.xlu0 %6018, %v6005
        %v6020 = vpop.permute.xlu0 %6019
        %v6022 = vadd.f32 %v6017, %v6020
        %6023 = vrot.lane.b32.xlu0 %v5549, 20
        %v6024 = vpop.permute.xlu0 %6023
        %v6025 = vsel %vm928, %v6024, 0
        %6027 = vmatprep.subr.mxu0 0.0
        %6028 = vmatpush1.msra.mxu0 %v6022
        %6029 = vmatprep.subr.mxu0 0.0
        %6030 = vmatpush1.msra.mxu0 0.0
        %6031 = vmatprep.subr.mxu0 0.0
        %6032 = vmatpush1.msra.mxu0 0.0
        %6033 = vmatprep.subr.mxu0 0.0
        %6034 = vmatpush1.msra.mxu0 0.0
        %6035 = vmatprep.subr.mxu0 0.0
        %6036 = vmatpush1.msra.mxu0 0.0
        %6037 = vmatprep.subr.mxu0 0.0
        %6038 = vmatpush1.msra.mxu0 0.0
        %6039 = vmatprep.subr.mxu0 0.0
        %6040 = vmatpush1.msra.mxu0 0.0
        %6041 = vmatprep.subr.mxu0 0.0
        %6042 = vmatpush1.msra.mxu0 0.0
        %6043 = vmatprep.subr.mxu0 0.0
        %6044 = vmatpush1.msra.mxu0 0.0
        %6045 = vmatprep.subr.mxu0 0.0
        %6046 = vmatpush1.msra.mxu0 0.0
        %6047 = vmatprep.subr.mxu0 0.0
        %6048 = vmatpush1.msra.mxu0 0.0
        %6049 = vmatprep.subr.mxu0 0.0
        %6050 = vmatpush1.msra.mxu0 0.0
        %6051 = vmatprep.subr.mxu0 0.0
        %6052 = vmatpush1.msra.mxu0 0.0
        %6053 = vmatprep.subr.mxu0 0.0
        %6054 = vmatpush1.msra.mxu0 0.0
        %6055 = vmatprep.subr.mxu0 0.0
        %6056 = vmatpush1.msra.mxu0 0.0
        %6057 = vmatprep.subr.mxu0 0.0
        %6058 = vmatpush1.msra.mxu0 0.0
        %6059 = vmatprep.subr.mxu0 0.0
        %6060 = vmatpush1.msra.mxu0 0.0
        %6061 = vmatprep.subr.mxu0 0.0
        %6062 = vmatpush1.msra.mxu0 0.0
        %6063 = vmatprep.subr.mxu0 0.0
        %6064 = vmatpush1.msra.mxu0 0.0
        %6065 = vmatprep.subr.mxu0 0.0
        %6066 = vmatpush1.msra.mxu0 0.0
        %6067 = vmatprep.subr.mxu0 0.0
        %6068 = vmatpush1.msra.mxu0 0.0
        %6069 = vmatprep.subr.mxu0 0.0
        %6070 = vmatpush1.msra.mxu0 0.0
        %6071 = vmatprep.subr.mxu0 0.0
        %6072 = vmatpush1.msra.mxu0 0.0
        %6073 = vmatprep.subr.mxu0 0.0
        %6074 = vmatpush1.msra.mxu0 0.0
        %6075 = vmatprep.subr.mxu0 0.0
        %6076 = vmatpush1.msra.mxu0 0.0
        %6077 = vmatprep.subr.mxu0 0.0
        %6078 = vmatpush1.msra.mxu0 0.0
        %6079 = vmatprep.subr.mxu0 0.0
        %6080 = vmatpush1.msra.mxu0 0.0
        %6081 = vmatprep.subr.mxu0 0.0
        %6082 = vmatpush1.msra.mxu0 0.0
        %6083 = vmatprep.subr.mxu0 0.0
        %6084 = vmatpush1.msra.mxu0 0.0
        %6085 = vmatprep.subr.mxu0 0.0
        %6086 = vmatpush1.msra.mxu0 0.0
        %6087 = vmatprep.subr.mxu0 0.0
        %6088 = vmatpush1.msra.mxu0 0.0
        %6089 = vmatprep.subr.mxu0 0.0
        %6090 = vmatpush1.msra.mxu0 0.0
        %6091 = vmatprep.mubr.f32.mxu0 0.0
        %6092 = vmatmul.mubr.f32.gmra.mrb[0].mxu0 %v6025
        %v6093 = vpop.f32.mrb[0].mxu0
        %v6094 = vadd.f32 0.0, %v6093
        %v6095 = vpop.f32.mrb[0].mxu0
        %6096 = vdwg.mxu0
        %6097 = vrot.lane.b32.xlu0 %v5549, 12
        %v6098 = vpop.permute.xlu0 %6097
        %v6099 = vsel %vm928, %v6098, 0
        %6101 = vmatprep.subr.mxu0 0.0
        %6102 = vmatpush1.msra.mxu0 %v6022
        %6103 = vmatprep.subr.mxu0 0.0
        %6104 = vmatpush1.msra.mxu0 0.0
        %6105 = vmatprep.subr.mxu0 0.0
        %6106 = vmatpush1.msra.mxu0 0.0
        %6107 = vmatprep.subr.mxu0 0.0
        %6108 = vmatpush1.msra.mxu0 0.0
        %6109 = vmatprep.subr.mxu0 0.0
        %6110 = vmatpush1.msra.mxu0 0.0
        %6111 = vmatprep.subr.mxu0 0.0
        %6112 = vmatpush1.msra.mxu0 0.0
        %6113 = vmatprep.subr.mxu0 0.0
        %6114 = vmatpush1.msra.mxu0 0.0
        %6115 = vmatprep.subr.mxu0 0.0
        %6116 = vmatpush1.msra.mxu0 0.0
        %6117 = vmatprep.subr.mxu0 0.0
        %6118 = vmatpush1.msra.mxu0 0.0
        %6119 = vmatprep.subr.mxu0 0.0
        %6120 = vmatpush1.msra.mxu0 0.0
        %6121 = vmatprep.subr.mxu0 0.0
        %6122 = vmatpush1.msra.mxu0 0.0
        %6123 = vmatprep.subr.mxu0 0.0
        %6124 = vmatpush1.msra.mxu0 0.0
        %6125 = vmatprep.subr.mxu0 0.0
        %6126 = vmatpush1.msra.mxu0 0.0
        %6127 = vmatprep.subr.mxu0 0.0
        %6128 = vmatpush1.msra.mxu0 0.0
        %6129 = vmatprep.subr.mxu0 0.0
        %6130 = vmatpush1.msra.mxu0 0.0
        %6131 = vmatprep.subr.mxu0 0.0
        %6132 = vmatpush1.msra.mxu0 0.0
        %6133 = vmatprep.subr.mxu0 0.0
        %6134 = vmatpush1.msra.mxu0 0.0
        %6135 = vmatprep.subr.mxu0 0.0
        %6136 = vmatpush1.msra.mxu0 0.0
        %6137 = vmatprep.subr.mxu0 0.0
        %6138 = vmatpush1.msra.mxu0 0.0
        %6139 = vmatprep.subr.mxu0 0.0
        %6140 = vmatpush1.msra.mxu0 0.0
        %6141 = vmatprep.subr.mxu0 0.0
        %6142 = vmatpush1.msra.mxu0 0.0
        %6143 = vmatprep.subr.mxu0 0.0
        %6144 = vmatpush1.msra.mxu0 0.0
        %6145 = vmatprep.subr.mxu0 0.0
        %6146 = vmatpush1.msra.mxu0 0.0
        %6147 = vmatprep.subr.mxu0 0.0
        %6148 = vmatpush1.msra.mxu0 0.0
        %6149 = vmatprep.subr.mxu0 0.0
        %6150 = vmatpush1.msra.mxu0 0.0
        %6151 = vmatprep.subr.mxu0 0.0
        %6152 = vmatpush1.msra.mxu0 0.0
        %6153 = vmatprep.subr.mxu0 0.0
        %6154 = vmatpush1.msra.mxu0 0.0
        %6155 = vmatprep.subr.mxu0 0.0
        %6156 = vmatpush1.msra.mxu0 0.0
        %6157 = vmatprep.subr.mxu0 0.0
        %6158 = vmatpush1.msra.mxu0 0.0
        %6159 = vmatprep.subr.mxu0 0.0
        %6160 = vmatpush1.msra.mxu0 0.0
        %6161 = vmatprep.subr.mxu0 0.0
        %6162 = vmatpush1.msra.mxu0 0.0
        %6163 = vmatprep.subr.mxu0 0.0
        %6164 = vmatpush1.msra.mxu0 0.0
        %6165 = vmatprep.mubr.f32.mxu0 0.0
        %6166 = vmatmul.mubr.f32.gmra.mrb[0].mxu0 %v6099
        %v6167 = vpop.f32.mrb[0].mxu0
        %v6168 = vadd.f32 0.0, %v6167
        %v6169 = vpop.f32.mrb[0].mxu0
        %6170 = vdwg.mxu0
        %v6172 = vsel %vm928, %v6168, 0
        %6174 = vmatprep.subr.mxu0 0.0
        %6175 = vmatpush1.msra.mxu0 %v4347
        %6176 = vmatprep.subr.mxu0 0.0
        %6177 = vmatpush1.msra.mxu0 0.0
        %6178 = vmatprep.subr.mxu0 0.0
        %6179 = vmatpush1.msra.mxu0 0.0
        %6180 = vmatprep.subr.mxu0 0.0
        %6181 = vmatpush1.msra.mxu0 0.0
        %6182 = vmatprep.subr.mxu0 0.0
        %6183 = vmatpush1.msra.mxu0 0.0
        %6184 = vmatprep.subr.mxu0 0.0
        %6185 = vmatpush1.msra.mxu0 0.0
        %6186 = vmatprep.subr.mxu0 0.0
        %6187 = vmatpush1.msra.mxu0 0.0
        %6188 = vmatprep.subr.mxu0 0.0
        %6189 = vmatpush1.msra.mxu0 0.0
        %6190 = vmatprep.subr.mxu0 0.0
        %6191 = vmatpush1.msra.mxu0 0.0
        %6192 = vmatprep.subr.mxu0 0.0
        %6193 = vmatpush1.msra.mxu0 0.0
        %6194 = vmatprep.subr.mxu0 0.0
        %6195 = vmatpush1.msra.mxu0 0.0
        %6196 = vmatprep.subr.mxu0 0.0
        %6197 = vmatpush1.msra.mxu0 0.0
        %6198 = vmatprep.subr.mxu0 0.0
        %6199 = vmatpush1.msra.mxu0 0.0
        %6200 = vmatprep.subr.mxu0 0.0
        %6201 = vmatpush1.msra.mxu0 0.0
        %6202 = vmatprep.subr.mxu0 0.0
        %6203 = vmatpush1.msra.mxu0 0.0
        %6204 = vmatprep.subr.mxu0 0.0
        %6205 = vmatpush1.msra.mxu0 0.0
        %6206 = vmatprep.subr.mxu0 0.0
        %6207 = vmatpush1.msra.mxu0 0.0
        %6208 = vmatprep.subr.mxu0 0.0
        %6209 = vmatpush1.msra.mxu0 0.0
        %6210 = vmatprep.subr.mxu0 0.0
        %6211 = vmatpush1.msra.mxu0 0.0
        %6212 = vmatprep.subr.mxu0 0.0
        %6213 = vmatpush1.msra.mxu0 0.0
        %6214 = vmatprep.subr.mxu0 0.0
        %6215 = vmatpush1.msra.mxu0 0.0
        %6216 = vmatprep.subr.mxu0 0.0
        %6217 = vmatpush1.msra.mxu0 0.0
        %6218 = vmatprep.subr.mxu0 0.0
        %6219 = vmatpush1.msra.mxu0 0.0
        %6220 = vmatprep.subr.mxu0 0.0
        %6221 = vmatpush1.msra.mxu0 0.0
        %6222 = vmatprep.subr.mxu0 0.0
        %6223 = vmatpush1.msra.mxu0 0.0
        %6224 = vmatprep.subr.mxu0 0.0
        %6225 = vmatpush1.msra.mxu0 0.0
        %6226 = vmatprep.subr.mxu0 0.0
        %6227 = vmatpush1.msra.mxu0 0.0
        %6228 = vmatprep.subr.mxu0 0.0
        %6229 = vmatpush1.msra.mxu0 0.0
        %6230 = vmatprep.subr.mxu0 0.0
        %6231 = vmatpush1.msra.mxu0 0.0
        %6232 = vmatprep.subr.mxu0 0.0
        %6233 = vmatpush1.msra.mxu0 0.0
        %6234 = vmatprep.subr.mxu0 0.0
        %6235 = vmatpush1.msra.mxu0 0.0
        %6236 = vmatprep.subr.mxu0 0.0
        %6237 = vmatpush1.msra.mxu0 0.0
        %6238 = vmatprep.mubr.f32.mxu0 0.0
        %6239 = vmatmul.mubr.f32.gmra.mrb[0].mxu0 %v6172
        %v6240 = vpop.f32.mrb[0].mxu0
        %v6241 = vadd.f32 0.0, %v6240
        %v6242 = vpop.f32.mrb[0].mxu0
        %6243 = vdwg.mxu0
        %v6245 = vsel %vm928, %v6094, 0
        %6247 = vmatprep.subr.mxu0 0.0
        %6248 = vmatpush1.msra.mxu0 %v4243
        %6249 = vmatprep.subr.mxu0 0.0
        %6250 = vmatpush1.msra.mxu0 0.0
        %6251 = vmatprep.subr.mxu0 0.0
        %6252 = vmatpush1.msra.mxu0 0.0
        %6253 = vmatprep.subr.mxu0 0.0
        %6254 = vmatpush1.msra.mxu0 0.0
        %6255 = vmatprep.subr.mxu0 0.0
        %6256 = vmatpush1.msra.mxu0 0.0
        %6257 = vmatprep.subr.mxu0 0.0
        %6258 = vmatpush1.msra.mxu0 0.0
        %6259 = vmatprep.subr.mxu0 0.0
        %6260 = vmatpush1.msra.mxu0 0.0
        %6261 = vmatprep.subr.mxu0 0.0
        %6262 = vmatpush1.msra.mxu0 0.0
        %6263 = vmatprep.subr.mxu0 0.0
        %6264 = vmatpush1.msra.mxu0 0.0
        %6265 = vmatprep.subr.mxu0 0.0
        %6266 = vmatpush1.msra.mxu0 0.0
        %6267 = vmatprep.subr.mxu0 0.0
        %6268 = vmatpush1.msra.mxu0 0.0
        %6269 = vmatprep.subr.mxu0 0.0
        %6270 = vmatpush1.msra.mxu0 0.0
        %6271 = vmatprep.subr.mxu0 0.0
        %6272 = vmatpush1.msra.mxu0 0.0
        %6273 = vmatprep.subr.mxu0 0.0
        %6274 = vmatpush1.msra.mxu0 0.0
        %6275 = vmatprep.subr.mxu0 0.0
        %6276 = vmatpush1.msra.mxu0 0.0
        %6277 = vmatprep.subr.mxu0 0.0
        %6278 = vmatpush1.msra.mxu0 0.0
        %6279 = vmatprep.subr.mxu0 0.0
        %6280 = vmatpush1.msra.mxu0 0.0
        %6281 = vmatprep.subr.mxu0 0.0
        %6282 = vmatpush1.msra.mxu0 0.0
        %6283 = vmatprep.subr.mxu0 0.0
        %6284 = vmatpush1.msra.mxu0 0.0
        %6285 = vmatprep.subr.mxu0 0.0
        %6286 = vmatpush1.msra.mxu0 0.0
        %6287 = vmatprep.subr.mxu0 0.0
        %6288 = vmatpush1.msra.mxu0 0.0
        %6289 = vmatprep.subr.mxu0 0.0
        %6290 = vmatpush1.msra.mxu0 0.0
        %6291 = vmatprep.subr.mxu0 0.0
        %6292 = vmatpush1.msra.mxu0 0.0
        %6293 = vmatprep.subr.mxu0 0.0
        %6294 = vmatpush1.msra.mxu0 0.0
        %6295 = vmatprep.subr.mxu0 0.0
        %6296 = vmatpush1.msra.mxu0 0.0
        %6297 = vmatprep.subr.mxu0 0.0
        %6298 = vmatpush1.msra.mxu0 0.0
        %6299 = vmatprep.subr.mxu0 0.0
        %6300 = vmatpush1.msra.mxu0 0.0
        %6301 = vmatprep.subr.mxu0 0.0
        %6302 = vmatpush1.msra.mxu0 0.0
        %6303 = vmatprep.subr.mxu0 0.0
        %6304 = vmatpush1.msra.mxu0 0.0
        %6305 = vmatprep.subr.mxu0 0.0
        %6306 = vmatpush1.msra.mxu0 0.0
        %6307 = vmatprep.subr.mxu0 0.0
        %6308 = vmatpush1.msra.mxu0 0.0
        %6309 = vmatprep.subr.mxu0 0.0
        %6310 = vmatpush1.msra.mxu0 0.0
        %6311 = vmatprep.mubr.f32.mxu0 0.0
        %6312 = vmatmul.mubr.f32.gmra.mrb[0].mxu0 %v6245
        %v6313 = vpop.f32.mrb[0].mxu0
        %v6314 = vadd.f32 %v6241, %v6313
        %v6315 = vpop.f32.mrb[0].mxu0
        %6316 = vdwg.mxu0
        %6317 = vset.pattern.permute.xlu0 32
        %6318 = vperm.xlu0 %6317, %v6005
        %v6319 = vpop.permute.xlu0 %6318
        %v6321 = vadd.f32 %v6314, %v6319
        %v6322 = vmax.f32 %v6321, 0.0
        %6323 = vset.pattern.permute.xlu0 33
        %6324 = vperm.xlu0 %6323, %v6005
        %v6325 = vpop.permute.xlu0 %6324
        %v6327 = vmul.f32 %v6322, %v6325
        %6328 = vset.pattern.permute.xlu0 34
        %6329 = vperm.xlu0 %6328, %v6005
        %v6330 = vpop.permute.xlu0 %6329
        %v6332 = vadd.f32 %v6327, %v6330
        %v6333 = vld [vmem:[#allocation2 + $0x18] sm:$0xf]
        %v6334 = vld [vmem:[#allocation2 + $0x20] sm:$0xf]
        %v6336 = vsel %vm309, %v6332, 0
        %6338 = vmatprep.subr.mxu0 0.0
        %6339 = vmatpush1.msra.mxu0 %v307
        %6340 = vmatprep.subr.mxu0 0.0
        %6341 = vmatpush1.msra.mxu0 %v308
        %6342 = vmatprep.subr.mxu0 0.0
        %6343 = vmatpush1.msra.mxu0 0.0
        %6344 = vmatprep.subr.mxu0 0.0
        %6345 = vmatpush1.msra.mxu0 0.0
        %6346 = vmatprep.subr.mxu0 0.0
        %6347 = vmatpush1.msra.mxu0 0.0
        %6348 = vmatprep.subr.mxu0 0.0
        %6349 = vmatpush1.msra.mxu0 0.0
        %6350 = vmatprep.subr.mxu0 0.0
        %6351 = vmatpush1.msra.mxu0 0.0
        %6352 = vmatprep.subr.mxu0 0.0
        %6353 = vmatpush1.msra.mxu0 0.0
        %6354 = vmatprep.subr.mxu0 0.0
        %6355 = vmatpush1.msra.mxu0 0.0
        %6356 = vmatprep.subr.mxu0 0.0
        %6357 = vmatpush1.msra.mxu0 0.0
        %6358 = vmatprep.subr.mxu0 0.0
        %6359 = vmatpush1.msra.mxu0 0.0
        %6360 = vmatprep.subr.mxu0 0.0
        %6361 = vmatpush1.msra.mxu0 0.0
        %6362 = vmatprep.subr.mxu0 0.0
        %6363 = vmatpush1.msra.mxu0 0.0
        %6364 = vmatprep.subr.mxu0 0.0
        %6365 = vmatpush1.msra.mxu0 0.0
        %6366 = vmatprep.subr.mxu0 0.0
        %6367 = vmatpush1.msra.mxu0 0.0
        %6368 = vmatprep.subr.mxu0 0.0
        %6369 = vmatpush1.msra.mxu0 0.0
        %6370 = vmatprep.subr.mxu0 0.0
        %6371 = vmatpush1.msra.mxu0 0.0
        %6372 = vmatprep.subr.mxu0 0.0
        %6373 = vmatpush1.msra.mxu0 0.0
        %6374 = vmatprep.subr.mxu0 0.0
        %6375 = vmatpush1.msra.mxu0 0.0
        %6376 = vmatprep.subr.mxu0 0.0
        %6377 = vmatpush1.msra.mxu0 0.0
        %6378 = vmatprep.subr.mxu0 0.0
        %6379 = vmatpush1.msra.mxu0 0.0
        %6380 = vmatprep.subr.mxu0 0.0
        %6381 = vmatpush1.msra.mxu0 0.0
        %6382 = vmatprep.subr.mxu0 0.0
        %6383 = vmatpush1.msra.mxu0 0.0
        %6384 = vmatprep.subr.mxu0 0.0
        %6385 = vmatpush1.msra.mxu0 0.0
        %6386 = vmatprep.subr.mxu0 0.0
        %6387 = vmatpush1.msra.mxu0 0.0
        %6388 = vmatprep.subr.mxu0 0.0
        %6389 = vmatpush1.msra.mxu0 0.0
        %6390 = vmatprep.subr.mxu0 0.0
        %6391 = vmatpush1.msra.mxu0 0.0
        %6392 = vmatprep.subr.mxu0 0.0
        %6393 = vmatpush1.msra.mxu0 0.0
        %6394 = vmatprep.subr.mxu0 0.0
        %6395 = vmatpush1.msra.mxu0 0.0
        %6396 = vmatprep.subr.mxu0 0.0
        %6397 = vmatpush1.msra.mxu0 0.0
        %6398 = vmatprep.subr.mxu0 0.0
        %6399 = vmatpush1.msra.mxu0 0.0
        %6400 = vmatprep.subr.mxu0 0.0
        %6401 = vmatpush1.msra.mxu0 0.0
        %6402 = vmatprep.mubr.f32.mxu0 0.0
        %6403 = vmatmul.mubr.f32.gmra.mrb[0].mxu0 %v6336
        %v6404 = vpop.f32.mrb[0].mxu0
        %v6405 = vadd.f32 0.0, %v6404
        %v6406 = vpop.f32.mrb[0].mxu0
        %6407 = vdwg.mxu0
        %6408 = vmatprep.subr.mxu0 0.0
        %6409 = vmatpush1.msra.mxu0 %v385
        %6410 = vmatprep.subr.mxu0 0.0
        %6411 = vmatpush1.msra.mxu0 %v386
        %6412 = vmatprep.subr.mxu0 0.0
        %6413 = vmatpush1.msra.mxu0 0.0
        %6414 = vmatprep.subr.mxu0 0.0
        %6415 = vmatpush1.msra.mxu0 0.0
        %6416 = vmatprep.subr.mxu0 0.0
        %6417 = vmatpush1.msra.mxu0 0.0
        %6418 = vmatprep.subr.mxu0 0.0
        %6419 = vmatpush1.msra.mxu0 0.0
        %6420 = vmatprep.subr.mxu0 0.0
        %6421 = vmatpush1.msra.mxu0 0.0
        %6422 = vmatprep.subr.mxu0 0.0
        %6423 = vmatpush1.msra.mxu0 0.0
        %6424 = vmatprep.subr.mxu0 0.0
        %6425 = vmatpush1.msra.mxu0 0.0
        %6426 = vmatprep.subr.mxu0 0.0
        %6427 = vmatpush1.msra.mxu0 0.0
        %6428 = vmatprep.subr.mxu0 0.0
        %6429 = vmatpush1.msra.mxu0 0.0
        %6430 = vmatprep.subr.mxu0 0.0
        %6431 = vmatpush1.msra.mxu0 0.0
        %6432 = vmatprep.subr.mxu0 0.0
        %6433 = vmatpush1.msra.mxu0 0.0
        %6434 = vmatprep.subr.mxu0 0.0
        %6435 = vmatpush1.msra.mxu0 0.0
        %6436 = vmatprep.subr.mxu0 0.0
        %6437 = vmatpush1.msra.mxu0 0.0
        %6438 = vmatprep.subr.mxu0 0.0
        %6439 = vmatpush1.msra.mxu0 0.0
        %6440 = vmatprep.subr.mxu0 0.0
        %6441 = vmatpush1.msra.mxu0 0.0
        %6442 = vmatprep.subr.mxu0 0.0
        %6443 = vmatpush1.msra.mxu0 0.0
        %6444 = vmatprep.subr.mxu0 0.0
        %6445 = vmatpush1.msra.mxu0 0.0
        %6446 = vmatprep.subr.mxu0 0.0
        %6447 = vmatpush1.msra.mxu0 0.0
        %6448 = vmatprep.subr.mxu0 0.0
        %6449 = vmatpush1.msra.mxu0 0.0
        %6450 = vmatprep.subr.mxu0 0.0
        %6451 = vmatpush1.msra.mxu0 0.0
        %6452 = vmatprep.subr.mxu0 0.0
        %6453 = vmatpush1.msra.mxu0 0.0
        %6454 = vmatprep.subr.mxu0 0.0
        %6455 = vmatpush1.msra.mxu0 0.0
        %6456 = vmatprep.subr.mxu0 0.0
        %6457 = vmatpush1.msra.mxu0 0.0
        %6458 = vmatprep.subr.mxu0 0.0
        %6459 = vmatpush1.msra.mxu0 0.0
        %6460 = vmatprep.subr.mxu0 0.0
        %6461 = vmatpush1.msra.mxu0 0.0
        %6462 = vmatprep.subr.mxu0 0.0
        %6463 = vmatpush1.msra.mxu0 0.0
        %6464 = vmatprep.subr.mxu0 0.0
        %6465 = vmatpush1.msra.mxu0 0.0
        %6466 = vmatprep.subr.mxu0 0.0
        %6467 = vmatpush1.msra.mxu0 0.0
        %6468 = vmatprep.subr.mxu0 0.0
        %6469 = vmatpush1.msra.mxu0 0.0
        %6470 = vmatprep.subr.mxu0 0.0
        %6471 = vmatpush1.msra.mxu0 0.0
        %6472 = vmatprep.mubr.f32.mxu0 0.0
        %6473 = vmatmul.mubr.f32.gmra.mrb[0].mxu0 %v6336
        %v6474 = vpop.f32.mrb[0].mxu0
        %v6475 = vadd.f32 0.0, %v6474
        %v6476 = vpop.f32.mrb[0].mxu0
        %6477 = vdwg.mxu0
        %6479 = vrot.lane.b32.xlu0 %v6334, 124
        %v6480 = vpop.permute.xlu0 %6479
        %v6481 = vsel %vm928, %v6480, 0
        %6483 = vmatprep.subr.mxu0 0.0
        %6484 = vmatpush1.msra.mxu0 %v6475
        %6485 = vmatprep.subr.mxu0 0.0
        %6486 = vmatpush1.msra.mxu0 0.0
        %6487 = vmatprep.subr.mxu0 0.0
        %6488 = vmatpush1.msra.mxu0 0.0
        %6489 = vmatprep.subr.mxu0 0.0
        %6490 = vmatpush1.msra.mxu0 0.0
        %6491 = vmatprep.subr.mxu0 0.0
        %6492 = vmatpush1.msra.mxu0 0.0
        %6493 = vmatprep.subr.mxu0 0.0
        %6494 = vmatpush1.msra.mxu0 0.0
        %6495 = vmatprep.subr.mxu0 0.0
        %6496 = vmatpush1.msra.mxu0 0.0
        %6497 = vmatprep.subr.mxu0 0.0
        %6498 = vmatpush1.msra.mxu0 0.0
        %6499 = vmatprep.subr.mxu0 0.0
        %6500 = vmatpush1.msra.mxu0 0.0
        %6501 = vmatprep.subr.mxu0 0.0
        %6502 = vmatpush1.msra.mxu0 0.0
        %6503 = vmatprep.subr.mxu0 0.0
        %6504 = vmatpush1.msra.mxu0 0.0
        %6505 = vmatprep.subr.mxu0 0.0
        %6506 = vmatpush1.msra.mxu0 0.0
        %6507 = vmatprep.subr.mxu0 0.0
        %6508 = vmatpush1.msra.mxu0 0.0
        %6509 = vmatprep.subr.mxu0 0.0
        %6510 = vmatpush1.msra.mxu0 0.0
        %6511 = vmatprep.subr.mxu0 0.0
        %6512 = vmatpush1.msra.mxu0 0.0
        %6513 = vmatprep.subr.mxu0 0.0
        %6514 = vmatpush1.msra.mxu0 0.0
        %6515 = vmatprep.subr.mxu0 0.0
        %6516 = vmatpush1.msra.mxu0 0.0
        %6517 = vmatprep.subr.mxu0 0.0
        %6518 = vmatpush1.msra.mxu0 0.0
        %6519 = vmatprep.subr.mxu0 0.0
        %6520 = vmatpush1.msra.mxu0 0.0
        %6521 = vmatprep.subr.mxu0 0.0
        %6522 = vmatpush1.msra.mxu0 0.0
        %6523 = vmatprep.subr.mxu0 0.0
        %6524 = vmatpush1.msra.mxu0 0.0
        %6525 = vmatprep.subr.mxu0 0.0
        %6526 = vmatpush1.msra.mxu0 0.0
        %6527 = vmatprep.subr.mxu0 0.0
        %6528 = vmatpush1.msra.mxu0 0.0
        %6529 = vmatprep.subr.mxu0 0.0
        %6530 = vmatpush1.msra.mxu0 0.0
        %6531 = vmatprep.subr.mxu0 0.0
        %6532 = vmatpush1.msra.mxu0 0.0
        %6533 = vmatprep.subr.mxu0 0.0
        %6534 = vmatpush1.msra.mxu0 0.0
        %6535 = vmatprep.subr.mxu0 0.0
        %6536 = vmatpush1.msra.mxu0 0.0
        %6537 = vmatprep.subr.mxu0 0.0
        %6538 = vmatpush1.msra.mxu0 0.0
        %6539 = vmatprep.subr.mxu0 0.0
        %6540 = vmatpush1.msra.mxu0 0.0
        %6541 = vmatprep.subr.mxu0 0.0
        %6542 = vmatpush1.msra.mxu0 0.0
        %6543 = vmatprep.subr.mxu0 0.0
        %6544 = vmatpush1.msra.mxu0 0.0
        %6545 = vmatprep.subr.mxu0 0.0
        %6546 = vmatpush1.msra.mxu0 0.0
        %6547 = vmatprep.mubr.f32.mxu0 0.0
        %6548 = vmatmul.mubr.f32.gmra.mrb[0].mxu0 %v6481
        %v6549 = vpop.f32.mrb[0].mxu0
        %v6550 = vadd.f32 0.0, %v6549
        %v6551 = vpop.f32.mrb[0].mxu0
        %6552 = vdwg.mxu0
        %6554 = vrot.lane.b32.xlu0 %v6333, 4
        %v6555 = vpop.permute.xlu0 %6554
        %6556 = vrot.lane.b32.xlu0 %v6334, 4
        %v6557 = vpop.permute.xlu0 %6556
        %v6558 = vsel %vm460, %v6555, %v6557
        %v6559 = vsel %vm928, %v6558, 0
        %6561 = vmatprep.subr.mxu0 0.0
        %6562 = vmatpush1.msra.mxu0 %v6405
        %6563 = vmatprep.subr.mxu0 0.0
        %6564 = vmatpush1.msra.mxu0 0.0
        %6565 = vmatprep.subr.mxu0 0.0
        %6566 = vmatpush1.msra.mxu0 0.0
        %6567 = vmatprep.subr.mxu0 0.0
        %6568 = vmatpush1.msra.mxu0 0.0
        %6569 = vmatprep.subr.mxu0 0.0
        %6570 = vmatpush1.msra.mxu0 0.0
        %6571 = vmatprep.subr.mxu0 0.0
        %6572 = vmatpush1.msra.mxu0 0.0
        %6573 = vmatprep.subr.mxu0 0.0
        %6574 = vmatpush1.msra.mxu0 0.0
        %6575 = vmatprep.subr.mxu0 0.0
        %6576 = vmatpush1.msra.mxu0 0.0
        %6577 = vmatprep.subr.mxu0 0.0
        %6578 = vmatpush1.msra.mxu0 0.0
        %6579 = vmatprep.subr.mxu0 0.0
        %6580 = vmatpush1.msra.mxu0 0.0
        %6581 = vmatprep.subr.mxu0 0.0
        %6582 = vmatpush1.msra.mxu0 0.0
        %6583 = vmatprep.subr.mxu0 0.0
        %6584 = vmatpush1.msra.mxu0 0.0
        %6585 = vmatprep.subr.mxu0 0.0
        %6586 = vmatpush1.msra.mxu0 0.0
        %6587 = vmatprep.subr.mxu0 0.0
        %6588 = vmatpush1.msra.mxu0 0.0
        %6589 = vmatprep.subr.mxu0 0.0
        %6590 = vmatpush1.msra.mxu0 0.0
        %6591 = vmatprep.subr.mxu0 0.0
        %6592 = vmatpush1.msra.mxu0 0.0
        %6593 = vmatprep.subr.mxu0 0.0
        %6594 = vmatpush1.msra.mxu0 0.0
        %6595 = vmatprep.subr.mxu0 0.0
        %6596 = vmatpush1.msra.mxu0 0.0
        %6597 = vmatprep.subr.mxu0 0.0
        %6598 = vmatpush1.msra.mxu0 0.0
        %6599 = vmatprep.subr.mxu0 0.0
        %6600 = vmatpush1.msra.mxu0 0.0
        %6601 = vmatprep.subr.mxu0 0.0
        %6602 = vmatpush1.msra.mxu0 0.0
        %6603 = vmatprep.subr.mxu0 0.0
        %6604 = vmatpush1.msra.mxu0 0.0
        %6605 = vmatprep.subr.mxu0 0.0
        %6606 = vmatpush1.msra.mxu0 0.0
        %6607 = vmatprep.subr.mxu0 0.0
        %6608 = vmatpush1.msra.mxu0 0.0
        %6609 = vmatprep.subr.mxu0 0.0
        %6610 = vmatpush1.msra.mxu0 0.0
        %6611 = vmatprep.subr.mxu0 0.0
        %6612 = vmatpush1.msra.mxu0 0.0
        %6613 = vmatprep.subr.mxu0 0.0
        %6614 = vmatpush1.msra.mxu0 0.0
        %6615 = vmatprep.subr.mxu0 0.0
        %6616 = vmatpush1.msra.mxu0 0.0
        %6617 = vmatprep.subr.mxu0 0.0
        %6618 = vmatpush1.msra.mxu0 0.0
        %6619 = vmatprep.subr.mxu0 0.0
        %6620 = vmatpush1.msra.mxu0 0.0
        %6621 = vmatprep.subr.mxu0 0.0
        %6622 = vmatpush1.msra.mxu0 0.0
        %6623 = vmatprep.subr.mxu0 0.0
        %6624 = vmatpush1.msra.mxu0 0.0
        %6625 = vmatprep.mubr.f32.mxu0 0.0
        %6626 = vmatmul.mubr.f32.gmra.mrb[0].mxu0 %v6559
        %v6627 = vpop.f32.mrb[0].mxu0
        %v6628 = vadd.f32 %v6550, %v6627
        %v6629 = vpop.f32.mrb[0].mxu0
        %6630 = vdwg.mxu0
        %6631 = vmatprep.subr.mxu0 0.0
        %6632 = vmatpush1.msra.mxu0 %v615
        %6633 = vmatprep.subr.mxu0 0.0
        %6634 = vmatpush1.msra.mxu0 %v616
        %6635 = vmatprep.subr.mxu0 0.0
        %6636 = vmatpush1.msra.mxu0 0.0
        %6637 = vmatprep.subr.mxu0 0.0
        %6638 = vmatpush1.msra.mxu0 0.0
        %6639 = vmatprep.subr.mxu0 0.0
        %6640 = vmatpush1.msra.mxu0 0.0
        %6641 = vmatprep.subr.mxu0 0.0
        %6642 = vmatpush1.msra.mxu0 0.0
        %6643 = vmatprep.subr.mxu0 0.0
        %6644 = vmatpush1.msra.mxu0 0.0
        %6645 = vmatprep.subr.mxu0 0.0
        %6646 = vmatpush1.msra.mxu0 0.0
        %6647 = vmatprep.subr.mxu0 0.0
        %6648 = vmatpush1.msra.mxu0 0.0
        %6649 = vmatprep.subr.mxu0 0.0
        %6650 = vmatpush1.msra.mxu0 0.0
        %6651 = vmatprep.subr.mxu0 0.0
        %6652 = vmatpush1.msra.mxu0 0.0
        %6653 = vmatprep.subr.mxu0 0.0
        %6654 = vmatpush1.msra.mxu0 0.0
        %6655 = vmatprep.subr.mxu0 0.0
        %6656 = vmatpush1.msra.mxu0 0.0
        %6657 = vmatprep.subr.mxu0 0.0
        %6658 = vmatpush1.msra.mxu0 0.0
        %6659 = vmatprep.subr.mxu0 0.0
        %6660 = vmatpush1.msra.mxu0 0.0
        %6661 = vmatprep.subr.mxu0 0.0
        %6662 = vmatpush1.msra.mxu0 0.0
        %6663 = vmatprep.subr.mxu0 0.0
        %6664 = vmatpush1.msra.mxu0 0.0
        %6665 = vmatprep.subr.mxu0 0.0
        %6666 = vmatpush1.msra.mxu0 0.0
        %6667 = vmatprep.subr.mxu0 0.0
        %6668 = vmatpush1.msra.mxu0 0.0
        %6669 = vmatprep.subr.mxu0 0.0
        %6670 = vmatpush1.msra.mxu0 0.0
        %6671 = vmatprep.subr.mxu0 0.0
        %6672 = vmatpush1.msra.mxu0 0.0
        %6673 = vmatprep.subr.mxu0 0.0
        %6674 = vmatpush1.msra.mxu0 0.0
        %6675 = vmatprep.subr.mxu0 0.0
        %6676 = vmatpush1.msra.mxu0 0.0
        %6677 = vmatprep.subr.mxu0 0.0
        %6678 = vmatpush1.msra.mxu0 0.0
        %6679 = vmatprep.subr.mxu0 0.0
        %6680 = vmatpush1.msra.mxu0 0.0
        %6681 = vmatprep.subr.mxu0 0.0
        %6682 = vmatpush1.msra.mxu0 0.0
        %6683 = vmatprep.subr.mxu0 0.0
        %6684 = vmatpush1.msra.mxu0 0.0
        %6685 = vmatprep.subr.mxu0 0.0
        %6686 = vmatpush1.msra.mxu0 0.0
        %6687 = vmatprep.subr.mxu0 0.0
        %6688 = vmatpush1.msra.mxu0 0.0
        %6689 = vmatprep.subr.mxu0 0.0
        %6690 = vmatpush1.msra.mxu0 0.0
        %6691 = vmatprep.subr.mxu0 0.0
        %6692 = vmatpush1.msra.mxu0 0.0
        %6693 = vmatprep.subr.mxu0 0.0
        %6694 = vmatpush1.msra.mxu0 0.0
        %6695 = vmatprep.mubr.f32.mxu0 0.0
        %6696 = vmatmul.mubr.f32.gmra.mrb[0].mxu0 %v6336
        %v6697 = vpop.f32.mrb[0].mxu0
        %v6698 = vadd.f32 0.0, %v6697
        %v6699 = vpop.f32.mrb[0].mxu0
        %6700 = vdwg.mxu0
        %6701 = vrot.lane.b32.xlu0 %v6334, 116
        %v6702 = vpop.permute.xlu0 %6701
        %v6703 = vsel %vm928, %v6702, 0
        %6705 = vmatprep.subr.mxu0 0.0
        %6706 = vmatpush1.msra.mxu0 %v6698
        %6707 = vmatprep.subr.mxu0 0.0
        %6708 = vmatpush1.msra.mxu0 0.0
        %6709 = vmatprep.subr.mxu0 0.0
        %6710 = vmatpush1.msra.mxu0 0.0
        %6711 = vmatprep.subr.mxu0 0.0
        %6712 = vmatpush1.msra.mxu0 0.0
        %6713 = vmatprep.subr.mxu0 0.0
        %6714 = vmatpush1.msra.mxu0 0.0
        %6715 = vmatprep.subr.mxu0 0.0
        %6716 = vmatpush1.msra.mxu0 0.0
        %6717 = vmatprep.subr.mxu0 0.0
        %6718 = vmatpush1.msra.mxu0 0.0
        %6719 = vmatprep.subr.mxu0 0.0
        %6720 = vmatpush1.msra.mxu0 0.0
        %6721 = vmatprep.subr.mxu0 0.0
        %6722 = vmatpush1.msra.mxu0 0.0
        %6723 = vmatprep.subr.mxu0 0.0
        %6724 = vmatpush1.msra.mxu0 0.0
        %6725 = vmatprep.subr.mxu0 0.0
        %6726 = vmatpush1.msra.mxu0 0.0
        %6727 = vmatprep.subr.mxu0 0.0
        %6728 = vmatpush1.msra.mxu0 0.0
        %6729 = vmatprep.subr.mxu0 0.0
        %6730 = vmatpush1.msra.mxu0 0.0
        %6731 = vmatprep.subr.mxu0 0.0
        %6732 = vmatpush1.msra.mxu0 0.0
        %6733 = vmatprep.subr.mxu0 0.0
        %6734 = vmatpush1.msra.mxu0 0.0
        %6735 = vmatprep.subr.mxu0 0.0
        %6736 = vmatpush1.msra.mxu0 0.0
        %6737 = vmatprep.subr.mxu0 0.0
        %6738 = vmatpush1.msra.mxu0 0.0
        %6739 = vmatprep.subr.mxu0 0.0
        %6740 = vmatpush1.msra.mxu0 0.0
        %6741 = vmatprep.subr.mxu0 0.0
        %6742 = vmatpush1.msra.mxu0 0.0
        %6743 = vmatprep.subr.mxu0 0.0
        %6744 = vmatpush1.msra.mxu0 0.0
        %6745 = vmatprep.subr.mxu0 0.0
        %6746 = vmatpush1.msra.mxu0 0.0
        %6747 = vmatprep.subr.mxu0 0.0
        %6748 = vmatpush1.msra.mxu0 0.0
        %6749 = vmatprep.subr.mxu0 0.0
        %6750 = vmatpush1.msra.mxu0 0.0
        %6751 = vmatprep.subr.mxu0 0.0
        %6752 = vmatpush1.msra.mxu0 0.0
        %6753 = vmatprep.subr.mxu0 0.0
        %6754 = vmatpush1.msra.mxu0 0.0
        %6755 = vmatprep.subr.mxu0 0.0
        %6756 = vmatpush1.msra.mxu0 0.0
        %6757 = vmatprep.subr.mxu0 0.0
        %6758 = vmatpush1.msra.mxu0 0.0
        %6759 = vmatprep.subr.mxu0 0.0
        %6760 = vmatpush1.msra.mxu0 0.0
        %6761 = vmatprep.subr.mxu0 0.0
        %6762 = vmatpush1.msra.mxu0 0.0
        %6763 = vmatprep.subr.mxu0 0.0
        %6764 = vmatpush1.msra.mxu0 0.0
        %6765 = vmatprep.subr.mxu0 0.0
        %6766 = vmatpush1.msra.mxu0 0.0
        %6767 = vmatprep.subr.mxu0 0.0
        %6768 = vmatpush1.msra.mxu0 0.0
        %6769 = vmatprep.mubr.f32.mxu0 0.0
        %6770 = vmatmul.mubr.f32.gmra.mrb[0].mxu0 %v6703
        %v6771 = vpop.f32.mrb[0].mxu0
        %v6772 = vadd.f32 0.0, %v6771
        %v6773 = vpop.f32.mrb[0].mxu0
        %6774 = vdwg.mxu0
        %v6775 = vadd.f32 %v6628, %v6772
        %v6776 = vld [vmem:[%s2] sm:$0xf]
        %6778 = vset.pattern.permute.xlu0 35
        %6779 = vperm.xlu0 %6778, %v6776
        %v6780 = vpop.permute.xlu0 %6779
        %v6782 = vadd.f32 %v6775, %v6780
        %v6783 = vmax.f32 %v6782, 0.0
        %v6784 = vand.u32 2147483647, %v6782
        %v6785 = vsub.f32 0.0, %v6784
        %v6786 = vmul.f32 %v6785, 1.442695
        %v6787 = vpow.pop %v6786
        %v6788 = vadd.f32 %v6787, 1.0
        %v6789 = vlog2.pop %v6788
        %v6790 = vmul.f32 %v6789, 0.6931472
        %v6791 = vadd.f32 %v6783, %v6790
        %vm6792 = vcmask 125952
        %6793 = vst.msk [vmem:[%s296] sm:$0xf] %vm6792, %v6791
        %s6794 = sand.u32 %s98, 1
        %s6795 = scalar_lea.sflag [#allocation4], %s6794
        %s6796 = sand.u32 %s98, 1
        %s6797 = smul.addr %s6796, 8
        %s6798 = scalar_lea.vmem [#allocation5], %s6797
        %p6799 = scmp.lt.s32.totalorder %s22, 1
        %s6800 = scalar_select %p6799, %s22, 1
        %s6801 = smul.addr %s6800, 2
        %s6802 = smul.addr %s6801, 8
        %s6803 = scalar_lea.vmem %s4, %s6802
        %p6804 = scmp.lt.s32.totalorder %s22, 1
        %s6805 = scalar_select %p6804, %s22, 1
        %s6806 = smul.addr %s6805, 4
        %s6807 = smul.addr %s6806, 8
        %s6808 = scalar_lea.vmem %s5, %s6807
        %p6809 = scmp.lt.s32.totalorder %s22, 1
        %s6810 = scalar_select %p6809, %s22, 1
        %s6811 = smul.addr %s6810, 4
        %s6812 = scalar_lea.vmem %s6, %s6811
        // Predicated region
        $region37: #{forward.1} parent=31 // pred_check
          %p6813 = pneg %p108
        $region38: #{forward.1} parent=31 // pred_check_branch
          %6815 = sbr.rel (%p6813) target = $region40
        $region39: #{forward.1} parent=31 // pred_region
          %s6817 = ssub.s32 128, 128
          %6818 = vsyncadd %s6795, %s6817
          %s6819 = smul.addr %s22, 128
          %s6820 = scalar_lea.hbm %s3, %s6819
          %s6822 = sshll.u32 %s6798, 4
          %s6823 = int_to_ptr.vmem [resolvable:$true] %s6822
          %6825 = dma.vmem_to_hbm [thread:$0]  %s6823, 128, %s6820, %s6795
        $region40: #{forward.1} parent=31 // pred_fallthru
          _
        // Predicated region
        $region41: #{forward.1} parent=31 // pred_check
          %p6826 = pneg %p134
        $region42: #{forward.1} parent=31 // pred_check_branch
          %6828 = sbr.rel (%p6826) target = $region44
        $region43: #{forward.1} parent=31 // pred_region
          _
        $region44: #{forward.1} parent=31 // pred_fallthru
          _
        // Predicated region
        $region45: #{forward.1} parent=31 // pred_check
          %p6829 = pneg %p160
        $region46: #{forward.1} parent=31 // pred_check_branch
          %6831 = sbr.rel (%p6829) target = $region48
        $region47: #{forward.1} parent=31 // pred_region
          _
        $region48: #{forward.1} parent=31 // pred_fallthru
          _
        // Predicated region
        $region49: #{forward.1} parent=31 // pred_check
          %p6832 = pneg %p186
        $region50: #{forward.1} parent=31 // pred_check_branch
          %6834 = sbr.rel (%p6832) target = $region52
        $region51: #{forward.1} parent=31 // pred_region
          _
        $region52: #{forward.1} parent=31 // pred_fallthru
          _
      $region32: #{forward.1} parent=5 // pred_fallthru
        _
      %p6835 = scmp.le.s32.totalorder 2, %s17
      // Predicated region
      $region53: #{forward.1} parent=5 // pred_check
        %p6836 = pneg %p6835
      $region54: #{forward.1} parent=5 // pred_check_branch
        %6838 = sbr.rel (%p6836) target = $region56
      $region55: #{forward.1} parent=5 // pred_region
        %s6839 = ssub.s32 %s17, 2
        // Predicated region
        $region57: #{forward.1} parent=55 // pred_check
          %p6840 = pneg %p114
        $region58: #{forward.1} parent=55 // pred_check_branch
          %6842 = sbr.rel (%p6840) target = $region60
        $region59: #{forward.1} parent=55 // pred_region
          %s6843 = sand.u32 %s99, 1
          %s6844 = scalar_lea.sflag [#allocation4], %s6843
          %s6845 = sand.u32 %s99, 1
          %s6846 = smul.addr %s6845, 8
          %s6847 = scalar_lea.vmem [#allocation5], %s6846
          %6848 = dma.done %s6844, 128
        $region60: #{forward.1} parent=55 // pred_fallthru
          _
        // Predicated region
        $region61: #{forward.1} parent=55 // pred_check
          %p6849 = pneg %p140
        $region62: #{forward.1} parent=55 // pred_check_branch
          %6851 = sbr.rel (%p6849) target = $region64
        $region63: #{forward.1} parent=55 // pred_region
          %p6852 = scmp.lt.s32.totalorder %s23, 1
          %s6853 = scalar_select %p6852, %s23, 1
          %s6854 = smul.addr %s6853, 2
          %s6855 = smul.addr %s6854, 8
          %s6856 = scalar_lea.vmem %s4, %s6855
        $region64: #{forward.1} parent=55 // pred_fallthru
          _
        // Predicated region
        $region65: #{forward.1} parent=55 // pred_check
          %p6857 = pneg %p166
        $region66: #{forward.1} parent=55 // pred_check_branch
          %6859 = sbr.rel (%p6857) target = $region68
        $region67: #{forward.1} parent=55 // pred_region
          %p6860 = scmp.lt.s32.totalorder %s23, 1
          %s6861 = scalar_select %p6860, %s23, 1
          %s6862 = smul.addr %s6861, 4
          %s6863 = smul.addr %s6862, 8
          %s6864 = scalar_lea.vmem %s5, %s6863
        $region68: #{forward.1} parent=55 // pred_fallthru
          _
        // Predicated region
        $region69: #{forward.1} parent=55 // pred_check
          %p6865 = pneg %p192
        $region70: #{forward.1} parent=55 // pred_check_branch
          %6867 = sbr.rel (%p6865) target = $region72
        $region71: #{forward.1} parent=55 // pred_region
          %p6868 = scmp.lt.s32.totalorder %s23, 1
          %s6869 = scalar_select %p6868, %s23, 1
          %s6870 = smul.addr %s6869, 4
          %s6871 = scalar_lea.vmem %s6, %s6870
        $region72: #{forward.1} parent=55 // pred_fallthru
          _
      $region56: #{forward.1} parent=5 // pred_fallthru
        _
    $region6: #{forward.1} parent=1 // loop_footer
      %s21 = sadd.s32 1, %s17
    $region7: #{forward.1} parent=1 // loop_footer_branch
      %16 = sbr.rel target = $region3
    $region8: #{forward.1} parent=1 // loop_exit
      _
    %6872 = vsyncpa [#allocation3], 1
    %s6873 = scalar_lea.sflag [#allocation3], 1
    %6874 = vsyncpa %s6873, 1
    %6875 = vsyncpa [#allocation4], 1
    %s6876 = scalar_lea.sflag [#allocation4], 1
    %6877 = vsyncpa %s6876, 1

</llo_original>
